<compile_context>
chip_gen: v7x
topology: tpu7x:2x2x1
jax: 0.10.0
libtpu: 0.0.40
codegen_flags: <defaults>
</compile_context>

<pallas_src>
import functools

import jax
import jax.numpy as jnp
import numpy as np
from jax import lax
from jax.experimental import pallas as pl
from jax.experimental.pallas import tpu as pltpu


# ----------------------------------------------------------------------------
# Pallas kernels
# ----------------------------------------------------------------------------

def _conv_pool_kernel(p_ref, w_ref, b_ref, o_ref):
    """Fused conv(5x5, pad=2) + bias + ReLU + 2x2 max-pool for one batch elem.

    p_ref: (1, 4, P, K)  im2col patches, grouped by pool-window position
                          (P = #pooled pixels, K = 25 * C_in)
    w_ref: (K, C_out)     conv weight, (kh,kw,cin)-major
    b_ref: (1, C_out)     conv bias
    o_ref: (1, P, C_out)  pooled output, pixel order (ph*W_pooled + pw)
    """
    w = w_ref[...]
    b = b_ref[...]
    acc = None
    for k in range(4):                                    # 2x2 pool window
        y = jnp.dot(p_ref[0, k], w, preferred_element_type=jnp.float32) + b
        y = jnp.maximum(y, 0.0)                           # ReLU (commutes with max)
        acc = y if acc is None else jnp.maximum(acc, y)   # max-pool over leading dim
    o_ref[0] = acc.astype(o_ref.dtype)


def _gelu_tanh(x):
    c = 0.7978845608028654  # sqrt(2/pi)
    return 0.5 * x * (1.0 + jnp.tanh(c * (x + 0.044715 * x * x * x)))


def _head_kernel(f1_ref, f2_ref, w1_ref, b1_ref, w2_ref, b2_ref,
                 a1_ref, a2_ref, b3_ref, o_ref):
    """FC head for both digits + fused adder layer.

    f*_ref: (B, 3136)   flattened conv features, (h*7+w)*64 + c order
    w1_ref: (3136, 256) fc1 weight (permuted to feature order), b1_ref: (1, 256)
    w2_ref: (256, 10)   digit linear weight (transposed),       b2_ref: (1, 10)
    a1/a2 : (10, 19)    exact decomposition of Linear(100, 19) over the outer sum
    b3_ref: (1, 19)     add-layer bias
    o_ref : (B, 19)
    """
    w1 = w1_ref[...]
    b1 = b1_ref[...]
    w2 = w2_ref[...]
    b2 = b2_ref[...]

    def digit_logits(f):
        h = jnp.maximum(jnp.dot(f, w1, preferred_element_type=jnp.float32) + b1, 0.0)
        z = jnp.dot(h, w2, preferred_element_type=jnp.float32) + b2
        return _gelu_tanh(z)

    d1 = digit_logits(f1_ref[...])
    d2 = digit_logits(f2_ref[...])
    out = (jnp.dot(d1, a1_ref[...], preferred_element_type=jnp.float32)
           + jnp.dot(d2, a2_ref[...], preferred_element_type=jnp.float32)
           + b3_ref[...])
    o_ref[...] = out.astype(o_ref.dtype)


# ----------------------------------------------------------------------------
# pallas_call wrappers
# ----------------------------------------------------------------------------

def _conv_pool_call(patches, w, b):
    n, _, p, k = patches.shape
    cout = w.shape[1]
    return pl.pallas_call(
        _conv_pool_kernel,
        out_shape=jax.ShapeDtypeStruct((n, p, cout), jnp.float32),
        grid=(n,),
        in_specs=[
            pl.BlockSpec((1, 4, p, k), lambda i: (i, 0, 0, 0)),
            pl.BlockSpec((k, cout), lambda i: (0, 0)),
            pl.BlockSpec((1, cout), lambda i: (0, 0)),
        ],
        out_specs=pl.BlockSpec((1, p, cout), lambda i: (i, 0, 0)),
        compiler_params=pltpu.CompilerParams(
            dimension_semantics=("parallel",)),   # megacore-shard the batch on v7x
    )(patches, w, b)


def _head_call(f1, f2, w_fc1, b_fc1, w_lin, b_lin, a1, a2, b_add):
    bsz = f1.shape[0]
    return pl.pallas_call(
        _head_kernel,
        out_shape=jax.ShapeDtypeStruct((bsz, 19), jnp.float32),
        in_specs=[pl.BlockSpec(memory_space=pltpu.VMEM)] * 9,
        out_specs=pl.BlockSpec(memory_space=pltpu.VMEM),
    )(f1, f2, w_fc1, b_fc1, w_lin, b_lin, a1, a2, b_add)


# ----------------------------------------------------------------------------
# Wrapper-side layout plumbing (padding, im2col, weight permutations)
# ----------------------------------------------------------------------------

def _im2col_pool_grouped(x_pad, h_out, w_out):
    """x_pad: (N, h_out+4, w_out+4, C) -> (N, 4, (h_out//2)*(w_out//2), 25*C).

    Patch feature order is (kh*5+kw)*C + cin; axis 1 is the 2x2 pool-window
    position (dh*2 + dw); axis 2 is the pooled pixel (ph*(w_out//2) + pw).
    """
    n, _, _, c = x_pad.shape
    cols = []
    for kh in range(5):
        for kw in range(5):
            cols.append(x_pad[:, kh:kh + h_out, kw:kw + w_out, :])
    p = jnp.stack(cols, axis=3)                        # (N, H, W, 25, C)
    p = p.reshape(n, h_out, w_out, 25 * c)
    p = p.reshape(n, h_out // 2, 2, w_out // 2, 2, 25 * c)
    p = p.transpose(0, 2, 4, 1, 3, 5)                  # (N, 2, 2, H/2, W/2, 25C)
    return p.reshape(n, 4, (h_out // 2) * (w_out // 2), 25 * c)


def digit_adder_forward(x1, x2, params):
    """Forward pass matching PyTorch DigitAdder(mse=False).forward(x1, x2)."""
    bsz = x1.shape[0]
    x = jnp.concatenate([x1, x2], axis=0)[:, 0]        # (2B, 28, 28), shared weights
    n = 2 * bsz

    # --- stage 1: conv(1->32, 5x5, pad 2) + ReLU + maxpool 2x2 -> (2B, 196, 32)
    x_pad = jnp.pad(x, ((0, 0), (2, 2), (2, 2)))
    p1 = _im2col_pool_grouped(x_pad[..., None], 28, 28)            # (2B, 4, 196, 25)
    w1 = params["conv1_w"].transpose(2, 3, 1, 0).reshape(25, 32)
    pooled1 = _conv_pool_call(p1, w1, params["conv1_b"].reshape(1, 32))

    # --- stage 2: conv(32->64, 5x5, pad 2) + ReLU + maxpool 2x2 -> (2B, 49, 64)
    h1 = pooled1.reshape(n, 14, 14, 32)
    h1_pad = jnp.pad(h1, ((0, 0), (2, 2), (2, 2), (0, 0)))
    p2 = _im2col_pool_grouped(h1_pad, 14, 14)                      # (2B, 4, 49, 800)
    w2 = params["conv2_w"].transpose(2, 3, 1, 0).reshape(800, 64)
    pooled2 = _conv_pool_call(p2, w2, params["conv2_b"].reshape(1, 64))

    feats = pooled2.reshape(n, 49 * 64)                # flat index (h*7+w)*64 + c

    # fc1 weight permuted from torch's (c*49 + h*7 + w) order to (h*7+w)*64 + c.
    w_fc1 = params["fc1_w"].reshape(256, 64, 7, 7).transpose(2, 3, 1, 0).reshape(3136, 256)
    # Exact decomposition of add_layer over the outer sum (see module docstring).
    w3 = params["add_w"].reshape(19, 10, 10)
    a1 = w3.sum(axis=2).T                              # (10, 19)
    a2 = w3.sum(axis=1).T                              # (10, 19)

    return _head_call(
        feats[:bsz], feats[bsz:],
        w_fc1, params["fc1_b"].reshape(1, 256),
        params["lin_w"].T, params["lin_b"].reshape(1, 10),
        a1, a2, params["add_b"].reshape(1, 19))


# ----------------------------------------------------------------------------
# Pure-JAX reference mirroring the PyTorch module, for verification
# ----------------------------------------------------------------------------

def _digit_adder_ref(x1, x2, params):
    hp = lax.Precision.HIGHEST

    def recognizer(x):
        y = lax.conv_general_dilated(
            x, params["conv1_w"], (1, 1), [(2, 2), (2, 2)],
            dimension_numbers=("NCHW", "OIHW", "NCHW"), precision=hp)
        y = jnp.maximum(y + params["conv1_b"][None, :, None, None], 0.0)
        y = lax.reduce_window(y, -jnp.inf, lax.max, (1, 1, 2, 2), (1, 1, 2, 2), "VALID")
        y = lax.conv_general_dilated(
            y, params["conv2_w"], (1, 1), [(2, 2), (2, 2)],
            dimension_numbers=("NCHW", "OIHW", "NCHW"), precision=hp)
        y = jnp.maximum(y + params["conv2_b"][None, :, None, None], 0.0)
        y = lax.reduce_window(y, -jnp.inf, lax.max, (1, 1, 2, 2), (1, 1, 2, 2), "VALID")
        y = y.reshape(y.shape[0], -1)
        y = jnp.maximum(jnp.dot(y, params["fc1_w"].T, precision=hp) + params["fc1_b"], 0.0)
        z = jnp.dot(y, params["lin_w"].T, precision=hp) + params["lin_b"]
        return _gelu_tanh(z)

    d1 = recognizer(x1)
    d2 = recognizer(x2)
    comb = (d1[:, :, None] + d2[:, None, :]).reshape(d1.shape[0], -1)
    return jnp.dot(comb, params["add_w"].T, precision=hp) + params["add_b"]


# ----------------------------------------------------------------------------

if __name__ == "__main__":
    key = jax.random.PRNGKey(0)
    ks = jax.random.split(key, 12)
    B = 2  # spatial size must be 28x28 (module hard-codes 64*7*7)

    x1 = jax.random.normal(ks[0], (B, 1, 28, 28), jnp.float32)
    x2 = jax.random.normal(ks[1], (B, 1, 28, 28), jnp.float32)

    def init(k, shape, fan_in):
        return jax.random.normal(k, shape, jnp.float32) / np.sqrt(fan_in)

    params = {
        "conv1_w": init(ks[2], (32, 1, 5, 5), 25),
        "conv1_b": init(ks[3], (32,), 25),
        "conv2_w": init(ks[4], (64, 32, 5, 5), 800),
        "conv2_b": init(ks[5], (64,), 800),
        "fc1_w": init(ks[6], (256, 3136), 3136),
        "fc1_b": init(ks[7], (256,), 3136),
        "lin_w": init(ks[8], (10, 256), 256),
        "lin_b": init(ks[9], (10,), 256),
        "add_w": init(ks[10], (19, 100), 100),
        "add_b": init(ks[11], (19,), 100),
    }

    out = jax.block_until_ready(jax.jit(digit_adder_forward)(x1, x2, params))
    ref = jax.block_until_ready(jax.jit(_digit_adder_ref)(x1, x2, params))

    # Tolerance covers MXU f32 accumulation-order / precision-mode differences;
    # any wiring or layout-permutation bug would be orders of magnitude larger.
    np.testing.assert_allclose(np.asarray(out), np.asarray(ref), rtol=2e-3, atol=2e-3)
    print("KERNEL_OK")
</pallas_src>

<mosaic_0001>
module attributes {stable_mosaic.version = 11 : i64} {
  func.func @_conv_pool_kernel(%arg0: i32, %arg1: memref<1x4x196x25xf32, #tpu.memory_space<vmem>>, %arg2: memref<25x32xf32, #tpu.memory_space<vmem>>, %arg3: memref<1x32xf32, #tpu.memory_space<vmem>>, %arg4: memref<1x196x32xf32, #tpu.memory_space<vmem>>) attributes {dimension_semantics = [#tpu.dimension_semantics<parallel>], iteration_bounds = array<i64: 4>, scalar_prefetch = 0 : i64, scratch_operands = 0 : i64, tpu.core_type = #tpu.core_type<tc>, window_params = [{transform_indices = @transform_0, window_bounds = array<i64: 1, 4, 196, 25>}, {pipeline_mode = #tpu.pipeline_mode<synchronous>, transform_indices = @transform_1, window_bounds = array<i64: 25, 32>}, {pipeline_mode = #tpu.pipeline_mode<synchronous>, transform_indices = @transform_2, window_bounds = array<i64: 1, 32>}, {transform_indices = @transform_3, window_bounds = array<i64: 1, 196, 32>}]} {
    %c0 = arith.constant 0 : index
    %c0_0 = arith.constant 0 : index
    %0 = vector.load %arg2[%c0, %c0_0] : memref<25x32xf32, #tpu.memory_space<vmem>>, vector<25x32xf32>
    %c0_1 = arith.constant 0 : index
    %c0_2 = arith.constant 0 : index
    %1 = vector.load %arg3[%c0_1, %c0_2] : memref<1x32xf32, #tpu.memory_space<vmem>>, vector<1x32xf32>
    %c0_3 = arith.constant 0 : index
    %c0_4 = arith.constant 0 : index
    %c0_5 = arith.constant 0 : index
    %c0_6 = arith.constant 0 : index
    %2 = vector.load %arg1[%c0_3, %c0_4, %c0_5, %c0_6] : memref<1x4x196x25xf32, #tpu.memory_space<vmem>>, vector<1x1x196x25xf32>
    %3 = vector.shape_cast %2 : vector<1x1x196x25xf32> to vector<196x25xf32>
    %cst = arith.constant dense<0.000000e+00> : vector<196x32xf32>
    %4 = tpu.matmul %3, %0, %cst {dimension_numbers = #tpu.dot_dimension_numbers<[1], [0], [0], [1], [0, 0, 1, 1], [], []>} : vector<196x25xf32>, vector<25x32xf32>, vector<196x32xf32> -> vector<196x32xf32>
    %5 = vector.broadcast %1 : vector<1x32xf32> to vector<196x32xf32>
    %6 = arith.addf %4, %5 : vector<196x32xf32>
    %cst_7 = arith.constant 0.000000e+00 : f32
    %7 = vector.broadcast %cst_7 : f32 to vector<196x32xf32>
    %8 = arith.maximumf %6, %7 : vector<196x32xf32>
    %c0_8 = arith.constant 0 : index
    %c1 = arith.constant 1 : index
    %c0_9 = arith.constant 0 : index
    %c0_10 = arith.constant 0 : index
    %9 = vector.load %arg1[%c0_8, %c1, %c0_9, %c0_10] : memref<1x4x196x25xf32, #tpu.memory_space<vmem>>, vector<1x1x196x25xf32>
    %10 = vector.shape_cast %9 : vector<1x1x196x25xf32> to vector<196x25xf32>
    %cst_11 = arith.constant dense<0.000000e+00> : vector<196x32xf32>
    %11 = tpu.matmul %10, %0, %cst_11 {dimension_numbers = #tpu.dot_dimension_numbers<[1], [0], [0], [1], [0, 0, 1, 1], [], []>} : vector<196x25xf32>, vector<25x32xf32>, vector<196x32xf32> -> vector<196x32xf32>
    %12 = vector.broadcast %1 : vector<1x32xf32> to vector<196x32xf32>
    %13 = arith.addf %11, %12 : vector<196x32xf32>
    %cst_12 = arith.constant 0.000000e+00 : f32
    %14 = vector.broadcast %cst_12 : f32 to vector<196x32xf32>
    %15 = arith.maximumf %13, %14 : vector<196x32xf32>
    %16 = arith.maximumf %8, %15 : vector<196x32xf32>
    %c0_13 = arith.constant 0 : index
    %c2 = arith.constant 2 : index
    %c0_14 = arith.constant 0 : index
    %c0_15 = arith.constant 0 : index
    %17 = vector.load %arg1[%c0_13, %c2, %c0_14, %c0_15] : memref<1x4x196x25xf32, #tpu.memory_space<vmem>>, vector<1x1x196x25xf32>
    %18 = vector.shape_cast %17 : vector<1x1x196x25xf32> to vector<196x25xf32>
    %cst_16 = arith.constant dense<0.000000e+00> : vector<196x32xf32>
    %19 = tpu.matmul %18, %0, %cst_16 {dimension_numbers = #tpu.dot_dimension_numbers<[1], [0], [0], [1], [0, 0, 1, 1], [], []>} : vector<196x25xf32>, vector<25x32xf32>, vector<196x32xf32> -> vector<196x32xf32>
    %20 = vector.broadcast %1 : vector<1x32xf32> to vector<196x32xf32>
    %21 = arith.addf %19, %20 : vector<196x32xf32>
    %cst_17 = arith.constant 0.000000e+00 : f32
    %22 = vector.broadcast %cst_17 : f32 to vector<196x32xf32>
    %23 = arith.maximumf %21, %22 : vector<196x32xf32>
    %24 = arith.maximumf %16, %23 : vector<196x32xf32>
    %c0_18 = arith.constant 0 : index
    %c3 = arith.constant 3 : index
    %c0_19 = arith.constant 0 : index
    %c0_20 = arith.constant 0 : index
    %25 = vector.load %arg1[%c0_18, %c3, %c0_19, %c0_20] : memref<1x4x196x25xf32, #tpu.memory_space<vmem>>, vector<1x1x196x25xf32>
    %26 = vector.shape_cast %25 : vector<1x1x196x25xf32> to vector<196x25xf32>
    %cst_21 = arith.constant dense<0.000000e+00> : vector<196x32xf32>
    %27 = tpu.matmul %26, %0, %cst_21 {dimension_numbers = #tpu.dot_dimension_numbers<[1], [0], [0], [1], [0, 0, 1, 1], [], []>} : vector<196x25xf32>, vector<25x32xf32>, vector<196x32xf32> -> vector<196x32xf32>
    %28 = vector.broadcast %1 : vector<1x32xf32> to vector<196x32xf32>
    %29 = arith.addf %27, %28 : vector<196x32xf32>
    %cst_22 = arith.constant 0.000000e+00 : f32
    %30 = vector.broadcast %cst_22 : f32 to vector<196x32xf32>
    %31 = arith.maximumf %29, %30 : vector<196x32xf32>
    %32 = arith.maximumf %24, %31 : vector<196x32xf32>
    %c0_23 = arith.constant 0 : index
    %c0_24 = arith.constant 0 : index
    %c0_25 = arith.constant 0 : index
    %33 = vector.load %arg4[%c0_23, %c0_24, %c0_25] : memref<1x196x32xf32, #tpu.memory_space<vmem>>, vector<1x196x32xf32>
    %34 = vector.shape_cast %33 : vector<1x196x32xf32> to vector<196x32xf32>
    %35 = vector.shape_cast %32 : vector<196x32xf32> to vector<1x196x32xf32>
    tpu.vector_store %arg4[%c0_23, %c0_24, %c0_25], %35 {strides = array<i32>} : memref<1x196x32xf32, #tpu.memory_space<vmem>>, vector<1x196x32xf32>,
    return
  }
  func.func @transform_0(%arg0: i32) -> (i32, i32, i32, i32) {
    %c0_i32 = arith.constant 0 : i32
    %c0_i32_0 = arith.constant 0 : i32
    %c0_i32_1 = arith.constant 0 : i32
    %c0_i32_2 = arith.constant 0 : i32
    return %arg0, %c0_i32, %c0_i32_0, %c0_i32_1 : i32, i32, i32, i32
  }
  func.func @transform_1(%arg0: i32) -> (i32, i32) {
    %c0_i32 = arith.constant 0 : i32
    %c0_i32_0 = arith.constant 0 : i32
    %c0_i32_1 = arith.constant 0 : i32
    return %c0_i32, %c0_i32_0 : i32, i32
  }
  func.func @transform_2(%arg0: i32) -> (i32, i32) {
    %c0_i32 = arith.constant 0 : i32
    %c0_i32_0 = arith.constant 0 : i32
    %c0_i32_1 = arith.constant 0 : i32
    return %c0_i32, %c0_i32_0 : i32, i32
  }
  func.func @transform_3(%arg0: i32) -> (i32, i32, i32) {
    %c0_i32 = arith.constant 0 : i32
    %c0_i32_0 = arith.constant 0 : i32
    %c0_i32_1 = arith.constant 0 : i32
    return %arg0, %c0_i32, %c0_i32_0 : i32, i32, i32
  }
}

module attributes {stable_mosaic.version = 11 : i64} {
  func.func @_conv_pool_kernel(%arg0: i32, %arg1: memref<1x4x49x800xf32, #tpu.memory_space<vmem>>, %arg2: memref<800x64xf32, #tpu.memory_space<vmem>>, %arg3: memref<1x64xf32, #tpu.memory_space<vmem>>, %arg4: memref<1x49x64xf32, #tpu.memory_space<vmem>>) attributes {dimension_semantics = [#tpu.dimension_semantics<parallel>], iteration_bounds = array<i64: 4>, scalar_prefetch = 0 : i64, scratch_operands = 0 : i64, tpu.core_type = #tpu.core_type<tc>, window_params = [{transform_indices = @transform_0, window_bounds = array<i64: 1, 4, 49, 800>}, {pipeline_mode = #tpu.pipeline_mode<synchronous>, transform_indices = @transform_1, window_bounds = array<i64: 800, 64>}, {pipeline_mode = #tpu.pipeline_mode<synchronous>, transform_indices = @transform_2, window_bounds = array<i64: 1, 64>}, {transform_indices = @transform_3, window_bounds = array<i64: 1, 49, 64>}]} {
    %c0 = arith.constant 0 : index
    %c0_0 = arith.constant 0 : index
    %0 = vector.load %arg2[%c0, %c0_0] : memref<800x64xf32, #tpu.memory_space<vmem>>, vector<800x64xf32>
    %c0_1 = arith.constant 0 : index
    %c0_2 = arith.constant 0 : index
    %1 = vector.load %arg3[%c0_1, %c0_2] : memref<1x64xf32, #tpu.memory_space<vmem>>, vector<1x64xf32>
    %c0_3 = arith.constant 0 : index
    %c0_4 = arith.constant 0 : index
    %c0_5 = arith.constant 0 : index
    %c0_6 = arith.constant 0 : index
    %2 = vector.load %arg1[%c0_3, %c0_4, %c0_5, %c0_6] : memref<1x4x49x800xf32, #tpu.memory_space<vmem>>, vector<1x1x49x800xf32>
    %3 = vector.shape_cast %2 : vector<1x1x49x800xf32> to vector<49x800xf32>
    %cst = arith.constant dense<0.000000e+00> : vector<49x64xf32>
    %4 = tpu.matmul %3, %0, %cst {dimension_numbers = #tpu.dot_dimension_numbers<[1], [0], [0], [1], [0, 0, 1, 1], [], []>} : vector<49x800xf32>, vector<800x64xf32>, vector<49x64xf32> -> vector<49x64xf32>
    %5 = vector.broadcast %1 : vector<1x64xf32> to vector<49x64xf32>
    %6 = arith.addf %4, %5 : vector<49x64xf32>
    %cst_7 = arith.constant 0.000000e+00 : f32
    %7 = vector.broadcast %cst_7 : f32 to vector<49x64xf32>
    %8 = arith.maximumf %6, %7 : vector<49x64xf32>
    %c0_8 = arith.constant 0 : index
    %c1 = arith.constant 1 : index
    %c0_9 = arith.constant 0 : index
    %c0_10 = arith.constant 0 : index
    %9 = vector.load %arg1[%c0_8, %c1, %c0_9, %c0_10] : memref<1x4x49x800xf32, #tpu.memory_space<vmem>>, vector<1x1x49x800xf32>
    %10 = vector.shape_cast %9 : vector<1x1x49x800xf32> to vector<49x800xf32>
    %cst_11 = arith.constant dense<0.000000e+00> : vector<49x64xf32>
    %11 = tpu.matmul %10, %0, %cst_11 {dimension_numbers = #tpu.dot_dimension_numbers<[1], [0], [0], [1], [0, 0, 1, 1], [], []>} : vector<49x800xf32>, vector<800x64xf32>, vector<49x64xf32> -> vector<49x64xf32>
    %12 = vector.broadcast %1 : vector<1x64xf32> to vector<49x64xf32>
    %13 = arith.addf %11, %12 : vector<49x64xf32>
    %cst_12 = arith.constant 0.000000e+00 : f32
    %14 = vector.broadcast %cst_12 : f32 to vector<49x64xf32>
    %15 = arith.maximumf %13, %14 : vector<49x64xf32>
    %16 = arith.maximumf %8, %15 : vector<49x64xf32>
    %c0_13 = arith.constant 0 : index
    %c2 = arith.constant 2 : index
    %c0_14 = arith.constant 0 : index
    %c0_15 = arith.constant 0 : index
    %17 = vector.load %arg1[%c0_13, %c2, %c0_14, %c0_15] : memref<1x4x49x800xf32, #tpu.memory_space<vmem>>, vector<1x1x49x800xf32>
    %18 = vector.shape_cast %17 : vector<1x1x49x800xf32> to vector<49x800xf32>
    %cst_16 = arith.constant dense<0.000000e+00> : vector<49x64xf32>
    %19 = tpu.matmul %18, %0, %cst_16 {dimension_numbers = #tpu.dot_dimension_numbers<[1], [0], [0], [1], [0, 0, 1, 1], [], []>} : vector<49x800xf32>, vector<800x64xf32>, vector<49x64xf32> -> vector<49x64xf32>
    %20 = vector.broadcast %1 : vector<1x64xf32> to vector<49x64xf32>
    %21 = arith.addf %19, %20 : vector<49x64xf32>
    %cst_17 = arith.constant 0.000000e+00 : f32
    %22 = vector.broadcast %cst_17 : f32 to vector<49x64xf32>
    %23 = arith.maximumf %21, %22 : vector<49x64xf32>
    %24 = arith.maximumf %16, %23 : vector<49x64xf32>
    %c0_18 = arith.constant 0 : index
    %c3 = arith.constant 3 : index
    %c0_19 = arith.constant 0 : index
    %c0_20 = arith.constant 0 : index
    %25 = vector.load %arg1[%c0_18, %c3, %c0_19, %c0_20] : memref<1x4x49x800xf32, #tpu.memory_space<vmem>>, vector<1x1x49x800xf32>
    %26 = vector.shape_cast %25 : vector<1x1x49x800xf32> to vector<49x800xf32>
    %cst_21 = arith.constant dense<0.000000e+00> : vector<49x64xf32>
    %27 = tpu.matmul %26, %0, %cst_21 {dimension_numbers = #tpu.dot_dimension_numbers<[1], [0], [0], [1], [0, 0, 1, 1], [], []>} : vector<49x800xf32>, vector<800x64xf32>, vector<49x64xf32> -> vector<49x64xf32>
    %28 = vector.broadcast %1 : vector<1x64xf32> to vector<49x64xf32>
    %29 = arith.addf %27, %28 : vector<49x64xf32>
    %cst_22 = arith.constant 0.000000e+00 : f32
    %30 = vector.broadcast %cst_22 : f32 to vector<49x64xf32>
    %31 = arith.maximumf %29, %30 : vector<49x64xf32>
    %32 = arith.maximumf %24, %31 : vector<49x64xf32>
    %c0_23 = arith.constant 0 : index
    %c0_24 = arith.constant 0 : index
    %c0_25 = arith.constant 0 : index
    %33 = vector.load %arg4[%c0_23, %c0_24, %c0_25] : memref<1x49x64xf32, #tpu.memory_space<vmem>>, vector<1x49x64xf32>
    %34 = vector.shape_cast %33 : vector<1x49x64xf32> to vector<49x64xf32>
    %35 = vector.shape_cast %32 : vector<49x64xf32> to vector<1x49x64xf32>
    tpu.vector_store %arg4[%c0_23, %c0_24, %c0_25], %35 {strides = array<i32>} : memref<1x49x64xf32, #tpu.memory_space<vmem>>, vector<1x49x64xf32>,
    return
  }
  func.func @transform_0(%arg0: i32) -> (i32, i32, i32, i32) {
    %c0_i32 = arith.constant 0 : i32
    %c0_i32_0 = arith.constant 0 : i32
    %c0_i32_1 = arith.constant 0 : i32
    %c0_i32_2 = arith.constant 0 : i32
    return %arg0, %c0_i32, %c0_i32_0, %c0_i32_1 : i32, i32, i32, i32
  }
  func.func @transform_1(%arg0: i32) -> (i32, i32) {
    %c0_i32 = arith.constant 0 : i32
    %c0_i32_0 = arith.constant 0 : i32
    %c0_i32_1 = arith.constant 0 : i32
    return %c0_i32, %c0_i32_0 : i32, i32
  }
  func.func @transform_2(%arg0: i32) -> (i32, i32) {
    %c0_i32 = arith.constant 0 : i32
    %c0_i32_0 = arith.constant 0 : i32
    %c0_i32_1 = arith.constant 0 : i32
    return %c0_i32, %c0_i32_0 : i32, i32
  }
  func.func @transform_3(%arg0: i32) -> (i32, i32, i32) {
    %c0_i32 = arith.constant 0 : i32
    %c0_i32_0 = arith.constant 0 : i32
    %c0_i32_1 = arith.constant 0 : i32
    return %arg0, %c0_i32, %c0_i32_0 : i32, i32, i32
  }
}

module attributes {stable_mosaic.version = 11 : i64} {
  func.func @_head_kernel(%arg0: memref<2x3136xf32, #tpu.memory_space<vmem>>, %arg1: memref<2x3136xf32, #tpu.memory_space<vmem>>, %arg2: memref<3136x256xf32, #tpu.memory_space<vmem>>, %arg3: memref<1x256xf32, #tpu.memory_space<vmem>>, %arg4: memref<256x10xf32, #tpu.memory_space<vmem>>, %arg5: memref<1x10xf32, #tpu.memory_space<vmem>>, %arg6: memref<10x19xf32, #tpu.memory_space<vmem>>, %arg7: memref<10x19xf32, #tpu.memory_space<vmem>>, %arg8: memref<1x19xf32, #tpu.memory_space<vmem>>, %arg9: memref<2x19xf32, #tpu.memory_space<vmem>>) attributes {dimension_semantics = [], scalar_prefetch = 0 : i64, scratch_operands = 0 : i64, tpu.core_type = #tpu.core_type<tc>} {
    %c0 = arith.constant 0 : index
    %c0_0 = arith.constant 0 : index
    %0 = vector.load %arg2[%c0, %c0_0] : memref<3136x256xf32, #tpu.memory_space<vmem>>, vector<3136x256xf32>
    %c0_1 = arith.constant 0 : index
    %c0_2 = arith.constant 0 : index
    %1 = vector.load %arg3[%c0_1, %c0_2] : memref<1x256xf32, #tpu.memory_space<vmem>>, vector<1x256xf32>
    %c0_3 = arith.constant 0 : index
    %c0_4 = arith.constant 0 : index
    %2 = vector.load %arg4[%c0_3, %c0_4] : memref<256x10xf32, #tpu.memory_space<vmem>>, vector<256x10xf32>
    %c0_5 = arith.constant 0 : index
    %c0_6 = arith.constant 0 : index
    %3 = vector.load %arg5[%c0_5, %c0_6] : memref<1x10xf32, #tpu.memory_space<vmem>>, vector<1x10xf32>
    %c0_7 = arith.constant 0 : index
    %c0_8 = arith.constant 0 : index
    %4 = vector.load %arg0[%c0_7, %c0_8] : memref<2x3136xf32, #tpu.memory_space<vmem>>, vector<2x3136xf32>
    %cst = arith.constant dense<0.000000e+00> : vector<2x256xf32>
    %5 = tpu.matmul %4, %0, %cst {dimension_numbers = #tpu.dot_dimension_numbers<[1], [0], [0], [1], [0, 0, 1, 1], [], []>} : vector<2x3136xf32>, vector<3136x256xf32>, vector<2x256xf32> -> vector<2x256xf32>
    %6 = vector.broadcast %1 : vector<1x256xf32> to vector<2x256xf32>
    %7 = arith.addf %5, %6 : vector<2x256xf32>
    %cst_9 = arith.constant 0.000000e+00 : f32
    %8 = vector.broadcast %cst_9 : f32 to vector<2x256xf32>
    %9 = arith.maximumf %7, %8 : vector<2x256xf32>
    %cst_10 = arith.constant dense<0.000000e+00> : vector<2x10xf32>
    %10 = tpu.matmul %9, %2, %cst_10 {dimension_numbers = #tpu.dot_dimension_numbers<[1], [0], [0], [1], [0, 0, 1, 1], [], []>} : vector<2x256xf32>, vector<256x10xf32>, vector<2x10xf32> -> vector<2x10xf32>
    %11 = vector.broadcast %3 : vector<1x10xf32> to vector<2x10xf32>
    %12 = arith.addf %10, %11 : vector<2x10xf32>
    %cst_11 = arith.constant 5.000000e-01 : f32
    %13 = vector.broadcast %cst_11 : f32 to vector<2x10xf32>
    %14 = arith.mulf %13, %12 : vector<2x10xf32>
    %cst_12 = arith.constant 4.471500e-02 : f32
    %15 = vector.broadcast %cst_12 : f32 to vector<2x10xf32>
    %16 = arith.mulf %15, %12 : vector<2x10xf32>
    %17 = arith.mulf %16, %12 : vector<2x10xf32>
    %18 = arith.mulf %17, %12 : vector<2x10xf32>
    %19 = arith.addf %12, %18 : vector<2x10xf32>
    %cst_13 = arith.constant 0.797884583 : f32
    %20 = vector.broadcast %cst_13 : f32 to vector<2x10xf32>
    %21 = arith.mulf %20, %19 : vector<2x10xf32>
    %22 = math.tanh %21 : vector<2x10xf32>
    %cst_14 = arith.constant 1.000000e+00 : f32
    %23 = vector.broadcast %cst_14 : f32 to vector<2x10xf32>
    %24 = arith.addf %23, %22 : vector<2x10xf32>
    %25 = arith.mulf %14, %24 : vector<2x10xf32>
    %c0_15 = arith.constant 0 : index
    %c0_16 = arith.constant 0 : index
    %26 = vector.load %arg1[%c0_15, %c0_16] : memref<2x3136xf32, #tpu.memory_space<vmem>>, vector<2x3136xf32>
    %cst_17 = arith.constant dense<0.000000e+00> : vector<2x256xf32>
    %27 = tpu.matmul %26, %0, %cst_17 {dimension_numbers = #tpu.dot_dimension_numbers<[1], [0], [0], [1], [0, 0, 1, 1], [], []>} : vector<2x3136xf32>, vector<3136x256xf32>, vector<2x256xf32> -> vector<2x256xf32>
    %28 = vector.broadcast %1 : vector<1x256xf32> to vector<2x256xf32>
    %29 = arith.addf %27, %28 : vector<2x256xf32>
    %cst_18 = arith.constant 0.000000e+00 : f32
    %30 = vector.broadcast %cst_18 : f32 to vector<2x256xf32>
    %31 = arith.maximumf %29, %30 : vector<2x256xf32>
    %cst_19 = arith.constant dense<0.000000e+00> : vector<2x10xf32>
    %32 = tpu.matmul %31, %2, %cst_19 {dimension_numbers = #tpu.dot_dimension_numbers<[1], [0], [0], [1], [0, 0, 1, 1], [], []>} : vector<2x256xf32>, vector<256x10xf32>, vector<2x10xf32> -> vector<2x10xf32>
    %33 = vector.broadcast %3 : vector<1x10xf32> to vector<2x10xf32>
    %34 = arith.addf %32, %33 : vector<2x10xf32>
    %cst_20 = arith.constant 5.000000e-01 : f32
    %35 = vector.broadcast %cst_20 : f32 to vector<2x10xf32>
    %36 = arith.mulf %35, %34 : vector<2x10xf32>
    %cst_21 = arith.constant 4.471500e-02 : f32
    %37 = vector.broadcast %cst_21 : f32 to vector<2x10xf32>
    %38 = arith.mulf %37, %34 : vector<2x10xf32>
    %39 = arith.mulf %38, %34 : vector<2x10xf32>
    %40 = arith.mulf %39, %34 : vector<2x10xf32>
    %41 = arith.addf %34, %40 : vector<2x10xf32>
    %cst_22 = arith.constant 0.797884583 : f32
    %42 = vector.broadcast %cst_22 : f32 to vector<2x10xf32>
    %43 = arith.mulf %42, %41 : vector<2x10xf32>
    %44 = math.tanh %43 : vector<2x10xf32>
    %cst_23 = arith.constant 1.000000e+00 : f32
    %45 = vector.broadcast %cst_23 : f32 to vector<2x10xf32>
    %46 = arith.addf %45, %44 : vector<2x10xf32>
    %47 = arith.mulf %36, %46 : vector<2x10xf32>
    %c0_24 = arith.constant 0 : index
    %c0_25 = arith.constant 0 : index
    %48 = vector.load %arg6[%c0_24, %c0_25] : memref<10x19xf32, #tpu.memory_space<vmem>>, vector<10x19xf32>
    %cst_26 = arith.constant dense<0.000000e+00> : vector<2x19xf32>
    %49 = tpu.matmul %25, %48, %cst_26 {dimension_numbers = #tpu.dot_dimension_numbers<[1], [0], [0], [1], [0, 0, 1, 1], [], []>} : vector<2x10xf32>, vector<10x19xf32>, vector<2x19xf32> -> vector<2x19xf32>
    %c0_27 = arith.constant 0 : index
    %c0_28 = arith.constant 0 : index
    %50 = vector.load %arg7[%c0_27, %c0_28] : memref<10x19xf32, #tpu.memory_space<vmem>>, vector<10x19xf32>
    %cst_29 = arith.constant dense<0.000000e+00> : vector<2x19xf32>
    %51 = tpu.matmul %47, %50, %cst_29 {dimension_numbers = #tpu.dot_dimension_numbers<[1], [0], [0], [1], [0, 0, 1, 1], [], []>} : vector<2x10xf32>, vector<10x19xf32>, vector<2x19xf32> -> vector<2x19xf32>
    %52 = arith.addf %49, %51 : vector<2x19xf32>
    %c0_30 = arith.constant 0 : index
    %c0_31 = arith.constant 0 : index
    %53 = vector.load %arg8[%c0_30, %c0_31] : memref<1x19xf32, #tpu.memory_space<vmem>>, vector<1x19xf32>
    %54 = vector.broadcast %53 : vector<1x19xf32> to vector<2x19xf32>
    %55 = arith.addf %52, %54 : vector<2x19xf32>
    %c0_32 = arith.constant 0 : index
    %c0_33 = arith.constant 0 : index
    %56 = vector.load %arg9[%c0_32, %c0_33] : memref<2x19xf32, #tpu.memory_space<vmem>>, vector<2x19xf32>
    tpu.vector_store %arg9[%c0_32, %c0_33], %55 {strides = array<i32>} : memref<2x19xf32, #tpu.memory_space<vmem>>, vector<2x19xf32>,
    return
  }
}

</mosaic_0001>

<llo_original>
// kernel: digit_adder_forward.3
$region0: #{digit_adder_forward.3}
  #allocation0 [shape = 'u32[]', space=smem, size = 0x4, offset = 0x4, fixed_abs, tag = 'smem constant byte address 0x4 - core index']
  #allocation1 [shape = 'u32[144,128]{1,0:T(1,128)}', space=vmem, size = 0x12000, scoped, tag = 'internal scratch']
  %s0 = inlined_call_operand.vmem [shape: f32[4,4,196,25], index: 0, kind: input, shape index: {}]
  %s1 = inlined_call_operand.vmem [shape: f32[25,32], index: 1, kind: input, shape index: {}]
  %s2 = inlined_call_operand.vmem [shape: f32[1,32], index: 2, kind: input, shape index: {}]
  %s3 = inlined_call_operand.vmem [shape: f32[4,196,32], index: 3, kind: output, shape index: {}]
  %s4 = sld [smem:[#allocation0]]
  $region45: #{digit_adder_forward.3} parent=0
    _
  %s6 = ssub.s32 1, %s4
  %s7 = scalar_select 0, %s6, %s4
  loop: start=0, step=1, limit=6
  $region2: #{digit_adder_forward.3} parent=0 // loop_pre_header
    _
  $region3: #{digit_adder_forward.3} parent=0 // loop_header
    %s9 = sphi 0, %s13
    %p10 = scmp.ge.s32.totalorder %s9, 6
    %s19 = sphi 0, %s21
    %s22 = sphi 0, %s19
    %s23 = sphi 0, %s22
    %s39 = sphi 0, %s23
    %s43 = sphi 0, %s43
    %s45 = sphi 0, %s43
    %s46 = sphi 0, %s45
    %s60 = sphi 0, %s46
    %s64 = sphi 0, %s64
    %s66 = sphi 0, %s64
    %s67 = sphi 0, %s66
    %s81 = sphi 0, %s67
    %s87 = sphi 0, %s89
    %s90 = sphi 0, %s87
    %s91 = sphi 0, %s90
    %s107 = sphi 0, %s91
  $region4: #{digit_adder_forward.3} parent=0 // loop_header_branch
    %12 = sbr.rel (%p10) target = $region8
  $region5: #{digit_adder_forward.3} parent=0 // loop_body
    %s14 = ssub.s32 %s9, 1
    %s15 = ssub.s32 %s9, 2
    %s16 = sadd.s32 %s9, 1
    %s17 = ssub.s32 %s9, %s16
    %p18 = scmp.eq.s32.totalorder %s17, 0
    %s20 = sadd.s32 %s19, 1
    %s21 = scalar_select %p18, %s19, %s20
    %p24 = pneg %p18
    %p25 = scmp.eq.s32.totalorder %s9, 3
    %p26 = por %p24, %p25
    %p27 = scmp.ne.s32.totalorder %s19, %s22
    %p28 = scmp.eq.s32.totalorder %s9, 0
    %p29 = por %p27, %p28
    %p30 = scmp.ne.s32.totalorder %s19, %s22
    %p31 = scmp.eq.s32.totalorder %s14, 3
    %p32 = por %p30, %p31
    %p33 = scmp.ne.s32.totalorder %s22, %s23
    %p34 = scmp.eq.s32.totalorder %s14, 0
    %p35 = por %p33, %p34
    %p36 = scmp.ne.s32.totalorder %s22, %s23
    %p37 = scmp.eq.s32.totalorder %s15, 3
    %p38 = por %p36, %p37
    %p40 = scmp.ne.s32.totalorder %s23, %s39
    %p41 = scmp.eq.s32.totalorder %s15, 0
    %p42 = por %p40, %p41
    %s44 = sadd.s32 %s43, 1
    %p47 = scmp.eq.s32.totalorder %s9, 3
    %p48 = scmp.ne.s32.totalorder %s43, %s45
    %p49 = scmp.eq.s32.totalorder %s9, 0
    %p50 = por %p48, %p49
    %p51 = scmp.ne.s32.totalorder %s43, %s45
    %p52 = scmp.eq.s32.totalorder %s14, 3
    %p53 = por %p51, %p52
    %p54 = scmp.ne.s32.totalorder %s45, %s46
    %p55 = scmp.eq.s32.totalorder %s14, 0
    %p56 = por %p54, %p55
    %p57 = scmp.ne.s32.totalorder %s45, %s46
    %p58 = scmp.eq.s32.totalorder %s15, 3
    %p59 = por %p57, %p58
    %p61 = scmp.ne.s32.totalorder %s46, %s60
    %p62 = scmp.eq.s32.totalorder %s15, 0
    %p63 = por %p61, %p62
    %s65 = sadd.s32 %s64, 1
    %p68 = scmp.eq.s32.totalorder %s9, 3
    %p69 = scmp.ne.s32.totalorder %s64, %s66
    %p70 = scmp.eq.s32.totalorder %s9, 0
    %p71 = por %p69, %p70
    %p72 = scmp.ne.s32.totalorder %s64, %s66
    %p73 = scmp.eq.s32.totalorder %s14, 3
    %p74 = por %p72, %p73
    %p75 = scmp.ne.s32.totalorder %s66, %s67
    %p76 = scmp.eq.s32.totalorder %s14, 0
    %p77 = por %p75, %p76
    %p78 = scmp.ne.s32.totalorder %s66, %s67
    %p79 = scmp.eq.s32.totalorder %s15, 3
    %p80 = por %p78, %p79
    %p82 = scmp.ne.s32.totalorder %s67, %s81
    %p83 = scmp.eq.s32.totalorder %s15, 0
    %p84 = por %p82, %p83
    %s85 = ssub.s32 %s9, %s16
    %p86 = scmp.eq.s32.totalorder %s85, 0
    %s88 = sadd.s32 %s87, 1
    %s89 = scalar_select %p86, %s87, %s88
    %p92 = pneg %p86
    %p93 = scmp.eq.s32.totalorder %s9, 3
    %p94 = por %p92, %p93
    %p95 = scmp.ne.s32.totalorder %s87, %s90
    %p96 = scmp.eq.s32.totalorder %s9, 0
    %p97 = por %p95, %p96
    %p98 = scmp.ne.s32.totalorder %s87, %s90
    %p99 = scmp.eq.s32.totalorder %s14, 3
    %p100 = por %p98, %p99
    %p101 = scmp.ne.s32.totalorder %s90, %s91
    %p102 = scmp.eq.s32.totalorder %s14, 0
    %p103 = por %p101, %p102
    %p104 = scmp.ne.s32.totalorder %s90, %s91
    %p105 = scmp.eq.s32.totalorder %s15, 3
    %p106 = por %p104, %p105
    %p108 = scmp.ne.s32.totalorder %s91, %s107
    %p109 = scmp.eq.s32.totalorder %s15, 0
    %p110 = por %p108, %p109
    %p111 = scmp.le.s32.totalorder 1, %s9
    %p112 = scmp.lt.s32.totalorder %s9, 5
    %p113 = pnand %p111, %p112
    %p114 = pneg %p113
    // Predicated region
    $region9: #{digit_adder_forward.3} parent=5 // pred_check
      _
    $region10: #{digit_adder_forward.3} parent=5 // pred_check_branch
      %116 = sbr.rel (%p113) target = $region12
    $region11: #{digit_adder_forward.3} parent=5 // pred_region
      %s117 = ssub.s32 %s9, 1
      // Predicated region
      $region13: #{digit_adder_forward.3} parent=11 // pred_check
        %p118 = pneg %p56
      $region14: #{digit_adder_forward.3} parent=11 // pred_check_branch
        %120 = sbr.rel (%p118) target = $region16
      $region15: #{digit_adder_forward.3} parent=11 // pred_region
        _
      $region16: #{digit_adder_forward.3} parent=11 // pred_fallthru
        _
      // Predicated region
      $region17: #{digit_adder_forward.3} parent=11 // pred_check
        %p121 = pneg %p77
      $region18: #{digit_adder_forward.3} parent=11 // pred_check_branch
        %123 = sbr.rel (%p121) target = $region20
      $region19: #{digit_adder_forward.3} parent=11 // pred_region
        _
      $region20: #{digit_adder_forward.3} parent=11 // pred_fallthru
        _
    $region12: #{digit_adder_forward.3} parent=5 // pred_fallthru
      _
    %p124 = scmp.lt.s32.totalorder %s9, 4
    // Predicated region
    $region21: #{digit_adder_forward.3} parent=5 // pred_check
      %p125 = pneg %p124
    $region22: #{digit_adder_forward.3} parent=5 // pred_check_branch
      %127 = sbr.rel (%p125) target = $region24
    $region23: #{digit_adder_forward.3} parent=5 // pred_region
      // Predicated region
      $region25: #{digit_adder_forward.3} parent=23 // pred_check
        %p128 = pneg %p29
      $region26: #{digit_adder_forward.3} parent=23 // pred_check_branch
        %130 = sbr.rel (%p128) target = $region28
      $region27: #{digit_adder_forward.3} parent=23 // pred_region
        %p131 = scmp.lt.s32.totalorder %s9, 3
        %s132 = scalar_select %p131, %s9, 3
        %s133 = smul.addr %s132, 100
        %s134 = smul.addr %s133, 8
        %s135 = scalar_lea.vmem %s0, %s134
      $region28: #{digit_adder_forward.3} parent=23 // pred_fallthru
        _
    $region24: #{digit_adder_forward.3} parent=5 // pred_fallthru
      _
    %p136 = scmp.le.s32.totalorder 1, %s9
    %p137 = scmp.lt.s32.totalorder %s9, 5
    %p138 = pnand %p136, %p137
    %p139 = pneg %p138
    // Predicated region
    $region29: #{digit_adder_forward.3} parent=5 // pred_check
      _
    $region30: #{digit_adder_forward.3} parent=5 // pred_check_branch
      %141 = sbr.rel (%p138) target = $region32
    $region31: #{digit_adder_forward.3} parent=5 // pred_region
      %s142 = ssub.s32 %s9, 1
      %p143 = scmp.lt.s32.totalorder %s14, 3
      %s144 = scalar_select %p143, %s14, 3
      %s145 = smul.addr %s144, 100
      %s146 = smul.addr %s145, 8
      %s147 = scalar_lea.vmem %s0, %s146
      %p148 = pneg %p35
      %p149 = pneg %p32
      %p150 = pneg %p56
      %p151 = pneg %p53
      %p152 = pneg %p77
      %p153 = pneg %p74
      %p154 = pneg %p103
      %p155 = pneg %p100
      %p156 = scmp.lt.s32.totalorder %s14, 3
      %s157 = scalar_select %p156, %s14, 3
      %s158 = smul.addr %s157, 25
      %s159 = smul.addr %s158, 8
      %s160 = scalar_lea.vmem %s3, %s159
      %p161 = scmp.lt.s32.totalorder %s14, 3
      %s162 = scalar_select %p161, %s14, 3
      %s163 = smul.addr %s162, 100
      %s164 = smul.addr %s163, 8
      %s165 = scalar_lea.vmem %s0, %s164
      %p166 = scmp.lt.s32.totalorder %s14, 3
      %s167 = scalar_select %p166, %s14, 3
      %s168 = smul.addr %s167, 25
      %s169 = smul.addr %s168, 8
      %s170 = scalar_lea.vmem %s3, %s169
      %v171 = vld [vmem:[%s1] sm:$0xff]
      %v172 = vld [vmem:[%s1 + $0x8] sm:$0xff]
      %v173 = vld [vmem:[%s1 + $0x10] sm:$0xff]
      %v174 = vld [vmem:[%s1 + $0x18] sm:$0x1]
      %v175 = vld [vmem:[%s2] sm:$0x1]
      %v176 = vld [vmem:[%s165] sm:$0xff]
      %v177 = vld [vmem:[%s165 + $0x8] sm:$0xff]
      %v178 = vld [vmem:[%s165 + $0x10] sm:$0xff]
      %v179 = vld [vmem:[%s165 + $0x18] sm:$0xff]
      %v180 = vld [vmem:[%s165 + $0x20] sm:$0xff]
      %v181 = vld [vmem:[%s165 + $0x28] sm:$0xff]
      %v182 = vld [vmem:[%s165 + $0x30] sm:$0xff]
      %v183 = vld [vmem:[%s165 + $0x38] sm:$0xff]
      %v184 = vld [vmem:[%s165 + $0x40] sm:$0xff]
      %v185 = vld [vmem:[%s165 + $0x48] sm:$0xff]
      %v186 = vld [vmem:[%s165 + $0x50] sm:$0xff]
      %v187 = vld [vmem:[%s165 + $0x58] sm:$0xff]
      %v188 = vld [vmem:[%s165 + $0x60] sm:$0xff]
      %v189 = vld [vmem:[%s165 + $0x68] sm:$0xff]
      %v190 = vld [vmem:[%s165 + $0x70] sm:$0xff]
      %v191 = vld [vmem:[%s165 + $0x78] sm:$0xff]
      %v192 = vld [vmem:[%s165 + $0x80] sm:$0xff]
      %v193 = vld [vmem:[%s165 + $0x88] sm:$0xff]
      %v194 = vld [vmem:[%s165 + $0x90] sm:$0xff]
      %v195 = vld [vmem:[%s165 + $0x98] sm:$0xff]
      %v196 = vld [vmem:[%s165 + $0xa0] sm:$0xff]
      %v197 = vld [vmem:[%s165 + $0xa8] sm:$0xff]
      %v198 = vld [vmem:[%s165 + $0xb0] sm:$0xff]
      %v199 = vld [vmem:[%s165 + $0xb8] sm:$0xff]
      %v200 = vld [vmem:[%s165 + $0xc0] sm:$0xf]
      %v202 = vlaneseq
      %v203 = vshrl.u32 %v202, 7
      %v204 = vsub.s32 0, %v203
      %v205 = vrot.slane %v175, %v204
      %vm207 = vcmask 203776
      %v209 = vsel %vm207, %v176, 0
      %v212 = vsel %vm207, %v177, 0
      %v215 = vsel %vm207, %v178, 0
      %v218 = vsel %vm207, %v179, 0
      %v221 = vsel %vm207, %v180, 0
      %v224 = vsel %vm207, %v181, 0
      %v227 = vsel %vm207, %v182, 0
      %v230 = vsel %vm207, %v183, 0
      %v233 = vsel %vm207, %v184, 0
      %v236 = vsel %vm207, %v185, 0
      %v239 = vsel %vm207, %v186, 0
      %v242 = vsel %vm207, %v187, 0
      %v245 = vsel %vm207, %v188, 0
      %v248 = vsel %vm207, %v189, 0
      %v251 = vsel %vm207, %v190, 0
      %v254 = vsel %vm207, %v191, 0
      %v257 = vsel %vm207, %v192, 0
      %v260 = vsel %vm207, %v193, 0
      %v263 = vsel %vm207, %v194, 0
      %v266 = vsel %vm207, %v195, 0
      %v269 = vsel %vm207, %v196, 0
      %v272 = vsel %vm207, %v197, 0
      %v275 = vsel %vm207, %v198, 0
      %v278 = vsel %vm207, %v199, 0
      %v281 = vsel %vm207, %v200, 0
      %vm283 = vcmask 1040384
      %v285 = vsel %vm283, %v174, 0
      %287 = vmatprep.subr.mxu0 0.0
      %288 = vmatpush1.msra.mxu0 %v171
      %289 = vmatprep.subr.mxu0 0.0
      %290 = vmatpush1.msra.mxu0 %v172
      %291 = vmatprep.subr.mxu0 0.0
      %292 = vmatpush1.msra.mxu0 %v173
      %293 = vmatprep.subr.mxu0 0.0
      %294 = vmatpush1.msra.mxu0 %v285
      %295 = vmatprep.subr.mxu0 0.0
      %296 = vmatpush1.msra.mxu0 0.0
      %297 = vmatprep.subr.mxu0 0.0
      %298 = vmatpush1.msra.mxu0 0.0
      %299 = vmatprep.subr.mxu0 0.0
      %300 = vmatpush1.msra.mxu0 0.0
      %301 = vmatprep.subr.mxu0 0.0
      %302 = vmatpush1.msra.mxu0 0.0
      %303 = vmatprep.subr.mxu0 0.0
      %304 = vmatpush1.msra.mxu0 0.0
      %305 = vmatprep.subr.mxu0 0.0
      %306 = vmatpush1.msra.mxu0 0.0
      %307 = vmatprep.subr.mxu0 0.0
      %308 = vmatpush1.msra.mxu0 0.0
      %309 = vmatprep.subr.mxu0 0.0
      %310 = vmatpush1.msra.mxu0 0.0
      %311 = vmatprep.subr.mxu0 0.0
      %312 = vmatpush1.msra.mxu0 0.0
      %313 = vmatprep.subr.mxu0 0.0
      %314 = vmatpush1.msra.mxu0 0.0
      %315 = vmatprep.subr.mxu0 0.0
      %316 = vmatpush1.msra.mxu0 0.0
      %317 = vmatprep.subr.mxu0 0.0
      %318 = vmatpush1.msra.mxu0 0.0
      %319 = vmatprep.subr.mxu0 0.0
      %320 = vmatpush1.msra.mxu0 0.0
      %321 = vmatprep.subr.mxu0 0.0
      %322 = vmatpush1.msra.mxu0 0.0
      %323 = vmatprep.subr.mxu0 0.0
      %324 = vmatpush1.msra.mxu0 0.0
      %325 = vmatprep.subr.mxu0 0.0
      %326 = vmatpush1.msra.mxu0 0.0
      %327 = vmatprep.subr.mxu0 0.0
      %328 = vmatpush1.msra.mxu0 0.0
      %329 = vmatprep.subr.mxu0 0.0
      %330 = vmatpush1.msra.mxu0 0.0
      %331 = vmatprep.subr.mxu0 0.0
      %332 = vmatpush1.msra.mxu0 0.0
      %333 = vmatprep.subr.mxu0 0.0
      %334 = vmatpush1.msra.mxu0 0.0
      %335 = vmatprep.subr.mxu0 0.0
      %336 = vmatpush1.msra.mxu0 0.0
      %337 = vmatprep.subr.mxu0 0.0
      %338 = vmatpush1.msra.mxu0 0.0
      %339 = vmatprep.subr.mxu0 0.0
      %340 = vmatpush1.msra.mxu0 0.0
      %341 = vmatprep.subr.mxu0 0.0
      %342 = vmatpush1.msra.mxu0 0.0
      %343 = vmatprep.subr.mxu0 0.0
      %344 = vmatpush1.msra.mxu0 0.0
      %345 = vmatprep.subr.mxu0 0.0
      %346 = vmatpush1.msra.mxu0 0.0
      %347 = vmatprep.subr.mxu0 0.0
      %348 = vmatpush1.msra.mxu0 0.0
      %349 = vmatprep.subr.mxu0 0.0
      %350 = vmatpush1.msra.mxu0 0.0
      %351 = vmatprep.mubr.f32.mxu0 0.0
      %352 = vmatmul.mubr.f32.gmra.mrb[0].mxu0 %v209
      %v353 = vpop.f32.mrb[0].mxu0
      %v354 = vadd.f32 %v205, %v353
      %v355 = vpop.f32.mrb[0].mxu0
      %356 = vmatprep.mubr.f32.mxu0 0.0
      %357 = vmatmul.mubr.f32.gmra.mrb[0].mxu0 %v212
      %v358 = vpop.f32.mrb[0].mxu0
      %v359 = vadd.f32 %v205, %v358
      %v360 = vpop.f32.mrb[0].mxu0
      %361 = vmatprep.mubr.f32.mxu0 0.0
      %362 = vmatmul.mubr.f32.gmra.mrb[0].mxu0 %v215
      %v363 = vpop.f32.mrb[0].mxu0
      %v364 = vadd.f32 %v205, %v363
      %v365 = vpop.f32.mrb[0].mxu0
      %366 = vmatprep.mubr.f32.mxu0 0.0
      %367 = vmatmul.mubr.f32.gmra.mrb[0].mxu0 %v218
      %v368 = vpop.f32.mrb[0].mxu0
      %v369 = vadd.f32 %v205, %v368
      %v370 = vpop.f32.mrb[0].mxu0
      %371 = vmatprep.mubr.f32.mxu0 0.0
      %372 = vmatmul.mubr.f32.gmra.mrb[0].mxu0 %v221
      %v373 = vpop.f32.mrb[0].mxu0
      %v374 = vadd.f32 %v205, %v373
      %v375 = vpop.f32.mrb[0].mxu0
      %376 = vmatprep.mubr.f32.mxu0 0.0
      %377 = vmatmul.mubr.f32.gmra.mrb[0].mxu0 %v224
      %v378 = vpop.f32.mrb[0].mxu0
      %v379 = vadd.f32 %v205, %v378
      %v380 = vpop.f32.mrb[0].mxu0
      %381 = vmatprep.mubr.f32.mxu0 0.0
      %382 = vmatmul.mubr.f32.gmra.mrb[0].mxu0 %v227
      %v383 = vpop.f32.mrb[0].mxu0
      %v384 = vadd.f32 %v205, %v383
      %v385 = vpop.f32.mrb[0].mxu0
      %386 = vmatprep.mubr.f32.mxu0 0.0
      %387 = vmatmul.mubr.f32.gmra.mrb[0].mxu0 %v230
      %v388 = vpop.f32.mrb[0].mxu0
      %v389 = vadd.f32 %v205, %v388
      %v390 = vpop.f32.mrb[0].mxu0
      %391 = vmatprep.mubr.f32.mxu0 0.0
      %392 = vmatmul.mubr.f32.gmra.mrb[0].mxu0 %v233
      %v393 = vpop.f32.mrb[0].mxu0
      %v394 = vadd.f32 %v205, %v393
      %v395 = vpop.f32.mrb[0].mxu0
      %396 = vmatprep.mubr.f32.mxu0 0.0
      %397 = vmatmul.mubr.f32.gmra.mrb[0].mxu0 %v236
      %v398 = vpop.f32.mrb[0].mxu0
      %v399 = vadd.f32 %v205, %v398
      %v400 = vpop.f32.mrb[0].mxu0
      %401 = vmatprep.mubr.f32.mxu0 0.0
      %402 = vmatmul.mubr.f32.gmra.mrb[0].mxu0 %v239
      %v403 = vpop.f32.mrb[0].mxu0
      %v404 = vadd.f32 %v205, %v403
      %v405 = vpop.f32.mrb[0].mxu0
      %406 = vmatprep.mubr.f32.mxu0 0.0
      %407 = vmatmul.mubr.f32.gmra.mrb[0].mxu0 %v242
      %v408 = vpop.f32.mrb[0].mxu0
      %v409 = vadd.f32 %v205, %v408
      %v410 = vpop.f32.mrb[0].mxu0
      %411 = vmatprep.mubr.f32.mxu0 0.0
      %412 = vmatmul.mubr.f32.gmra.mrb[0].mxu0 %v245
      %v413 = vpop.f32.mrb[0].mxu0
      %v414 = vadd.f32 %v205, %v413
      %v415 = vpop.f32.mrb[0].mxu0
      %416 = vmatprep.mubr.f32.mxu0 0.0
      %417 = vmatmul.mubr.f32.gmra.mrb[0].mxu0 %v248
      %v418 = vpop.f32.mrb[0].mxu0
      %v419 = vadd.f32 %v205, %v418
      %v420 = vpop.f32.mrb[0].mxu0
      %421 = vmatprep.mubr.f32.mxu0 0.0
      %422 = vmatmul.mubr.f32.gmra.mrb[0].mxu0 %v251
      %v423 = vpop.f32.mrb[0].mxu0
      %v424 = vadd.f32 %v205, %v423
      %v425 = vpop.f32.mrb[0].mxu0
      %426 = vmatprep.mubr.f32.mxu0 0.0
      %427 = vmatmul.mubr.f32.gmra.mrb[0].mxu0 %v254
      %v428 = vpop.f32.mrb[0].mxu0
      %v429 = vadd.f32 %v205, %v428
      %v430 = vpop.f32.mrb[0].mxu0
      %431 = vmatprep.mubr.f32.mxu0 0.0
      %432 = vmatmul.mubr.f32.gmra.mrb[0].mxu0 %v257
      %v433 = vpop.f32.mrb[0].mxu0
      %v434 = vadd.f32 %v205, %v433
      %v435 = vpop.f32.mrb[0].mxu0
      %436 = vmatprep.mubr.f32.mxu0 0.0
      %437 = vmatmul.mubr.f32.gmra.mrb[0].mxu0 %v260
      %v438 = vpop.f32.mrb[0].mxu0
      %v439 = vadd.f32 %v205, %v438
      %v440 = vpop.f32.mrb[0].mxu0
      %441 = vmatprep.mubr.f32.mxu0 0.0
      %442 = vmatmul.mubr.f32.gmra.mrb[0].mxu0 %v263
      %v443 = vpop.f32.mrb[0].mxu0
      %v444 = vadd.f32 %v205, %v443
      %v445 = vpop.f32.mrb[0].mxu0
      %446 = vmatprep.mubr.f32.mxu0 0.0
      %447 = vmatmul.mubr.f32.gmra.mrb[0].mxu0 %v266
      %v448 = vpop.f32.mrb[0].mxu0
      %v449 = vadd.f32 %v205, %v448
      %v450 = vpop.f32.mrb[0].mxu0
      %451 = vmatprep.mubr.f32.mxu0 0.0
      %452 = vmatmul.mubr.f32.gmra.mrb[0].mxu0 %v269
      %v453 = vpop.f32.mrb[0].mxu0
      %v454 = vadd.f32 %v205, %v453
      %v455 = vpop.f32.mrb[0].mxu0
      %456 = vmatprep.mubr.f32.mxu0 0.0
      %457 = vmatmul.mubr.f32.gmra.mrb[0].mxu0 %v272
      %v458 = vpop.f32.mrb[0].mxu0
      %v459 = vadd.f32 %v205, %v458
      %v460 = vpop.f32.mrb[0].mxu0
      %461 = vmatprep.mubr.f32.mxu0 0.0
      %462 = vmatmul.mubr.f32.gmra.mrb[0].mxu0 %v275
      %v463 = vpop.f32.mrb[0].mxu0
      %v464 = vadd.f32 %v205, %v463
      %v465 = vpop.f32.mrb[0].mxu0
      %466 = vmatprep.mubr.f32.mxu0 0.0
      %467 = vmatmul.mubr.f32.gmra.mrb[0].mxu0 %v278
      %v468 = vpop.f32.mrb[0].mxu0
      %v469 = vadd.f32 %v205, %v468
      %v470 = vpop.f32.mrb[0].mxu0
      %471 = vmatprep.mubr.f32.mxu0 0.0
      %472 = vmatmul.mubr.f32.gmra.mrb[0].mxu0 %v281
      %v473 = vpop.f32.mrb[0].mxu0
      %v474 = vadd.f32 %v205, %v473
      %v475 = vpop.f32.mrb[0].mxu0
      %476 = vdwg.mxu0
      %v477 = vmax.f32 %v354, 0.0
      %v478 = vmax.f32 %v359, 0.0
      %v479 = vmax.f32 %v364, 0.0
      %v480 = vmax.f32 %v369, 0.0
      %v481 = vmax.f32 %v374, 0.0
      %v482 = vmax.f32 %v379, 0.0
      %v483 = vmax.f32 %v384, 0.0
      %v484 = vmax.f32 %v389, 0.0
      %v485 = vmax.f32 %v394, 0.0
      %v486 = vmax.f32 %v399, 0.0
      %v487 = vmax.f32 %v404, 0.0
      %v488 = vmax.f32 %v409, 0.0
      %v489 = vmax.f32 %v414, 0.0
      %v490 = vmax.f32 %v419, 0.0
      %v491 = vmax.f32 %v424, 0.0
      %v492 = vmax.f32 %v429, 0.0
      %v493 = vmax.f32 %v434, 0.0
      %v494 = vmax.f32 %v439, 0.0
      %v495 = vmax.f32 %v444, 0.0
      %v496 = vmax.f32 %v449, 0.0
      %v497 = vmax.f32 %v454, 0.0
      %v498 = vmax.f32 %v459, 0.0
      %v499 = vmax.f32 %v464, 0.0
      %v500 = vmax.f32 %v469, 0.0
      %v501 = vmax.f32 %v474, 0.0
      %s502 = scalar_lea.vmem %s165, 200
      %v503 = vld [vmem:[%s502] sm:$0xff]
      %v504 = vld [vmem:[%s502 + $0x8] sm:$0xff]
      %v505 = vld [vmem:[%s502 + $0x10] sm:$0xff]
      %v506 = vld [vmem:[%s502 + $0x18] sm:$0xff]
      %v507 = vld [vmem:[%s502 + $0x20] sm:$0xff]
      %v508 = vld [vmem:[%s502 + $0x28] sm:$0xff]
      %v509 = vld [vmem:[%s502 + $0x30] sm:$0xff]
      %v510 = vld [vmem:[%s502 + $0x38] sm:$0xff]
      %v511 = vld [vmem:[%s502 + $0x40] sm:$0xff]
      %v512 = vld [vmem:[%s502 + $0x48] sm:$0xff]
      %v513 = vld [vmem:[%s502 + $0x50] sm:$0xff]
      %v514 = vld [vmem:[%s502 + $0x58] sm:$0xff]
      %v515 = vld [vmem:[%s502 + $0x60] sm:$0xff]
      %v516 = vld [vmem:[%s502 + $0x68] sm:$0xff]
      %v517 = vld [vmem:[%s502 + $0x70] sm:$0xff]
      %v518 = vld [vmem:[%s502 + $0x78] sm:$0xff]
      %v519 = vld [vmem:[%s502 + $0x80] sm:$0xff]
      %v520 = vld [vmem:[%s502 + $0x88] sm:$0xff]
      %v521 = vld [vmem:[%s502 + $0x90] sm:$0xff]
      %v522 = vld [vmem:[%s502 + $0x98] sm:$0xff]
      %v523 = vld [vmem:[%s502 + $0xa0] sm:$0xff]
      %v524 = vld [vmem:[%s502 + $0xa8] sm:$0xff]
      %v525 = vld [vmem:[%s502 + $0xb0] sm:$0xff]
      %v526 = vld [vmem:[%s502 + $0xb8] sm:$0xff]
      %v527 = vld [vmem:[%s502 + $0xc0] sm:$0xf]
      %v529 = vsel %vm207, %v503, 0
      %v532 = vsel %vm207, %v504, 0
      %v535 = vsel %vm207, %v505, 0
      %v538 = vsel %vm207, %v506, 0
      %v541 = vsel %vm207, %v507, 0
      %v544 = vsel %vm207, %v508, 0
      %v547 = vsel %vm207, %v509, 0
      %v550 = vsel %vm207, %v510, 0
      %v553 = vsel %vm207, %v511, 0
      %v556 = vsel %vm207, %v512, 0
      %v559 = vsel %vm207, %v513, 0
      %v562 = vsel %vm207, %v514, 0
      %v565 = vsel %vm207, %v515, 0
      %v568 = vsel %vm207, %v516, 0
      %v571 = vsel %vm207, %v517, 0
      %v574 = vsel %vm207, %v518, 0
      %v577 = vsel %vm207, %v519, 0
      %v580 = vsel %vm207, %v520, 0
      %v583 = vsel %vm207, %v521, 0
      %v586 = vsel %vm207, %v522, 0
      %v589 = vsel %vm207, %v523, 0
      %v592 = vsel %vm207, %v524, 0
      %v595 = vsel %vm207, %v525, 0
      %v598 = vsel %vm207, %v526, 0
      %v601 = vsel %vm207, %v527, 0
      %603 = vmatprep.subr.mxu0 0.0
      %604 = vmatpush1.msra.mxu0 %v171
      %605 = vmatprep.subr.mxu0 0.0
      %606 = vmatpush1.msra.mxu0 %v172
      %607 = vmatprep.subr.mxu0 0.0
      %608 = vmatpush1.msra.mxu0 %v173
      %609 = vmatprep.subr.mxu0 0.0
      %610 = vmatpush1.msra.mxu0 %v285
      %611 = vmatprep.subr.mxu0 0.0
      %612 = vmatpush1.msra.mxu0 0.0
      %613 = vmatprep.subr.mxu0 0.0
      %614 = vmatpush1.msra.mxu0 0.0
      %615 = vmatprep.subr.mxu0 0.0
      %616 = vmatpush1.msra.mxu0 0.0
      %617 = vmatprep.subr.mxu0 0.0
      %618 = vmatpush1.msra.mxu0 0.0
      %619 = vmatprep.subr.mxu0 0.0
      %620 = vmatpush1.msra.mxu0 0.0
      %621 = vmatprep.subr.mxu0 0.0
      %622 = vmatpush1.msra.mxu0 0.0
      %623 = vmatprep.subr.mxu0 0.0
      %624 = vmatpush1.msra.mxu0 0.0
      %625 = vmatprep.subr.mxu0 0.0
      %626 = vmatpush1.msra.mxu0 0.0
      %627 = vmatprep.subr.mxu0 0.0
      %628 = vmatpush1.msra.mxu0 0.0
      %629 = vmatprep.subr.mxu0 0.0
      %630 = vmatpush1.msra.mxu0 0.0
      %631 = vmatprep.subr.mxu0 0.0
      %632 = vmatpush1.msra.mxu0 0.0
      %633 = vmatprep.subr.mxu0 0.0
      %634 = vmatpush1.msra.mxu0 0.0
      %635 = vmatprep.subr.mxu0 0.0
      %636 = vmatpush1.msra.mxu0 0.0
      %637 = vmatprep.subr.mxu0 0.0
      %638 = vmatpush1.msra.mxu0 0.0
      %639 = vmatprep.subr.mxu0 0.0
      %640 = vmatpush1.msra.mxu0 0.0
      %641 = vmatprep.subr.mxu0 0.0
      %642 = vmatpush1.msra.mxu0 0.0
      %643 = vmatprep.subr.mxu0 0.0
      %644 = vmatpush1.msra.mxu0 0.0
      %645 = vmatprep.subr.mxu0 0.0
      %646 = vmatpush1.msra.mxu0 0.0
      %647 = vmatprep.subr.mxu0 0.0
      %648 = vmatpush1.msra.mxu0 0.0
      %649 = vmatprep.subr.mxu0 0.0
      %650 = vmatpush1.msra.mxu0 0.0
      %651 = vmatprep.subr.mxu0 0.0
      %652 = vmatpush1.msra.mxu0 0.0
      %653 = vmatprep.subr.mxu0 0.0
      %654 = vmatpush1.msra.mxu0 0.0
      %655 = vmatprep.subr.mxu0 0.0
      %656 = vmatpush1.msra.mxu0 0.0
      %657 = vmatprep.subr.mxu0 0.0
      %658 = vmatpush1.msra.mxu0 0.0
      %659 = vmatprep.subr.mxu0 0.0
      %660 = vmatpush1.msra.mxu0 0.0
      %661 = vmatprep.subr.mxu0 0.0
      %662 = vmatpush1.msra.mxu0 0.0
      %663 = vmatprep.subr.mxu0 0.0
      %664 = vmatpush1.msra.mxu0 0.0
      %665 = vmatprep.subr.mxu0 0.0
      %666 = vmatpush1.msra.mxu0 0.0
      %667 = vmatprep.mubr.f32.mxu0 0.0
      %668 = vmatmul.mubr.f32.gmra.mrb[0].mxu0 %v529
      %v669 = vpop.f32.mrb[0].mxu0
      %v670 = vadd.f32 %v205, %v669
      %v671 = vpop.f32.mrb[0].mxu0
      %672 = vmatprep.mubr.f32.mxu0 0.0
      %673 = vmatmul.mubr.f32.gmra.mrb[0].mxu0 %v532
      %v674 = vpop.f32.mrb[0].mxu0
      %v675 = vadd.f32 %v205, %v674
      %v676 = vpop.f32.mrb[0].mxu0
      %677 = vmatprep.mubr.f32.mxu0 0.0
      %678 = vmatmul.mubr.f32.gmra.mrb[0].mxu0 %v535
      %v679 = vpop.f32.mrb[0].mxu0
      %v680 = vadd.f32 %v205, %v679
      %v681 = vpop.f32.mrb[0].mxu0
      %682 = vmatprep.mubr.f32.mxu0 0.0
      %683 = vmatmul.mubr.f32.gmra.mrb[0].mxu0 %v538
      %v684 = vpop.f32.mrb[0].mxu0
      %v685 = vadd.f32 %v205, %v684
      %v686 = vpop.f32.mrb[0].mxu0
      %687 = vmatprep.mubr.f32.mxu0 0.0
      %688 = vmatmul.mubr.f32.gmra.mrb[0].mxu0 %v541
      %v689 = vpop.f32.mrb[0].mxu0
      %v690 = vadd.f32 %v205, %v689
      %v691 = vpop.f32.mrb[0].mxu0
      %692 = vmatprep.mubr.f32.mxu0 0.0
      %693 = vmatmul.mubr.f32.gmra.mrb[0].mxu0 %v544
      %v694 = vpop.f32.mrb[0].mxu0
      %v695 = vadd.f32 %v205, %v694
      %v696 = vpop.f32.mrb[0].mxu0
      %697 = vmatprep.mubr.f32.mxu0 0.0
      %698 = vmatmul.mubr.f32.gmra.mrb[0].mxu0 %v547
      %v699 = vpop.f32.mrb[0].mxu0
      %v700 = vadd.f32 %v205, %v699
      %v701 = vpop.f32.mrb[0].mxu0
      %702 = vmatprep.mubr.f32.mxu0 0.0
      %703 = vmatmul.mubr.f32.gmra.mrb[0].mxu0 %v550
      %v704 = vpop.f32.mrb[0].mxu0
      %v705 = vadd.f32 %v205, %v704
      %v706 = vpop.f32.mrb[0].mxu0
      %707 = vmatprep.mubr.f32.mxu0 0.0
      %708 = vmatmul.mubr.f32.gmra.mrb[0].mxu0 %v553
      %v709 = vpop.f32.mrb[0].mxu0
      %v710 = vadd.f32 %v205, %v709
      %v711 = vpop.f32.mrb[0].mxu0
      %712 = vmatprep.mubr.f32.mxu0 0.0
      %713 = vmatmul.mubr.f32.gmra.mrb[0].mxu0 %v556
      %v714 = vpop.f32.mrb[0].mxu0
      %v715 = vadd.f32 %v205, %v714
      %v716 = vpop.f32.mrb[0].mxu0
      %717 = vmatprep.mubr.f32.mxu0 0.0
      %718 = vmatmul.mubr.f32.gmra.mrb[0].mxu0 %v559
      %v719 = vpop.f32.mrb[0].mxu0
      %v720 = vadd.f32 %v205, %v719
      %v721 = vpop.f32.mrb[0].mxu0
      %722 = vmatprep.mubr.f32.mxu0 0.0
      %723 = vmatmul.mubr.f32.gmra.mrb[0].mxu0 %v562
      %v724 = vpop.f32.mrb[0].mxu0
      %v725 = vadd.f32 %v205, %v724
      %v726 = vpop.f32.mrb[0].mxu0
      %727 = vmatprep.mubr.f32.mxu0 0.0
      %728 = vmatmul.mubr.f32.gmra.mrb[0].mxu0 %v565
      %v729 = vpop.f32.mrb[0].mxu0
      %v730 = vadd.f32 %v205, %v729
      %v731 = vpop.f32.mrb[0].mxu0
      %732 = vmatprep.mubr.f32.mxu0 0.0
      %733 = vmatmul.mubr.f32.gmra.mrb[0].mxu0 %v568
      %v734 = vpop.f32.mrb[0].mxu0
      %v735 = vadd.f32 %v205, %v734
      %v736 = vpop.f32.mrb[0].mxu0
      %737 = vmatprep.mubr.f32.mxu0 0.0
      %738 = vmatmul.mubr.f32.gmra.mrb[0].mxu0 %v571
      %v739 = vpop.f32.mrb[0].mxu0
      %v740 = vadd.f32 %v205, %v739
      %v741 = vpop.f32.mrb[0].mxu0
      %742 = vmatprep.mubr.f32.mxu0 0.0
      %743 = vmatmul.mubr.f32.gmra.mrb[0].mxu0 %v574
      %v744 = vpop.f32.mrb[0].mxu0
      %v745 = vadd.f32 %v205, %v744
      %v746 = vpop.f32.mrb[0].mxu0
      %747 = vmatprep.mubr.f32.mxu0 0.0
      %748 = vmatmul.mubr.f32.gmra.mrb[0].mxu0 %v577
      %v749 = vpop.f32.mrb[0].mxu0
      %v750 = vadd.f32 %v205, %v749
      %v751 = vpop.f32.mrb[0].mxu0
      %752 = vmatprep.mubr.f32.mxu0 0.0
      %753 = vmatmul.mubr.f32.gmra.mrb[0].mxu0 %v580
      %v754 = vpop.f32.mrb[0].mxu0
      %v755 = vadd.f32 %v205, %v754
      %v756 = vpop.f32.mrb[0].mxu0
      %757 = vmatprep.mubr.f32.mxu0 0.0
      %758 = vmatmul.mubr.f32.gmra.mrb[0].mxu0 %v583
      %v759 = vpop.f32.mrb[0].mxu0
      %v760 = vadd.f32 %v205, %v759
      %v761 = vpop.f32.mrb[0].mxu0
      %762 = vmatprep.mubr.f32.mxu0 0.0
      %763 = vmatmul.mubr.f32.gmra.mrb[0].mxu0 %v586
      %v764 = vpop.f32.mrb[0].mxu0
      %v765 = vadd.f32 %v205, %v764
      %v766 = vpop.f32.mrb[0].mxu0
      %767 = vmatprep.mubr.f32.mxu0 0.0
      %768 = vmatmul.mubr.f32.gmra.mrb[0].mxu0 %v589
      %v769 = vpop.f32.mrb[0].mxu0
      %v770 = vadd.f32 %v205, %v769
      %v771 = vpop.f32.mrb[0].mxu0
      %772 = vmatprep.mubr.f32.mxu0 0.0
      %773 = vmatmul.mubr.f32.gmra.mrb[0].mxu0 %v592
      %v774 = vpop.f32.mrb[0].mxu0
      %v775 = vadd.f32 %v205, %v774
      %v776 = vpop.f32.mrb[0].mxu0
      %777 = vmatprep.mubr.f32.mxu0 0.0
      %778 = vmatmul.mubr.f32.gmra.mrb[0].mxu0 %v595
      %v779 = vpop.f32.mrb[0].mxu0
      %v780 = vadd.f32 %v205, %v779
      %v781 = vpop.f32.mrb[0].mxu0
      %782 = vmatprep.mubr.f32.mxu0 0.0
      %783 = vmatmul.mubr.f32.gmra.mrb[0].mxu0 %v598
      %v784 = vpop.f32.mrb[0].mxu0
      %v785 = vadd.f32 %v205, %v784
      %v786 = vpop.f32.mrb[0].mxu0
      %787 = vmatprep.mubr.f32.mxu0 0.0
      %788 = vmatmul.mubr.f32.gmra.mrb[0].mxu0 %v601
      %v789 = vpop.f32.mrb[0].mxu0
      %v790 = vadd.f32 %v205, %v789
      %v791 = vpop.f32.mrb[0].mxu0
      %792 = vdwg.mxu0
      %v793 = vmax.f32 %v670, 0.0
      %v794 = vmax.f32 %v675, 0.0
      %v795 = vmax.f32 %v680, 0.0
      %v796 = vmax.f32 %v685, 0.0
      %v797 = vmax.f32 %v690, 0.0
      %v798 = vmax.f32 %v695, 0.0
      %v799 = vmax.f32 %v700, 0.0
      %v800 = vmax.f32 %v705, 0.0
      %v801 = vmax.f32 %v710, 0.0
      %v802 = vmax.f32 %v715, 0.0
      %v803 = vmax.f32 %v720, 0.0
      %v804 = vmax.f32 %v725, 0.0
      %v805 = vmax.f32 %v730, 0.0
      %v806 = vmax.f32 %v735, 0.0
      %v807 = vmax.f32 %v740, 0.0
      %v808 = vmax.f32 %v745, 0.0
      %v809 = vmax.f32 %v750, 0.0
      %v810 = vmax.f32 %v755, 0.0
      %v811 = vmax.f32 %v760, 0.0
      %v812 = vmax.f32 %v765, 0.0
      %v813 = vmax.f32 %v770, 0.0
      %v814 = vmax.f32 %v775, 0.0
      %v815 = vmax.f32 %v780, 0.0
      %v816 = vmax.f32 %v785, 0.0
      %v817 = vmax.f32 %v790, 0.0
      %v818 = vmax.f32 %v477, %v793
      %v819 = vmax.f32 %v478, %v794
      %v820 = vmax.f32 %v479, %v795
      %v821 = vmax.f32 %v480, %v796
      %v822 = vmax.f32 %v481, %v797
      %v823 = vmax.f32 %v482, %v798
      %v824 = vmax.f32 %v483, %v799
      %v825 = vmax.f32 %v484, %v800
      %v826 = vmax.f32 %v485, %v801
      %v827 = vmax.f32 %v486, %v802
      %v828 = vmax.f32 %v487, %v803
      %v829 = vmax.f32 %v488, %v804
      %v830 = vmax.f32 %v489, %v805
      %v831 = vmax.f32 %v490, %v806
      %v832 = vmax.f32 %v491, %v807
      %v833 = vmax.f32 %v492, %v808
      %v834 = vmax.f32 %v493, %v809
      %v835 = vmax.f32 %v494, %v810
      %v836 = vmax.f32 %v495, %v811
      %v837 = vmax.f32 %v496, %v812
      %v838 = vmax.f32 %v497, %v813
      %v839 = vmax.f32 %v498, %v814
      %v840 = vmax.f32 %v499, %v815
      %v841 = vmax.f32 %v500, %v816
      %v842 = vmax.f32 %v501, %v817
      %s843 = scalar_lea.vmem %s165, 400
      %v844 = vld [vmem:[%s843] sm:$0xff]
      %v845 = vld [vmem:[%s843 + $0x8] sm:$0xff]
      %v846 = vld [vmem:[%s843 + $0x10] sm:$0xff]
      %v847 = vld [vmem:[%s843 + $0x18] sm:$0xff]
      %v848 = vld [vmem:[%s843 + $0x20] sm:$0xff]
      %v849 = vld [vmem:[%s843 + $0x28] sm:$0xff]
      %v850 = vld [vmem:[%s843 + $0x30] sm:$0xff]
      %v851 = vld [vmem:[%s843 + $0x38] sm:$0xff]
      %v852 = vld [vmem:[%s843 + $0x40] sm:$0xff]
      %v853 = vld [vmem:[%s843 + $0x48] sm:$0xff]
      %v854 = vld [vmem:[%s843 + $0x50] sm:$0xff]
      %v855 = vld [vmem:[%s843 + $0x58] sm:$0xff]
      %v856 = vld [vmem:[%s843 + $0x60] sm:$0xff]
      %v857 = vld [vmem:[%s843 + $0x68] sm:$0xff]
      %v858 = vld [vmem:[%s843 + $0x70] sm:$0xff]
      %v859 = vld [vmem:[%s843 + $0x78] sm:$0xff]
      %v860 = vld [vmem:[%s843 + $0x80] sm:$0xff]
      %v861 = vld [vmem:[%s843 + $0x88] sm:$0xff]
      %v862 = vld [vmem:[%s843 + $0x90] sm:$0xff]
      %v863 = vld [vmem:[%s843 + $0x98] sm:$0xff]
      %v864 = vld [vmem:[%s843 + $0xa0] sm:$0xff]
      %v865 = vld [vmem:[%s843 + $0xa8] sm:$0xff]
      %v866 = vld [vmem:[%s843 + $0xb0] sm:$0xff]
      %v867 = vld [vmem:[%s843 + $0xb8] sm:$0xff]
      %v868 = vld [vmem:[%s843 + $0xc0] sm:$0xf]
      %v870 = vsel %vm207, %v844, 0
      %v873 = vsel %vm207, %v845, 0
      %v876 = vsel %vm207, %v846, 0
      %v879 = vsel %vm207, %v847, 0
      %v882 = vsel %vm207, %v848, 0
      %v885 = vsel %vm207, %v849, 0
      %v888 = vsel %vm207, %v850, 0
      %v891 = vsel %vm207, %v851, 0
      %v894 = vsel %vm207, %v852, 0
      %v897 = vsel %vm207, %v853, 0
      %v900 = vsel %vm207, %v854, 0
      %v903 = vsel %vm207, %v855, 0
      %v906 = vsel %vm207, %v856, 0
      %v909 = vsel %vm207, %v857, 0
      %v912 = vsel %vm207, %v858, 0
      %v915 = vsel %vm207, %v859, 0
      %v918 = vsel %vm207, %v860, 0
      %v921 = vsel %vm207, %v861, 0
      %v924 = vsel %vm207, %v862, 0
      %v927 = vsel %vm207, %v863, 0
      %v930 = vsel %vm207, %v864, 0
      %v933 = vsel %vm207, %v865, 0
      %v936 = vsel %vm207, %v866, 0
      %v939 = vsel %vm207, %v867, 0
      %v942 = vsel %vm207, %v868, 0
      %944 = vmatprep.subr.mxu0 0.0
      %945 = vmatpush1.msra.mxu0 %v171
      %946 = vmatprep.subr.mxu0 0.0
      %947 = vmatpush1.msra.mxu0 %v172
      %948 = vmatprep.subr.mxu0 0.0
      %949 = vmatpush1.msra.mxu0 %v173
      %950 = vmatprep.subr.mxu0 0.0
      %951 = vmatpush1.msra.mxu0 %v285
      %952 = vmatprep.subr.mxu0 0.0
      %953 = vmatpush1.msra.mxu0 0.0
      %954 = vmatprep.subr.mxu0 0.0
      %955 = vmatpush1.msra.mxu0 0.0
      %956 = vmatprep.subr.mxu0 0.0
      %957 = vmatpush1.msra.mxu0 0.0
      %958 = vmatprep.subr.mxu0 0.0
      %959 = vmatpush1.msra.mxu0 0.0
      %960 = vmatprep.subr.mxu0 0.0
      %961 = vmatpush1.msra.mxu0 0.0
      %962 = vmatprep.subr.mxu0 0.0
      %963 = vmatpush1.msra.mxu0 0.0
      %964 = vmatprep.subr.mxu0 0.0
      %965 = vmatpush1.msra.mxu0 0.0
      %966 = vmatprep.subr.mxu0 0.0
      %967 = vmatpush1.msra.mxu0 0.0
      %968 = vmatprep.subr.mxu0 0.0
      %969 = vmatpush1.msra.mxu0 0.0
      %970 = vmatprep.subr.mxu0 0.0
      %971 = vmatpush1.msra.mxu0 0.0
      %972 = vmatprep.subr.mxu0 0.0
      %973 = vmatpush1.msra.mxu0 0.0
      %974 = vmatprep.subr.mxu0 0.0
      %975 = vmatpush1.msra.mxu0 0.0
      %976 = vmatprep.subr.mxu0 0.0
      %977 = vmatpush1.msra.mxu0 0.0
      %978 = vmatprep.subr.mxu0 0.0
      %979 = vmatpush1.msra.mxu0 0.0
      %980 = vmatprep.subr.mxu0 0.0
      %981 = vmatpush1.msra.mxu0 0.0
      %982 = vmatprep.subr.mxu0 0.0
      %983 = vmatpush1.msra.mxu0 0.0
      %984 = vmatprep.subr.mxu0 0.0
      %985 = vmatpush1.msra.mxu0 0.0
      %986 = vmatprep.subr.mxu0 0.0
      %987 = vmatpush1.msra.mxu0 0.0
      %988 = vmatprep.subr.mxu0 0.0
      %989 = vmatpush1.msra.mxu0 0.0
      %990 = vmatprep.subr.mxu0 0.0
      %991 = vmatpush1.msra.mxu0 0.0
      %992 = vmatprep.subr.mxu0 0.0
      %993 = vmatpush1.msra.mxu0 0.0
      %994 = vmatprep.subr.mxu0 0.0
      %995 = vmatpush1.msra.mxu0 0.0
      %996 = vmatprep.subr.mxu0 0.0
      %997 = vmatpush1.msra.mxu0 0.0
      %998 = vmatprep.subr.mxu0 0.0
      %999 = vmatpush1.msra.mxu0 0.0
      %1000 = vmatprep.subr.mxu0 0.0
      %1001 = vmatpush1.msra.mxu0 0.0
      %1002 = vmatprep.subr.mxu0 0.0
      %1003 = vmatpush1.msra.mxu0 0.0
      %1004 = vmatprep.subr.mxu0 0.0
      %1005 = vmatpush1.msra.mxu0 0.0
      %1006 = vmatprep.subr.mxu0 0.0
      %1007 = vmatpush1.msra.mxu0 0.0
      %1008 = vmatprep.mubr.f32.mxu0 0.0
      %1009 = vmatmul.mubr.f32.gmra.mrb[0].mxu0 %v870
      %v1010 = vpop.f32.mrb[0].mxu0
      %v1011 = vadd.f32 %v205, %v1010
      %v1012 = vpop.f32.mrb[0].mxu0
      %1013 = vmatprep.mubr.f32.mxu0 0.0
      %1014 = vmatmul.mubr.f32.gmra.mrb[0].mxu0 %v873
      %v1015 = vpop.f32.mrb[0].mxu0
      %v1016 = vadd.f32 %v205, %v1015
      %v1017 = vpop.f32.mrb[0].mxu0
      %1018 = vmatprep.mubr.f32.mxu0 0.0
      %1019 = vmatmul.mubr.f32.gmra.mrb[0].mxu0 %v876
      %v1020 = vpop.f32.mrb[0].mxu0
      %v1021 = vadd.f32 %v205, %v1020
      %v1022 = vpop.f32.mrb[0].mxu0
      %1023 = vmatprep.mubr.f32.mxu0 0.0
      %1024 = vmatmul.mubr.f32.gmra.mrb[0].mxu0 %v879
      %v1025 = vpop.f32.mrb[0].mxu0
      %v1026 = vadd.f32 %v205, %v1025
      %v1027 = vpop.f32.mrb[0].mxu0
      %1028 = vmatprep.mubr.f32.mxu0 0.0
      %1029 = vmatmul.mubr.f32.gmra.mrb[0].mxu0 %v882
      %v1030 = vpop.f32.mrb[0].mxu0
      %v1031 = vadd.f32 %v205, %v1030
      %v1032 = vpop.f32.mrb[0].mxu0
      %1033 = vmatprep.mubr.f32.mxu0 0.0
      %1034 = vmatmul.mubr.f32.gmra.mrb[0].mxu0 %v885
      %v1035 = vpop.f32.mrb[0].mxu0
      %v1036 = vadd.f32 %v205, %v1035
      %v1037 = vpop.f32.mrb[0].mxu0
      %1038 = vmatprep.mubr.f32.mxu0 0.0
      %1039 = vmatmul.mubr.f32.gmra.mrb[0].mxu0 %v888
      %v1040 = vpop.f32.mrb[0].mxu0
      %v1041 = vadd.f32 %v205, %v1040
      %v1042 = vpop.f32.mrb[0].mxu0
      %1043 = vmatprep.mubr.f32.mxu0 0.0
      %1044 = vmatmul.mubr.f32.gmra.mrb[0].mxu0 %v891
      %v1045 = vpop.f32.mrb[0].mxu0
      %v1046 = vadd.f32 %v205, %v1045
      %v1047 = vpop.f32.mrb[0].mxu0
      %1048 = vmatprep.mubr.f32.mxu0 0.0
      %1049 = vmatmul.mubr.f32.gmra.mrb[0].mxu0 %v894
      %v1050 = vpop.f32.mrb[0].mxu0
      %v1051 = vadd.f32 %v205, %v1050
      %v1052 = vpop.f32.mrb[0].mxu0
      %1053 = vmatprep.mubr.f32.mxu0 0.0
      %1054 = vmatmul.mubr.f32.gmra.mrb[0].mxu0 %v897
      %v1055 = vpop.f32.mrb[0].mxu0
      %v1056 = vadd.f32 %v205, %v1055
      %v1057 = vpop.f32.mrb[0].mxu0
      %1058 = vmatprep.mubr.f32.mxu0 0.0
      %1059 = vmatmul.mubr.f32.gmra.mrb[0].mxu0 %v900
      %v1060 = vpop.f32.mrb[0].mxu0
      %v1061 = vadd.f32 %v205, %v1060
      %v1062 = vpop.f32.mrb[0].mxu0
      %1063 = vmatprep.mubr.f32.mxu0 0.0
      %1064 = vmatmul.mubr.f32.gmra.mrb[0].mxu0 %v903
      %v1065 = vpop.f32.mrb[0].mxu0
      %v1066 = vadd.f32 %v205, %v1065
      %v1067 = vpop.f32.mrb[0].mxu0
      %1068 = vmatprep.mubr.f32.mxu0 0.0
      %1069 = vmatmul.mubr.f32.gmra.mrb[0].mxu0 %v906
      %v1070 = vpop.f32.mrb[0].mxu0
      %v1071 = vadd.f32 %v205, %v1070
      %v1072 = vpop.f32.mrb[0].mxu0
      %1073 = vmatprep.mubr.f32.mxu0 0.0
      %1074 = vmatmul.mubr.f32.gmra.mrb[0].mxu0 %v909
      %v1075 = vpop.f32.mrb[0].mxu0
      %v1076 = vadd.f32 %v205, %v1075
      %v1077 = vpop.f32.mrb[0].mxu0
      %1078 = vmatprep.mubr.f32.mxu0 0.0
      %1079 = vmatmul.mubr.f32.gmra.mrb[0].mxu0 %v912
      %v1080 = vpop.f32.mrb[0].mxu0
      %v1081 = vadd.f32 %v205, %v1080
      %v1082 = vpop.f32.mrb[0].mxu0
      %1083 = vmatprep.mubr.f32.mxu0 0.0
      %1084 = vmatmul.mubr.f32.gmra.mrb[0].mxu0 %v915
      %v1085 = vpop.f32.mrb[0].mxu0
      %v1086 = vadd.f32 %v205, %v1085
      %v1087 = vpop.f32.mrb[0].mxu0
      %1088 = vmatprep.mubr.f32.mxu0 0.0
      %1089 = vmatmul.mubr.f32.gmra.mrb[0].mxu0 %v918
      %v1090 = vpop.f32.mrb[0].mxu0
      %v1091 = vadd.f32 %v205, %v1090
      %v1092 = vpop.f32.mrb[0].mxu0
      %1093 = vmatprep.mubr.f32.mxu0 0.0
      %1094 = vmatmul.mubr.f32.gmra.mrb[0].mxu0 %v921
      %v1095 = vpop.f32.mrb[0].mxu0
      %v1096 = vadd.f32 %v205, %v1095
      %v1097 = vpop.f32.mrb[0].mxu0
      %1098 = vmatprep.mubr.f32.mxu0 0.0
      %1099 = vmatmul.mubr.f32.gmra.mrb[0].mxu0 %v924
      %v1100 = vpop.f32.mrb[0].mxu0
      %v1101 = vadd.f32 %v205, %v1100
      %v1102 = vpop.f32.mrb[0].mxu0
      %1103 = vmatprep.mubr.f32.mxu0 0.0
      %1104 = vmatmul.mubr.f32.gmra.mrb[0].mxu0 %v927
      %v1105 = vpop.f32.mrb[0].mxu0
      %v1106 = vadd.f32 %v205, %v1105
      %v1107 = vpop.f32.mrb[0].mxu0
      %1108 = vmatprep.mubr.f32.mxu0 0.0
      %1109 = vmatmul.mubr.f32.gmra.mrb[0].mxu0 %v930
      %v1110 = vpop.f32.mrb[0].mxu0
      %v1111 = vadd.f32 %v205, %v1110
      %v1112 = vpop.f32.mrb[0].mxu0
      %1113 = vmatprep.mubr.f32.mxu0 0.0
      %1114 = vmatmul.mubr.f32.gmra.mrb[0].mxu0 %v933
      %v1115 = vpop.f32.mrb[0].mxu0
      %v1116 = vadd.f32 %v205, %v1115
      %v1117 = vpop.f32.mrb[0].mxu0
      %1118 = vmatprep.mubr.f32.mxu0 0.0
      %1119 = vmatmul.mubr.f32.gmra.mrb[0].mxu0 %v936
      %v1120 = vpop.f32.mrb[0].mxu0
      %v1121 = vadd.f32 %v205, %v1120
      %v1122 = vpop.f32.mrb[0].mxu0
      %1123 = vmatprep.mubr.f32.mxu0 0.0
      %1124 = vmatmul.mubr.f32.gmra.mrb[0].mxu0 %v939
      %v1125 = vpop.f32.mrb[0].mxu0
      %v1126 = vadd.f32 %v205, %v1125
      %v1127 = vpop.f32.mrb[0].mxu0
      %1128 = vmatprep.mubr.f32.mxu0 0.0
      %1129 = vmatmul.mubr.f32.gmra.mrb[0].mxu0 %v942
      %v1130 = vpop.f32.mrb[0].mxu0
      %v1131 = vadd.f32 %v205, %v1130
      %v1132 = vpop.f32.mrb[0].mxu0
      %1133 = vdwg.mxu0
      %v1134 = vmax.f32 %v1011, 0.0
      %v1135 = vmax.f32 %v1016, 0.0
      %v1136 = vmax.f32 %v1021, 0.0
      %v1137 = vmax.f32 %v1026, 0.0
      %v1138 = vmax.f32 %v1031, 0.0
      %v1139 = vmax.f32 %v1036, 0.0
      %v1140 = vmax.f32 %v1041, 0.0
      %v1141 = vmax.f32 %v1046, 0.0
      %v1142 = vmax.f32 %v1051, 0.0
      %v1143 = vmax.f32 %v1056, 0.0
      %v1144 = vmax.f32 %v1061, 0.0
      %v1145 = vmax.f32 %v1066, 0.0
      %v1146 = vmax.f32 %v1071, 0.0
      %v1147 = vmax.f32 %v1076, 0.0
      %v1148 = vmax.f32 %v1081, 0.0
      %v1149 = vmax.f32 %v1086, 0.0
      %v1150 = vmax.f32 %v1091, 0.0
      %v1151 = vmax.f32 %v1096, 0.0
      %v1152 = vmax.f32 %v1101, 0.0
      %v1153 = vmax.f32 %v1106, 0.0
      %v1154 = vmax.f32 %v1111, 0.0
      %v1155 = vmax.f32 %v1116, 0.0
      %v1156 = vmax.f32 %v1121, 0.0
      %v1157 = vmax.f32 %v1126, 0.0
      %v1158 = vmax.f32 %v1131, 0.0
      %v1159 = vmax.f32 %v818, %v1134
      %v1160 = vmax.f32 %v819, %v1135
      %v1161 = vmax.f32 %v820, %v1136
      %v1162 = vmax.f32 %v821, %v1137
      %v1163 = vmax.f32 %v822, %v1138
      %v1164 = vmax.f32 %v823, %v1139
      %v1165 = vmax.f32 %v824, %v1140
      %v1166 = vmax.f32 %v825, %v1141
      %v1167 = vmax.f32 %v826, %v1142
      %v1168 = vmax.f32 %v827, %v1143
      %v1169 = vmax.f32 %v828, %v1144
      %v1170 = vmax.f32 %v829, %v1145
      %v1171 = vmax.f32 %v830, %v1146
      %v1172 = vmax.f32 %v831, %v1147
      %v1173 = vmax.f32 %v832, %v1148
      %v1174 = vmax.f32 %v833, %v1149
      %v1175 = vmax.f32 %v834, %v1150
      %v1176 = vmax.f32 %v835, %v1151
      %v1177 = vmax.f32 %v836, %v1152
      %v1178 = vmax.f32 %v837, %v1153
      %v1179 = vmax.f32 %v838, %v1154
      %v1180 = vmax.f32 %v839, %v1155
      %v1181 = vmax.f32 %v840, %v1156
      %v1182 = vmax.f32 %v841, %v1157
      %v1183 = vmax.f32 %v842, %v1158
      %s1184 = scalar_lea.vmem %s165, 600
      %v1185 = vld [vmem:[%s1184] sm:$0xff]
      %v1186 = vld [vmem:[%s1184 + $0x8] sm:$0xff]
      %v1187 = vld [vmem:[%s1184 + $0x10] sm:$0xff]
      %v1188 = vld [vmem:[%s1184 + $0x18] sm:$0xff]
      %v1189 = vld [vmem:[%s1184 + $0x20] sm:$0xff]
      %v1190 = vld [vmem:[%s1184 + $0x28] sm:$0xff]
      %v1191 = vld [vmem:[%s1184 + $0x30] sm:$0xff]
      %v1192 = vld [vmem:[%s1184 + $0x38] sm:$0xff]
      %v1193 = vld [vmem:[%s1184 + $0x40] sm:$0xff]
      %v1194 = vld [vmem:[%s1184 + $0x48] sm:$0xff]
      %v1195 = vld [vmem:[%s1184 + $0x50] sm:$0xff]
      %v1196 = vld [vmem:[%s1184 + $0x58] sm:$0xff]
      %v1197 = vld [vmem:[%s1184 + $0x60] sm:$0xff]
      %v1198 = vld [vmem:[%s1184 + $0x68] sm:$0xff]
      %v1199 = vld [vmem:[%s1184 + $0x70] sm:$0xff]
      %v1200 = vld [vmem:[%s1184 + $0x78] sm:$0xff]
      %v1201 = vld [vmem:[%s1184 + $0x80] sm:$0xff]
      %v1202 = vld [vmem:[%s1184 + $0x88] sm:$0xff]
      %v1203 = vld [vmem:[%s1184 + $0x90] sm:$0xff]
      %v1204 = vld [vmem:[%s1184 + $0x98] sm:$0xff]
      %v1205 = vld [vmem:[%s1184 + $0xa0] sm:$0xff]
      %v1206 = vld [vmem:[%s1184 + $0xa8] sm:$0xff]
      %v1207 = vld [vmem:[%s1184 + $0xb0] sm:$0xff]
      %v1208 = vld [vmem:[%s1184 + $0xb8] sm:$0xff]
      %v1209 = vld [vmem:[%s1184 + $0xc0] sm:$0xf]
      %v1211 = vsel %vm207, %v1185, 0
      %v1214 = vsel %vm207, %v1186, 0
      %v1217 = vsel %vm207, %v1187, 0
      %v1220 = vsel %vm207, %v1188, 0
      %v1223 = vsel %vm207, %v1189, 0
      %v1226 = vsel %vm207, %v1190, 0
      %v1229 = vsel %vm207, %v1191, 0
      %v1232 = vsel %vm207, %v1192, 0
      %v1235 = vsel %vm207, %v1193, 0
      %v1238 = vsel %vm207, %v1194, 0
      %v1241 = vsel %vm207, %v1195, 0
      %v1244 = vsel %vm207, %v1196, 0
      %v1247 = vsel %vm207, %v1197, 0
      %v1250 = vsel %vm207, %v1198, 0
      %v1253 = vsel %vm207, %v1199, 0
      %v1256 = vsel %vm207, %v1200, 0
      %v1259 = vsel %vm207, %v1201, 0
      %v1262 = vsel %vm207, %v1202, 0
      %v1265 = vsel %vm207, %v1203, 0
      %v1268 = vsel %vm207, %v1204, 0
      %v1271 = vsel %vm207, %v1205, 0
      %v1274 = vsel %vm207, %v1206, 0
      %v1277 = vsel %vm207, %v1207, 0
      %v1280 = vsel %vm207, %v1208, 0
      %v1283 = vsel %vm207, %v1209, 0
      %1285 = vmatprep.subr.mxu0 0.0
      %1286 = vmatpush1.msra.mxu0 %v171
      %1287 = vmatprep.subr.mxu0 0.0
      %1288 = vmatpush1.msra.mxu0 %v172
      %1289 = vmatprep.subr.mxu0 0.0
      %1290 = vmatpush1.msra.mxu0 %v173
      %1291 = vmatprep.subr.mxu0 0.0
      %1292 = vmatpush1.msra.mxu0 %v285
      %1293 = vmatprep.subr.mxu0 0.0
      %1294 = vmatpush1.msra.mxu0 0.0
      %1295 = vmatprep.subr.mxu0 0.0
      %1296 = vmatpush1.msra.mxu0 0.0
      %1297 = vmatprep.subr.mxu0 0.0
      %1298 = vmatpush1.msra.mxu0 0.0
      %1299 = vmatprep.subr.mxu0 0.0
      %1300 = vmatpush1.msra.mxu0 0.0
      %1301 = vmatprep.subr.mxu0 0.0
      %1302 = vmatpush1.msra.mxu0 0.0
      %1303 = vmatprep.subr.mxu0 0.0
      %1304 = vmatpush1.msra.mxu0 0.0
      %1305 = vmatprep.subr.mxu0 0.0
      %1306 = vmatpush1.msra.mxu0 0.0
      %1307 = vmatprep.subr.mxu0 0.0
      %1308 = vmatpush1.msra.mxu0 0.0
      %1309 = vmatprep.subr.mxu0 0.0
      %1310 = vmatpush1.msra.mxu0 0.0
      %1311 = vmatprep.subr.mxu0 0.0
      %1312 = vmatpush1.msra.mxu0 0.0
      %1313 = vmatprep.subr.mxu0 0.0
      %1314 = vmatpush1.msra.mxu0 0.0
      %1315 = vmatprep.subr.mxu0 0.0
      %1316 = vmatpush1.msra.mxu0 0.0
      %1317 = vmatprep.subr.mxu0 0.0
      %1318 = vmatpush1.msra.mxu0 0.0
      %1319 = vmatprep.subr.mxu0 0.0
      %1320 = vmatpush1.msra.mxu0 0.0
      %1321 = vmatprep.subr.mxu0 0.0
      %1322 = vmatpush1.msra.mxu0 0.0
      %1323 = vmatprep.subr.mxu0 0.0
      %1324 = vmatpush1.msra.mxu0 0.0
      %1325 = vmatprep.subr.mxu0 0.0
      %1326 = vmatpush1.msra.mxu0 0.0
      %1327 = vmatprep.subr.mxu0 0.0
      %1328 = vmatpush1.msra.mxu0 0.0
      %1329 = vmatprep.subr.mxu0 0.0
      %1330 = vmatpush1.msra.mxu0 0.0
      %1331 = vmatprep.subr.mxu0 0.0
      %1332 = vmatpush1.msra.mxu0 0.0
      %1333 = vmatprep.subr.mxu0 0.0
      %1334 = vmatpush1.msra.mxu0 0.0
      %1335 = vmatprep.subr.mxu0 0.0
      %1336 = vmatpush1.msra.mxu0 0.0
      %1337 = vmatprep.subr.mxu0 0.0
      %1338 = vmatpush1.msra.mxu0 0.0
      %1339 = vmatprep.subr.mxu0 0.0
      %1340 = vmatpush1.msra.mxu0 0.0
      %1341 = vmatprep.subr.mxu0 0.0
      %1342 = vmatpush1.msra.mxu0 0.0
      %1343 = vmatprep.subr.mxu0 0.0
      %1344 = vmatpush1.msra.mxu0 0.0
      %1345 = vmatprep.subr.mxu0 0.0
      %1346 = vmatpush1.msra.mxu0 0.0
      %1347 = vmatprep.subr.mxu0 0.0
      %1348 = vmatpush1.msra.mxu0 0.0
      %1349 = vmatprep.mubr.f32.mxu0 0.0
      %1350 = vmatmul.mubr.f32.gmra.mrb[0].mxu0 %v1211
      %v1351 = vpop.f32.mrb[0].mxu0
      %v1352 = vadd.f32 %v205, %v1351
      %v1353 = vpop.f32.mrb[0].mxu0
      %1354 = vmatprep.mubr.f32.mxu0 0.0
      %1355 = vmatmul.mubr.f32.gmra.mrb[0].mxu0 %v1214
      %v1356 = vpop.f32.mrb[0].mxu0
      %v1357 = vadd.f32 %v205, %v1356
      %v1358 = vpop.f32.mrb[0].mxu0
      %1359 = vmatprep.mubr.f32.mxu0 0.0
      %1360 = vmatmul.mubr.f32.gmra.mrb[0].mxu0 %v1217
      %v1361 = vpop.f32.mrb[0].mxu0
      %v1362 = vadd.f32 %v205, %v1361
      %v1363 = vpop.f32.mrb[0].mxu0
      %1364 = vmatprep.mubr.f32.mxu0 0.0
      %1365 = vmatmul.mubr.f32.gmra.mrb[0].mxu0 %v1220
      %v1366 = vpop.f32.mrb[0].mxu0
      %v1367 = vadd.f32 %v205, %v1366
      %v1368 = vpop.f32.mrb[0].mxu0
      %1369 = vmatprep.mubr.f32.mxu0 0.0
      %1370 = vmatmul.mubr.f32.gmra.mrb[0].mxu0 %v1223
      %v1371 = vpop.f32.mrb[0].mxu0
      %v1372 = vadd.f32 %v205, %v1371
      %v1373 = vpop.f32.mrb[0].mxu0
      %1374 = vmatprep.mubr.f32.mxu0 0.0
      %1375 = vmatmul.mubr.f32.gmra.mrb[0].mxu0 %v1226
      %v1376 = vpop.f32.mrb[0].mxu0
      %v1377 = vadd.f32 %v205, %v1376
      %v1378 = vpop.f32.mrb[0].mxu0
      %1379 = vmatprep.mubr.f32.mxu0 0.0
      %1380 = vmatmul.mubr.f32.gmra.mrb[0].mxu0 %v1229
      %v1381 = vpop.f32.mrb[0].mxu0
      %v1382 = vadd.f32 %v205, %v1381
      %v1383 = vpop.f32.mrb[0].mxu0
      %1384 = vmatprep.mubr.f32.mxu0 0.0
      %1385 = vmatmul.mubr.f32.gmra.mrb[0].mxu0 %v1232
      %v1386 = vpop.f32.mrb[0].mxu0
      %v1387 = vadd.f32 %v205, %v1386
      %v1388 = vpop.f32.mrb[0].mxu0
      %1389 = vmatprep.mubr.f32.mxu0 0.0
      %1390 = vmatmul.mubr.f32.gmra.mrb[0].mxu0 %v1235
      %v1391 = vpop.f32.mrb[0].mxu0
      %v1392 = vadd.f32 %v205, %v1391
      %v1393 = vpop.f32.mrb[0].mxu0
      %1394 = vmatprep.mubr.f32.mxu0 0.0
      %1395 = vmatmul.mubr.f32.gmra.mrb[0].mxu0 %v1238
      %v1396 = vpop.f32.mrb[0].mxu0
      %v1397 = vadd.f32 %v205, %v1396
      %v1398 = vpop.f32.mrb[0].mxu0
      %1399 = vmatprep.mubr.f32.mxu0 0.0
      %1400 = vmatmul.mubr.f32.gmra.mrb[0].mxu0 %v1241
      %v1401 = vpop.f32.mrb[0].mxu0
      %v1402 = vadd.f32 %v205, %v1401
      %v1403 = vpop.f32.mrb[0].mxu0
      %1404 = vmatprep.mubr.f32.mxu0 0.0
      %1405 = vmatmul.mubr.f32.gmra.mrb[0].mxu0 %v1244
      %v1406 = vpop.f32.mrb[0].mxu0
      %v1407 = vadd.f32 %v205, %v1406
      %v1408 = vpop.f32.mrb[0].mxu0
      %1409 = vmatprep.mubr.f32.mxu0 0.0
      %1410 = vmatmul.mubr.f32.gmra.mrb[0].mxu0 %v1247
      %v1411 = vpop.f32.mrb[0].mxu0
      %v1412 = vadd.f32 %v205, %v1411
      %v1413 = vpop.f32.mrb[0].mxu0
      %1414 = vmatprep.mubr.f32.mxu0 0.0
      %1415 = vmatmul.mubr.f32.gmra.mrb[0].mxu0 %v1250
      %v1416 = vpop.f32.mrb[0].mxu0
      %v1417 = vadd.f32 %v205, %v1416
      %v1418 = vpop.f32.mrb[0].mxu0
      %1419 = vmatprep.mubr.f32.mxu0 0.0
      %1420 = vmatmul.mubr.f32.gmra.mrb[0].mxu0 %v1253
      %v1421 = vpop.f32.mrb[0].mxu0
      %v1422 = vadd.f32 %v205, %v1421
      %v1423 = vpop.f32.mrb[0].mxu0
      %1424 = vmatprep.mubr.f32.mxu0 0.0
      %1425 = vmatmul.mubr.f32.gmra.mrb[0].mxu0 %v1256
      %v1426 = vpop.f32.mrb[0].mxu0
      %v1427 = vadd.f32 %v205, %v1426
      %v1428 = vpop.f32.mrb[0].mxu0
      %1429 = vmatprep.mubr.f32.mxu0 0.0
      %1430 = vmatmul.mubr.f32.gmra.mrb[0].mxu0 %v1259
      %v1431 = vpop.f32.mrb[0].mxu0
      %v1432 = vadd.f32 %v205, %v1431
      %v1433 = vpop.f32.mrb[0].mxu0
      %1434 = vmatprep.mubr.f32.mxu0 0.0
      %1435 = vmatmul.mubr.f32.gmra.mrb[0].mxu0 %v1262
      %v1436 = vpop.f32.mrb[0].mxu0
      %v1437 = vadd.f32 %v205, %v1436
      %v1438 = vpop.f32.mrb[0].mxu0
      %1439 = vmatprep.mubr.f32.mxu0 0.0
      %1440 = vmatmul.mubr.f32.gmra.mrb[0].mxu0 %v1265
      %v1441 = vpop.f32.mrb[0].mxu0
      %v1442 = vadd.f32 %v205, %v1441
      %v1443 = vpop.f32.mrb[0].mxu0
      %1444 = vmatprep.mubr.f32.mxu0 0.0
      %1445 = vmatmul.mubr.f32.gmra.mrb[0].mxu0 %v1268
      %v1446 = vpop.f32.mrb[0].mxu0
      %v1447 = vadd.f32 %v205, %v1446
      %v1448 = vpop.f32.mrb[0].mxu0
      %1449 = vmatprep.mubr.f32.mxu0 0.0
      %1450 = vmatmul.mubr.f32.gmra.mrb[0].mxu0 %v1271
      %v1451 = vpop.f32.mrb[0].mxu0
      %v1452 = vadd.f32 %v205, %v1451
      %v1453 = vpop.f32.mrb[0].mxu0
      %1454 = vmatprep.mubr.f32.mxu0 0.0
      %1455 = vmatmul.mubr.f32.gmra.mrb[0].mxu0 %v1274
      %v1456 = vpop.f32.mrb[0].mxu0
      %v1457 = vadd.f32 %v205, %v1456
      %v1458 = vpop.f32.mrb[0].mxu0
      %1459 = vmatprep.mubr.f32.mxu0 0.0
      %1460 = vmatmul.mubr.f32.gmra.mrb[0].mxu0 %v1277
      %v1461 = vpop.f32.mrb[0].mxu0
      %v1462 = vadd.f32 %v205, %v1461
      %v1463 = vpop.f32.mrb[0].mxu0
      %1464 = vmatprep.mubr.f32.mxu0 0.0
      %1465 = vmatmul.mubr.f32.gmra.mrb[0].mxu0 %v1280
      %v1466 = vpop.f32.mrb[0].mxu0
      %v1467 = vadd.f32 %v205, %v1466
      %v1468 = vpop.f32.mrb[0].mxu0
      %1469 = vmatprep.mubr.f32.mxu0 0.0
      %1470 = vmatmul.mubr.f32.gmra.mrb[0].mxu0 %v1283
      %v1471 = vpop.f32.mrb[0].mxu0
      %v1472 = vadd.f32 %v205, %v1471
      %v1473 = vpop.f32.mrb[0].mxu0
      %1474 = vdwg.mxu0
      %v1475 = vmax.f32 %v1352, 0.0
      %v1476 = vmax.f32 %v1357, 0.0
      %v1477 = vmax.f32 %v1362, 0.0
      %v1478 = vmax.f32 %v1367, 0.0
      %v1479 = vmax.f32 %v1372, 0.0
      %v1480 = vmax.f32 %v1377, 0.0
      %v1481 = vmax.f32 %v1382, 0.0
      %v1482 = vmax.f32 %v1387, 0.0
      %v1483 = vmax.f32 %v1392, 0.0
      %v1484 = vmax.f32 %v1397, 0.0
      %v1485 = vmax.f32 %v1402, 0.0
      %v1486 = vmax.f32 %v1407, 0.0
      %v1487 = vmax.f32 %v1412, 0.0
      %v1488 = vmax.f32 %v1417, 0.0
      %v1489 = vmax.f32 %v1422, 0.0
      %v1490 = vmax.f32 %v1427, 0.0
      %v1491 = vmax.f32 %v1432, 0.0
      %v1492 = vmax.f32 %v1437, 0.0
      %v1493 = vmax.f32 %v1442, 0.0
      %v1494 = vmax.f32 %v1447, 0.0
      %v1495 = vmax.f32 %v1452, 0.0
      %v1496 = vmax.f32 %v1457, 0.0
      %v1497 = vmax.f32 %v1462, 0.0
      %v1498 = vmax.f32 %v1467, 0.0
      %v1499 = vmax.f32 %v1472, 0.0
      %v1500 = vmax.f32 %v1159, %v1475
      %v1501 = vmax.f32 %v1160, %v1476
      %v1502 = vmax.f32 %v1161, %v1477
      %v1503 = vmax.f32 %v1162, %v1478
      %v1504 = vmax.f32 %v1163, %v1479
      %v1505 = vmax.f32 %v1164, %v1480
      %v1506 = vmax.f32 %v1165, %v1481
      %v1507 = vmax.f32 %v1166, %v1482
      %v1508 = vmax.f32 %v1167, %v1483
      %v1509 = vmax.f32 %v1168, %v1484
      %v1510 = vmax.f32 %v1169, %v1485
      %v1511 = vmax.f32 %v1170, %v1486
      %v1512 = vmax.f32 %v1171, %v1487
      %v1513 = vmax.f32 %v1172, %v1488
      %v1514 = vmax.f32 %v1173, %v1489
      %v1515 = vmax.f32 %v1174, %v1490
      %v1516 = vmax.f32 %v1175, %v1491
      %v1517 = vmax.f32 %v1176, %v1492
      %v1518 = vmax.f32 %v1177, %v1493
      %v1519 = vmax.f32 %v1178, %v1494
      %v1520 = vmax.f32 %v1179, %v1495
      %v1521 = vmax.f32 %v1180, %v1496
      %v1522 = vmax.f32 %v1181, %v1497
      %v1523 = vmax.f32 %v1182, %v1498
      %v1524 = vmax.f32 %v1183, %v1499
      %vm1525 = vcmask 261120
      %1526 = vst.msk [vmem:[%s170] sm:$0xff] %vm1525, %v1500
      %1527 = vst.msk [vmem:[%s170 + $0x8] sm:$0xff] %vm1525, %v1501
      %1528 = vst.msk [vmem:[%s170 + $0x10] sm:$0xff] %vm1525, %v1502
      %1529 = vst.msk [vmem:[%s170 + $0x18] sm:$0xff] %vm1525, %v1503
      %1530 = vst.msk [vmem:[%s170 + $0x20] sm:$0xff] %vm1525, %v1504
      %1531 = vst.msk [vmem:[%s170 + $0x28] sm:$0xff] %vm1525, %v1505
      %1532 = vst.msk [vmem:[%s170 + $0x30] sm:$0xff] %vm1525, %v1506
      %1533 = vst.msk [vmem:[%s170 + $0x38] sm:$0xff] %vm1525, %v1507
      %1534 = vst.msk [vmem:[%s170 + $0x40] sm:$0xff] %vm1525, %v1508
      %1535 = vst.msk [vmem:[%s170 + $0x48] sm:$0xff] %vm1525, %v1509
      %1536 = vst.msk [vmem:[%s170 + $0x50] sm:$0xff] %vm1525, %v1510
      %1537 = vst.msk [vmem:[%s170 + $0x58] sm:$0xff] %vm1525, %v1511
      %1538 = vst.msk [vmem:[%s170 + $0x60] sm:$0xff] %vm1525, %v1512
      %1539 = vst.msk [vmem:[%s170 + $0x68] sm:$0xff] %vm1525, %v1513
      %1540 = vst.msk [vmem:[%s170 + $0x70] sm:$0xff] %vm1525, %v1514
      %1541 = vst.msk [vmem:[%s170 + $0x78] sm:$0xff] %vm1525, %v1515
      %1542 = vst.msk [vmem:[%s170 + $0x80] sm:$0xff] %vm1525, %v1516
      %1543 = vst.msk [vmem:[%s170 + $0x88] sm:$0xff] %vm1525, %v1517
      %1544 = vst.msk [vmem:[%s170 + $0x90] sm:$0xff] %vm1525, %v1518
      %1545 = vst.msk [vmem:[%s170 + $0x98] sm:$0xff] %vm1525, %v1519
      %1546 = vst.msk [vmem:[%s170 + $0xa0] sm:$0xff] %vm1525, %v1520
      %1547 = vst.msk [vmem:[%s170 + $0xa8] sm:$0xff] %vm1525, %v1521
      %1548 = vst.msk [vmem:[%s170 + $0xb0] sm:$0xff] %vm1525, %v1522
      %1549 = vst.msk [vmem:[%s170 + $0xb8] sm:$0xff] %vm1525, %v1523
      %vm1550 = vcmask 257024
      %1551 = vst.msk [vmem:[%s170 + $0xc0] sm:$0xf] %vm1550, %v1524
      %p1552 = scmp.lt.s32.totalorder %s14, 3
      %s1553 = scalar_select %p1552, %s14, 3
      %s1554 = smul.addr %s1553, 25
      %s1555 = smul.addr %s1554, 8
      %s1556 = scalar_lea.vmem %s3, %s1555
      // Predicated region
      $region33: #{digit_adder_forward.3} parent=31 // pred_check
        %p1557 = pneg %p100
      $region34: #{digit_adder_forward.3} parent=31 // pred_check_branch
        %1559 = sbr.rel (%p1557) target = $region36
      $region35: #{digit_adder_forward.3} parent=31 // pred_region
        _
      $region36: #{digit_adder_forward.3} parent=31 // pred_fallthru
        _
    $region32: #{digit_adder_forward.3} parent=5 // pred_fallthru
      _
    %p1560 = scmp.le.s32.totalorder 2, %s9
    // Predicated region
    $region37: #{digit_adder_forward.3} parent=5 // pred_check
      %p1561 = pneg %p1560
    $region38: #{digit_adder_forward.3} parent=5 // pred_check_branch
      %1563 = sbr.rel (%p1561) target = $region40
    $region39: #{digit_adder_forward.3} parent=5 // pred_region
      %s1564 = ssub.s32 %s9, 2
      // Predicated region
      $region41: #{digit_adder_forward.3} parent=39 // pred_check
        %p1565 = pneg %p106
      $region42: #{digit_adder_forward.3} parent=39 // pred_check_branch
        %1567 = sbr.rel (%p1565) target = $region44
      $region43: #{digit_adder_forward.3} parent=39 // pred_region
        %p1568 = scmp.lt.s32.totalorder %s15, 3
        %s1569 = scalar_select %p1568, %s15, 3
        %s1570 = smul.addr %s1569, 25
        %s1571 = smul.addr %s1570, 8
        %s1572 = scalar_lea.vmem %s3, %s1571
      $region44: #{digit_adder_forward.3} parent=39 // pred_fallthru
        _
    $region40: #{digit_adder_forward.3} parent=5 // pred_fallthru
      _
  $region6: #{digit_adder_forward.3} parent=0 // loop_footer
    %s13 = sadd.s32 1, %s9
  $region7: #{digit_adder_forward.3} parent=0 // loop_footer_branch
    %8 = sbr.rel target = $region3
  $region8: #{digit_adder_forward.3} parent=0 // loop_exit
    _

// kernel: digit_adder_forward.4
$region0: #{digit_adder_forward.4}
  #allocation0 [shape = 'u32[]', space=smem, size = 0x4, offset = 0x4, fixed_abs, tag = 'smem constant byte address 0x4 - core index']
  #allocation1 [shape = 'u32[144,128]{1,0:T(1,128)}', space=vmem, size = 0x12000, scoped, tag = 'internal scratch']
  %s0 = inlined_call_operand.vmem [shape: f32[4,4,49,800], index: 0, kind: input, shape index: {}]
  %s1 = inlined_call_operand.vmem [shape: f32[800,64], index: 1, kind: input, shape index: {}]
  %s2 = inlined_call_operand.vmem [shape: f32[1,64], index: 2, kind: input, shape index: {}]
  %s3 = inlined_call_operand.vmem [shape: f32[4,49,64], index: 3, kind: output, shape index: {}]
  %s4 = sld [smem:[#allocation0]]
  $region45: #{digit_adder_forward.4} parent=0
    _
  %s6 = ssub.s32 1, %s4
  %s7 = scalar_select 0, %s6, %s4
  loop: start=0, step=1, limit=6
  $region2: #{digit_adder_forward.4} parent=0 // loop_pre_header
    _
  $region3: #{digit_adder_forward.4} parent=0 // loop_header
    %s9 = sphi 0, %s13
    %p10 = scmp.ge.s32.totalorder %s9, 6
    %s19 = sphi 0, %s21
    %s22 = sphi 0, %s19
    %s23 = sphi 0, %s22
    %s39 = sphi 0, %s23
    %s43 = sphi 0, %s43
    %s45 = sphi 0, %s43
    %s46 = sphi 0, %s45
    %s60 = sphi 0, %s46
    %s64 = sphi 0, %s64
    %s66 = sphi 0, %s64
    %s67 = sphi 0, %s66
    %s81 = sphi 0, %s67
    %s87 = sphi 0, %s89
    %s90 = sphi 0, %s87
    %s91 = sphi 0, %s90
    %s107 = sphi 0, %s91
  $region4: #{digit_adder_forward.4} parent=0 // loop_header_branch
    %12 = sbr.rel (%p10) target = $region8
  $region5: #{digit_adder_forward.4} parent=0 // loop_body
    %s14 = ssub.s32 %s9, 1
    %s15 = ssub.s32 %s9, 2
    %s16 = sadd.s32 %s9, 1
    %s17 = ssub.s32 %s9, %s16
    %p18 = scmp.eq.s32.totalorder %s17, 0
    %s20 = sadd.s32 %s19, 1
    %s21 = scalar_select %p18, %s19, %s20
    %p24 = pneg %p18
    %p25 = scmp.eq.s32.totalorder %s9, 3
    %p26 = por %p24, %p25
    %p27 = scmp.ne.s32.totalorder %s19, %s22
    %p28 = scmp.eq.s32.totalorder %s9, 0
    %p29 = por %p27, %p28
    %p30 = scmp.ne.s32.totalorder %s19, %s22
    %p31 = scmp.eq.s32.totalorder %s14, 3
    %p32 = por %p30, %p31
    %p33 = scmp.ne.s32.totalorder %s22, %s23
    %p34 = scmp.eq.s32.totalorder %s14, 0
    %p35 = por %p33, %p34
    %p36 = scmp.ne.s32.totalorder %s22, %s23
    %p37 = scmp.eq.s32.totalorder %s15, 3
    %p38 = por %p36, %p37
    %p40 = scmp.ne.s32.totalorder %s23, %s39
    %p41 = scmp.eq.s32.totalorder %s15, 0
    %p42 = por %p40, %p41
    %s44 = sadd.s32 %s43, 1
    %p47 = scmp.eq.s32.totalorder %s9, 3
    %p48 = scmp.ne.s32.totalorder %s43, %s45
    %p49 = scmp.eq.s32.totalorder %s9, 0
    %p50 = por %p48, %p49
    %p51 = scmp.ne.s32.totalorder %s43, %s45
    %p52 = scmp.eq.s32.totalorder %s14, 3
    %p53 = por %p51, %p52
    %p54 = scmp.ne.s32.totalorder %s45, %s46
    %p55 = scmp.eq.s32.totalorder %s14, 0
    %p56 = por %p54, %p55
    %p57 = scmp.ne.s32.totalorder %s45, %s46
    %p58 = scmp.eq.s32.totalorder %s15, 3
    %p59 = por %p57, %p58
    %p61 = scmp.ne.s32.totalorder %s46, %s60
    %p62 = scmp.eq.s32.totalorder %s15, 0
    %p63 = por %p61, %p62
    %s65 = sadd.s32 %s64, 1
    %p68 = scmp.eq.s32.totalorder %s9, 3
    %p69 = scmp.ne.s32.totalorder %s64, %s66
    %p70 = scmp.eq.s32.totalorder %s9, 0
    %p71 = por %p69, %p70
    %p72 = scmp.ne.s32.totalorder %s64, %s66
    %p73 = scmp.eq.s32.totalorder %s14, 3
    %p74 = por %p72, %p73
    %p75 = scmp.ne.s32.totalorder %s66, %s67
    %p76 = scmp.eq.s32.totalorder %s14, 0
    %p77 = por %p75, %p76
    %p78 = scmp.ne.s32.totalorder %s66, %s67
    %p79 = scmp.eq.s32.totalorder %s15, 3
    %p80 = por %p78, %p79
    %p82 = scmp.ne.s32.totalorder %s67, %s81
    %p83 = scmp.eq.s32.totalorder %s15, 0
    %p84 = por %p82, %p83
    %s85 = ssub.s32 %s9, %s16
    %p86 = scmp.eq.s32.totalorder %s85, 0
    %s88 = sadd.s32 %s87, 1
    %s89 = scalar_select %p86, %s87, %s88
    %p92 = pneg %p86
    %p93 = scmp.eq.s32.totalorder %s9, 3
    %p94 = por %p92, %p93
    %p95 = scmp.ne.s32.totalorder %s87, %s90
    %p96 = scmp.eq.s32.totalorder %s9, 0
    %p97 = por %p95, %p96
    %p98 = scmp.ne.s32.totalorder %s87, %s90
    %p99 = scmp.eq.s32.totalorder %s14, 3
    %p100 = por %p98, %p99
    %p101 = scmp.ne.s32.totalorder %s90, %s91
    %p102 = scmp.eq.s32.totalorder %s14, 0
    %p103 = por %p101, %p102
    %p104 = scmp.ne.s32.totalorder %s90, %s91
    %p105 = scmp.eq.s32.totalorder %s15, 3
    %p106 = por %p104, %p105
    %p108 = scmp.ne.s32.totalorder %s91, %s107
    %p109 = scmp.eq.s32.totalorder %s15, 0
    %p110 = por %p108, %p109
    %p111 = scmp.le.s32.totalorder 1, %s9
    %p112 = scmp.lt.s32.totalorder %s9, 5
    %p113 = pnand %p111, %p112
    %p114 = pneg %p113
    // Predicated region
    $region9: #{digit_adder_forward.4} parent=5 // pred_check
      _
    $region10: #{digit_adder_forward.4} parent=5 // pred_check_branch
      %116 = sbr.rel (%p113) target = $region12
    $region11: #{digit_adder_forward.4} parent=5 // pred_region
      %s117 = ssub.s32 %s9, 1
      // Predicated region
      $region13: #{digit_adder_forward.4} parent=11 // pred_check
        %p118 = pneg %p56
      $region14: #{digit_adder_forward.4} parent=11 // pred_check_branch
        %120 = sbr.rel (%p118) target = $region16
      $region15: #{digit_adder_forward.4} parent=11 // pred_region
        _
      $region16: #{digit_adder_forward.4} parent=11 // pred_fallthru
        _
      // Predicated region
      $region17: #{digit_adder_forward.4} parent=11 // pred_check
        %p121 = pneg %p77
      $region18: #{digit_adder_forward.4} parent=11 // pred_check_branch
        %123 = sbr.rel (%p121) target = $region20
      $region19: #{digit_adder_forward.4} parent=11 // pred_region
        _
      $region20: #{digit_adder_forward.4} parent=11 // pred_fallthru
        _
    $region12: #{digit_adder_forward.4} parent=5 // pred_fallthru
      _
    %p124 = scmp.lt.s32.totalorder %s9, 4
    // Predicated region
    $region21: #{digit_adder_forward.4} parent=5 // pred_check
      %p125 = pneg %p124
    $region22: #{digit_adder_forward.4} parent=5 // pred_check_branch
      %127 = sbr.rel (%p125) target = $region24
    $region23: #{digit_adder_forward.4} parent=5 // pred_region
      // Predicated region
      $region25: #{digit_adder_forward.4} parent=23 // pred_check
        %p128 = pneg %p29
      $region26: #{digit_adder_forward.4} parent=23 // pred_check_branch
        %130 = sbr.rel (%p128) target = $region28
      $region27: #{digit_adder_forward.4} parent=23 // pred_region
        %p131 = scmp.lt.s32.totalorder %s9, 3
        %s132 = scalar_select %p131, %s9, 3
        %s133 = smul.addr %s132, 196
        %s134 = smul.addr %s133, 8
        %s135 = scalar_lea.vmem %s0, %s134
      $region28: #{digit_adder_forward.4} parent=23 // pred_fallthru
        _
    $region24: #{digit_adder_forward.4} parent=5 // pred_fallthru
      _
    %p136 = scmp.le.s32.totalorder 1, %s9
    %p137 = scmp.lt.s32.totalorder %s9, 5
    %p138 = pnand %p136, %p137
    %p139 = pneg %p138
    // Predicated region
    $region29: #{digit_adder_forward.4} parent=5 // pred_check
      _
    $region30: #{digit_adder_forward.4} parent=5 // pred_check_branch
      %141 = sbr.rel (%p138) target = $region32
    $region31: #{digit_adder_forward.4} parent=5 // pred_region
      %s142 = ssub.s32 %s9, 1
      %p143 = scmp.lt.s32.totalorder %s14, 3
      %s144 = scalar_select %p143, %s14, 3
      %s145 = smul.addr %s144, 196
      %s146 = smul.addr %s145, 8
      %s147 = scalar_lea.vmem %s0, %s146
      %p148 = pneg %p35
      %p149 = pneg %p32
      %p150 = pneg %p56
      %p151 = pneg %p53
      %p152 = pneg %p77
      %p153 = pneg %p74
      %p154 = pneg %p103
      %p155 = pneg %p100
      %p156 = scmp.lt.s32.totalorder %s14, 3
      %s157 = scalar_select %p156, %s14, 3
      %s158 = smul.addr %s157, 7
      %s159 = smul.addr %s158, 8
      %s160 = scalar_lea.vmem %s3, %s159
      %p161 = scmp.lt.s32.totalorder %s14, 3
      %s162 = scalar_select %p161, %s14, 3
      %s163 = smul.addr %s162, 196
      %s164 = smul.addr %s163, 8
      %s165 = scalar_lea.vmem %s0, %s164
      %p166 = scmp.lt.s32.totalorder %s14, 3
      %s167 = scalar_select %p166, %s14, 3
      %s168 = smul.addr %s167, 7
      %s169 = smul.addr %s168, 8
      %s170 = scalar_lea.vmem %s3, %s169
      %v171 = vld [vmem:[%s1] sm:$0xff]
      %v172 = vld [vmem:[%s1 + $0x8] sm:$0xff]
      %v173 = vld [vmem:[%s1 + $0x10] sm:$0xff]
      %v174 = vld [vmem:[%s1 + $0x18] sm:$0xff]
      %v175 = vld [vmem:[%s1 + $0x20] sm:$0xff]
      %v176 = vld [vmem:[%s1 + $0x28] sm:$0xff]
      %v177 = vld [vmem:[%s1 + $0x30] sm:$0xff]
      %v178 = vld [vmem:[%s1 + $0x38] sm:$0xff]
      %v179 = vld [vmem:[%s1 + $0x40] sm:$0xff]
      %v180 = vld [vmem:[%s1 + $0x48] sm:$0xff]
      %v181 = vld [vmem:[%s1 + $0x50] sm:$0xff]
      %v182 = vld [vmem:[%s1 + $0x58] sm:$0xff]
      %v183 = vld [vmem:[%s1 + $0x60] sm:$0xff]
      %v184 = vld [vmem:[%s1 + $0x68] sm:$0xff]
      %v185 = vld [vmem:[%s1 + $0x70] sm:$0xff]
      %v186 = vld [vmem:[%s1 + $0x78] sm:$0xff]
      %v187 = vld [vmem:[%s1 + $0x80] sm:$0xff]
      %v188 = vld [vmem:[%s1 + $0x88] sm:$0xff]
      %v189 = vld [vmem:[%s1 + $0x90] sm:$0xff]
      %v190 = vld [vmem:[%s1 + $0x98] sm:$0xff]
      %v191 = vld [vmem:[%s1 + $0xa0] sm:$0xff]
      %v192 = vld [vmem:[%s1 + $0xa8] sm:$0xff]
      %v193 = vld [vmem:[%s1 + $0xb0] sm:$0xff]
      %v194 = vld [vmem:[%s1 + $0xb8] sm:$0xff]
      %v195 = vld [vmem:[%s1 + $0xc0] sm:$0xff]
      %v196 = vld [vmem:[%s1 + $0xc8] sm:$0xff]
      %v197 = vld [vmem:[%s1 + $0xd0] sm:$0xff]
      %v198 = vld [vmem:[%s1 + $0xd8] sm:$0xff]
      %v199 = vld [vmem:[%s1 + $0xe0] sm:$0xff]
      %v200 = vld [vmem:[%s1 + $0xe8] sm:$0xff]
      %v201 = vld [vmem:[%s1 + $0xf0] sm:$0xff]
      %v202 = vld [vmem:[%s1 + $0xf8] sm:$0xff]
      %v203 = vld [vmem:[%s1 + $0x100] sm:$0xff]
      %v204 = vld [vmem:[%s1 + $0x108] sm:$0xff]
      %v205 = vld [vmem:[%s1 + $0x110] sm:$0xff]
      %v206 = vld [vmem:[%s1 + $0x118] sm:$0xff]
      %v207 = vld [vmem:[%s1 + $0x120] sm:$0xff]
      %v208 = vld [vmem:[%s1 + $0x128] sm:$0xff]
      %v209 = vld [vmem:[%s1 + $0x130] sm:$0xff]
      %v210 = vld [vmem:[%s1 + $0x138] sm:$0xff]
      %v211 = vld [vmem:[%s1 + $0x140] sm:$0xff]
      %v212 = vld [vmem:[%s1 + $0x148] sm:$0xff]
      %v213 = vld [vmem:[%s1 + $0x150] sm:$0xff]
      %v214 = vld [vmem:[%s1 + $0x158] sm:$0xff]
      %v215 = vld [vmem:[%s1 + $0x160] sm:$0xff]
      %v216 = vld [vmem:[%s1 + $0x168] sm:$0xff]
      %v217 = vld [vmem:[%s1 + $0x170] sm:$0xff]
      %v218 = vld [vmem:[%s1 + $0x178] sm:$0xff]
      %v219 = vld [vmem:[%s1 + $0x180] sm:$0xff]
      %v220 = vld [vmem:[%s1 + $0x188] sm:$0xff]
      %v221 = vld [vmem:[%s1 + $0x190] sm:$0xff]
      %v222 = vld [vmem:[%s1 + $0x198] sm:$0xff]
      %v223 = vld [vmem:[%s1 + $0x1a0] sm:$0xff]
      %v224 = vld [vmem:[%s1 + $0x1a8] sm:$0xff]
      %v225 = vld [vmem:[%s1 + $0x1b0] sm:$0xff]
      %v226 = vld [vmem:[%s1 + $0x1b8] sm:$0xff]
      %v227 = vld [vmem:[%s1 + $0x1c0] sm:$0xff]
      %v228 = vld [vmem:[%s1 + $0x1c8] sm:$0xff]
      %v229 = vld [vmem:[%s1 + $0x1d0] sm:$0xff]
      %v230 = vld [vmem:[%s1 + $0x1d8] sm:$0xff]
      %v231 = vld [vmem:[%s1 + $0x1e0] sm:$0xff]
      %v232 = vld [vmem:[%s1 + $0x1e8] sm:$0xff]
      %v233 = vld [vmem:[%s1 + $0x1f0] sm:$0xff]
      %v234 = vld [vmem:[%s1 + $0x1f8] sm:$0xff]
      %v235 = vld [vmem:[%s1 + $0x200] sm:$0xff]
      %v236 = vld [vmem:[%s1 + $0x208] sm:$0xff]
      %v237 = vld [vmem:[%s1 + $0x210] sm:$0xff]
      %v238 = vld [vmem:[%s1 + $0x218] sm:$0xff]
      %v239 = vld [vmem:[%s1 + $0x220] sm:$0xff]
      %v240 = vld [vmem:[%s1 + $0x228] sm:$0xff]
      %v241 = vld [vmem:[%s1 + $0x230] sm:$0xff]
      %v242 = vld [vmem:[%s1 + $0x238] sm:$0xff]
      %v243 = vld [vmem:[%s1 + $0x240] sm:$0xff]
      %v244 = vld [vmem:[%s1 + $0x248] sm:$0xff]
      %v245 = vld [vmem:[%s1 + $0x250] sm:$0xff]
      %v246 = vld [vmem:[%s1 + $0x258] sm:$0xff]
      %v247 = vld [vmem:[%s1 + $0x260] sm:$0xff]
      %v248 = vld [vmem:[%s1 + $0x268] sm:$0xff]
      %v249 = vld [vmem:[%s1 + $0x270] sm:$0xff]
      %v250 = vld [vmem:[%s1 + $0x278] sm:$0xff]
      %v251 = vld [vmem:[%s1 + $0x280] sm:$0xff]
      %v252 = vld [vmem:[%s1 + $0x288] sm:$0xff]
      %v253 = vld [vmem:[%s1 + $0x290] sm:$0xff]
      %v254 = vld [vmem:[%s1 + $0x298] sm:$0xff]
      %v255 = vld [vmem:[%s1 + $0x2a0] sm:$0xff]
      %v256 = vld [vmem:[%s1 + $0x2a8] sm:$0xff]
      %v257 = vld [vmem:[%s1 + $0x2b0] sm:$0xff]
      %v258 = vld [vmem:[%s1 + $0x2b8] sm:$0xff]
      %v259 = vld [vmem:[%s1 + $0x2c0] sm:$0xff]
      %v260 = vld [vmem:[%s1 + $0x2c8] sm:$0xff]
      %v261 = vld [vmem:[%s1 + $0x2d0] sm:$0xff]
      %v262 = vld [vmem:[%s1 + $0x2d8] sm:$0xff]
      %v263 = vld [vmem:[%s1 + $0x2e0] sm:$0xff]
      %v264 = vld [vmem:[%s1 + $0x2e8] sm:$0xff]
      %v265 = vld [vmem:[%s1 + $0x2f0] sm:$0xff]
      %v266 = vld [vmem:[%s1 + $0x2f8] sm:$0xff]
      %v267 = vld [vmem:[%s1 + $0x300] sm:$0xff]
      %v268 = vld [vmem:[%s1 + $0x308] sm:$0xff]
      %v269 = vld [vmem:[%s1 + $0x310] sm:$0xff]
      %v270 = vld [vmem:[%s1 + $0x318] sm:$0xff]
      %v271 = vld [vmem:[%s2] sm:$0x1]
      %v272 = vld [vmem:[%s165] sm:$0xff]
      %v273 = vld [vmem:[%s165 + $0x8] sm:$0xff]
      %v274 = vld [vmem:[%s165 + $0x10] sm:$0xff]
      %v275 = vld [vmem:[%s165 + $0x18] sm:$0xff]
      %v276 = vld [vmem:[%s165 + $0x20] sm:$0xff]
      %v277 = vld [vmem:[%s165 + $0x28] sm:$0xff]
      %v278 = vld [vmem:[%s165 + $0x30] sm:$0xff]
      %v279 = vld [vmem:[%s165 + $0x38] sm:$0xff]
      %v280 = vld [vmem:[%s165 + $0x40] sm:$0xff]
      %v281 = vld [vmem:[%s165 + $0x48] sm:$0xff]
      %v282 = vld [vmem:[%s165 + $0x50] sm:$0xff]
      %v283 = vld [vmem:[%s165 + $0x58] sm:$0xff]
      %v284 = vld [vmem:[%s165 + $0x60] sm:$0xff]
      %v285 = vld [vmem:[%s165 + $0x68] sm:$0xff]
      %v286 = vld [vmem:[%s165 + $0x70] sm:$0xff]
      %v287 = vld [vmem:[%s165 + $0x78] sm:$0xff]
      %v288 = vld [vmem:[%s165 + $0x80] sm:$0xff]
      %v289 = vld [vmem:[%s165 + $0x88] sm:$0xff]
      %v290 = vld [vmem:[%s165 + $0x90] sm:$0xff]
      %v291 = vld [vmem:[%s165 + $0x98] sm:$0xff]
      %v292 = vld [vmem:[%s165 + $0xa0] sm:$0xff]
      %v293 = vld [vmem:[%s165 + $0xa8] sm:$0xff]
      %v294 = vld [vmem:[%s165 + $0xb0] sm:$0xff]
      %v295 = vld [vmem:[%s165 + $0xb8] sm:$0xff]
      %v296 = vld [vmem:[%s165 + $0xc0] sm:$0xff]
      %v297 = vld [vmem:[%s165 + $0xc8] sm:$0xff]
      %v298 = vld [vmem:[%s165 + $0xd0] sm:$0xff]
      %v299 = vld [vmem:[%s165 + $0xd8] sm:$0xff]
      %v300 = vld [vmem:[%s165 + $0xe0] sm:$0xff]
      %v301 = vld [vmem:[%s165 + $0xe8] sm:$0xff]
      %v302 = vld [vmem:[%s165 + $0xf0] sm:$0xff]
      %v303 = vld [vmem:[%s165 + $0xf8] sm:$0xff]
      %v304 = vld [vmem:[%s165 + $0x100] sm:$0xff]
      %v305 = vld [vmem:[%s165 + $0x108] sm:$0xff]
      %v306 = vld [vmem:[%s165 + $0x110] sm:$0xff]
      %v307 = vld [vmem:[%s165 + $0x118] sm:$0xff]
      %v308 = vld [vmem:[%s165 + $0x120] sm:$0xff]
      %v309 = vld [vmem:[%s165 + $0x128] sm:$0xff]
      %v310 = vld [vmem:[%s165 + $0x130] sm:$0xff]
      %v311 = vld [vmem:[%s165 + $0x138] sm:$0xff]
      %v312 = vld [vmem:[%s165 + $0x140] sm:$0xff]
      %v313 = vld [vmem:[%s165 + $0x148] sm:$0xff]
      %v314 = vld [vmem:[%s165 + $0x150] sm:$0x1]
      %v315 = vld [vmem:[%s165 + $0x158] sm:$0x1]
      %v316 = vld [vmem:[%s165 + $0x160] sm:$0x1]
      %v317 = vld [vmem:[%s165 + $0x168] sm:$0x1]
      %v318 = vld [vmem:[%s165 + $0x170] sm:$0x1]
      %v319 = vld [vmem:[%s165 + $0x178] sm:$0x1]
      %v320 = vld [vmem:[%s165 + $0x180] sm:$0x1]
      %v322 = vlaneseq
      %v323 = vshrl.u32 %v322, 7
      %v324 = vsub.s32 0, %v323
      %v325 = vrot.slane %v271, %v324
      %vm327 = vcmask 261120
      %v329 = vsel %vm327, %v278, 0
      %v332 = vsel %vm327, %v285, 0
      %v335 = vsel %vm327, %v292, 0
      %v338 = vsel %vm327, %v299, 0
      %v341 = vsel %vm327, %v306, 0
      %v344 = vsel %vm327, %v313, 0
      %v347 = vsel %vm327, %v320, 0
      %349 = vmatprep.subr.mxu0 0.0
      %350 = vmatpush1.msra.mxu0 %v171
      %351 = vmatprep.subr.mxu0 0.0
      %352 = vmatpush1.msra.mxu0 %v172
      %353 = vmatprep.subr.mxu0 0.0
      %354 = vmatpush1.msra.mxu0 %v173
      %355 = vmatprep.subr.mxu0 0.0
      %356 = vmatpush1.msra.mxu0 %v174
      %357 = vmatprep.subr.mxu0 0.0
      %358 = vmatpush1.msra.mxu0 %v175
      %359 = vmatprep.subr.mxu0 0.0
      %360 = vmatpush1.msra.mxu0 %v176
      %361 = vmatprep.subr.mxu0 0.0
      %362 = vmatpush1.msra.mxu0 %v177
      %363 = vmatprep.subr.mxu0 0.0
      %364 = vmatpush1.msra.mxu0 %v178
      %365 = vmatprep.subr.mxu0 0.0
      %366 = vmatpush1.msra.mxu0 %v179
      %367 = vmatprep.subr.mxu0 0.0
      %368 = vmatpush1.msra.mxu0 %v180
      %369 = vmatprep.subr.mxu0 0.0
      %370 = vmatpush1.msra.mxu0 %v181
      %371 = vmatprep.subr.mxu0 0.0
      %372 = vmatpush1.msra.mxu0 %v182
      %373 = vmatprep.subr.mxu0 0.0
      %374 = vmatpush1.msra.mxu0 %v183
      %375 = vmatprep.subr.mxu0 0.0
      %376 = vmatpush1.msra.mxu0 %v184
      %377 = vmatprep.subr.mxu0 0.0
      %378 = vmatpush1.msra.mxu0 %v185
      %379 = vmatprep.subr.mxu0 0.0
      %380 = vmatpush1.msra.mxu0 %v186
      %381 = vmatprep.subr.mxu0 0.0
      %382 = vmatpush1.msra.mxu0 %v187
      %383 = vmatprep.subr.mxu0 0.0
      %384 = vmatpush1.msra.mxu0 %v188
      %385 = vmatprep.subr.mxu0 0.0
      %386 = vmatpush1.msra.mxu0 %v189
      %387 = vmatprep.subr.mxu0 0.0
      %388 = vmatpush1.msra.mxu0 %v190
      %389 = vmatprep.subr.mxu0 0.0
      %390 = vmatpush1.msra.mxu0 %v191
      %391 = vmatprep.subr.mxu0 0.0
      %392 = vmatpush1.msra.mxu0 %v192
      %393 = vmatprep.subr.mxu0 0.0
      %394 = vmatpush1.msra.mxu0 %v193
      %395 = vmatprep.subr.mxu0 0.0
      %396 = vmatpush1.msra.mxu0 %v194
      %397 = vmatprep.subr.mxu0 0.0
      %398 = vmatpush1.msra.mxu0 %v195
      %399 = vmatprep.subr.mxu0 0.0
      %400 = vmatpush1.msra.mxu0 %v196
      %401 = vmatprep.subr.mxu0 0.0
      %402 = vmatpush1.msra.mxu0 %v197
      %403 = vmatprep.subr.mxu0 0.0
      %404 = vmatpush1.msra.mxu0 %v198
      %405 = vmatprep.subr.mxu0 0.0
      %406 = vmatpush1.msra.mxu0 %v199
      %407 = vmatprep.subr.mxu0 0.0
      %408 = vmatpush1.msra.mxu0 %v200
      %409 = vmatprep.subr.mxu0 0.0
      %410 = vmatpush1.msra.mxu0 %v201
      %411 = vmatprep.subr.mxu0 0.0
      %412 = vmatpush1.msra.mxu0 %v202
      %413 = vmatprep.mubr.f32.mxu0 %v273
      %414 = vmatmul.mubr.f32.gmra.mrb[0].mxu0 %v272
      %v415 = vpop.f32.mrb[0].mxu0
      %v416 = vadd.f32 %v325, %v415
      %v417 = vpop.f32.mrb[0].mxu0
      %418 = vmatprep.mubr.f32.mxu0 %v280
      %419 = vmatmul.mubr.f32.gmra.mrb[0].mxu0 %v279
      %v420 = vpop.f32.mrb[0].mxu0
      %v421 = vadd.f32 %v325, %v420
      %v422 = vpop.f32.mrb[0].mxu0
      %423 = vmatprep.mubr.f32.mxu0 %v287
      %424 = vmatmul.mubr.f32.gmra.mrb[0].mxu0 %v286
      %v425 = vpop.f32.mrb[0].mxu0
      %v426 = vadd.f32 %v325, %v425
      %v427 = vpop.f32.mrb[0].mxu0
      %428 = vmatprep.mubr.f32.mxu0 %v294
      %429 = vmatmul.mubr.f32.gmra.mrb[0].mxu0 %v293
      %v430 = vpop.f32.mrb[0].mxu0
      %v431 = vadd.f32 %v325, %v430
      %v432 = vpop.f32.mrb[0].mxu0
      %433 = vmatprep.mubr.f32.mxu0 %v301
      %434 = vmatmul.mubr.f32.gmra.mrb[0].mxu0 %v300
      %v435 = vpop.f32.mrb[0].mxu0
      %v436 = vadd.f32 %v325, %v435
      %v437 = vpop.f32.mrb[0].mxu0
      %438 = vmatprep.mubr.f32.mxu0 %v308
      %439 = vmatmul.mubr.f32.gmra.mrb[0].mxu0 %v307
      %v440 = vpop.f32.mrb[0].mxu0
      %v441 = vadd.f32 %v325, %v440
      %v442 = vpop.f32.mrb[0].mxu0
      %443 = vmatprep.mubr.f32.mxu0 %v315
      %444 = vmatmul.mubr.f32.gmra.mrb[0].mxu0 %v314
      %v445 = vpop.f32.mrb[0].mxu0
      %v446 = vadd.f32 %v325, %v445
      %v447 = vpop.f32.mrb[0].mxu0
      %448 = vdwg.mxu0
      %449 = vmatprep.subr.mxu0 0.0
      %450 = vmatpush1.msra.mxu0 %v203
      %451 = vmatprep.subr.mxu0 0.0
      %452 = vmatpush1.msra.mxu0 %v204
      %453 = vmatprep.subr.mxu0 0.0
      %454 = vmatpush1.msra.mxu0 %v205
      %455 = vmatprep.subr.mxu0 0.0
      %456 = vmatpush1.msra.mxu0 %v206
      %457 = vmatprep.subr.mxu0 0.0
      %458 = vmatpush1.msra.mxu0 %v207
      %459 = vmatprep.subr.mxu0 0.0
      %460 = vmatpush1.msra.mxu0 %v208
      %461 = vmatprep.subr.mxu0 0.0
      %462 = vmatpush1.msra.mxu0 %v209
      %463 = vmatprep.subr.mxu0 0.0
      %464 = vmatpush1.msra.mxu0 %v210
      %465 = vmatprep.subr.mxu0 0.0
      %466 = vmatpush1.msra.mxu0 %v211
      %467 = vmatprep.subr.mxu0 0.0
      %468 = vmatpush1.msra.mxu0 %v212
      %469 = vmatprep.subr.mxu0 0.0
      %470 = vmatpush1.msra.mxu0 %v213
      %471 = vmatprep.subr.mxu0 0.0
      %472 = vmatpush1.msra.mxu0 %v214
      %473 = vmatprep.subr.mxu0 0.0
      %474 = vmatpush1.msra.mxu0 %v215
      %475 = vmatprep.subr.mxu0 0.0
      %476 = vmatpush1.msra.mxu0 %v216
      %477 = vmatprep.subr.mxu0 0.0
      %478 = vmatpush1.msra.mxu0 %v217
      %479 = vmatprep.subr.mxu0 0.0
      %480 = vmatpush1.msra.mxu0 %v218
      %481 = vmatprep.subr.mxu0 0.0
      %482 = vmatpush1.msra.mxu0 %v219
      %483 = vmatprep.subr.mxu0 0.0
      %484 = vmatpush1.msra.mxu0 %v220
      %485 = vmatprep.subr.mxu0 0.0
      %486 = vmatpush1.msra.mxu0 %v221
      %487 = vmatprep.subr.mxu0 0.0
      %488 = vmatpush1.msra.mxu0 %v222
      %489 = vmatprep.subr.mxu0 0.0
      %490 = vmatpush1.msra.mxu0 %v223
      %491 = vmatprep.subr.mxu0 0.0
      %492 = vmatpush1.msra.mxu0 %v224
      %493 = vmatprep.subr.mxu0 0.0
      %494 = vmatpush1.msra.mxu0 %v225
      %495 = vmatprep.subr.mxu0 0.0
      %496 = vmatpush1.msra.mxu0 %v226
      %497 = vmatprep.subr.mxu0 0.0
      %498 = vmatpush1.msra.mxu0 %v227
      %499 = vmatprep.subr.mxu0 0.0
      %500 = vmatpush1.msra.mxu0 %v228
      %501 = vmatprep.subr.mxu0 0.0
      %502 = vmatpush1.msra.mxu0 %v229
      %503 = vmatprep.subr.mxu0 0.0
      %504 = vmatpush1.msra.mxu0 %v230
      %505 = vmatprep.subr.mxu0 0.0
      %506 = vmatpush1.msra.mxu0 %v231
      %507 = vmatprep.subr.mxu0 0.0
      %508 = vmatpush1.msra.mxu0 %v232
      %509 = vmatprep.subr.mxu0 0.0
      %510 = vmatpush1.msra.mxu0 %v233
      %511 = vmatprep.subr.mxu0 0.0
      %512 = vmatpush1.msra.mxu0 %v234
      %513 = vmatprep.mubr.f32.mxu0 %v275
      %514 = vmatmul.mubr.f32.gmra.mrb[0].mxu0 %v274
      %v515 = vpop.f32.mrb[0].mxu0
      %v516 = vadd.f32 %v416, %v515
      %v517 = vpop.f32.mrb[0].mxu0
      %518 = vmatprep.mubr.f32.mxu0 %v282
      %519 = vmatmul.mubr.f32.gmra.mrb[0].mxu0 %v281
      %v520 = vpop.f32.mrb[0].mxu0
      %v521 = vadd.f32 %v421, %v520
      %v522 = vpop.f32.mrb[0].mxu0
      %523 = vmatprep.mubr.f32.mxu0 %v289
      %524 = vmatmul.mubr.f32.gmra.mrb[0].mxu0 %v288
      %v525 = vpop.f32.mrb[0].mxu0
      %v526 = vadd.f32 %v426, %v525
      %v527 = vpop.f32.mrb[0].mxu0
      %528 = vmatprep.mubr.f32.mxu0 %v296
      %529 = vmatmul.mubr.f32.gmra.mrb[0].mxu0 %v295
      %v530 = vpop.f32.mrb[0].mxu0
      %v531 = vadd.f32 %v431, %v530
      %v532 = vpop.f32.mrb[0].mxu0
      %533 = vmatprep.mubr.f32.mxu0 %v303
      %534 = vmatmul.mubr.f32.gmra.mrb[0].mxu0 %v302
      %v535 = vpop.f32.mrb[0].mxu0
      %v536 = vadd.f32 %v436, %v535
      %v537 = vpop.f32.mrb[0].mxu0
      %538 = vmatprep.mubr.f32.mxu0 %v310
      %539 = vmatmul.mubr.f32.gmra.mrb[0].mxu0 %v309
      %v540 = vpop.f32.mrb[0].mxu0
      %v541 = vadd.f32 %v441, %v540
      %v542 = vpop.f32.mrb[0].mxu0
      %543 = vmatprep.mubr.f32.mxu0 %v317
      %544 = vmatmul.mubr.f32.gmra.mrb[0].mxu0 %v316
      %v545 = vpop.f32.mrb[0].mxu0
      %v546 = vadd.f32 %v446, %v545
      %v547 = vpop.f32.mrb[0].mxu0
      %548 = vdwg.mxu0
      %549 = vmatprep.subr.mxu0 0.0
      %550 = vmatpush1.msra.mxu0 %v235
      %551 = vmatprep.subr.mxu0 0.0
      %552 = vmatpush1.msra.mxu0 %v236
      %553 = vmatprep.subr.mxu0 0.0
      %554 = vmatpush1.msra.mxu0 %v237
      %555 = vmatprep.subr.mxu0 0.0
      %556 = vmatpush1.msra.mxu0 %v238
      %557 = vmatprep.subr.mxu0 0.0
      %558 = vmatpush1.msra.mxu0 %v239
      %559 = vmatprep.subr.mxu0 0.0
      %560 = vmatpush1.msra.mxu0 %v240
      %561 = vmatprep.subr.mxu0 0.0
      %562 = vmatpush1.msra.mxu0 %v241
      %563 = vmatprep.subr.mxu0 0.0
      %564 = vmatpush1.msra.mxu0 %v242
      %565 = vmatprep.subr.mxu0 0.0
      %566 = vmatpush1.msra.mxu0 %v243
      %567 = vmatprep.subr.mxu0 0.0
      %568 = vmatpush1.msra.mxu0 %v244
      %569 = vmatprep.subr.mxu0 0.0
      %570 = vmatpush1.msra.mxu0 %v245
      %571 = vmatprep.subr.mxu0 0.0
      %572 = vmatpush1.msra.mxu0 %v246
      %573 = vmatprep.subr.mxu0 0.0
      %574 = vmatpush1.msra.mxu0 %v247
      %575 = vmatprep.subr.mxu0 0.0
      %576 = vmatpush1.msra.mxu0 %v248
      %577 = vmatprep.subr.mxu0 0.0
      %578 = vmatpush1.msra.mxu0 %v249
      %579 = vmatprep.subr.mxu0 0.0
      %580 = vmatpush1.msra.mxu0 %v250
      %581 = vmatprep.subr.mxu0 0.0
      %582 = vmatpush1.msra.mxu0 %v251
      %583 = vmatprep.subr.mxu0 0.0
      %584 = vmatpush1.msra.mxu0 %v252
      %585 = vmatprep.subr.mxu0 0.0
      %586 = vmatpush1.msra.mxu0 %v253
      %587 = vmatprep.subr.mxu0 0.0
      %588 = vmatpush1.msra.mxu0 %v254
      %589 = vmatprep.subr.mxu0 0.0
      %590 = vmatpush1.msra.mxu0 %v255
      %591 = vmatprep.subr.mxu0 0.0
      %592 = vmatpush1.msra.mxu0 %v256
      %593 = vmatprep.subr.mxu0 0.0
      %594 = vmatpush1.msra.mxu0 %v257
      %595 = vmatprep.subr.mxu0 0.0
      %596 = vmatpush1.msra.mxu0 %v258
      %597 = vmatprep.subr.mxu0 0.0
      %598 = vmatpush1.msra.mxu0 %v259
      %599 = vmatprep.subr.mxu0 0.0
      %600 = vmatpush1.msra.mxu0 %v260
      %601 = vmatprep.subr.mxu0 0.0
      %602 = vmatpush1.msra.mxu0 %v261
      %603 = vmatprep.subr.mxu0 0.0
      %604 = vmatpush1.msra.mxu0 %v262
      %605 = vmatprep.subr.mxu0 0.0
      %606 = vmatpush1.msra.mxu0 %v263
      %607 = vmatprep.subr.mxu0 0.0
      %608 = vmatpush1.msra.mxu0 %v264
      %609 = vmatprep.subr.mxu0 0.0
      %610 = vmatpush1.msra.mxu0 %v265
      %611 = vmatprep.subr.mxu0 0.0
      %612 = vmatpush1.msra.mxu0 %v266
      %613 = vmatprep.mubr.f32.mxu0 %v277
      %614 = vmatmul.mubr.f32.gmra.mrb[0].mxu0 %v276
      %v615 = vpop.f32.mrb[0].mxu0
      %v616 = vadd.f32 %v516, %v615
      %v617 = vpop.f32.mrb[0].mxu0
      %618 = vmatprep.mubr.f32.mxu0 %v284
      %619 = vmatmul.mubr.f32.gmra.mrb[0].mxu0 %v283
      %v620 = vpop.f32.mrb[0].mxu0
      %v621 = vadd.f32 %v521, %v620
      %v622 = vpop.f32.mrb[0].mxu0
      %623 = vmatprep.mubr.f32.mxu0 %v291
      %624 = vmatmul.mubr.f32.gmra.mrb[0].mxu0 %v290
      %v625 = vpop.f32.mrb[0].mxu0
      %v626 = vadd.f32 %v526, %v625
      %v627 = vpop.f32.mrb[0].mxu0
      %628 = vmatprep.mubr.f32.mxu0 %v298
      %629 = vmatmul.mubr.f32.gmra.mrb[0].mxu0 %v297
      %v630 = vpop.f32.mrb[0].mxu0
      %v631 = vadd.f32 %v531, %v630
      %v632 = vpop.f32.mrb[0].mxu0
      %633 = vmatprep.mubr.f32.mxu0 %v305
      %634 = vmatmul.mubr.f32.gmra.mrb[0].mxu0 %v304
      %v635 = vpop.f32.mrb[0].mxu0
      %v636 = vadd.f32 %v536, %v635
      %v637 = vpop.f32.mrb[0].mxu0
      %638 = vmatprep.mubr.f32.mxu0 %v312
      %639 = vmatmul.mubr.f32.gmra.mrb[0].mxu0 %v311
      %v640 = vpop.f32.mrb[0].mxu0
      %v641 = vadd.f32 %v541, %v640
      %v642 = vpop.f32.mrb[0].mxu0
      %643 = vmatprep.mubr.f32.mxu0 %v319
      %644 = vmatmul.mubr.f32.gmra.mrb[0].mxu0 %v318
      %v645 = vpop.f32.mrb[0].mxu0
      %v646 = vadd.f32 %v546, %v645
      %v647 = vpop.f32.mrb[0].mxu0
      %648 = vdwg.mxu0
      %649 = vmatprep.subr.mxu0 0.0
      %650 = vmatpush1.msra.mxu0 %v267
      %651 = vmatprep.subr.mxu0 0.0
      %652 = vmatpush1.msra.mxu0 %v268
      %653 = vmatprep.subr.mxu0 0.0
      %654 = vmatpush1.msra.mxu0 %v269
      %655 = vmatprep.subr.mxu0 0.0
      %656 = vmatpush1.msra.mxu0 %v270
      %657 = vmatprep.subr.mxu0 0.0
      %658 = vmatpush1.msra.mxu0 0.0
      %659 = vmatprep.subr.mxu0 0.0
      %660 = vmatpush1.msra.mxu0 0.0
      %661 = vmatprep.subr.mxu0 0.0
      %662 = vmatpush1.msra.mxu0 0.0
      %663 = vmatprep.subr.mxu0 0.0
      %664 = vmatpush1.msra.mxu0 0.0
      %665 = vmatprep.subr.mxu0 0.0
      %666 = vmatpush1.msra.mxu0 0.0
      %667 = vmatprep.subr.mxu0 0.0
      %668 = vmatpush1.msra.mxu0 0.0
      %669 = vmatprep.subr.mxu0 0.0
      %670 = vmatpush1.msra.mxu0 0.0
      %671 = vmatprep.subr.mxu0 0.0
      %672 = vmatpush1.msra.mxu0 0.0
      %673 = vmatprep.subr.mxu0 0.0
      %674 = vmatpush1.msra.mxu0 0.0
      %675 = vmatprep.subr.mxu0 0.0
      %676 = vmatpush1.msra.mxu0 0.0
      %677 = vmatprep.subr.mxu0 0.0
      %678 = vmatpush1.msra.mxu0 0.0
      %679 = vmatprep.subr.mxu0 0.0
      %680 = vmatpush1.msra.mxu0 0.0
      %681 = vmatprep.subr.mxu0 0.0
      %682 = vmatpush1.msra.mxu0 0.0
      %683 = vmatprep.subr.mxu0 0.0
      %684 = vmatpush1.msra.mxu0 0.0
      %685 = vmatprep.subr.mxu0 0.0
      %686 = vmatpush1.msra.mxu0 0.0
      %687 = vmatprep.subr.mxu0 0.0
      %688 = vmatpush1.msra.mxu0 0.0
      %689 = vmatprep.subr.mxu0 0.0
      %690 = vmatpush1.msra.mxu0 0.0
      %691 = vmatprep.subr.mxu0 0.0
      %692 = vmatpush1.msra.mxu0 0.0
      %693 = vmatprep.subr.mxu0 0.0
      %694 = vmatpush1.msra.mxu0 0.0
      %695 = vmatprep.subr.mxu0 0.0
      %696 = vmatpush1.msra.mxu0 0.0
      %697 = vmatprep.subr.mxu0 0.0
      %698 = vmatpush1.msra.mxu0 0.0
      %699 = vmatprep.subr.mxu0 0.0
      %700 = vmatpush1.msra.mxu0 0.0
      %701 = vmatprep.subr.mxu0 0.0
      %702 = vmatpush1.msra.mxu0 0.0
      %703 = vmatprep.subr.mxu0 0.0
      %704 = vmatpush1.msra.mxu0 0.0
      %705 = vmatprep.subr.mxu0 0.0
      %706 = vmatpush1.msra.mxu0 0.0
      %707 = vmatprep.subr.mxu0 0.0
      %708 = vmatpush1.msra.mxu0 0.0
      %709 = vmatprep.subr.mxu0 0.0
      %710 = vmatpush1.msra.mxu0 0.0
      %711 = vmatprep.subr.mxu0 0.0
      %712 = vmatpush1.msra.mxu0 0.0
      %713 = vmatprep.mubr.f32.mxu0 0.0
      %714 = vmatmul.mubr.f32.gmra.mrb[0].mxu0 %v329
      %v715 = vpop.f32.mrb[0].mxu0
      %v716 = vadd.f32 %v616, %v715
      %v717 = vpop.f32.mrb[0].mxu0
      %718 = vmatprep.mubr.f32.mxu0 0.0
      %719 = vmatmul.mubr.f32.gmra.mrb[0].mxu0 %v332
      %v720 = vpop.f32.mrb[0].mxu0
      %v721 = vadd.f32 %v621, %v720
      %v722 = vpop.f32.mrb[0].mxu0
      %723 = vmatprep.mubr.f32.mxu0 0.0
      %724 = vmatmul.mubr.f32.gmra.mrb[0].mxu0 %v335
      %v725 = vpop.f32.mrb[0].mxu0
      %v726 = vadd.f32 %v626, %v725
      %v727 = vpop.f32.mrb[0].mxu0
      %728 = vmatprep.mubr.f32.mxu0 0.0
      %729 = vmatmul.mubr.f32.gmra.mrb[0].mxu0 %v338
      %v730 = vpop.f32.mrb[0].mxu0
      %v731 = vadd.f32 %v631, %v730
      %v732 = vpop.f32.mrb[0].mxu0
      %733 = vmatprep.mubr.f32.mxu0 0.0
      %734 = vmatmul.mubr.f32.gmra.mrb[0].mxu0 %v341
      %v735 = vpop.f32.mrb[0].mxu0
      %v736 = vadd.f32 %v636, %v735
      %v737 = vpop.f32.mrb[0].mxu0
      %738 = vmatprep.mubr.f32.mxu0 0.0
      %739 = vmatmul.mubr.f32.gmra.mrb[0].mxu0 %v344
      %v740 = vpop.f32.mrb[0].mxu0
      %v741 = vadd.f32 %v641, %v740
      %v742 = vpop.f32.mrb[0].mxu0
      %743 = vmatprep.mubr.f32.mxu0 0.0
      %744 = vmatmul.mubr.f32.gmra.mrb[0].mxu0 %v347
      %v745 = vpop.f32.mrb[0].mxu0
      %v746 = vadd.f32 %v646, %v745
      %v747 = vpop.f32.mrb[0].mxu0
      %748 = vdwg.mxu0
      %v749 = vmax.f32 %v716, 0.0
      %v750 = vmax.f32 %v721, 0.0
      %v751 = vmax.f32 %v726, 0.0
      %v752 = vmax.f32 %v731, 0.0
      %v753 = vmax.f32 %v736, 0.0
      %v754 = vmax.f32 %v741, 0.0
      %v755 = vmax.f32 %v746, 0.0
      %s756 = scalar_lea.vmem %s165, 392
      %v757 = vld [vmem:[%s756] sm:$0xff]
      %v758 = vld [vmem:[%s756 + $0x8] sm:$0xff]
      %v759 = vld [vmem:[%s756 + $0x10] sm:$0xff]
      %v760 = vld [vmem:[%s756 + $0x18] sm:$0xff]
      %v761 = vld [vmem:[%s756 + $0x20] sm:$0xff]
      %v762 = vld [vmem:[%s756 + $0x28] sm:$0xff]
      %v763 = vld [vmem:[%s756 + $0x30] sm:$0xff]
      %v764 = vld [vmem:[%s756 + $0x38] sm:$0xff]
      %v765 = vld [vmem:[%s756 + $0x40] sm:$0xff]
      %v766 = vld [vmem:[%s756 + $0x48] sm:$0xff]
      %v767 = vld [vmem:[%s756 + $0x50] sm:$0xff]
      %v768 = vld [vmem:[%s756 + $0x58] sm:$0xff]
      %v769 = vld [vmem:[%s756 + $0x60] sm:$0xff]
      %v770 = vld [vmem:[%s756 + $0x68] sm:$0xff]
      %v771 = vld [vmem:[%s756 + $0x70] sm:$0xff]
      %v772 = vld [vmem:[%s756 + $0x78] sm:$0xff]
      %v773 = vld [vmem:[%s756 + $0x80] sm:$0xff]
      %v774 = vld [vmem:[%s756 + $0x88] sm:$0xff]
      %v775 = vld [vmem:[%s756 + $0x90] sm:$0xff]
      %v776 = vld [vmem:[%s756 + $0x98] sm:$0xff]
      %v777 = vld [vmem:[%s756 + $0xa0] sm:$0xff]
      %v778 = vld [vmem:[%s756 + $0xa8] sm:$0xff]
      %v779 = vld [vmem:[%s756 + $0xb0] sm:$0xff]
      %v780 = vld [vmem:[%s756 + $0xb8] sm:$0xff]
      %v781 = vld [vmem:[%s756 + $0xc0] sm:$0xff]
      %v782 = vld [vmem:[%s756 + $0xc8] sm:$0xff]
      %v783 = vld [vmem:[%s756 + $0xd0] sm:$0xff]
      %v784 = vld [vmem:[%s756 + $0xd8] sm:$0xff]
      %v785 = vld [vmem:[%s756 + $0xe0] sm:$0xff]
      %v786 = vld [vmem:[%s756 + $0xe8] sm:$0xff]
      %v787 = vld [vmem:[%s756 + $0xf0] sm:$0xff]
      %v788 = vld [vmem:[%s756 + $0xf8] sm:$0xff]
      %v789 = vld [vmem:[%s756 + $0x100] sm:$0xff]
      %v790 = vld [vmem:[%s756 + $0x108] sm:$0xff]
      %v791 = vld [vmem:[%s756 + $0x110] sm:$0xff]
      %v792 = vld [vmem:[%s756 + $0x118] sm:$0xff]
      %v793 = vld [vmem:[%s756 + $0x120] sm:$0xff]
      %v794 = vld [vmem:[%s756 + $0x128] sm:$0xff]
      %v795 = vld [vmem:[%s756 + $0x130] sm:$0xff]
      %v796 = vld [vmem:[%s756 + $0x138] sm:$0xff]
      %v797 = vld [vmem:[%s756 + $0x140] sm:$0xff]
      %v798 = vld [vmem:[%s756 + $0x148] sm:$0xff]
      %v799 = vld [vmem:[%s756 + $0x150] sm:$0x1]
      %v800 = vld [vmem:[%s756 + $0x158] sm:$0x1]
      %v801 = vld [vmem:[%s756 + $0x160] sm:$0x1]
      %v802 = vld [vmem:[%s756 + $0x168] sm:$0x1]
      %v803 = vld [vmem:[%s756 + $0x170] sm:$0x1]
      %v804 = vld [vmem:[%s756 + $0x178] sm:$0x1]
      %v805 = vld [vmem:[%s756 + $0x180] sm:$0x1]
      %v807 = vsel %vm327, %v763, 0
      %v810 = vsel %vm327, %v770, 0
      %v813 = vsel %vm327, %v777, 0
      %v816 = vsel %vm327, %v784, 0
      %v819 = vsel %vm327, %v791, 0
      %v822 = vsel %vm327, %v798, 0
      %v825 = vsel %vm327, %v805, 0
      %827 = vmatprep.subr.mxu0 0.0
      %828 = vmatpush1.msra.mxu0 %v171
      %829 = vmatprep.subr.mxu0 0.0
      %830 = vmatpush1.msra.mxu0 %v172
      %831 = vmatprep.subr.mxu0 0.0
      %832 = vmatpush1.msra.mxu0 %v173
      %833 = vmatprep.subr.mxu0 0.0
      %834 = vmatpush1.msra.mxu0 %v174
      %835 = vmatprep.subr.mxu0 0.0
      %836 = vmatpush1.msra.mxu0 %v175
      %837 = vmatprep.subr.mxu0 0.0
      %838 = vmatpush1.msra.mxu0 %v176
      %839 = vmatprep.subr.mxu0 0.0
      %840 = vmatpush1.msra.mxu0 %v177
      %841 = vmatprep.subr.mxu0 0.0
      %842 = vmatpush1.msra.mxu0 %v178
      %843 = vmatprep.subr.mxu0 0.0
      %844 = vmatpush1.msra.mxu0 %v179
      %845 = vmatprep.subr.mxu0 0.0
      %846 = vmatpush1.msra.mxu0 %v180
      %847 = vmatprep.subr.mxu0 0.0
      %848 = vmatpush1.msra.mxu0 %v181
      %849 = vmatprep.subr.mxu0 0.0
      %850 = vmatpush1.msra.mxu0 %v182
      %851 = vmatprep.subr.mxu0 0.0
      %852 = vmatpush1.msra.mxu0 %v183
      %853 = vmatprep.subr.mxu0 0.0
      %854 = vmatpush1.msra.mxu0 %v184
      %855 = vmatprep.subr.mxu0 0.0
      %856 = vmatpush1.msra.mxu0 %v185
      %857 = vmatprep.subr.mxu0 0.0
      %858 = vmatpush1.msra.mxu0 %v186
      %859 = vmatprep.subr.mxu0 0.0
      %860 = vmatpush1.msra.mxu0 %v187
      %861 = vmatprep.subr.mxu0 0.0
      %862 = vmatpush1.msra.mxu0 %v188
      %863 = vmatprep.subr.mxu0 0.0
      %864 = vmatpush1.msra.mxu0 %v189
      %865 = vmatprep.subr.mxu0 0.0
      %866 = vmatpush1.msra.mxu0 %v190
      %867 = vmatprep.subr.mxu0 0.0
      %868 = vmatpush1.msra.mxu0 %v191
      %869 = vmatprep.subr.mxu0 0.0
      %870 = vmatpush1.msra.mxu0 %v192
      %871 = vmatprep.subr.mxu0 0.0
      %872 = vmatpush1.msra.mxu0 %v193
      %873 = vmatprep.subr.mxu0 0.0
      %874 = vmatpush1.msra.mxu0 %v194
      %875 = vmatprep.subr.mxu0 0.0
      %876 = vmatpush1.msra.mxu0 %v195
      %877 = vmatprep.subr.mxu0 0.0
      %878 = vmatpush1.msra.mxu0 %v196
      %879 = vmatprep.subr.mxu0 0.0
      %880 = vmatpush1.msra.mxu0 %v197
      %881 = vmatprep.subr.mxu0 0.0
      %882 = vmatpush1.msra.mxu0 %v198
      %883 = vmatprep.subr.mxu0 0.0
      %884 = vmatpush1.msra.mxu0 %v199
      %885 = vmatprep.subr.mxu0 0.0
      %886 = vmatpush1.msra.mxu0 %v200
      %887 = vmatprep.subr.mxu0 0.0
      %888 = vmatpush1.msra.mxu0 %v201
      %889 = vmatprep.subr.mxu0 0.0
      %890 = vmatpush1.msra.mxu0 %v202
      %891 = vmatprep.mubr.f32.mxu0 %v758
      %892 = vmatmul.mubr.f32.gmra.mrb[0].mxu0 %v757
      %v893 = vpop.f32.mrb[0].mxu0
      %v894 = vadd.f32 %v325, %v893
      %v895 = vpop.f32.mrb[0].mxu0
      %896 = vmatprep.mubr.f32.mxu0 %v765
      %897 = vmatmul.mubr.f32.gmra.mrb[0].mxu0 %v764
      %v898 = vpop.f32.mrb[0].mxu0
      %v899 = vadd.f32 %v325, %v898
      %v900 = vpop.f32.mrb[0].mxu0
      %901 = vmatprep.mubr.f32.mxu0 %v772
      %902 = vmatmul.mubr.f32.gmra.mrb[0].mxu0 %v771
      %v903 = vpop.f32.mrb[0].mxu0
      %v904 = vadd.f32 %v325, %v903
      %v905 = vpop.f32.mrb[0].mxu0
      %906 = vmatprep.mubr.f32.mxu0 %v779
      %907 = vmatmul.mubr.f32.gmra.mrb[0].mxu0 %v778
      %v908 = vpop.f32.mrb[0].mxu0
      %v909 = vadd.f32 %v325, %v908
      %v910 = vpop.f32.mrb[0].mxu0
      %911 = vmatprep.mubr.f32.mxu0 %v786
      %912 = vmatmul.mubr.f32.gmra.mrb[0].mxu0 %v785
      %v913 = vpop.f32.mrb[0].mxu0
      %v914 = vadd.f32 %v325, %v913
      %v915 = vpop.f32.mrb[0].mxu0
      %916 = vmatprep.mubr.f32.mxu0 %v793
      %917 = vmatmul.mubr.f32.gmra.mrb[0].mxu0 %v792
      %v918 = vpop.f32.mrb[0].mxu0
      %v919 = vadd.f32 %v325, %v918
      %v920 = vpop.f32.mrb[0].mxu0
      %921 = vmatprep.mubr.f32.mxu0 %v800
      %922 = vmatmul.mubr.f32.gmra.mrb[0].mxu0 %v799
      %v923 = vpop.f32.mrb[0].mxu0
      %v924 = vadd.f32 %v325, %v923
      %v925 = vpop.f32.mrb[0].mxu0
      %926 = vdwg.mxu0
      %927 = vmatprep.subr.mxu0 0.0
      %928 = vmatpush1.msra.mxu0 %v203
      %929 = vmatprep.subr.mxu0 0.0
      %930 = vmatpush1.msra.mxu0 %v204
      %931 = vmatprep.subr.mxu0 0.0
      %932 = vmatpush1.msra.mxu0 %v205
      %933 = vmatprep.subr.mxu0 0.0
      %934 = vmatpush1.msra.mxu0 %v206
      %935 = vmatprep.subr.mxu0 0.0
      %936 = vmatpush1.msra.mxu0 %v207
      %937 = vmatprep.subr.mxu0 0.0
      %938 = vmatpush1.msra.mxu0 %v208
      %939 = vmatprep.subr.mxu0 0.0
      %940 = vmatpush1.msra.mxu0 %v209
      %941 = vmatprep.subr.mxu0 0.0
      %942 = vmatpush1.msra.mxu0 %v210
      %943 = vmatprep.subr.mxu0 0.0
      %944 = vmatpush1.msra.mxu0 %v211
      %945 = vmatprep.subr.mxu0 0.0
      %946 = vmatpush1.msra.mxu0 %v212
      %947 = vmatprep.subr.mxu0 0.0
      %948 = vmatpush1.msra.mxu0 %v213
      %949 = vmatprep.subr.mxu0 0.0
      %950 = vmatpush1.msra.mxu0 %v214
      %951 = vmatprep.subr.mxu0 0.0
      %952 = vmatpush1.msra.mxu0 %v215
      %953 = vmatprep.subr.mxu0 0.0
      %954 = vmatpush1.msra.mxu0 %v216
      %955 = vmatprep.subr.mxu0 0.0
      %956 = vmatpush1.msra.mxu0 %v217
      %957 = vmatprep.subr.mxu0 0.0
      %958 = vmatpush1.msra.mxu0 %v218
      %959 = vmatprep.subr.mxu0 0.0
      %960 = vmatpush1.msra.mxu0 %v219
      %961 = vmatprep.subr.mxu0 0.0
      %962 = vmatpush1.msra.mxu0 %v220
      %963 = vmatprep.subr.mxu0 0.0
      %964 = vmatpush1.msra.mxu0 %v221
      %965 = vmatprep.subr.mxu0 0.0
      %966 = vmatpush1.msra.mxu0 %v222
      %967 = vmatprep.subr.mxu0 0.0
      %968 = vmatpush1.msra.mxu0 %v223
      %969 = vmatprep.subr.mxu0 0.0
      %970 = vmatpush1.msra.mxu0 %v224
      %971 = vmatprep.subr.mxu0 0.0
      %972 = vmatpush1.msra.mxu0 %v225
      %973 = vmatprep.subr.mxu0 0.0
      %974 = vmatpush1.msra.mxu0 %v226
      %975 = vmatprep.subr.mxu0 0.0
      %976 = vmatpush1.msra.mxu0 %v227
      %977 = vmatprep.subr.mxu0 0.0
      %978 = vmatpush1.msra.mxu0 %v228
      %979 = vmatprep.subr.mxu0 0.0
      %980 = vmatpush1.msra.mxu0 %v229
      %981 = vmatprep.subr.mxu0 0.0
      %982 = vmatpush1.msra.mxu0 %v230
      %983 = vmatprep.subr.mxu0 0.0
      %984 = vmatpush1.msra.mxu0 %v231
      %985 = vmatprep.subr.mxu0 0.0
      %986 = vmatpush1.msra.mxu0 %v232
      %987 = vmatprep.subr.mxu0 0.0
      %988 = vmatpush1.msra.mxu0 %v233
      %989 = vmatprep.subr.mxu0 0.0
      %990 = vmatpush1.msra.mxu0 %v234
      %991 = vmatprep.mubr.f32.mxu0 %v760
      %992 = vmatmul.mubr.f32.gmra.mrb[0].mxu0 %v759
      %v993 = vpop.f32.mrb[0].mxu0
      %v994 = vadd.f32 %v894, %v993
      %v995 = vpop.f32.mrb[0].mxu0
      %996 = vmatprep.mubr.f32.mxu0 %v767
      %997 = vmatmul.mubr.f32.gmra.mrb[0].mxu0 %v766
      %v998 = vpop.f32.mrb[0].mxu0
      %v999 = vadd.f32 %v899, %v998
      %v1000 = vpop.f32.mrb[0].mxu0
      %1001 = vmatprep.mubr.f32.mxu0 %v774
      %1002 = vmatmul.mubr.f32.gmra.mrb[0].mxu0 %v773
      %v1003 = vpop.f32.mrb[0].mxu0
      %v1004 = vadd.f32 %v904, %v1003
      %v1005 = vpop.f32.mrb[0].mxu0
      %1006 = vmatprep.mubr.f32.mxu0 %v781
      %1007 = vmatmul.mubr.f32.gmra.mrb[0].mxu0 %v780
      %v1008 = vpop.f32.mrb[0].mxu0
      %v1009 = vadd.f32 %v909, %v1008
      %v1010 = vpop.f32.mrb[0].mxu0
      %1011 = vmatprep.mubr.f32.mxu0 %v788
      %1012 = vmatmul.mubr.f32.gmra.mrb[0].mxu0 %v787
      %v1013 = vpop.f32.mrb[0].mxu0
      %v1014 = vadd.f32 %v914, %v1013
      %v1015 = vpop.f32.mrb[0].mxu0
      %1016 = vmatprep.mubr.f32.mxu0 %v795
      %1017 = vmatmul.mubr.f32.gmra.mrb[0].mxu0 %v794
      %v1018 = vpop.f32.mrb[0].mxu0
      %v1019 = vadd.f32 %v919, %v1018
      %v1020 = vpop.f32.mrb[0].mxu0
      %1021 = vmatprep.mubr.f32.mxu0 %v802
      %1022 = vmatmul.mubr.f32.gmra.mrb[0].mxu0 %v801
      %v1023 = vpop.f32.mrb[0].mxu0
      %v1024 = vadd.f32 %v924, %v1023
      %v1025 = vpop.f32.mrb[0].mxu0
      %1026 = vdwg.mxu0
      %1027 = vmatprep.subr.mxu0 0.0
      %1028 = vmatpush1.msra.mxu0 %v235
      %1029 = vmatprep.subr.mxu0 0.0
      %1030 = vmatpush1.msra.mxu0 %v236
      %1031 = vmatprep.subr.mxu0 0.0
      %1032 = vmatpush1.msra.mxu0 %v237
      %1033 = vmatprep.subr.mxu0 0.0
      %1034 = vmatpush1.msra.mxu0 %v238
      %1035 = vmatprep.subr.mxu0 0.0
      %1036 = vmatpush1.msra.mxu0 %v239
      %1037 = vmatprep.subr.mxu0 0.0
      %1038 = vmatpush1.msra.mxu0 %v240
      %1039 = vmatprep.subr.mxu0 0.0
      %1040 = vmatpush1.msra.mxu0 %v241
      %1041 = vmatprep.subr.mxu0 0.0
      %1042 = vmatpush1.msra.mxu0 %v242
      %1043 = vmatprep.subr.mxu0 0.0
      %1044 = vmatpush1.msra.mxu0 %v243
      %1045 = vmatprep.subr.mxu0 0.0
      %1046 = vmatpush1.msra.mxu0 %v244
      %1047 = vmatprep.subr.mxu0 0.0
      %1048 = vmatpush1.msra.mxu0 %v245
      %1049 = vmatprep.subr.mxu0 0.0
      %1050 = vmatpush1.msra.mxu0 %v246
      %1051 = vmatprep.subr.mxu0 0.0
      %1052 = vmatpush1.msra.mxu0 %v247
      %1053 = vmatprep.subr.mxu0 0.0
      %1054 = vmatpush1.msra.mxu0 %v248
      %1055 = vmatprep.subr.mxu0 0.0
      %1056 = vmatpush1.msra.mxu0 %v249
      %1057 = vmatprep.subr.mxu0 0.0
      %1058 = vmatpush1.msra.mxu0 %v250
      %1059 = vmatprep.subr.mxu0 0.0
      %1060 = vmatpush1.msra.mxu0 %v251
      %1061 = vmatprep.subr.mxu0 0.0
      %1062 = vmatpush1.msra.mxu0 %v252
      %1063 = vmatprep.subr.mxu0 0.0
      %1064 = vmatpush1.msra.mxu0 %v253
      %1065 = vmatprep.subr.mxu0 0.0
      %1066 = vmatpush1.msra.mxu0 %v254
      %1067 = vmatprep.subr.mxu0 0.0
      %1068 = vmatpush1.msra.mxu0 %v255
      %1069 = vmatprep.subr.mxu0 0.0
      %1070 = vmatpush1.msra.mxu0 %v256
      %1071 = vmatprep.subr.mxu0 0.0
      %1072 = vmatpush1.msra.mxu0 %v257
      %1073 = vmatprep.subr.mxu0 0.0
      %1074 = vmatpush1.msra.mxu0 %v258
      %1075 = vmatprep.subr.mxu0 0.0
      %1076 = vmatpush1.msra.mxu0 %v259
      %1077 = vmatprep.subr.mxu0 0.0
      %1078 = vmatpush1.msra.mxu0 %v260
      %1079 = vmatprep.subr.mxu0 0.0
      %1080 = vmatpush1.msra.mxu0 %v261
      %1081 = vmatprep.subr.mxu0 0.0
      %1082 = vmatpush1.msra.mxu0 %v262
      %1083 = vmatprep.subr.mxu0 0.0
      %1084 = vmatpush1.msra.mxu0 %v263
      %1085 = vmatprep.subr.mxu0 0.0
      %1086 = vmatpush1.msra.mxu0 %v264
      %1087 = vmatprep.subr.mxu0 0.0
      %1088 = vmatpush1.msra.mxu0 %v265
      %1089 = vmatprep.subr.mxu0 0.0
      %1090 = vmatpush1.msra.mxu0 %v266
      %1091 = vmatprep.mubr.f32.mxu0 %v762
      %1092 = vmatmul.mubr.f32.gmra.mrb[0].mxu0 %v761
      %v1093 = vpop.f32.mrb[0].mxu0
      %v1094 = vadd.f32 %v994, %v1093
      %v1095 = vpop.f32.mrb[0].mxu0
      %1096 = vmatprep.mubr.f32.mxu0 %v769
      %1097 = vmatmul.mubr.f32.gmra.mrb[0].mxu0 %v768
      %v1098 = vpop.f32.mrb[0].mxu0
      %v1099 = vadd.f32 %v999, %v1098
      %v1100 = vpop.f32.mrb[0].mxu0
      %1101 = vmatprep.mubr.f32.mxu0 %v776
      %1102 = vmatmul.mubr.f32.gmra.mrb[0].mxu0 %v775
      %v1103 = vpop.f32.mrb[0].mxu0
      %v1104 = vadd.f32 %v1004, %v1103
      %v1105 = vpop.f32.mrb[0].mxu0
      %1106 = vmatprep.mubr.f32.mxu0 %v783
      %1107 = vmatmul.mubr.f32.gmra.mrb[0].mxu0 %v782
      %v1108 = vpop.f32.mrb[0].mxu0
      %v1109 = vadd.f32 %v1009, %v1108
      %v1110 = vpop.f32.mrb[0].mxu0
      %1111 = vmatprep.mubr.f32.mxu0 %v790
      %1112 = vmatmul.mubr.f32.gmra.mrb[0].mxu0 %v789
      %v1113 = vpop.f32.mrb[0].mxu0
      %v1114 = vadd.f32 %v1014, %v1113
      %v1115 = vpop.f32.mrb[0].mxu0
      %1116 = vmatprep.mubr.f32.mxu0 %v797
      %1117 = vmatmul.mubr.f32.gmra.mrb[0].mxu0 %v796
      %v1118 = vpop.f32.mrb[0].mxu0
      %v1119 = vadd.f32 %v1019, %v1118
      %v1120 = vpop.f32.mrb[0].mxu0
      %1121 = vmatprep.mubr.f32.mxu0 %v804
      %1122 = vmatmul.mubr.f32.gmra.mrb[0].mxu0 %v803
      %v1123 = vpop.f32.mrb[0].mxu0
      %v1124 = vadd.f32 %v1024, %v1123
      %v1125 = vpop.f32.mrb[0].mxu0
      %1126 = vdwg.mxu0
      %1127 = vmatprep.subr.mxu0 0.0
      %1128 = vmatpush1.msra.mxu0 %v267
      %1129 = vmatprep.subr.mxu0 0.0
      %1130 = vmatpush1.msra.mxu0 %v268
      %1131 = vmatprep.subr.mxu0 0.0
      %1132 = vmatpush1.msra.mxu0 %v269
      %1133 = vmatprep.subr.mxu0 0.0
      %1134 = vmatpush1.msra.mxu0 %v270
      %1135 = vmatprep.subr.mxu0 0.0
      %1136 = vmatpush1.msra.mxu0 0.0
      %1137 = vmatprep.subr.mxu0 0.0
      %1138 = vmatpush1.msra.mxu0 0.0
      %1139 = vmatprep.subr.mxu0 0.0
      %1140 = vmatpush1.msra.mxu0 0.0
      %1141 = vmatprep.subr.mxu0 0.0
      %1142 = vmatpush1.msra.mxu0 0.0
      %1143 = vmatprep.subr.mxu0 0.0
      %1144 = vmatpush1.msra.mxu0 0.0
      %1145 = vmatprep.subr.mxu0 0.0
      %1146 = vmatpush1.msra.mxu0 0.0
      %1147 = vmatprep.subr.mxu0 0.0
      %1148 = vmatpush1.msra.mxu0 0.0
      %1149 = vmatprep.subr.mxu0 0.0
      %1150 = vmatpush1.msra.mxu0 0.0
      %1151 = vmatprep.subr.mxu0 0.0
      %1152 = vmatpush1.msra.mxu0 0.0
      %1153 = vmatprep.subr.mxu0 0.0
      %1154 = vmatpush1.msra.mxu0 0.0
      %1155 = vmatprep.subr.mxu0 0.0
      %1156 = vmatpush1.msra.mxu0 0.0
      %1157 = vmatprep.subr.mxu0 0.0
      %1158 = vmatpush1.msra.mxu0 0.0
      %1159 = vmatprep.subr.mxu0 0.0
      %1160 = vmatpush1.msra.mxu0 0.0
      %1161 = vmatprep.subr.mxu0 0.0
      %1162 = vmatpush1.msra.mxu0 0.0
      %1163 = vmatprep.subr.mxu0 0.0
      %1164 = vmatpush1.msra.mxu0 0.0
      %1165 = vmatprep.subr.mxu0 0.0
      %1166 = vmatpush1.msra.mxu0 0.0
      %1167 = vmatprep.subr.mxu0 0.0
      %1168 = vmatpush1.msra.mxu0 0.0
      %1169 = vmatprep.subr.mxu0 0.0
      %1170 = vmatpush1.msra.mxu0 0.0
      %1171 = vmatprep.subr.mxu0 0.0
      %1172 = vmatpush1.msra.mxu0 0.0
      %1173 = vmatprep.subr.mxu0 0.0
      %1174 = vmatpush1.msra.mxu0 0.0
      %1175 = vmatprep.subr.mxu0 0.0
      %1176 = vmatpush1.msra.mxu0 0.0
      %1177 = vmatprep.subr.mxu0 0.0
      %1178 = vmatpush1.msra.mxu0 0.0
      %1179 = vmatprep.subr.mxu0 0.0
      %1180 = vmatpush1.msra.mxu0 0.0
      %1181 = vmatprep.subr.mxu0 0.0
      %1182 = vmatpush1.msra.mxu0 0.0
      %1183 = vmatprep.subr.mxu0 0.0
      %1184 = vmatpush1.msra.mxu0 0.0
      %1185 = vmatprep.subr.mxu0 0.0
      %1186 = vmatpush1.msra.mxu0 0.0
      %1187 = vmatprep.subr.mxu0 0.0
      %1188 = vmatpush1.msra.mxu0 0.0
      %1189 = vmatprep.subr.mxu0 0.0
      %1190 = vmatpush1.msra.mxu0 0.0
      %1191 = vmatprep.mubr.f32.mxu0 0.0
      %1192 = vmatmul.mubr.f32.gmra.mrb[0].mxu0 %v807
      %v1193 = vpop.f32.mrb[0].mxu0
      %v1194 = vadd.f32 %v1094, %v1193
      %v1195 = vpop.f32.mrb[0].mxu0
      %1196 = vmatprep.mubr.f32.mxu0 0.0
      %1197 = vmatmul.mubr.f32.gmra.mrb[0].mxu0 %v810
      %v1198 = vpop.f32.mrb[0].mxu0
      %v1199 = vadd.f32 %v1099, %v1198
      %v1200 = vpop.f32.mrb[0].mxu0
      %1201 = vmatprep.mubr.f32.mxu0 0.0
      %1202 = vmatmul.mubr.f32.gmra.mrb[0].mxu0 %v813
      %v1203 = vpop.f32.mrb[0].mxu0
      %v1204 = vadd.f32 %v1104, %v1203
      %v1205 = vpop.f32.mrb[0].mxu0
      %1206 = vmatprep.mubr.f32.mxu0 0.0
      %1207 = vmatmul.mubr.f32.gmra.mrb[0].mxu0 %v816
      %v1208 = vpop.f32.mrb[0].mxu0
      %v1209 = vadd.f32 %v1109, %v1208
      %v1210 = vpop.f32.mrb[0].mxu0
      %1211 = vmatprep.mubr.f32.mxu0 0.0
      %1212 = vmatmul.mubr.f32.gmra.mrb[0].mxu0 %v819
      %v1213 = vpop.f32.mrb[0].mxu0
      %v1214 = vadd.f32 %v1114, %v1213
      %v1215 = vpop.f32.mrb[0].mxu0
      %1216 = vmatprep.mubr.f32.mxu0 0.0
      %1217 = vmatmul.mubr.f32.gmra.mrb[0].mxu0 %v822
      %v1218 = vpop.f32.mrb[0].mxu0
      %v1219 = vadd.f32 %v1119, %v1218
      %v1220 = vpop.f32.mrb[0].mxu0
      %1221 = vmatprep.mubr.f32.mxu0 0.0
      %1222 = vmatmul.mubr.f32.gmra.mrb[0].mxu0 %v825
      %v1223 = vpop.f32.mrb[0].mxu0
      %v1224 = vadd.f32 %v1124, %v1223
      %v1225 = vpop.f32.mrb[0].mxu0
      %1226 = vdwg.mxu0
      %v1227 = vmax.f32 %v1194, 0.0
      %v1228 = vmax.f32 %v1199, 0.0
      %v1229 = vmax.f32 %v1204, 0.0
      %v1230 = vmax.f32 %v1209, 0.0
      %v1231 = vmax.f32 %v1214, 0.0
      %v1232 = vmax.f32 %v1219, 0.0
      %v1233 = vmax.f32 %v1224, 0.0
      %v1234 = vmax.f32 %v749, %v1227
      %v1235 = vmax.f32 %v750, %v1228
      %v1236 = vmax.f32 %v751, %v1229
      %v1237 = vmax.f32 %v752, %v1230
      %v1238 = vmax.f32 %v753, %v1231
      %v1239 = vmax.f32 %v754, %v1232
      %v1240 = vmax.f32 %v755, %v1233
      %s1241 = scalar_lea.vmem %s165, 784
      %v1242 = vld [vmem:[%s1241] sm:$0xff]
      %v1243 = vld [vmem:[%s1241 + $0x8] sm:$0xff]
      %v1244 = vld [vmem:[%s1241 + $0x10] sm:$0xff]
      %v1245 = vld [vmem:[%s1241 + $0x18] sm:$0xff]
      %v1246 = vld [vmem:[%s1241 + $0x20] sm:$0xff]
      %v1247 = vld [vmem:[%s1241 + $0x28] sm:$0xff]
      %v1248 = vld [vmem:[%s1241 + $0x30] sm:$0xff]
      %v1249 = vld [vmem:[%s1241 + $0x38] sm:$0xff]
      %v1250 = vld [vmem:[%s1241 + $0x40] sm:$0xff]
      %v1251 = vld [vmem:[%s1241 + $0x48] sm:$0xff]
      %v1252 = vld [vmem:[%s1241 + $0x50] sm:$0xff]
      %v1253 = vld [vmem:[%s1241 + $0x58] sm:$0xff]
      %v1254 = vld [vmem:[%s1241 + $0x60] sm:$0xff]
      %v1255 = vld [vmem:[%s1241 + $0x68] sm:$0xff]
      %v1256 = vld [vmem:[%s1241 + $0x70] sm:$0xff]
      %v1257 = vld [vmem:[%s1241 + $0x78] sm:$0xff]
      %v1258 = vld [vmem:[%s1241 + $0x80] sm:$0xff]
      %v1259 = vld [vmem:[%s1241 + $0x88] sm:$0xff]
      %v1260 = vld [vmem:[%s1241 + $0x90] sm:$0xff]
      %v1261 = vld [vmem:[%s1241 + $0x98] sm:$0xff]
      %v1262 = vld [vmem:[%s1241 + $0xa0] sm:$0xff]
      %v1263 = vld [vmem:[%s1241 + $0xa8] sm:$0xff]
      %v1264 = vld [vmem:[%s1241 + $0xb0] sm:$0xff]
      %v1265 = vld [vmem:[%s1241 + $0xb8] sm:$0xff]
      %v1266 = vld [vmem:[%s1241 + $0xc0] sm:$0xff]
      %v1267 = vld [vmem:[%s1241 + $0xc8] sm:$0xff]
      %v1268 = vld [vmem:[%s1241 + $0xd0] sm:$0xff]
      %v1269 = vld [vmem:[%s1241 + $0xd8] sm:$0xff]
      %v1270 = vld [vmem:[%s1241 + $0xe0] sm:$0xff]
      %v1271 = vld [vmem:[%s1241 + $0xe8] sm:$0xff]
      %v1272 = vld [vmem:[%s1241 + $0xf0] sm:$0xff]
      %v1273 = vld [vmem:[%s1241 + $0xf8] sm:$0xff]
      %v1274 = vld [vmem:[%s1241 + $0x100] sm:$0xff]
      %v1275 = vld [vmem:[%s1241 + $0x108] sm:$0xff]
      %v1276 = vld [vmem:[%s1241 + $0x110] sm:$0xff]
      %v1277 = vld [vmem:[%s1241 + $0x118] sm:$0xff]
      %v1278 = vld [vmem:[%s1241 + $0x120] sm:$0xff]
      %v1279 = vld [vmem:[%s1241 + $0x128] sm:$0xff]
      %v1280 = vld [vmem:[%s1241 + $0x130] sm:$0xff]
      %v1281 = vld [vmem:[%s1241 + $0x138] sm:$0xff]
      %v1282 = vld [vmem:[%s1241 + $0x140] sm:$0xff]
      %v1283 = vld [vmem:[%s1241 + $0x148] sm:$0xff]
      %v1284 = vld [vmem:[%s1241 + $0x150] sm:$0x1]
      %v1285 = vld [vmem:[%s1241 + $0x158] sm:$0x1]
      %v1286 = vld [vmem:[%s1241 + $0x160] sm:$0x1]
      %v1287 = vld [vmem:[%s1241 + $0x168] sm:$0x1]
      %v1288 = vld [vmem:[%s1241 + $0x170] sm:$0x1]
      %v1289 = vld [vmem:[%s1241 + $0x178] sm:$0x1]
      %v1290 = vld [vmem:[%s1241 + $0x180] sm:$0x1]
      %v1292 = vsel %vm327, %v1248, 0
      %v1295 = vsel %vm327, %v1255, 0
      %v1298 = vsel %vm327, %v1262, 0
      %v1301 = vsel %vm327, %v1269, 0
      %v1304 = vsel %vm327, %v1276, 0
      %v1307 = vsel %vm327, %v1283, 0
      %v1310 = vsel %vm327, %v1290, 0
      %1312 = vmatprep.subr.mxu0 0.0
      %1313 = vmatpush1.msra.mxu0 %v171
      %1314 = vmatprep.subr.mxu0 0.0
      %1315 = vmatpush1.msra.mxu0 %v172
      %1316 = vmatprep.subr.mxu0 0.0
      %1317 = vmatpush1.msra.mxu0 %v173
      %1318 = vmatprep.subr.mxu0 0.0
      %1319 = vmatpush1.msra.mxu0 %v174
      %1320 = vmatprep.subr.mxu0 0.0
      %1321 = vmatpush1.msra.mxu0 %v175
      %1322 = vmatprep.subr.mxu0 0.0
      %1323 = vmatpush1.msra.mxu0 %v176
      %1324 = vmatprep.subr.mxu0 0.0
      %1325 = vmatpush1.msra.mxu0 %v177
      %1326 = vmatprep.subr.mxu0 0.0
      %1327 = vmatpush1.msra.mxu0 %v178
      %1328 = vmatprep.subr.mxu0 0.0
      %1329 = vmatpush1.msra.mxu0 %v179
      %1330 = vmatprep.subr.mxu0 0.0
      %1331 = vmatpush1.msra.mxu0 %v180
      %1332 = vmatprep.subr.mxu0 0.0
      %1333 = vmatpush1.msra.mxu0 %v181
      %1334 = vmatprep.subr.mxu0 0.0
      %1335 = vmatpush1.msra.mxu0 %v182
      %1336 = vmatprep.subr.mxu0 0.0
      %1337 = vmatpush1.msra.mxu0 %v183
      %1338 = vmatprep.subr.mxu0 0.0
      %1339 = vmatpush1.msra.mxu0 %v184
      %1340 = vmatprep.subr.mxu0 0.0
      %1341 = vmatpush1.msra.mxu0 %v185
      %1342 = vmatprep.subr.mxu0 0.0
      %1343 = vmatpush1.msra.mxu0 %v186
      %1344 = vmatprep.subr.mxu0 0.0
      %1345 = vmatpush1.msra.mxu0 %v187
      %1346 = vmatprep.subr.mxu0 0.0
      %1347 = vmatpush1.msra.mxu0 %v188
      %1348 = vmatprep.subr.mxu0 0.0
      %1349 = vmatpush1.msra.mxu0 %v189
      %1350 = vmatprep.subr.mxu0 0.0
      %1351 = vmatpush1.msra.mxu0 %v190
      %1352 = vmatprep.subr.mxu0 0.0
      %1353 = vmatpush1.msra.mxu0 %v191
      %1354 = vmatprep.subr.mxu0 0.0
      %1355 = vmatpush1.msra.mxu0 %v192
      %1356 = vmatprep.subr.mxu0 0.0
      %1357 = vmatpush1.msra.mxu0 %v193
      %1358 = vmatprep.subr.mxu0 0.0
      %1359 = vmatpush1.msra.mxu0 %v194
      %1360 = vmatprep.subr.mxu0 0.0
      %1361 = vmatpush1.msra.mxu0 %v195
      %1362 = vmatprep.subr.mxu0 0.0
      %1363 = vmatpush1.msra.mxu0 %v196
      %1364 = vmatprep.subr.mxu0 0.0
      %1365 = vmatpush1.msra.mxu0 %v197
      %1366 = vmatprep.subr.mxu0 0.0
      %1367 = vmatpush1.msra.mxu0 %v198
      %1368 = vmatprep.subr.mxu0 0.0
      %1369 = vmatpush1.msra.mxu0 %v199
      %1370 = vmatprep.subr.mxu0 0.0
      %1371 = vmatpush1.msra.mxu0 %v200
      %1372 = vmatprep.subr.mxu0 0.0
      %1373 = vmatpush1.msra.mxu0 %v201
      %1374 = vmatprep.subr.mxu0 0.0
      %1375 = vmatpush1.msra.mxu0 %v202
      %1376 = vmatprep.mubr.f32.mxu0 %v1243
      %1377 = vmatmul.mubr.f32.gmra.mrb[0].mxu0 %v1242
      %v1378 = vpop.f32.mrb[0].mxu0
      %v1379 = vadd.f32 %v325, %v1378
      %v1380 = vpop.f32.mrb[0].mxu0
      %1381 = vmatprep.mubr.f32.mxu0 %v1250
      %1382 = vmatmul.mubr.f32.gmra.mrb[0].mxu0 %v1249
      %v1383 = vpop.f32.mrb[0].mxu0
      %v1384 = vadd.f32 %v325, %v1383
      %v1385 = vpop.f32.mrb[0].mxu0
      %1386 = vmatprep.mubr.f32.mxu0 %v1257
      %1387 = vmatmul.mubr.f32.gmra.mrb[0].mxu0 %v1256
      %v1388 = vpop.f32.mrb[0].mxu0
      %v1389 = vadd.f32 %v325, %v1388
      %v1390 = vpop.f32.mrb[0].mxu0
      %1391 = vmatprep.mubr.f32.mxu0 %v1264
      %1392 = vmatmul.mubr.f32.gmra.mrb[0].mxu0 %v1263
      %v1393 = vpop.f32.mrb[0].mxu0
      %v1394 = vadd.f32 %v325, %v1393
      %v1395 = vpop.f32.mrb[0].mxu0
      %1396 = vmatprep.mubr.f32.mxu0 %v1271
      %1397 = vmatmul.mubr.f32.gmra.mrb[0].mxu0 %v1270
      %v1398 = vpop.f32.mrb[0].mxu0
      %v1399 = vadd.f32 %v325, %v1398
      %v1400 = vpop.f32.mrb[0].mxu0
      %1401 = vmatprep.mubr.f32.mxu0 %v1278
      %1402 = vmatmul.mubr.f32.gmra.mrb[0].mxu0 %v1277
      %v1403 = vpop.f32.mrb[0].mxu0
      %v1404 = vadd.f32 %v325, %v1403
      %v1405 = vpop.f32.mrb[0].mxu0
      %1406 = vmatprep.mubr.f32.mxu0 %v1285
      %1407 = vmatmul.mubr.f32.gmra.mrb[0].mxu0 %v1284
      %v1408 = vpop.f32.mrb[0].mxu0
      %v1409 = vadd.f32 %v325, %v1408
      %v1410 = vpop.f32.mrb[0].mxu0
      %1411 = vdwg.mxu0
      %1412 = vmatprep.subr.mxu0 0.0
      %1413 = vmatpush1.msra.mxu0 %v203
      %1414 = vmatprep.subr.mxu0 0.0
      %1415 = vmatpush1.msra.mxu0 %v204
      %1416 = vmatprep.subr.mxu0 0.0
      %1417 = vmatpush1.msra.mxu0 %v205
      %1418 = vmatprep.subr.mxu0 0.0
      %1419 = vmatpush1.msra.mxu0 %v206
      %1420 = vmatprep.subr.mxu0 0.0
      %1421 = vmatpush1.msra.mxu0 %v207
      %1422 = vmatprep.subr.mxu0 0.0
      %1423 = vmatpush1.msra.mxu0 %v208
      %1424 = vmatprep.subr.mxu0 0.0
      %1425 = vmatpush1.msra.mxu0 %v209
      %1426 = vmatprep.subr.mxu0 0.0
      %1427 = vmatpush1.msra.mxu0 %v210
      %1428 = vmatprep.subr.mxu0 0.0
      %1429 = vmatpush1.msra.mxu0 %v211
      %1430 = vmatprep.subr.mxu0 0.0
      %1431 = vmatpush1.msra.mxu0 %v212
      %1432 = vmatprep.subr.mxu0 0.0
      %1433 = vmatpush1.msra.mxu0 %v213
      %1434 = vmatprep.subr.mxu0 0.0
      %1435 = vmatpush1.msra.mxu0 %v214
      %1436 = vmatprep.subr.mxu0 0.0
      %1437 = vmatpush1.msra.mxu0 %v215
      %1438 = vmatprep.subr.mxu0 0.0
      %1439 = vmatpush1.msra.mxu0 %v216
      %1440 = vmatprep.subr.mxu0 0.0
      %1441 = vmatpush1.msra.mxu0 %v217
      %1442 = vmatprep.subr.mxu0 0.0
      %1443 = vmatpush1.msra.mxu0 %v218
      %1444 = vmatprep.subr.mxu0 0.0
      %1445 = vmatpush1.msra.mxu0 %v219
      %1446 = vmatprep.subr.mxu0 0.0
      %1447 = vmatpush1.msra.mxu0 %v220
      %1448 = vmatprep.subr.mxu0 0.0
      %1449 = vmatpush1.msra.mxu0 %v221
      %1450 = vmatprep.subr.mxu0 0.0
      %1451 = vmatpush1.msra.mxu0 %v222
      %1452 = vmatprep.subr.mxu0 0.0
      %1453 = vmatpush1.msra.mxu0 %v223
      %1454 = vmatprep.subr.mxu0 0.0
      %1455 = vmatpush1.msra.mxu0 %v224
      %1456 = vmatprep.subr.mxu0 0.0
      %1457 = vmatpush1.msra.mxu0 %v225
      %1458 = vmatprep.subr.mxu0 0.0
      %1459 = vmatpush1.msra.mxu0 %v226
      %1460 = vmatprep.subr.mxu0 0.0
      %1461 = vmatpush1.msra.mxu0 %v227
      %1462 = vmatprep.subr.mxu0 0.0
      %1463 = vmatpush1.msra.mxu0 %v228
      %1464 = vmatprep.subr.mxu0 0.0
      %1465 = vmatpush1.msra.mxu0 %v229
      %1466 = vmatprep.subr.mxu0 0.0
      %1467 = vmatpush1.msra.mxu0 %v230
      %1468 = vmatprep.subr.mxu0 0.0
      %1469 = vmatpush1.msra.mxu0 %v231
      %1470 = vmatprep.subr.mxu0 0.0
      %1471 = vmatpush1.msra.mxu0 %v232
      %1472 = vmatprep.subr.mxu0 0.0
      %1473 = vmatpush1.msra.mxu0 %v233
      %1474 = vmatprep.subr.mxu0 0.0
      %1475 = vmatpush1.msra.mxu0 %v234
      %1476 = vmatprep.mubr.f32.mxu0 %v1245
      %1477 = vmatmul.mubr.f32.gmra.mrb[0].mxu0 %v1244
      %v1478 = vpop.f32.mrb[0].mxu0
      %v1479 = vadd.f32 %v1379, %v1478
      %v1480 = vpop.f32.mrb[0].mxu0
      %1481 = vmatprep.mubr.f32.mxu0 %v1252
      %1482 = vmatmul.mubr.f32.gmra.mrb[0].mxu0 %v1251
      %v1483 = vpop.f32.mrb[0].mxu0
      %v1484 = vadd.f32 %v1384, %v1483
      %v1485 = vpop.f32.mrb[0].mxu0
      %1486 = vmatprep.mubr.f32.mxu0 %v1259
      %1487 = vmatmul.mubr.f32.gmra.mrb[0].mxu0 %v1258
      %v1488 = vpop.f32.mrb[0].mxu0
      %v1489 = vadd.f32 %v1389, %v1488
      %v1490 = vpop.f32.mrb[0].mxu0
      %1491 = vmatprep.mubr.f32.mxu0 %v1266
      %1492 = vmatmul.mubr.f32.gmra.mrb[0].mxu0 %v1265
      %v1493 = vpop.f32.mrb[0].mxu0
      %v1494 = vadd.f32 %v1394, %v1493
      %v1495 = vpop.f32.mrb[0].mxu0
      %1496 = vmatprep.mubr.f32.mxu0 %v1273
      %1497 = vmatmul.mubr.f32.gmra.mrb[0].mxu0 %v1272
      %v1498 = vpop.f32.mrb[0].mxu0
      %v1499 = vadd.f32 %v1399, %v1498
      %v1500 = vpop.f32.mrb[0].mxu0
      %1501 = vmatprep.mubr.f32.mxu0 %v1280
      %1502 = vmatmul.mubr.f32.gmra.mrb[0].mxu0 %v1279
      %v1503 = vpop.f32.mrb[0].mxu0
      %v1504 = vadd.f32 %v1404, %v1503
      %v1505 = vpop.f32.mrb[0].mxu0
      %1506 = vmatprep.mubr.f32.mxu0 %v1287
      %1507 = vmatmul.mubr.f32.gmra.mrb[0].mxu0 %v1286
      %v1508 = vpop.f32.mrb[0].mxu0
      %v1509 = vadd.f32 %v1409, %v1508
      %v1510 = vpop.f32.mrb[0].mxu0
      %1511 = vdwg.mxu0
      %1512 = vmatprep.subr.mxu0 0.0
      %1513 = vmatpush1.msra.mxu0 %v235
      %1514 = vmatprep.subr.mxu0 0.0
      %1515 = vmatpush1.msra.mxu0 %v236
      %1516 = vmatprep.subr.mxu0 0.0
      %1517 = vmatpush1.msra.mxu0 %v237
      %1518 = vmatprep.subr.mxu0 0.0
      %1519 = vmatpush1.msra.mxu0 %v238
      %1520 = vmatprep.subr.mxu0 0.0
      %1521 = vmatpush1.msra.mxu0 %v239
      %1522 = vmatprep.subr.mxu0 0.0
      %1523 = vmatpush1.msra.mxu0 %v240
      %1524 = vmatprep.subr.mxu0 0.0
      %1525 = vmatpush1.msra.mxu0 %v241
      %1526 = vmatprep.subr.mxu0 0.0
      %1527 = vmatpush1.msra.mxu0 %v242
      %1528 = vmatprep.subr.mxu0 0.0
      %1529 = vmatpush1.msra.mxu0 %v243
      %1530 = vmatprep.subr.mxu0 0.0
      %1531 = vmatpush1.msra.mxu0 %v244
      %1532 = vmatprep.subr.mxu0 0.0
      %1533 = vmatpush1.msra.mxu0 %v245
      %1534 = vmatprep.subr.mxu0 0.0
      %1535 = vmatpush1.msra.mxu0 %v246
      %1536 = vmatprep.subr.mxu0 0.0
      %1537 = vmatpush1.msra.mxu0 %v247
      %1538 = vmatprep.subr.mxu0 0.0
      %1539 = vmatpush1.msra.mxu0 %v248
      %1540 = vmatprep.subr.mxu0 0.0
      %1541 = vmatpush1.msra.mxu0 %v249
      %1542 = vmatprep.subr.mxu0 0.0
      %1543 = vmatpush1.msra.mxu0 %v250
      %1544 = vmatprep.subr.mxu0 0.0
      %1545 = vmatpush1.msra.mxu0 %v251
      %1546 = vmatprep.subr.mxu0 0.0
      %1547 = vmatpush1.msra.mxu0 %v252
      %1548 = vmatprep.subr.mxu0 0.0
      %1549 = vmatpush1.msra.mxu0 %v253
      %1550 = vmatprep.subr.mxu0 0.0
      %1551 = vmatpush1.msra.mxu0 %v254
      %1552 = vmatprep.subr.mxu0 0.0
      %1553 = vmatpush1.msra.mxu0 %v255
      %1554 = vmatprep.subr.mxu0 0.0
      %1555 = vmatpush1.msra.mxu0 %v256
      %1556 = vmatprep.subr.mxu0 0.0
      %1557 = vmatpush1.msra.mxu0 %v257
      %1558 = vmatprep.subr.mxu0 0.0
      %1559 = vmatpush1.msra.mxu0 %v258
      %1560 = vmatprep.subr.mxu0 0.0
      %1561 = vmatpush1.msra.mxu0 %v259
      %1562 = vmatprep.subr.mxu0 0.0
      %1563 = vmatpush1.msra.mxu0 %v260
      %1564 = vmatprep.subr.mxu0 0.0
      %1565 = vmatpush1.msra.mxu0 %v261
      %1566 = vmatprep.subr.mxu0 0.0
      %1567 = vmatpush1.msra.mxu0 %v262
      %1568 = vmatprep.subr.mxu0 0.0
      %1569 = vmatpush1.msra.mxu0 %v263
      %1570 = vmatprep.subr.mxu0 0.0
      %1571 = vmatpush1.msra.mxu0 %v264
      %1572 = vmatprep.subr.mxu0 0.0
      %1573 = vmatpush1.msra.mxu0 %v265
      %1574 = vmatprep.subr.mxu0 0.0
      %1575 = vmatpush1.msra.mxu0 %v266
      %1576 = vmatprep.mubr.f32.mxu0 %v1247
      %1577 = vmatmul.mubr.f32.gmra.mrb[0].mxu0 %v1246
      %v1578 = vpop.f32.mrb[0].mxu0
      %v1579 = vadd.f32 %v1479, %v1578
      %v1580 = vpop.f32.mrb[0].mxu0
      %1581 = vmatprep.mubr.f32.mxu0 %v1254
      %1582 = vmatmul.mubr.f32.gmra.mrb[0].mxu0 %v1253
      %v1583 = vpop.f32.mrb[0].mxu0
      %v1584 = vadd.f32 %v1484, %v1583
      %v1585 = vpop.f32.mrb[0].mxu0
      %1586 = vmatprep.mubr.f32.mxu0 %v1261
      %1587 = vmatmul.mubr.f32.gmra.mrb[0].mxu0 %v1260
      %v1588 = vpop.f32.mrb[0].mxu0
      %v1589 = vadd.f32 %v1489, %v1588
      %v1590 = vpop.f32.mrb[0].mxu0
      %1591 = vmatprep.mubr.f32.mxu0 %v1268
      %1592 = vmatmul.mubr.f32.gmra.mrb[0].mxu0 %v1267
      %v1593 = vpop.f32.mrb[0].mxu0
      %v1594 = vadd.f32 %v1494, %v1593
      %v1595 = vpop.f32.mrb[0].mxu0
      %1596 = vmatprep.mubr.f32.mxu0 %v1275
      %1597 = vmatmul.mubr.f32.gmra.mrb[0].mxu0 %v1274
      %v1598 = vpop.f32.mrb[0].mxu0
      %v1599 = vadd.f32 %v1499, %v1598
      %v1600 = vpop.f32.mrb[0].mxu0
      %1601 = vmatprep.mubr.f32.mxu0 %v1282
      %1602 = vmatmul.mubr.f32.gmra.mrb[0].mxu0 %v1281
      %v1603 = vpop.f32.mrb[0].mxu0
      %v1604 = vadd.f32 %v1504, %v1603
      %v1605 = vpop.f32.mrb[0].mxu0
      %1606 = vmatprep.mubr.f32.mxu0 %v1289
      %1607 = vmatmul.mubr.f32.gmra.mrb[0].mxu0 %v1288
      %v1608 = vpop.f32.mrb[0].mxu0
      %v1609 = vadd.f32 %v1509, %v1608
      %v1610 = vpop.f32.mrb[0].mxu0
      %1611 = vdwg.mxu0
      %1612 = vmatprep.subr.mxu0 0.0
      %1613 = vmatpush1.msra.mxu0 %v267
      %1614 = vmatprep.subr.mxu0 0.0
      %1615 = vmatpush1.msra.mxu0 %v268
      %1616 = vmatprep.subr.mxu0 0.0
      %1617 = vmatpush1.msra.mxu0 %v269
      %1618 = vmatprep.subr.mxu0 0.0
      %1619 = vmatpush1.msra.mxu0 %v270
      %1620 = vmatprep.subr.mxu0 0.0
      %1621 = vmatpush1.msra.mxu0 0.0
      %1622 = vmatprep.subr.mxu0 0.0
      %1623 = vmatpush1.msra.mxu0 0.0
      %1624 = vmatprep.subr.mxu0 0.0
      %1625 = vmatpush1.msra.mxu0 0.0
      %1626 = vmatprep.subr.mxu0 0.0
      %1627 = vmatpush1.msra.mxu0 0.0
      %1628 = vmatprep.subr.mxu0 0.0
      %1629 = vmatpush1.msra.mxu0 0.0
      %1630 = vmatprep.subr.mxu0 0.0
      %1631 = vmatpush1.msra.mxu0 0.0
      %1632 = vmatprep.subr.mxu0 0.0
      %1633 = vmatpush1.msra.mxu0 0.0
      %1634 = vmatprep.subr.mxu0 0.0
      %1635 = vmatpush1.msra.mxu0 0.0
      %1636 = vmatprep.subr.mxu0 0.0
      %1637 = vmatpush1.msra.mxu0 0.0
      %1638 = vmatprep.subr.mxu0 0.0
      %1639 = vmatpush1.msra.mxu0 0.0
      %1640 = vmatprep.subr.mxu0 0.0
      %1641 = vmatpush1.msra.mxu0 0.0
      %1642 = vmatprep.subr.mxu0 0.0
      %1643 = vmatpush1.msra.mxu0 0.0
      %1644 = vmatprep.subr.mxu0 0.0
      %1645 = vmatpush1.msra.mxu0 0.0
      %1646 = vmatprep.subr.mxu0 0.0
      %1647 = vmatpush1.msra.mxu0 0.0
      %1648 = vmatprep.subr.mxu0 0.0
      %1649 = vmatpush1.msra.mxu0 0.0
      %1650 = vmatprep.subr.mxu0 0.0
      %1651 = vmatpush1.msra.mxu0 0.0
      %1652 = vmatprep.subr.mxu0 0.0
      %1653 = vmatpush1.msra.mxu0 0.0
      %1654 = vmatprep.subr.mxu0 0.0
      %1655 = vmatpush1.msra.mxu0 0.0
      %1656 = vmatprep.subr.mxu0 0.0
      %1657 = vmatpush1.msra.mxu0 0.0
      %1658 = vmatprep.subr.mxu0 0.0
      %1659 = vmatpush1.msra.mxu0 0.0
      %1660 = vmatprep.subr.mxu0 0.0
      %1661 = vmatpush1.msra.mxu0 0.0
      %1662 = vmatprep.subr.mxu0 0.0
      %1663 = vmatpush1.msra.mxu0 0.0
      %1664 = vmatprep.subr.mxu0 0.0
      %1665 = vmatpush1.msra.mxu0 0.0
      %1666 = vmatprep.subr.mxu0 0.0
      %1667 = vmatpush1.msra.mxu0 0.0
      %1668 = vmatprep.subr.mxu0 0.0
      %1669 = vmatpush1.msra.mxu0 0.0
      %1670 = vmatprep.subr.mxu0 0.0
      %1671 = vmatpush1.msra.mxu0 0.0
      %1672 = vmatprep.subr.mxu0 0.0
      %1673 = vmatpush1.msra.mxu0 0.0
      %1674 = vmatprep.subr.mxu0 0.0
      %1675 = vmatpush1.msra.mxu0 0.0
      %1676 = vmatprep.mubr.f32.mxu0 0.0
      %1677 = vmatmul.mubr.f32.gmra.mrb[0].mxu0 %v1292
      %v1678 = vpop.f32.mrb[0].mxu0
      %v1679 = vadd.f32 %v1579, %v1678
      %v1680 = vpop.f32.mrb[0].mxu0
      %1681 = vmatprep.mubr.f32.mxu0 0.0
      %1682 = vmatmul.mubr.f32.gmra.mrb[0].mxu0 %v1295
      %v1683 = vpop.f32.mrb[0].mxu0
      %v1684 = vadd.f32 %v1584, %v1683
      %v1685 = vpop.f32.mrb[0].mxu0
      %1686 = vmatprep.mubr.f32.mxu0 0.0
      %1687 = vmatmul.mubr.f32.gmra.mrb[0].mxu0 %v1298
      %v1688 = vpop.f32.mrb[0].mxu0
      %v1689 = vadd.f32 %v1589, %v1688
      %v1690 = vpop.f32.mrb[0].mxu0
      %1691 = vmatprep.mubr.f32.mxu0 0.0
      %1692 = vmatmul.mubr.f32.gmra.mrb[0].mxu0 %v1301
      %v1693 = vpop.f32.mrb[0].mxu0
      %v1694 = vadd.f32 %v1594, %v1693
      %v1695 = vpop.f32.mrb[0].mxu0
      %1696 = vmatprep.mubr.f32.mxu0 0.0
      %1697 = vmatmul.mubr.f32.gmra.mrb[0].mxu0 %v1304
      %v1698 = vpop.f32.mrb[0].mxu0
      %v1699 = vadd.f32 %v1599, %v1698
      %v1700 = vpop.f32.mrb[0].mxu0
      %1701 = vmatprep.mubr.f32.mxu0 0.0
      %1702 = vmatmul.mubr.f32.gmra.mrb[0].mxu0 %v1307
      %v1703 = vpop.f32.mrb[0].mxu0
      %v1704 = vadd.f32 %v1604, %v1703
      %v1705 = vpop.f32.mrb[0].mxu0
      %1706 = vmatprep.mubr.f32.mxu0 0.0
      %1707 = vmatmul.mubr.f32.gmra.mrb[0].mxu0 %v1310
      %v1708 = vpop.f32.mrb[0].mxu0
      %v1709 = vadd.f32 %v1609, %v1708
      %v1710 = vpop.f32.mrb[0].mxu0
      %1711 = vdwg.mxu0
      %v1712 = vmax.f32 %v1679, 0.0
      %v1713 = vmax.f32 %v1684, 0.0
      %v1714 = vmax.f32 %v1689, 0.0
      %v1715 = vmax.f32 %v1694, 0.0
      %v1716 = vmax.f32 %v1699, 0.0
      %v1717 = vmax.f32 %v1704, 0.0
      %v1718 = vmax.f32 %v1709, 0.0
      %v1719 = vmax.f32 %v1234, %v1712
      %v1720 = vmax.f32 %v1235, %v1713
      %v1721 = vmax.f32 %v1236, %v1714
      %v1722 = vmax.f32 %v1237, %v1715
      %v1723 = vmax.f32 %v1238, %v1716
      %v1724 = vmax.f32 %v1239, %v1717
      %v1725 = vmax.f32 %v1240, %v1718
      %s1726 = scalar_lea.vmem %s165, 1176
      %v1727 = vld [vmem:[%s1726] sm:$0xff]
      %v1728 = vld [vmem:[%s1726 + $0x8] sm:$0xff]
      %v1729 = vld [vmem:[%s1726 + $0x10] sm:$0xff]
      %v1730 = vld [vmem:[%s1726 + $0x18] sm:$0xff]
      %v1731 = vld [vmem:[%s1726 + $0x20] sm:$0xff]
      %v1732 = vld [vmem:[%s1726 + $0x28] sm:$0xff]
      %v1733 = vld [vmem:[%s1726 + $0x30] sm:$0xff]
      %v1734 = vld [vmem:[%s1726 + $0x38] sm:$0xff]
      %v1735 = vld [vmem:[%s1726 + $0x40] sm:$0xff]
      %v1736 = vld [vmem:[%s1726 + $0x48] sm:$0xff]
      %v1737 = vld [vmem:[%s1726 + $0x50] sm:$0xff]
      %v1738 = vld [vmem:[%s1726 + $0x58] sm:$0xff]
      %v1739 = vld [vmem:[%s1726 + $0x60] sm:$0xff]
      %v1740 = vld [vmem:[%s1726 + $0x68] sm:$0xff]
      %v1741 = vld [vmem:[%s1726 + $0x70] sm:$0xff]
      %v1742 = vld [vmem:[%s1726 + $0x78] sm:$0xff]
      %v1743 = vld [vmem:[%s1726 + $0x80] sm:$0xff]
      %v1744 = vld [vmem:[%s1726 + $0x88] sm:$0xff]
      %v1745 = vld [vmem:[%s1726 + $0x90] sm:$0xff]
      %v1746 = vld [vmem:[%s1726 + $0x98] sm:$0xff]
      %v1747 = vld [vmem:[%s1726 + $0xa0] sm:$0xff]
      %v1748 = vld [vmem:[%s1726 + $0xa8] sm:$0xff]
      %v1749 = vld [vmem:[%s1726 + $0xb0] sm:$0xff]
      %v1750 = vld [vmem:[%s1726 + $0xb8] sm:$0xff]
      %v1751 = vld [vmem:[%s1726 + $0xc0] sm:$0xff]
      %v1752 = vld [vmem:[%s1726 + $0xc8] sm:$0xff]
      %v1753 = vld [vmem:[%s1726 + $0xd0] sm:$0xff]
      %v1754 = vld [vmem:[%s1726 + $0xd8] sm:$0xff]
      %v1755 = vld [vmem:[%s1726 + $0xe0] sm:$0xff]
      %v1756 = vld [vmem:[%s1726 + $0xe8] sm:$0xff]
      %v1757 = vld [vmem:[%s1726 + $0xf0] sm:$0xff]
      %v1758 = vld [vmem:[%s1726 + $0xf8] sm:$0xff]
      %v1759 = vld [vmem:[%s1726 + $0x100] sm:$0xff]
      %v1760 = vld [vmem:[%s1726 + $0x108] sm:$0xff]
      %v1761 = vld [vmem:[%s1726 + $0x110] sm:$0xff]
      %v1762 = vld [vmem:[%s1726 + $0x118] sm:$0xff]
      %v1763 = vld [vmem:[%s1726 + $0x120] sm:$0xff]
      %v1764 = vld [vmem:[%s1726 + $0x128] sm:$0xff]
      %v1765 = vld [vmem:[%s1726 + $0x130] sm:$0xff]
      %v1766 = vld [vmem:[%s1726 + $0x138] sm:$0xff]
      %v1767 = vld [vmem:[%s1726 + $0x140] sm:$0xff]
      %v1768 = vld [vmem:[%s1726 + $0x148] sm:$0xff]
      %v1769 = vld [vmem:[%s1726 + $0x150] sm:$0x1]
      %v1770 = vld [vmem:[%s1726 + $0x158] sm:$0x1]
      %v1771 = vld [vmem:[%s1726 + $0x160] sm:$0x1]
      %v1772 = vld [vmem:[%s1726 + $0x168] sm:$0x1]
      %v1773 = vld [vmem:[%s1726 + $0x170] sm:$0x1]
      %v1774 = vld [vmem:[%s1726 + $0x178] sm:$0x1]
      %v1775 = vld [vmem:[%s1726 + $0x180] sm:$0x1]
      %v1777 = vsel %vm327, %v1733, 0
      %v1780 = vsel %vm327, %v1740, 0
      %v1783 = vsel %vm327, %v1747, 0
      %v1786 = vsel %vm327, %v1754, 0
      %v1789 = vsel %vm327, %v1761, 0
      %v1792 = vsel %vm327, %v1768, 0
      %v1795 = vsel %vm327, %v1775, 0
      %1797 = vmatprep.subr.mxu0 0.0
      %1798 = vmatpush1.msra.mxu0 %v171
      %1799 = vmatprep.subr.mxu0 0.0
      %1800 = vmatpush1.msra.mxu0 %v172
      %1801 = vmatprep.subr.mxu0 0.0
      %1802 = vmatpush1.msra.mxu0 %v173
      %1803 = vmatprep.subr.mxu0 0.0
      %1804 = vmatpush1.msra.mxu0 %v174
      %1805 = vmatprep.subr.mxu0 0.0
      %1806 = vmatpush1.msra.mxu0 %v175
      %1807 = vmatprep.subr.mxu0 0.0
      %1808 = vmatpush1.msra.mxu0 %v176
      %1809 = vmatprep.subr.mxu0 0.0
      %1810 = vmatpush1.msra.mxu0 %v177
      %1811 = vmatprep.subr.mxu0 0.0
      %1812 = vmatpush1.msra.mxu0 %v178
      %1813 = vmatprep.subr.mxu0 0.0
      %1814 = vmatpush1.msra.mxu0 %v179
      %1815 = vmatprep.subr.mxu0 0.0
      %1816 = vmatpush1.msra.mxu0 %v180
      %1817 = vmatprep.subr.mxu0 0.0
      %1818 = vmatpush1.msra.mxu0 %v181
      %1819 = vmatprep.subr.mxu0 0.0
      %1820 = vmatpush1.msra.mxu0 %v182
      %1821 = vmatprep.subr.mxu0 0.0
      %1822 = vmatpush1.msra.mxu0 %v183
      %1823 = vmatprep.subr.mxu0 0.0
      %1824 = vmatpush1.msra.mxu0 %v184
      %1825 = vmatprep.subr.mxu0 0.0
      %1826 = vmatpush1.msra.mxu0 %v185
      %1827 = vmatprep.subr.mxu0 0.0
      %1828 = vmatpush1.msra.mxu0 %v186
      %1829 = vmatprep.subr.mxu0 0.0
      %1830 = vmatpush1.msra.mxu0 %v187
      %1831 = vmatprep.subr.mxu0 0.0
      %1832 = vmatpush1.msra.mxu0 %v188
      %1833 = vmatprep.subr.mxu0 0.0
      %1834 = vmatpush1.msra.mxu0 %v189
      %1835 = vmatprep.subr.mxu0 0.0
      %1836 = vmatpush1.msra.mxu0 %v190
      %1837 = vmatprep.subr.mxu0 0.0
      %1838 = vmatpush1.msra.mxu0 %v191
      %1839 = vmatprep.subr.mxu0 0.0
      %1840 = vmatpush1.msra.mxu0 %v192
      %1841 = vmatprep.subr.mxu0 0.0
      %1842 = vmatpush1.msra.mxu0 %v193
      %1843 = vmatprep.subr.mxu0 0.0
      %1844 = vmatpush1.msra.mxu0 %v194
      %1845 = vmatprep.subr.mxu0 0.0
      %1846 = vmatpush1.msra.mxu0 %v195
      %1847 = vmatprep.subr.mxu0 0.0
      %1848 = vmatpush1.msra.mxu0 %v196
      %1849 = vmatprep.subr.mxu0 0.0
      %1850 = vmatpush1.msra.mxu0 %v197
      %1851 = vmatprep.subr.mxu0 0.0
      %1852 = vmatpush1.msra.mxu0 %v198
      %1853 = vmatprep.subr.mxu0 0.0
      %1854 = vmatpush1.msra.mxu0 %v199
      %1855 = vmatprep.subr.mxu0 0.0
      %1856 = vmatpush1.msra.mxu0 %v200
      %1857 = vmatprep.subr.mxu0 0.0
      %1858 = vmatpush1.msra.mxu0 %v201
      %1859 = vmatprep.subr.mxu0 0.0
      %1860 = vmatpush1.msra.mxu0 %v202
      %1861 = vmatprep.mubr.f32.mxu0 %v1728
      %1862 = vmatmul.mubr.f32.gmra.mrb[0].mxu0 %v1727
      %v1863 = vpop.f32.mrb[0].mxu0
      %v1864 = vadd.f32 %v325, %v1863
      %v1865 = vpop.f32.mrb[0].mxu0
      %1866 = vmatprep.mubr.f32.mxu0 %v1735
      %1867 = vmatmul.mubr.f32.gmra.mrb[0].mxu0 %v1734
      %v1868 = vpop.f32.mrb[0].mxu0
      %v1869 = vadd.f32 %v325, %v1868
      %v1870 = vpop.f32.mrb[0].mxu0
      %1871 = vmatprep.mubr.f32.mxu0 %v1742
      %1872 = vmatmul.mubr.f32.gmra.mrb[0].mxu0 %v1741
      %v1873 = vpop.f32.mrb[0].mxu0
      %v1874 = vadd.f32 %v325, %v1873
      %v1875 = vpop.f32.mrb[0].mxu0
      %1876 = vmatprep.mubr.f32.mxu0 %v1749
      %1877 = vmatmul.mubr.f32.gmra.mrb[0].mxu0 %v1748
      %v1878 = vpop.f32.mrb[0].mxu0
      %v1879 = vadd.f32 %v325, %v1878
      %v1880 = vpop.f32.mrb[0].mxu0
      %1881 = vmatprep.mubr.f32.mxu0 %v1756
      %1882 = vmatmul.mubr.f32.gmra.mrb[0].mxu0 %v1755
      %v1883 = vpop.f32.mrb[0].mxu0
      %v1884 = vadd.f32 %v325, %v1883
      %v1885 = vpop.f32.mrb[0].mxu0
      %1886 = vmatprep.mubr.f32.mxu0 %v1763
      %1887 = vmatmul.mubr.f32.gmra.mrb[0].mxu0 %v1762
      %v1888 = vpop.f32.mrb[0].mxu0
      %v1889 = vadd.f32 %v325, %v1888
      %v1890 = vpop.f32.mrb[0].mxu0
      %1891 = vmatprep.mubr.f32.mxu0 %v1770
      %1892 = vmatmul.mubr.f32.gmra.mrb[0].mxu0 %v1769
      %v1893 = vpop.f32.mrb[0].mxu0
      %v1894 = vadd.f32 %v325, %v1893
      %v1895 = vpop.f32.mrb[0].mxu0
      %1896 = vdwg.mxu0
      %1897 = vmatprep.subr.mxu0 0.0
      %1898 = vmatpush1.msra.mxu0 %v203
      %1899 = vmatprep.subr.mxu0 0.0
      %1900 = vmatpush1.msra.mxu0 %v204
      %1901 = vmatprep.subr.mxu0 0.0
      %1902 = vmatpush1.msra.mxu0 %v205
      %1903 = vmatprep.subr.mxu0 0.0
      %1904 = vmatpush1.msra.mxu0 %v206
      %1905 = vmatprep.subr.mxu0 0.0
      %1906 = vmatpush1.msra.mxu0 %v207
      %1907 = vmatprep.subr.mxu0 0.0
      %1908 = vmatpush1.msra.mxu0 %v208
      %1909 = vmatprep.subr.mxu0 0.0
      %1910 = vmatpush1.msra.mxu0 %v209
      %1911 = vmatprep.subr.mxu0 0.0
      %1912 = vmatpush1.msra.mxu0 %v210
      %1913 = vmatprep.subr.mxu0 0.0
      %1914 = vmatpush1.msra.mxu0 %v211
      %1915 = vmatprep.subr.mxu0 0.0
      %1916 = vmatpush1.msra.mxu0 %v212
      %1917 = vmatprep.subr.mxu0 0.0
      %1918 = vmatpush1.msra.mxu0 %v213
      %1919 = vmatprep.subr.mxu0 0.0
      %1920 = vmatpush1.msra.mxu0 %v214
      %1921 = vmatprep.subr.mxu0 0.0
      %1922 = vmatpush1.msra.mxu0 %v215
      %1923 = vmatprep.subr.mxu0 0.0
      %1924 = vmatpush1.msra.mxu0 %v216
      %1925 = vmatprep.subr.mxu0 0.0
      %1926 = vmatpush1.msra.mxu0 %v217
      %1927 = vmatprep.subr.mxu0 0.0
      %1928 = vmatpush1.msra.mxu0 %v218
      %1929 = vmatprep.subr.mxu0 0.0
      %1930 = vmatpush1.msra.mxu0 %v219
      %1931 = vmatprep.subr.mxu0 0.0
      %1932 = vmatpush1.msra.mxu0 %v220
      %1933 = vmatprep.subr.mxu0 0.0
      %1934 = vmatpush1.msra.mxu0 %v221
      %1935 = vmatprep.subr.mxu0 0.0
      %1936 = vmatpush1.msra.mxu0 %v222
      %1937 = vmatprep.subr.mxu0 0.0
      %1938 = vmatpush1.msra.mxu0 %v223
      %1939 = vmatprep.subr.mxu0 0.0
      %1940 = vmatpush1.msra.mxu0 %v224
      %1941 = vmatprep.subr.mxu0 0.0
      %1942 = vmatpush1.msra.mxu0 %v225
      %1943 = vmatprep.subr.mxu0 0.0
      %1944 = vmatpush1.msra.mxu0 %v226
      %1945 = vmatprep.subr.mxu0 0.0
      %1946 = vmatpush1.msra.mxu0 %v227
      %1947 = vmatprep.subr.mxu0 0.0
      %1948 = vmatpush1.msra.mxu0 %v228
      %1949 = vmatprep.subr.mxu0 0.0
      %1950 = vmatpush1.msra.mxu0 %v229
      %1951 = vmatprep.subr.mxu0 0.0
      %1952 = vmatpush1.msra.mxu0 %v230
      %1953 = vmatprep.subr.mxu0 0.0
      %1954 = vmatpush1.msra.mxu0 %v231
      %1955 = vmatprep.subr.mxu0 0.0
      %1956 = vmatpush1.msra.mxu0 %v232
      %1957 = vmatprep.subr.mxu0 0.0
      %1958 = vmatpush1.msra.mxu0 %v233
      %1959 = vmatprep.subr.mxu0 0.0
      %1960 = vmatpush1.msra.mxu0 %v234
      %1961 = vmatprep.mubr.f32.mxu0 %v1730
      %1962 = vmatmul.mubr.f32.gmra.mrb[0].mxu0 %v1729
      %v1963 = vpop.f32.mrb[0].mxu0
      %v1964 = vadd.f32 %v1864, %v1963
      %v1965 = vpop.f32.mrb[0].mxu0
      %1966 = vmatprep.mubr.f32.mxu0 %v1737
      %1967 = vmatmul.mubr.f32.gmra.mrb[0].mxu0 %v1736
      %v1968 = vpop.f32.mrb[0].mxu0
      %v1969 = vadd.f32 %v1869, %v1968
      %v1970 = vpop.f32.mrb[0].mxu0
      %1971 = vmatprep.mubr.f32.mxu0 %v1744
      %1972 = vmatmul.mubr.f32.gmra.mrb[0].mxu0 %v1743
      %v1973 = vpop.f32.mrb[0].mxu0
      %v1974 = vadd.f32 %v1874, %v1973
      %v1975 = vpop.f32.mrb[0].mxu0
      %1976 = vmatprep.mubr.f32.mxu0 %v1751
      %1977 = vmatmul.mubr.f32.gmra.mrb[0].mxu0 %v1750
      %v1978 = vpop.f32.mrb[0].mxu0
      %v1979 = vadd.f32 %v1879, %v1978
      %v1980 = vpop.f32.mrb[0].mxu0
      %1981 = vmatprep.mubr.f32.mxu0 %v1758
      %1982 = vmatmul.mubr.f32.gmra.mrb[0].mxu0 %v1757
      %v1983 = vpop.f32.mrb[0].mxu0
      %v1984 = vadd.f32 %v1884, %v1983
      %v1985 = vpop.f32.mrb[0].mxu0
      %1986 = vmatprep.mubr.f32.mxu0 %v1765
      %1987 = vmatmul.mubr.f32.gmra.mrb[0].mxu0 %v1764
      %v1988 = vpop.f32.mrb[0].mxu0
      %v1989 = vadd.f32 %v1889, %v1988
      %v1990 = vpop.f32.mrb[0].mxu0
      %1991 = vmatprep.mubr.f32.mxu0 %v1772
      %1992 = vmatmul.mubr.f32.gmra.mrb[0].mxu0 %v1771
      %v1993 = vpop.f32.mrb[0].mxu0
      %v1994 = vadd.f32 %v1894, %v1993
      %v1995 = vpop.f32.mrb[0].mxu0
      %1996 = vdwg.mxu0
      %1997 = vmatprep.subr.mxu0 0.0
      %1998 = vmatpush1.msra.mxu0 %v235
      %1999 = vmatprep.subr.mxu0 0.0
      %2000 = vmatpush1.msra.mxu0 %v236
      %2001 = vmatprep.subr.mxu0 0.0
      %2002 = vmatpush1.msra.mxu0 %v237
      %2003 = vmatprep.subr.mxu0 0.0
      %2004 = vmatpush1.msra.mxu0 %v238
      %2005 = vmatprep.subr.mxu0 0.0
      %2006 = vmatpush1.msra.mxu0 %v239
      %2007 = vmatprep.subr.mxu0 0.0
      %2008 = vmatpush1.msra.mxu0 %v240
      %2009 = vmatprep.subr.mxu0 0.0
      %2010 = vmatpush1.msra.mxu0 %v241
      %2011 = vmatprep.subr.mxu0 0.0
      %2012 = vmatpush1.msra.mxu0 %v242
      %2013 = vmatprep.subr.mxu0 0.0
      %2014 = vmatpush1.msra.mxu0 %v243
      %2015 = vmatprep.subr.mxu0 0.0
      %2016 = vmatpush1.msra.mxu0 %v244
      %2017 = vmatprep.subr.mxu0 0.0
      %2018 = vmatpush1.msra.mxu0 %v245
      %2019 = vmatprep.subr.mxu0 0.0
      %2020 = vmatpush1.msra.mxu0 %v246
      %2021 = vmatprep.subr.mxu0 0.0
      %2022 = vmatpush1.msra.mxu0 %v247
      %2023 = vmatprep.subr.mxu0 0.0
      %2024 = vmatpush1.msra.mxu0 %v248
      %2025 = vmatprep.subr.mxu0 0.0
      %2026 = vmatpush1.msra.mxu0 %v249
      %2027 = vmatprep.subr.mxu0 0.0
      %2028 = vmatpush1.msra.mxu0 %v250
      %2029 = vmatprep.subr.mxu0 0.0
      %2030 = vmatpush1.msra.mxu0 %v251
      %2031 = vmatprep.subr.mxu0 0.0
      %2032 = vmatpush1.msra.mxu0 %v252
      %2033 = vmatprep.subr.mxu0 0.0
      %2034 = vmatpush1.msra.mxu0 %v253
      %2035 = vmatprep.subr.mxu0 0.0
      %2036 = vmatpush1.msra.mxu0 %v254
      %2037 = vmatprep.subr.mxu0 0.0
      %2038 = vmatpush1.msra.mxu0 %v255
      %2039 = vmatprep.subr.mxu0 0.0
      %2040 = vmatpush1.msra.mxu0 %v256
      %2041 = vmatprep.subr.mxu0 0.0
      %2042 = vmatpush1.msra.mxu0 %v257
      %2043 = vmatprep.subr.mxu0 0.0
      %2044 = vmatpush1.msra.mxu0 %v258
      %2045 = vmatprep.subr.mxu0 0.0
      %2046 = vmatpush1.msra.mxu0 %v259
      %2047 = vmatprep.subr.mxu0 0.0
      %2048 = vmatpush1.msra.mxu0 %v260
      %2049 = vmatprep.subr.mxu0 0.0
      %2050 = vmatpush1.msra.mxu0 %v261
      %2051 = vmatprep.subr.mxu0 0.0
      %2052 = vmatpush1.msra.mxu0 %v262
      %2053 = vmatprep.subr.mxu0 0.0
      %2054 = vmatpush1.msra.mxu0 %v263
      %2055 = vmatprep.subr.mxu0 0.0
      %2056 = vmatpush1.msra.mxu0 %v264
      %2057 = vmatprep.subr.mxu0 0.0
      %2058 = vmatpush1.msra.mxu0 %v265
      %2059 = vmatprep.subr.mxu0 0.0
      %2060 = vmatpush1.msra.mxu0 %v266
      %2061 = vmatprep.mubr.f32.mxu0 %v1732
      %2062 = vmatmul.mubr.f32.gmra.mrb[0].mxu0 %v1731
      %v2063 = vpop.f32.mrb[0].mxu0
      %v2064 = vadd.f32 %v1964, %v2063
      %v2065 = vpop.f32.mrb[0].mxu0
      %2066 = vmatprep.mubr.f32.mxu0 %v1739
      %2067 = vmatmul.mubr.f32.gmra.mrb[0].mxu0 %v1738
      %v2068 = vpop.f32.mrb[0].mxu0
      %v2069 = vadd.f32 %v1969, %v2068
      %v2070 = vpop.f32.mrb[0].mxu0
      %2071 = vmatprep.mubr.f32.mxu0 %v1746
      %2072 = vmatmul.mubr.f32.gmra.mrb[0].mxu0 %v1745
      %v2073 = vpop.f32.mrb[0].mxu0
      %v2074 = vadd.f32 %v1974, %v2073
      %v2075 = vpop.f32.mrb[0].mxu0
      %2076 = vmatprep.mubr.f32.mxu0 %v1753
      %2077 = vmatmul.mubr.f32.gmra.mrb[0].mxu0 %v1752
      %v2078 = vpop.f32.mrb[0].mxu0
      %v2079 = vadd.f32 %v1979, %v2078
      %v2080 = vpop.f32.mrb[0].mxu0
      %2081 = vmatprep.mubr.f32.mxu0 %v1760
      %2082 = vmatmul.mubr.f32.gmra.mrb[0].mxu0 %v1759
      %v2083 = vpop.f32.mrb[0].mxu0
      %v2084 = vadd.f32 %v1984, %v2083
      %v2085 = vpop.f32.mrb[0].mxu0
      %2086 = vmatprep.mubr.f32.mxu0 %v1767
      %2087 = vmatmul.mubr.f32.gmra.mrb[0].mxu0 %v1766
      %v2088 = vpop.f32.mrb[0].mxu0
      %v2089 = vadd.f32 %v1989, %v2088
      %v2090 = vpop.f32.mrb[0].mxu0
      %2091 = vmatprep.mubr.f32.mxu0 %v1774
      %2092 = vmatmul.mubr.f32.gmra.mrb[0].mxu0 %v1773
      %v2093 = vpop.f32.mrb[0].mxu0
      %v2094 = vadd.f32 %v1994, %v2093
      %v2095 = vpop.f32.mrb[0].mxu0
      %2096 = vdwg.mxu0
      %2097 = vmatprep.subr.mxu0 0.0
      %2098 = vmatpush1.msra.mxu0 %v267
      %2099 = vmatprep.subr.mxu0 0.0
      %2100 = vmatpush1.msra.mxu0 %v268
      %2101 = vmatprep.subr.mxu0 0.0
      %2102 = vmatpush1.msra.mxu0 %v269
      %2103 = vmatprep.subr.mxu0 0.0
      %2104 = vmatpush1.msra.mxu0 %v270
      %2105 = vmatprep.subr.mxu0 0.0
      %2106 = vmatpush1.msra.mxu0 0.0
      %2107 = vmatprep.subr.mxu0 0.0
      %2108 = vmatpush1.msra.mxu0 0.0
      %2109 = vmatprep.subr.mxu0 0.0
      %2110 = vmatpush1.msra.mxu0 0.0
      %2111 = vmatprep.subr.mxu0 0.0
      %2112 = vmatpush1.msra.mxu0 0.0
      %2113 = vmatprep.subr.mxu0 0.0
      %2114 = vmatpush1.msra.mxu0 0.0
      %2115 = vmatprep.subr.mxu0 0.0
      %2116 = vmatpush1.msra.mxu0 0.0
      %2117 = vmatprep.subr.mxu0 0.0
      %2118 = vmatpush1.msra.mxu0 0.0
      %2119 = vmatprep.subr.mxu0 0.0
      %2120 = vmatpush1.msra.mxu0 0.0
      %2121 = vmatprep.subr.mxu0 0.0
      %2122 = vmatpush1.msra.mxu0 0.0
      %2123 = vmatprep.subr.mxu0 0.0
      %2124 = vmatpush1.msra.mxu0 0.0
      %2125 = vmatprep.subr.mxu0 0.0
      %2126 = vmatpush1.msra.mxu0 0.0
      %2127 = vmatprep.subr.mxu0 0.0
      %2128 = vmatpush1.msra.mxu0 0.0
      %2129 = vmatprep.subr.mxu0 0.0
      %2130 = vmatpush1.msra.mxu0 0.0
      %2131 = vmatprep.subr.mxu0 0.0
      %2132 = vmatpush1.msra.mxu0 0.0
      %2133 = vmatprep.subr.mxu0 0.0
      %2134 = vmatpush1.msra.mxu0 0.0
      %2135 = vmatprep.subr.mxu0 0.0
      %2136 = vmatpush1.msra.mxu0 0.0
      %2137 = vmatprep.subr.mxu0 0.0
      %2138 = vmatpush1.msra.mxu0 0.0
      %2139 = vmatprep.subr.mxu0 0.0
      %2140 = vmatpush1.msra.mxu0 0.0
      %2141 = vmatprep.subr.mxu0 0.0
      %2142 = vmatpush1.msra.mxu0 0.0
      %2143 = vmatprep.subr.mxu0 0.0
      %2144 = vmatpush1.msra.mxu0 0.0
      %2145 = vmatprep.subr.mxu0 0.0
      %2146 = vmatpush1.msra.mxu0 0.0
      %2147 = vmatprep.subr.mxu0 0.0
      %2148 = vmatpush1.msra.mxu0 0.0
      %2149 = vmatprep.subr.mxu0 0.0
      %2150 = vmatpush1.msra.mxu0 0.0
      %2151 = vmatprep.subr.mxu0 0.0
      %2152 = vmatpush1.msra.mxu0 0.0
      %2153 = vmatprep.subr.mxu0 0.0
      %2154 = vmatpush1.msra.mxu0 0.0
      %2155 = vmatprep.subr.mxu0 0.0
      %2156 = vmatpush1.msra.mxu0 0.0
      %2157 = vmatprep.subr.mxu0 0.0
      %2158 = vmatpush1.msra.mxu0 0.0
      %2159 = vmatprep.subr.mxu0 0.0
      %2160 = vmatpush1.msra.mxu0 0.0
      %2161 = vmatprep.mubr.f32.mxu0 0.0
      %2162 = vmatmul.mubr.f32.gmra.mrb[0].mxu0 %v1777
      %v2163 = vpop.f32.mrb[0].mxu0
      %v2164 = vadd.f32 %v2064, %v2163
      %v2165 = vpop.f32.mrb[0].mxu0
      %2166 = vmatprep.mubr.f32.mxu0 0.0
      %2167 = vmatmul.mubr.f32.gmra.mrb[0].mxu0 %v1780
      %v2168 = vpop.f32.mrb[0].mxu0
      %v2169 = vadd.f32 %v2069, %v2168
      %v2170 = vpop.f32.mrb[0].mxu0
      %2171 = vmatprep.mubr.f32.mxu0 0.0
      %2172 = vmatmul.mubr.f32.gmra.mrb[0].mxu0 %v1783
      %v2173 = vpop.f32.mrb[0].mxu0
      %v2174 = vadd.f32 %v2074, %v2173
      %v2175 = vpop.f32.mrb[0].mxu0
      %2176 = vmatprep.mubr.f32.mxu0 0.0
      %2177 = vmatmul.mubr.f32.gmra.mrb[0].mxu0 %v1786
      %v2178 = vpop.f32.mrb[0].mxu0
      %v2179 = vadd.f32 %v2079, %v2178
      %v2180 = vpop.f32.mrb[0].mxu0
      %2181 = vmatprep.mubr.f32.mxu0 0.0
      %2182 = vmatmul.mubr.f32.gmra.mrb[0].mxu0 %v1789
      %v2183 = vpop.f32.mrb[0].mxu0
      %v2184 = vadd.f32 %v2084, %v2183
      %v2185 = vpop.f32.mrb[0].mxu0
      %2186 = vmatprep.mubr.f32.mxu0 0.0
      %2187 = vmatmul.mubr.f32.gmra.mrb[0].mxu0 %v1792
      %v2188 = vpop.f32.mrb[0].mxu0
      %v2189 = vadd.f32 %v2089, %v2188
      %v2190 = vpop.f32.mrb[0].mxu0
      %2191 = vmatprep.mubr.f32.mxu0 0.0
      %2192 = vmatmul.mubr.f32.gmra.mrb[0].mxu0 %v1795
      %v2193 = vpop.f32.mrb[0].mxu0
      %v2194 = vadd.f32 %v2094, %v2193
      %v2195 = vpop.f32.mrb[0].mxu0
      %2196 = vdwg.mxu0
      %v2197 = vmax.f32 %v2164, 0.0
      %v2198 = vmax.f32 %v2169, 0.0
      %v2199 = vmax.f32 %v2174, 0.0
      %v2200 = vmax.f32 %v2179, 0.0
      %v2201 = vmax.f32 %v2184, 0.0
      %v2202 = vmax.f32 %v2189, 0.0
      %v2203 = vmax.f32 %v2194, 0.0
      %v2204 = vmax.f32 %v1719, %v2197
      %v2205 = vmax.f32 %v1720, %v2198
      %v2206 = vmax.f32 %v1721, %v2199
      %v2207 = vmax.f32 %v1722, %v2200
      %v2208 = vmax.f32 %v1723, %v2201
      %v2209 = vmax.f32 %v1724, %v2202
      %v2210 = vmax.f32 %v1725, %v2203
      %vm2211 = vcmask 523264
      %2212 = vst.msk [vmem:[%s170] sm:$0xff] %vm2211, %v2204
      %2213 = vst.msk [vmem:[%s170 + $0x8] sm:$0xff] %vm2211, %v2205
      %2214 = vst.msk [vmem:[%s170 + $0x10] sm:$0xff] %vm2211, %v2206
      %2215 = vst.msk [vmem:[%s170 + $0x18] sm:$0xff] %vm2211, %v2207
      %2216 = vst.msk [vmem:[%s170 + $0x20] sm:$0xff] %vm2211, %v2208
      %2217 = vst.msk [vmem:[%s170 + $0x28] sm:$0xff] %vm2211, %v2209
      %vm2218 = vcmask 516096
      %2219 = vst.msk [vmem:[%s170 + $0x30] sm:$0x1] %vm2218, %v2210
      %p2220 = scmp.lt.s32.totalorder %s14, 3
      %s2221 = scalar_select %p2220, %s14, 3
      %s2222 = smul.addr %s2221, 7
      %s2223 = smul.addr %s2222, 8
      %s2224 = scalar_lea.vmem %s3, %s2223
      // Predicated region
      $region33: #{digit_adder_forward.4} parent=31 // pred_check
        %p2225 = pneg %p100
      $region34: #{digit_adder_forward.4} parent=31 // pred_check_branch
        %2227 = sbr.rel (%p2225) target = $region36
      $region35: #{digit_adder_forward.4} parent=31 // pred_region
        _
      $region36: #{digit_adder_forward.4} parent=31 // pred_fallthru
        _
    $region32: #{digit_adder_forward.4} parent=5 // pred_fallthru
      _
    %p2228 = scmp.le.s32.totalorder 2, %s9
    // Predicated region
    $region37: #{digit_adder_forward.4} parent=5 // pred_check
      %p2229 = pneg %p2228
    $region38: #{digit_adder_forward.4} parent=5 // pred_check_branch
      %2231 = sbr.rel (%p2229) target = $region40
    $region39: #{digit_adder_forward.4} parent=5 // pred_region
      %s2232 = ssub.s32 %s9, 2
      // Predicated region
      $region41: #{digit_adder_forward.4} parent=39 // pred_check
        %p2233 = pneg %p106
      $region42: #{digit_adder_forward.4} parent=39 // pred_check_branch
        %2235 = sbr.rel (%p2233) target = $region44
      $region43: #{digit_adder_forward.4} parent=39 // pred_region
        %p2236 = scmp.lt.s32.totalorder %s15, 3
        %s2237 = scalar_select %p2236, %s15, 3
        %s2238 = smul.addr %s2237, 7
        %s2239 = smul.addr %s2238, 8
        %s2240 = scalar_lea.vmem %s3, %s2239
      $region44: #{digit_adder_forward.4} parent=39 // pred_fallthru
        _
    $region40: #{digit_adder_forward.4} parent=5 // pred_fallthru
      _
  $region6: #{digit_adder_forward.4} parent=0 // loop_footer
    %s13 = sadd.s32 1, %s9
  $region7: #{digit_adder_forward.4} parent=0 // loop_footer_branch
    %8 = sbr.rel target = $region3
  $region8: #{digit_adder_forward.4} parent=0 // loop_exit
    _

// kernel: digit_adder_forward.5
$region0: #{digit_adder_forward.5}
  #allocation0 [shape = 'u32[]', space=smem, size = 0x4, offset = 0x4, fixed_abs, tag = 'smem constant byte address 0x4 - core index']
  #allocation1 [shape = 'u32[144,128]{1,0:T(1,128)}', space=vmem, size = 0x12000, scoped, tag = 'internal scratch']
  %s0 = inlined_call_operand.vmem [shape: f32[2,3136], index: 0, kind: input, shape index: {}]
  %s1 = inlined_call_operand.vmem [shape: f32[2,3136], index: 1, kind: input, shape index: {}]
  %s2 = inlined_call_operand.vmem [shape: f32[3136,256], index: 2, kind: input, shape index: {}]
  %s3 = inlined_call_operand.vmem [shape: f32[1,256], index: 3, kind: input, shape index: {}]
  %s4 = inlined_call_operand.vmem [shape: f32[256,10], index: 4, kind: input, shape index: {}]
  %s5 = inlined_call_operand.vmem [shape: f32[1,10], index: 5, kind: input, shape index: {}]
  %s6 = inlined_call_operand.vmem [shape: f32[10,19], index: 6, kind: input, shape index: {}]
  %s7 = inlined_call_operand.vmem [shape: f32[10,19], index: 7, kind: input, shape index: {}]
  %s8 = inlined_call_operand.vmem [shape: f32[1,19], index: 8, kind: input, shape index: {}]
  %s9 = inlined_call_operand.hbm [shape: f32[2,19], index: 9, kind: output, shape index: {}]
  %s10 = sld [smem:[#allocation0]]
  $region46: #{digit_adder_forward.5} parent=0
    _
  %s12 = ssub.s32 1, %s10
  %s13 = scalar_select 0, %s12, %s10
  $region1: #{digit_adder_forward.5} parent=0
    #allocation2 [shape = 'u8[1024]{0}', space=vmem, size = 0x400, scoped, tag = 'output window, operand 0, single buffered']
    #allocation3 [shape = 's32[1]{0}', space=sflag, size = 0x4, scoped, tag = 'scoped memory for digit_adder_forward.5']
    %14 = vsyncpa [#allocation3], 0
    // Predicated region
    $region2: #{digit_adder_forward.5} parent=1 // pred_check
      _
    $region3: #{digit_adder_forward.5} parent=1 // pred_check_branch
      %16 = sbr.rel (0) target = $region5
    $region4: #{digit_adder_forward.5} parent=1 // pred_region
      _
    $region5: #{digit_adder_forward.5} parent=1 // pred_fallthru
      _
    // Predicated region
    $region6: #{digit_adder_forward.5} parent=1 // pred_check
      _
    $region7: #{digit_adder_forward.5} parent=1 // pred_check_branch
      %18 = sbr.rel (0) target = $region9
    $region8: #{digit_adder_forward.5} parent=1 // pred_region
      _
    $region9: #{digit_adder_forward.5} parent=1 // pred_fallthru
      _
    // Predicated region
    $region10: #{digit_adder_forward.5} parent=1 // pred_check
      _
    $region11: #{digit_adder_forward.5} parent=1 // pred_check_branch
      %20 = sbr.rel (0) target = $region13
    $region12: #{digit_adder_forward.5} parent=1 // pred_region
      _
    $region13: #{digit_adder_forward.5} parent=1 // pred_fallthru
      _
    // Predicated region
    $region14: #{digit_adder_forward.5} parent=1 // pred_check
      _
    $region15: #{digit_adder_forward.5} parent=1 // pred_check_branch
      %22 = sbr.rel (0) target = $region17
    $region16: #{digit_adder_forward.5} parent=1 // pred_region
      _
    $region17: #{digit_adder_forward.5} parent=1 // pred_fallthru
      _
    // Predicated region
    $region18: #{digit_adder_forward.5} parent=1 // pred_check
      _
    $region19: #{digit_adder_forward.5} parent=1 // pred_check_branch
      %24 = sbr.rel (0) target = $region21
    $region20: #{digit_adder_forward.5} parent=1 // pred_region
      _
    $region21: #{digit_adder_forward.5} parent=1 // pred_fallthru
      _
    // Predicated region
    $region22: #{digit_adder_forward.5} parent=1 // pred_check
      _
    $region23: #{digit_adder_forward.5} parent=1 // pred_check_branch
      %26 = sbr.rel (0) target = $region25
    $region24: #{digit_adder_forward.5} parent=1 // pred_region
      _
    $region25: #{digit_adder_forward.5} parent=1 // pred_fallthru
      _
    // Predicated region
    $region26: #{digit_adder_forward.5} parent=1 // pred_check
      _
    $region27: #{digit_adder_forward.5} parent=1 // pred_check_branch
      %28 = sbr.rel (0) target = $region29
    $region28: #{digit_adder_forward.5} parent=1 // pred_region
      _
    $region29: #{digit_adder_forward.5} parent=1 // pred_fallthru
      _
    // Predicated region
    $region30: #{digit_adder_forward.5} parent=1 // pred_check
      _
    $region31: #{digit_adder_forward.5} parent=1 // pred_check_branch
      %30 = sbr.rel (0) target = $region33
    $region32: #{digit_adder_forward.5} parent=1 // pred_region
      _
    $region33: #{digit_adder_forward.5} parent=1 // pred_fallthru
      _
    // Predicated region
    $region34: #{digit_adder_forward.5} parent=1 // pred_check
      _
    $region35: #{digit_adder_forward.5} parent=1 // pred_check_branch
      %32 = sbr.rel (0) target = $region37
    $region36: #{digit_adder_forward.5} parent=1 // pred_region
      _
    $region37: #{digit_adder_forward.5} parent=1 // pred_fallthru
      _
    %v33 = vld [vmem:[%s2] sm:$0xff]
    %v34 = vld [vmem:[%s2 + $0x8] sm:$0xff]
    %v35 = vld [vmem:[%s2 + $0x10] sm:$0xff]
    %v36 = vld [vmem:[%s2 + $0x18] sm:$0xff]
    %v37 = vld [vmem:[%s2 + $0x20] sm:$0xff]
    %v38 = vld [vmem:[%s2 + $0x28] sm:$0xff]
    %v39 = vld [vmem:[%s2 + $0x30] sm:$0xff]
    %v40 = vld [vmem:[%s2 + $0x38] sm:$0xff]
    %v41 = vld [vmem:[%s2 + $0x40] sm:$0xff]
    %v42 = vld [vmem:[%s2 + $0x48] sm:$0xff]
    %v43 = vld [vmem:[%s2 + $0x50] sm:$0xff]
    %v44 = vld [vmem:[%s2 + $0x58] sm:$0xff]
    %v45 = vld [vmem:[%s2 + $0x60] sm:$0xff]
    %v46 = vld [vmem:[%s2 + $0x68] sm:$0xff]
    %v47 = vld [vmem:[%s2 + $0x70] sm:$0xff]
    %v48 = vld [vmem:[%s2 + $0x78] sm:$0xff]
    %v49 = vld [vmem:[%s2 + $0x80] sm:$0xff]
    %v50 = vld [vmem:[%s2 + $0x88] sm:$0xff]
    %v51 = vld [vmem:[%s2 + $0x90] sm:$0xff]
    %v52 = vld [vmem:[%s2 + $0x98] sm:$0xff]
    %v53 = vld [vmem:[%s2 + $0xa0] sm:$0xff]
    %v54 = vld [vmem:[%s2 + $0xa8] sm:$0xff]
    %v55 = vld [vmem:[%s2 + $0xb0] sm:$0xff]
    %v56 = vld [vmem:[%s2 + $0xb8] sm:$0xff]
    %v57 = vld [vmem:[%s2 + $0xc0] sm:$0xff]
    %v58 = vld [vmem:[%s2 + $0xc8] sm:$0xff]
    %v59 = vld [vmem:[%s2 + $0xd0] sm:$0xff]
    %v60 = vld [vmem:[%s2 + $0xd8] sm:$0xff]
    %v61 = vld [vmem:[%s2 + $0xe0] sm:$0xff]
    %v62 = vld [vmem:[%s2 + $0xe8] sm:$0xff]
    %v63 = vld [vmem:[%s2 + $0xf0] sm:$0xff]
    %v64 = vld [vmem:[%s2 + $0xf8] sm:$0xff]
    %v65 = vld [vmem:[%s2 + $0x100] sm:$0xff]
    %v66 = vld [vmem:[%s2 + $0x108] sm:$0xff]
    %v67 = vld [vmem:[%s2 + $0x110] sm:$0xff]
    %v68 = vld [vmem:[%s2 + $0x118] sm:$0xff]
    %v69 = vld [vmem:[%s2 + $0x120] sm:$0xff]
    %v70 = vld [vmem:[%s2 + $0x128] sm:$0xff]
    %v71 = vld [vmem:[%s2 + $0x130] sm:$0xff]
    %v72 = vld [vmem:[%s2 + $0x138] sm:$0xff]
    %v73 = vld [vmem:[%s2 + $0x140] sm:$0xff]
    %v74 = vld [vmem:[%s2 + $0x148] sm:$0xff]
    %v75 = vld [vmem:[%s2 + $0x150] sm:$0xff]
    %v76 = vld [vmem:[%s2 + $0x158] sm:$0xff]
    %v77 = vld [vmem:[%s2 + $0x160] sm:$0xff]
    %v78 = vld [vmem:[%s2 + $0x168] sm:$0xff]
    %v79 = vld [vmem:[%s2 + $0x170] sm:$0xff]
    %v80 = vld [vmem:[%s2 + $0x178] sm:$0xff]
    %v81 = vld [vmem:[%s2 + $0x180] sm:$0xff]
    %v82 = vld [vmem:[%s2 + $0x188] sm:$0xff]
    %v83 = vld [vmem:[%s2 + $0x190] sm:$0xff]
    %v84 = vld [vmem:[%s2 + $0x198] sm:$0xff]
    %v85 = vld [vmem:[%s2 + $0x1a0] sm:$0xff]
    %v86 = vld [vmem:[%s2 + $0x1a8] sm:$0xff]
    %v87 = vld [vmem:[%s2 + $0x1b0] sm:$0xff]
    %v88 = vld [vmem:[%s2 + $0x1b8] sm:$0xff]
    %v89 = vld [vmem:[%s2 + $0x1c0] sm:$0xff]
    %v90 = vld [vmem:[%s2 + $0x1c8] sm:$0xff]
    %v91 = vld [vmem:[%s2 + $0x1d0] sm:$0xff]
    %v92 = vld [vmem:[%s2 + $0x1d8] sm:$0xff]
    %v93 = vld [vmem:[%s2 + $0x1e0] sm:$0xff]
    %v94 = vld [vmem:[%s2 + $0x1e8] sm:$0xff]
    %v95 = vld [vmem:[%s2 + $0x1f0] sm:$0xff]
    %v96 = vld [vmem:[%s2 + $0x1f8] sm:$0xff]
    %v97 = vld [vmem:[%s2 + $0x200] sm:$0xff]
    %v98 = vld [vmem:[%s2 + $0x208] sm:$0xff]
    %v99 = vld [vmem:[%s2 + $0x210] sm:$0xff]
    %v100 = vld [vmem:[%s2 + $0x218] sm:$0xff]
    %v101 = vld [vmem:[%s2 + $0x220] sm:$0xff]
    %v102 = vld [vmem:[%s2 + $0x228] sm:$0xff]
    %v103 = vld [vmem:[%s2 + $0x230] sm:$0xff]
    %v104 = vld [vmem:[%s2 + $0x238] sm:$0xff]
    %v105 = vld [vmem:[%s2 + $0x240] sm:$0xff]
    %v106 = vld [vmem:[%s2 + $0x248] sm:$0xff]
    %v107 = vld [vmem:[%s2 + $0x250] sm:$0xff]
    %v108 = vld [vmem:[%s2 + $0x258] sm:$0xff]
    %v109 = vld [vmem:[%s2 + $0x260] sm:$0xff]
    %v110 = vld [vmem:[%s2 + $0x268] sm:$0xff]
    %v111 = vld [vmem:[%s2 + $0x270] sm:$0xff]
    %v112 = vld [vmem:[%s2 + $0x278] sm:$0xff]
    %v113 = vld [vmem:[%s2 + $0x280] sm:$0xff]
    %v114 = vld [vmem:[%s2 + $0x288] sm:$0xff]
    %v115 = vld [vmem:[%s2 + $0x290] sm:$0xff]
    %v116 = vld [vmem:[%s2 + $0x298] sm:$0xff]
    %v117 = vld [vmem:[%s2 + $0x2a0] sm:$0xff]
    %v118 = vld [vmem:[%s2 + $0x2a8] sm:$0xff]
    %v119 = vld [vmem:[%s2 + $0x2b0] sm:$0xff]
    %v120 = vld [vmem:[%s2 + $0x2b8] sm:$0xff]
    %v121 = vld [vmem:[%s2 + $0x2c0] sm:$0xff]
    %v122 = vld [vmem:[%s2 + $0x2c8] sm:$0xff]
    %v123 = vld [vmem:[%s2 + $0x2d0] sm:$0xff]
    %v124 = vld [vmem:[%s2 + $0x2d8] sm:$0xff]
    %v125 = vld [vmem:[%s2 + $0x2e0] sm:$0xff]
    %v126 = vld [vmem:[%s2 + $0x2e8] sm:$0xff]
    %v127 = vld [vmem:[%s2 + $0x2f0] sm:$0xff]
    %v128 = vld [vmem:[%s2 + $0x2f8] sm:$0xff]
    %v129 = vld [vmem:[%s2 + $0x300] sm:$0xff]
    %v130 = vld [vmem:[%s2 + $0x308] sm:$0xff]
    %v131 = vld [vmem:[%s2 + $0x310] sm:$0xff]
    %v132 = vld [vmem:[%s2 + $0x318] sm:$0xff]
    %v133 = vld [vmem:[%s2 + $0x320] sm:$0xff]
    %v134 = vld [vmem:[%s2 + $0x328] sm:$0xff]
    %v135 = vld [vmem:[%s2 + $0x330] sm:$0xff]
    %v136 = vld [vmem:[%s2 + $0x338] sm:$0xff]
    %v137 = vld [vmem:[%s2 + $0x340] sm:$0xff]
    %v138 = vld [vmem:[%s2 + $0x348] sm:$0xff]
    %v139 = vld [vmem:[%s2 + $0x350] sm:$0xff]
    %v140 = vld [vmem:[%s2 + $0x358] sm:$0xff]
    %v141 = vld [vmem:[%s2 + $0x360] sm:$0xff]
    %v142 = vld [vmem:[%s2 + $0x368] sm:$0xff]
    %v143 = vld [vmem:[%s2 + $0x370] sm:$0xff]
    %v144 = vld [vmem:[%s2 + $0x378] sm:$0xff]
    %v145 = vld [vmem:[%s2 + $0x380] sm:$0xff]
    %v146 = vld [vmem:[%s2 + $0x388] sm:$0xff]
    %v147 = vld [vmem:[%s2 + $0x390] sm:$0xff]
    %v148 = vld [vmem:[%s2 + $0x398] sm:$0xff]
    %v149 = vld [vmem:[%s2 + $0x3a0] sm:$0xff]
    %v150 = vld [vmem:[%s2 + $0x3a8] sm:$0xff]
    %v151 = vld [vmem:[%s2 + $0x3b0] sm:$0xff]
    %v152 = vld [vmem:[%s2 + $0x3b8] sm:$0xff]
    %v153 = vld [vmem:[%s2 + $0x3c0] sm:$0xff]
    %v154 = vld [vmem:[%s2 + $0x3c8] sm:$0xff]
    %v155 = vld [vmem:[%s2 + $0x3d0] sm:$0xff]
    %v156 = vld [vmem:[%s2 + $0x3d8] sm:$0xff]
    %v157 = vld [vmem:[%s2 + $0x3e0] sm:$0xff]
    %v158 = vld [vmem:[%s2 + $0x3e8] sm:$0xff]
    %v159 = vld [vmem:[%s2 + $0x3f0] sm:$0xff]
    %v160 = vld [vmem:[%s2 + $0x3f8] sm:$0xff]
    %v161 = vld [vmem:[%s2 + $0x400] sm:$0xff]
    %v162 = vld [vmem:[%s2 + $0x408] sm:$0xff]
    %v163 = vld [vmem:[%s2 + $0x410] sm:$0xff]
    %v164 = vld [vmem:[%s2 + $0x418] sm:$0xff]
    %v165 = vld [vmem:[%s2 + $0x420] sm:$0xff]
    %v166 = vld [vmem:[%s2 + $0x428] sm:$0xff]
    %v167 = vld [vmem:[%s2 + $0x430] sm:$0xff]
    %v168 = vld [vmem:[%s2 + $0x438] sm:$0xff]
    %v169 = vld [vmem:[%s2 + $0x440] sm:$0xff]
    %v170 = vld [vmem:[%s2 + $0x448] sm:$0xff]
    %v171 = vld [vmem:[%s2 + $0x450] sm:$0xff]
    %v172 = vld [vmem:[%s2 + $0x458] sm:$0xff]
    %v173 = vld [vmem:[%s2 + $0x460] sm:$0xff]
    %v174 = vld [vmem:[%s2 + $0x468] sm:$0xff]
    %v175 = vld [vmem:[%s2 + $0x470] sm:$0xff]
    %v176 = vld [vmem:[%s2 + $0x478] sm:$0xff]
    %v177 = vld [vmem:[%s2 + $0x480] sm:$0xff]
    %v178 = vld [vmem:[%s2 + $0x488] sm:$0xff]
    %v179 = vld [vmem:[%s2 + $0x490] sm:$0xff]
    %v180 = vld [vmem:[%s2 + $0x498] sm:$0xff]
    %v181 = vld [vmem:[%s2 + $0x4a0] sm:$0xff]
    %v182 = vld [vmem:[%s2 + $0x4a8] sm:$0xff]
    %v183 = vld [vmem:[%s2 + $0x4b0] sm:$0xff]
    %v184 = vld [vmem:[%s2 + $0x4b8] sm:$0xff]
    %v185 = vld [vmem:[%s2 + $0x4c0] sm:$0xff]
    %v186 = vld [vmem:[%s2 + $0x4c8] sm:$0xff]
    %v187 = vld [vmem:[%s2 + $0x4d0] sm:$0xff]
    %v188 = vld [vmem:[%s2 + $0x4d8] sm:$0xff]
    %v189 = vld [vmem:[%s2 + $0x4e0] sm:$0xff]
    %v190 = vld [vmem:[%s2 + $0x4e8] sm:$0xff]
    %v191 = vld [vmem:[%s2 + $0x4f0] sm:$0xff]
    %v192 = vld [vmem:[%s2 + $0x4f8] sm:$0xff]
    %v193 = vld [vmem:[%s2 + $0x500] sm:$0xff]
    %v194 = vld [vmem:[%s2 + $0x508] sm:$0xff]
    %v195 = vld [vmem:[%s2 + $0x510] sm:$0xff]
    %v196 = vld [vmem:[%s2 + $0x518] sm:$0xff]
    %v197 = vld [vmem:[%s2 + $0x520] sm:$0xff]
    %v198 = vld [vmem:[%s2 + $0x528] sm:$0xff]
    %v199 = vld [vmem:[%s2 + $0x530] sm:$0xff]
    %v200 = vld [vmem:[%s2 + $0x538] sm:$0xff]
    %v201 = vld [vmem:[%s2 + $0x540] sm:$0xff]
    %v202 = vld [vmem:[%s2 + $0x548] sm:$0xff]
    %v203 = vld [vmem:[%s2 + $0x550] sm:$0xff]
    %v204 = vld [vmem:[%s2 + $0x558] sm:$0xff]
    %v205 = vld [vmem:[%s2 + $0x560] sm:$0xff]
    %v206 = vld [vmem:[%s2 + $0x568] sm:$0xff]
    %v207 = vld [vmem:[%s2 + $0x570] sm:$0xff]
    %v208 = vld [vmem:[%s2 + $0x578] sm:$0xff]
    %v209 = vld [vmem:[%s2 + $0x580] sm:$0xff]
    %v210 = vld [vmem:[%s2 + $0x588] sm:$0xff]
    %v211 = vld [vmem:[%s2 + $0x590] sm:$0xff]
    %v212 = vld [vmem:[%s2 + $0x598] sm:$0xff]
    %v213 = vld [vmem:[%s2 + $0x5a0] sm:$0xff]
    %v214 = vld [vmem:[%s2 + $0x5a8] sm:$0xff]
    %v215 = vld [vmem:[%s2 + $0x5b0] sm:$0xff]
    %v216 = vld [vmem:[%s2 + $0x5b8] sm:$0xff]
    %v217 = vld [vmem:[%s2 + $0x5c0] sm:$0xff]
    %v218 = vld [vmem:[%s2 + $0x5c8] sm:$0xff]
    %v219 = vld [vmem:[%s2 + $0x5d0] sm:$0xff]
    %v220 = vld [vmem:[%s2 + $0x5d8] sm:$0xff]
    %v221 = vld [vmem:[%s2 + $0x5e0] sm:$0xff]
    %v222 = vld [vmem:[%s2 + $0x5e8] sm:$0xff]
    %v223 = vld [vmem:[%s2 + $0x5f0] sm:$0xff]
    %v224 = vld [vmem:[%s2 + $0x5f8] sm:$0xff]
    %v225 = vld [vmem:[%s2 + $0x600] sm:$0xff]
    %v226 = vld [vmem:[%s2 + $0x608] sm:$0xff]
    %v227 = vld [vmem:[%s2 + $0x610] sm:$0xff]
    %v228 = vld [vmem:[%s2 + $0x618] sm:$0xff]
    %v229 = vld [vmem:[%s2 + $0x620] sm:$0xff]
    %v230 = vld [vmem:[%s2 + $0x628] sm:$0xff]
    %v231 = vld [vmem:[%s2 + $0x630] sm:$0xff]
    %v232 = vld [vmem:[%s2 + $0x638] sm:$0xff]
    %v233 = vld [vmem:[%s2 + $0x640] sm:$0xff]
    %v234 = vld [vmem:[%s2 + $0x648] sm:$0xff]
    %v235 = vld [vmem:[%s2 + $0x650] sm:$0xff]
    %v236 = vld [vmem:[%s2 + $0x658] sm:$0xff]
    %v237 = vld [vmem:[%s2 + $0x660] sm:$0xff]
    %v238 = vld [vmem:[%s2 + $0x668] sm:$0xff]
    %v239 = vld [vmem:[%s2 + $0x670] sm:$0xff]
    %v240 = vld [vmem:[%s2 + $0x678] sm:$0xff]
    %v241 = vld [vmem:[%s2 + $0x680] sm:$0xff]
    %v242 = vld [vmem:[%s2 + $0x688] sm:$0xff]
    %v243 = vld [vmem:[%s2 + $0x690] sm:$0xff]
    %v244 = vld [vmem:[%s2 + $0x698] sm:$0xff]
    %v245 = vld [vmem:[%s2 + $0x6a0] sm:$0xff]
    %v246 = vld [vmem:[%s2 + $0x6a8] sm:$0xff]
    %v247 = vld [vmem:[%s2 + $0x6b0] sm:$0xff]
    %v248 = vld [vmem:[%s2 + $0x6b8] sm:$0xff]
    %v249 = vld [vmem:[%s2 + $0x6c0] sm:$0xff]
    %v250 = vld [vmem:[%s2 + $0x6c8] sm:$0xff]
    %v251 = vld [vmem:[%s2 + $0x6d0] sm:$0xff]
    %v252 = vld [vmem:[%s2 + $0x6d8] sm:$0xff]
    %v253 = vld [vmem:[%s2 + $0x6e0] sm:$0xff]
    %v254 = vld [vmem:[%s2 + $0x6e8] sm:$0xff]
    %v255 = vld [vmem:[%s2 + $0x6f0] sm:$0xff]
    %v256 = vld [vmem:[%s2 + $0x6f8] sm:$0xff]
    %v257 = vld [vmem:[%s2 + $0x700] sm:$0xff]
    %v258 = vld [vmem:[%s2 + $0x708] sm:$0xff]
    %v259 = vld [vmem:[%s2 + $0x710] sm:$0xff]
    %v260 = vld [vmem:[%s2 + $0x718] sm:$0xff]
    %v261 = vld [vmem:[%s2 + $0x720] sm:$0xff]
    %v262 = vld [vmem:[%s2 + $0x728] sm:$0xff]
    %v263 = vld [vmem:[%s2 + $0x730] sm:$0xff]
    %v264 = vld [vmem:[%s2 + $0x738] sm:$0xff]
    %v265 = vld [vmem:[%s2 + $0x740] sm:$0xff]
    %v266 = vld [vmem:[%s2 + $0x748] sm:$0xff]
    %v267 = vld [vmem:[%s2 + $0x750] sm:$0xff]
    %v268 = vld [vmem:[%s2 + $0x758] sm:$0xff]
    %v269 = vld [vmem:[%s2 + $0x760] sm:$0xff]
    %v270 = vld [vmem:[%s2 + $0x768] sm:$0xff]
    %v271 = vld [vmem:[%s2 + $0x770] sm:$0xff]
    %v272 = vld [vmem:[%s2 + $0x778] sm:$0xff]
    %v273 = vld [vmem:[%s2 + $0x780] sm:$0xff]
    %v274 = vld [vmem:[%s2 + $0x788] sm:$0xff]
    %v275 = vld [vmem:[%s2 + $0x790] sm:$0xff]
    %v276 = vld [vmem:[%s2 + $0x798] sm:$0xff]
    %v277 = vld [vmem:[%s2 + $0x7a0] sm:$0xff]
    %v278 = vld [vmem:[%s2 + $0x7a8] sm:$0xff]
    %v279 = vld [vmem:[%s2 + $0x7b0] sm:$0xff]
    %v280 = vld [vmem:[%s2 + $0x7b8] sm:$0xff]
    %v281 = vld [vmem:[%s2 + $0x7c0] sm:$0xff]
    %v282 = vld [vmem:[%s2 + $0x7c8] sm:$0xff]
    %v283 = vld [vmem:[%s2 + $0x7d0] sm:$0xff]
    %v284 = vld [vmem:[%s2 + $0x7d8] sm:$0xff]
    %v285 = vld [vmem:[%s2 + $0x7e0] sm:$0xff]
    %v286 = vld [vmem:[%s2 + $0x7e8] sm:$0xff]
    %v287 = vld [vmem:[%s2 + $0x7f0] sm:$0xff]
    %v288 = vld [vmem:[%s2 + $0x7f8] sm:$0xff]
    %v289 = vld [vmem:[%s2 + $0x800] sm:$0xff]
    %v290 = vld [vmem:[%s2 + $0x808] sm:$0xff]
    %v291 = vld [vmem:[%s2 + $0x810] sm:$0xff]
    %v292 = vld [vmem:[%s2 + $0x818] sm:$0xff]
    %v293 = vld [vmem:[%s2 + $0x820] sm:$0xff]
    %v294 = vld [vmem:[%s2 + $0x828] sm:$0xff]
    %v295 = vld [vmem:[%s2 + $0x830] sm:$0xff]
    %v296 = vld [vmem:[%s2 + $0x838] sm:$0xff]
    %v297 = vld [vmem:[%s2 + $0x840] sm:$0xff]
    %v298 = vld [vmem:[%s2 + $0x848] sm:$0xff]
    %v299 = vld [vmem:[%s2 + $0x850] sm:$0xff]
    %v300 = vld [vmem:[%s2 + $0x858] sm:$0xff]
    %v301 = vld [vmem:[%s2 + $0x860] sm:$0xff]
    %v302 = vld [vmem:[%s2 + $0x868] sm:$0xff]
    %v303 = vld [vmem:[%s2 + $0x870] sm:$0xff]
    %v304 = vld [vmem:[%s2 + $0x878] sm:$0xff]
    %v305 = vld [vmem:[%s2 + $0x880] sm:$0xff]
    %v306 = vld [vmem:[%s2 + $0x888] sm:$0xff]
    %v307 = vld [vmem:[%s2 + $0x890] sm:$0xff]
    %v308 = vld [vmem:[%s2 + $0x898] sm:$0xff]
    %v309 = vld [vmem:[%s2 + $0x8a0] sm:$0xff]
    %v310 = vld [vmem:[%s2 + $0x8a8] sm:$0xff]
    %v311 = vld [vmem:[%s2 + $0x8b0] sm:$0xff]
    %v312 = vld [vmem:[%s2 + $0x8b8] sm:$0xff]
    %v313 = vld [vmem:[%s2 + $0x8c0] sm:$0xff]
    %v314 = vld [vmem:[%s2 + $0x8c8] sm:$0xff]
    %v315 = vld [vmem:[%s2 + $0x8d0] sm:$0xff]
    %v316 = vld [vmem:[%s2 + $0x8d8] sm:$0xff]
    %v317 = vld [vmem:[%s2 + $0x8e0] sm:$0xff]
    %v318 = vld [vmem:[%s2 + $0x8e8] sm:$0xff]
    %v319 = vld [vmem:[%s2 + $0x8f0] sm:$0xff]
    %v320 = vld [vmem:[%s2 + $0x8f8] sm:$0xff]
    %v321 = vld [vmem:[%s2 + $0x900] sm:$0xff]
    %v322 = vld [vmem:[%s2 + $0x908] sm:$0xff]
    %v323 = vld [vmem:[%s2 + $0x910] sm:$0xff]
    %v324 = vld [vmem:[%s2 + $0x918] sm:$0xff]
    %v325 = vld [vmem:[%s2 + $0x920] sm:$0xff]
    %v326 = vld [vmem:[%s2 + $0x928] sm:$0xff]
    %v327 = vld [vmem:[%s2 + $0x930] sm:$0xff]
    %v328 = vld [vmem:[%s2 + $0x938] sm:$0xff]
    %v329 = vld [vmem:[%s2 + $0x940] sm:$0xff]
    %v330 = vld [vmem:[%s2 + $0x948] sm:$0xff]
    %v331 = vld [vmem:[%s2 + $0x950] sm:$0xff]
    %v332 = vld [vmem:[%s2 + $0x958] sm:$0xff]
    %v333 = vld [vmem:[%s2 + $0x960] sm:$0xff]
    %v334 = vld [vmem:[%s2 + $0x968] sm:$0xff]
    %v335 = vld [vmem:[%s2 + $0x970] sm:$0xff]
    %v336 = vld [vmem:[%s2 + $0x978] sm:$0xff]
    %v337 = vld [vmem:[%s2 + $0x980] sm:$0xff]
    %v338 = vld [vmem:[%s2 + $0x988] sm:$0xff]
    %v339 = vld [vmem:[%s2 + $0x990] sm:$0xff]
    %v340 = vld [vmem:[%s2 + $0x998] sm:$0xff]
    %v341 = vld [vmem:[%s2 + $0x9a0] sm:$0xff]
    %v342 = vld [vmem:[%s2 + $0x9a8] sm:$0xff]
    %v343 = vld [vmem:[%s2 + $0x9b0] sm:$0xff]
    %v344 = vld [vmem:[%s2 + $0x9b8] sm:$0xff]
    %v345 = vld [vmem:[%s2 + $0x9c0] sm:$0xff]
    %v346 = vld [vmem:[%s2 + $0x9c8] sm:$0xff]
    %v347 = vld [vmem:[%s2 + $0x9d0] sm:$0xff]
    %v348 = vld [vmem:[%s2 + $0x9d8] sm:$0xff]
    %v349 = vld [vmem:[%s2 + $0x9e0] sm:$0xff]
    %v350 = vld [vmem:[%s2 + $0x9e8] sm:$0xff]
    %v351 = vld [vmem:[%s2 + $0x9f0] sm:$0xff]
    %v352 = vld [vmem:[%s2 + $0x9f8] sm:$0xff]
    %v353 = vld [vmem:[%s2 + $0xa00] sm:$0xff]
    %v354 = vld [vmem:[%s2 + $0xa08] sm:$0xff]
    %v355 = vld [vmem:[%s2 + $0xa10] sm:$0xff]
    %v356 = vld [vmem:[%s2 + $0xa18] sm:$0xff]
    %v357 = vld [vmem:[%s2 + $0xa20] sm:$0xff]
    %v358 = vld [vmem:[%s2 + $0xa28] sm:$0xff]
    %v359 = vld [vmem:[%s2 + $0xa30] sm:$0xff]
    %v360 = vld [vmem:[%s2 + $0xa38] sm:$0xff]
    %v361 = vld [vmem:[%s2 + $0xa40] sm:$0xff]
    %v362 = vld [vmem:[%s2 + $0xa48] sm:$0xff]
    %v363 = vld [vmem:[%s2 + $0xa50] sm:$0xff]
    %v364 = vld [vmem:[%s2 + $0xa58] sm:$0xff]
    %v365 = vld [vmem:[%s2 + $0xa60] sm:$0xff]
    %v366 = vld [vmem:[%s2 + $0xa68] sm:$0xff]
    %v367 = vld [vmem:[%s2 + $0xa70] sm:$0xff]
    %v368 = vld [vmem:[%s2 + $0xa78] sm:$0xff]
    %v369 = vld [vmem:[%s2 + $0xa80] sm:$0xff]
    %v370 = vld [vmem:[%s2 + $0xa88] sm:$0xff]
    %v371 = vld [vmem:[%s2 + $0xa90] sm:$0xff]
    %v372 = vld [vmem:[%s2 + $0xa98] sm:$0xff]
    %v373 = vld [vmem:[%s2 + $0xaa0] sm:$0xff]
    %v374 = vld [vmem:[%s2 + $0xaa8] sm:$0xff]
    %v375 = vld [vmem:[%s2 + $0xab0] sm:$0xff]
    %v376 = vld [vmem:[%s2 + $0xab8] sm:$0xff]
    %v377 = vld [vmem:[%s2 + $0xac0] sm:$0xff]
    %v378 = vld [vmem:[%s2 + $0xac8] sm:$0xff]
    %v379 = vld [vmem:[%s2 + $0xad0] sm:$0xff]
    %v380 = vld [vmem:[%s2 + $0xad8] sm:$0xff]
    %v381 = vld [vmem:[%s2 + $0xae0] sm:$0xff]
    %v382 = vld [vmem:[%s2 + $0xae8] sm:$0xff]
    %v383 = vld [vmem:[%s2 + $0xaf0] sm:$0xff]
    %v384 = vld [vmem:[%s2 + $0xaf8] sm:$0xff]
    %v385 = vld [vmem:[%s2 + $0xb00] sm:$0xff]
    %v386 = vld [vmem:[%s2 + $0xb08] sm:$0xff]
    %v387 = vld [vmem:[%s2 + $0xb10] sm:$0xff]
    %v388 = vld [vmem:[%s2 + $0xb18] sm:$0xff]
    %v389 = vld [vmem:[%s2 + $0xb20] sm:$0xff]
    %v390 = vld [vmem:[%s2 + $0xb28] sm:$0xff]
    %v391 = vld [vmem:[%s2 + $0xb30] sm:$0xff]
    %v392 = vld [vmem:[%s2 + $0xb38] sm:$0xff]
    %v393 = vld [vmem:[%s2 + $0xb40] sm:$0xff]
    %v394 = vld [vmem:[%s2 + $0xb48] sm:$0xff]
    %v395 = vld [vmem:[%s2 + $0xb50] sm:$0xff]
    %v396 = vld [vmem:[%s2 + $0xb58] sm:$0xff]
    %v397 = vld [vmem:[%s2 + $0xb60] sm:$0xff]
    %v398 = vld [vmem:[%s2 + $0xb68] sm:$0xff]
    %v399 = vld [vmem:[%s2 + $0xb70] sm:$0xff]
    %v400 = vld [vmem:[%s2 + $0xb78] sm:$0xff]
    %v401 = vld [vmem:[%s2 + $0xb80] sm:$0xff]
    %v402 = vld [vmem:[%s2 + $0xb88] sm:$0xff]
    %v403 = vld [vmem:[%s2 + $0xb90] sm:$0xff]
    %v404 = vld [vmem:[%s2 + $0xb98] sm:$0xff]
    %v405 = vld [vmem:[%s2 + $0xba0] sm:$0xff]
    %v406 = vld [vmem:[%s2 + $0xba8] sm:$0xff]
    %v407 = vld [vmem:[%s2 + $0xbb0] sm:$0xff]
    %v408 = vld [vmem:[%s2 + $0xbb8] sm:$0xff]
    %v409 = vld [vmem:[%s2 + $0xbc0] sm:$0xff]
    %v410 = vld [vmem:[%s2 + $0xbc8] sm:$0xff]
    %v411 = vld [vmem:[%s2 + $0xbd0] sm:$0xff]
    %v412 = vld [vmem:[%s2 + $0xbd8] sm:$0xff]
    %v413 = vld [vmem:[%s2 + $0xbe0] sm:$0xff]
    %v414 = vld [vmem:[%s2 + $0xbe8] sm:$0xff]
    %v415 = vld [vmem:[%s2 + $0xbf0] sm:$0xff]
    %v416 = vld [vmem:[%s2 + $0xbf8] sm:$0xff]
    %v417 = vld [vmem:[%s2 + $0xc00] sm:$0xff]
    %v418 = vld [vmem:[%s2 + $0xc08] sm:$0xff]
    %v419 = vld [vmem:[%s2 + $0xc10] sm:$0xff]
    %v420 = vld [vmem:[%s2 + $0xc18] sm:$0xff]
    %v421 = vld [vmem:[%s2 + $0xc20] sm:$0xff]
    %v422 = vld [vmem:[%s2 + $0xc28] sm:$0xff]
    %v423 = vld [vmem:[%s2 + $0xc30] sm:$0xff]
    %v424 = vld [vmem:[%s2 + $0xc38] sm:$0xff]
    %v425 = vld [vmem:[%s2 + $0xc40] sm:$0xff]
    %v426 = vld [vmem:[%s2 + $0xc48] sm:$0xff]
    %v427 = vld [vmem:[%s2 + $0xc50] sm:$0xff]
    %v428 = vld [vmem:[%s2 + $0xc58] sm:$0xff]
    %v429 = vld [vmem:[%s2 + $0xc60] sm:$0xff]
    %v430 = vld [vmem:[%s2 + $0xc68] sm:$0xff]
    %v431 = vld [vmem:[%s2 + $0xc70] sm:$0xff]
    %v432 = vld [vmem:[%s2 + $0xc78] sm:$0xff]
    %v433 = vld [vmem:[%s2 + $0xc80] sm:$0xff]
    %v434 = vld [vmem:[%s2 + $0xc88] sm:$0xff]
    %v435 = vld [vmem:[%s2 + $0xc90] sm:$0xff]
    %v436 = vld [vmem:[%s2 + $0xc98] sm:$0xff]
    %v437 = vld [vmem:[%s2 + $0xca0] sm:$0xff]
    %v438 = vld [vmem:[%s2 + $0xca8] sm:$0xff]
    %v439 = vld [vmem:[%s2 + $0xcb0] sm:$0xff]
    %v440 = vld [vmem:[%s2 + $0xcb8] sm:$0xff]
    %v441 = vld [vmem:[%s2 + $0xcc0] sm:$0xff]
    %v442 = vld [vmem:[%s2 + $0xcc8] sm:$0xff]
    %v443 = vld [vmem:[%s2 + $0xcd0] sm:$0xff]
    %v444 = vld [vmem:[%s2 + $0xcd8] sm:$0xff]
    %v445 = vld [vmem:[%s2 + $0xce0] sm:$0xff]
    %v446 = vld [vmem:[%s2 + $0xce8] sm:$0xff]
    %v447 = vld [vmem:[%s2 + $0xcf0] sm:$0xff]
    %v448 = vld [vmem:[%s2 + $0xcf8] sm:$0xff]
    %v449 = vld [vmem:[%s2 + $0xd00] sm:$0xff]
    %v450 = vld [vmem:[%s2 + $0xd08] sm:$0xff]
    %v451 = vld [vmem:[%s2 + $0xd10] sm:$0xff]
    %v452 = vld [vmem:[%s2 + $0xd18] sm:$0xff]
    %v453 = vld [vmem:[%s2 + $0xd20] sm:$0xff]
    %v454 = vld [vmem:[%s2 + $0xd28] sm:$0xff]
    %v455 = vld [vmem:[%s2 + $0xd30] sm:$0xff]
    %v456 = vld [vmem:[%s2 + $0xd38] sm:$0xff]
    %v457 = vld [vmem:[%s2 + $0xd40] sm:$0xff]
    %v458 = vld [vmem:[%s2 + $0xd48] sm:$0xff]
    %v459 = vld [vmem:[%s2 + $0xd50] sm:$0xff]
    %v460 = vld [vmem:[%s2 + $0xd58] sm:$0xff]
    %v461 = vld [vmem:[%s2 + $0xd60] sm:$0xff]
    %v462 = vld [vmem:[%s2 + $0xd68] sm:$0xff]
    %v463 = vld [vmem:[%s2 + $0xd70] sm:$0xff]
    %v464 = vld [vmem:[%s2 + $0xd78] sm:$0xff]
    %v465 = vld [vmem:[%s2 + $0xd80] sm:$0xff]
    %v466 = vld [vmem:[%s2 + $0xd88] sm:$0xff]
    %v467 = vld [vmem:[%s2 + $0xd90] sm:$0xff]
    %v468 = vld [vmem:[%s2 + $0xd98] sm:$0xff]
    %v469 = vld [vmem:[%s2 + $0xda0] sm:$0xff]
    %v470 = vld [vmem:[%s2 + $0xda8] sm:$0xff]
    %v471 = vld [vmem:[%s2 + $0xdb0] sm:$0xff]
    %v472 = vld [vmem:[%s2 + $0xdb8] sm:$0xff]
    %v473 = vld [vmem:[%s2 + $0xdc0] sm:$0xff]
    %v474 = vld [vmem:[%s2 + $0xdc8] sm:$0xff]
    %v475 = vld [vmem:[%s2 + $0xdd0] sm:$0xff]
    %v476 = vld [vmem:[%s2 + $0xdd8] sm:$0xff]
    %v477 = vld [vmem:[%s2 + $0xde0] sm:$0xff]
    %v478 = vld [vmem:[%s2 + $0xde8] sm:$0xff]
    %v479 = vld [vmem:[%s2 + $0xdf0] sm:$0xff]
    %v480 = vld [vmem:[%s2 + $0xdf8] sm:$0xff]
    %v481 = vld [vmem:[%s2 + $0xe00] sm:$0xff]
    %v482 = vld [vmem:[%s2 + $0xe08] sm:$0xff]
    %v483 = vld [vmem:[%s2 + $0xe10] sm:$0xff]
    %v484 = vld [vmem:[%s2 + $0xe18] sm:$0xff]
    %v485 = vld [vmem:[%s2 + $0xe20] sm:$0xff]
    %v486 = vld [vmem:[%s2 + $0xe28] sm:$0xff]
    %v487 = vld [vmem:[%s2 + $0xe30] sm:$0xff]
    %v488 = vld [vmem:[%s2 + $0xe38] sm:$0xff]
    %v489 = vld [vmem:[%s2 + $0xe40] sm:$0xff]
    %v490 = vld [vmem:[%s2 + $0xe48] sm:$0xff]
    %v491 = vld [vmem:[%s2 + $0xe50] sm:$0xff]
    %v492 = vld [vmem:[%s2 + $0xe58] sm:$0xff]
    %v493 = vld [vmem:[%s2 + $0xe60] sm:$0xff]
    %v494 = vld [vmem:[%s2 + $0xe68] sm:$0xff]
    %v495 = vld [vmem:[%s2 + $0xe70] sm:$0xff]
    %v496 = vld [vmem:[%s2 + $0xe78] sm:$0xff]
    %v497 = vld [vmem:[%s2 + $0xe80] sm:$0xff]
    %v498 = vld [vmem:[%s2 + $0xe88] sm:$0xff]
    %v499 = vld [vmem:[%s2 + $0xe90] sm:$0xff]
    %v500 = vld [vmem:[%s2 + $0xe98] sm:$0xff]
    %v501 = vld [vmem:[%s2 + $0xea0] sm:$0xff]
    %v502 = vld [vmem:[%s2 + $0xea8] sm:$0xff]
    %v503 = vld [vmem:[%s2 + $0xeb0] sm:$0xff]
    %v504 = vld [vmem:[%s2 + $0xeb8] sm:$0xff]
    %v505 = vld [vmem:[%s2 + $0xec0] sm:$0xff]
    %v506 = vld [vmem:[%s2 + $0xec8] sm:$0xff]
    %v507 = vld [vmem:[%s2 + $0xed0] sm:$0xff]
    %v508 = vld [vmem:[%s2 + $0xed8] sm:$0xff]
    %v509 = vld [vmem:[%s2 + $0xee0] sm:$0xff]
    %v510 = vld [vmem:[%s2 + $0xee8] sm:$0xff]
    %v511 = vld [vmem:[%s2 + $0xef0] sm:$0xff]
    %v512 = vld [vmem:[%s2 + $0xef8] sm:$0xff]
    %v513 = vld [vmem:[%s2 + $0xf00] sm:$0xff]
    %v514 = vld [vmem:[%s2 + $0xf08] sm:$0xff]
    %v515 = vld [vmem:[%s2 + $0xf10] sm:$0xff]
    %v516 = vld [vmem:[%s2 + $0xf18] sm:$0xff]
    %v517 = vld [vmem:[%s2 + $0xf20] sm:$0xff]
    %v518 = vld [vmem:[%s2 + $0xf28] sm:$0xff]
    %v519 = vld [vmem:[%s2 + $0xf30] sm:$0xff]
    %v520 = vld [vmem:[%s2 + $0xf38] sm:$0xff]
    %v521 = vld [vmem:[%s2 + $0xf40] sm:$0xff]
    %v522 = vld [vmem:[%s2 + $0xf48] sm:$0xff]
    %v523 = vld [vmem:[%s2 + $0xf50] sm:$0xff]
    %v524 = vld [vmem:[%s2 + $0xf58] sm:$0xff]
    %v525 = vld [vmem:[%s2 + $0xf60] sm:$0xff]
    %v526 = vld [vmem:[%s2 + $0xf68] sm:$0xff]
    %v527 = vld [vmem:[%s2 + $0xf70] sm:$0xff]
    %v528 = vld [vmem:[%s2 + $0xf78] sm:$0xff]
    %v529 = vld [vmem:[%s2 + $0xf80] sm:$0xff]
    %v530 = vld [vmem:[%s2 + $0xf88] sm:$0xff]
    %v531 = vld [vmem:[%s2 + $0xf90] sm:$0xff]
    %v532 = vld [vmem:[%s2 + $0xf98] sm:$0xff]
    %v533 = vld [vmem:[%s2 + $0xfa0] sm:$0xff]
    %v534 = vld [vmem:[%s2 + $0xfa8] sm:$0xff]
    %v535 = vld [vmem:[%s2 + $0xfb0] sm:$0xff]
    %v536 = vld [vmem:[%s2 + $0xfb8] sm:$0xff]
    %v537 = vld [vmem:[%s2 + $0xfc0] sm:$0xff]
    %v538 = vld [vmem:[%s2 + $0xfc8] sm:$0xff]
    %v539 = vld [vmem:[%s2 + $0xfd0] sm:$0xff]
    %v540 = vld [vmem:[%s2 + $0xfd8] sm:$0xff]
    %v541 = vld [vmem:[%s2 + $0xfe0] sm:$0xff]
    %v542 = vld [vmem:[%s2 + $0xfe8] sm:$0xff]
    %v543 = vld [vmem:[%s2 + $0xff0] sm:$0xff]
    %v544 = vld [vmem:[%s2 + $0xff8] sm:$0xff]
    %v545 = vld [vmem:[%s2 + $0x1000] sm:$0xff]
    %v546 = vld [vmem:[%s2 + $0x1008] sm:$0xff]
    %v547 = vld [vmem:[%s2 + $0x1010] sm:$0xff]
    %v548 = vld [vmem:[%s2 + $0x1018] sm:$0xff]
    %v549 = vld [vmem:[%s2 + $0x1020] sm:$0xff]
    %v550 = vld [vmem:[%s2 + $0x1028] sm:$0xff]
    %v551 = vld [vmem:[%s2 + $0x1030] sm:$0xff]
    %v552 = vld [vmem:[%s2 + $0x1038] sm:$0xff]
    %v553 = vld [vmem:[%s2 + $0x1040] sm:$0xff]
    %v554 = vld [vmem:[%s2 + $0x1048] sm:$0xff]
    %v555 = vld [vmem:[%s2 + $0x1050] sm:$0xff]
    %v556 = vld [vmem:[%s2 + $0x1058] sm:$0xff]
    %v557 = vld [vmem:[%s2 + $0x1060] sm:$0xff]
    %v558 = vld [vmem:[%s2 + $0x1068] sm:$0xff]
    %v559 = vld [vmem:[%s2 + $0x1070] sm:$0xff]
    %v560 = vld [vmem:[%s2 + $0x1078] sm:$0xff]
    %v561 = vld [vmem:[%s2 + $0x1080] sm:$0xff]
    %v562 = vld [vmem:[%s2 + $0x1088] sm:$0xff]
    %v563 = vld [vmem:[%s2 + $0x1090] sm:$0xff]
    %v564 = vld [vmem:[%s2 + $0x1098] sm:$0xff]
    %v565 = vld [vmem:[%s2 + $0x10a0] sm:$0xff]
    %v566 = vld [vmem:[%s2 + $0x10a8] sm:$0xff]
    %v567 = vld [vmem:[%s2 + $0x10b0] sm:$0xff]
    %v568 = vld [vmem:[%s2 + $0x10b8] sm:$0xff]
    %v569 = vld [vmem:[%s2 + $0x10c0] sm:$0xff]
    %v570 = vld [vmem:[%s2 + $0x10c8] sm:$0xff]
    %v571 = vld [vmem:[%s2 + $0x10d0] sm:$0xff]
    %v572 = vld [vmem:[%s2 + $0x10d8] sm:$0xff]
    %v573 = vld [vmem:[%s2 + $0x10e0] sm:$0xff]
    %v574 = vld [vmem:[%s2 + $0x10e8] sm:$0xff]
    %v575 = vld [vmem:[%s2 + $0x10f0] sm:$0xff]
    %v576 = vld [vmem:[%s2 + $0x10f8] sm:$0xff]
    %v577 = vld [vmem:[%s2 + $0x1100] sm:$0xff]
    %v578 = vld [vmem:[%s2 + $0x1108] sm:$0xff]
    %v579 = vld [vmem:[%s2 + $0x1110] sm:$0xff]
    %v580 = vld [vmem:[%s2 + $0x1118] sm:$0xff]
    %v581 = vld [vmem:[%s2 + $0x1120] sm:$0xff]
    %v582 = vld [vmem:[%s2 + $0x1128] sm:$0xff]
    %v583 = vld [vmem:[%s2 + $0x1130] sm:$0xff]
    %v584 = vld [vmem:[%s2 + $0x1138] sm:$0xff]
    %v585 = vld [vmem:[%s2 + $0x1140] sm:$0xff]
    %v586 = vld [vmem:[%s2 + $0x1148] sm:$0xff]
    %v587 = vld [vmem:[%s2 + $0x1150] sm:$0xff]
    %v588 = vld [vmem:[%s2 + $0x1158] sm:$0xff]
    %v589 = vld [vmem:[%s2 + $0x1160] sm:$0xff]
    %v590 = vld [vmem:[%s2 + $0x1168] sm:$0xff]
    %v591 = vld [vmem:[%s2 + $0x1170] sm:$0xff]
    %v592 = vld [vmem:[%s2 + $0x1178] sm:$0xff]
    %v593 = vld [vmem:[%s2 + $0x1180] sm:$0xff]
    %v594 = vld [vmem:[%s2 + $0x1188] sm:$0xff]
    %v595 = vld [vmem:[%s2 + $0x1190] sm:$0xff]
    %v596 = vld [vmem:[%s2 + $0x1198] sm:$0xff]
    %v597 = vld [vmem:[%s2 + $0x11a0] sm:$0xff]
    %v598 = vld [vmem:[%s2 + $0x11a8] sm:$0xff]
    %v599 = vld [vmem:[%s2 + $0x11b0] sm:$0xff]
    %v600 = vld [vmem:[%s2 + $0x11b8] sm:$0xff]
    %v601 = vld [vmem:[%s2 + $0x11c0] sm:$0xff]
    %v602 = vld [vmem:[%s2 + $0x11c8] sm:$0xff]
    %v603 = vld [vmem:[%s2 + $0x11d0] sm:$0xff]
    %v604 = vld [vmem:[%s2 + $0x11d8] sm:$0xff]
    %v605 = vld [vmem:[%s2 + $0x11e0] sm:$0xff]
    %v606 = vld [vmem:[%s2 + $0x11e8] sm:$0xff]
    %v607 = vld [vmem:[%s2 + $0x11f0] sm:$0xff]
    %v608 = vld [vmem:[%s2 + $0x11f8] sm:$0xff]
    %v609 = vld [vmem:[%s2 + $0x1200] sm:$0xff]
    %v610 = vld [vmem:[%s2 + $0x1208] sm:$0xff]
    %v611 = vld [vmem:[%s2 + $0x1210] sm:$0xff]
    %v612 = vld [vmem:[%s2 + $0x1218] sm:$0xff]
    %v613 = vld [vmem:[%s2 + $0x1220] sm:$0xff]
    %v614 = vld [vmem:[%s2 + $0x1228] sm:$0xff]
    %v615 = vld [vmem:[%s2 + $0x1230] sm:$0xff]
    %v616 = vld [vmem:[%s2 + $0x1238] sm:$0xff]
    %v617 = vld [vmem:[%s2 + $0x1240] sm:$0xff]
    %v618 = vld [vmem:[%s2 + $0x1248] sm:$0xff]
    %v619 = vld [vmem:[%s2 + $0x1250] sm:$0xff]
    %v620 = vld [vmem:[%s2 + $0x1258] sm:$0xff]
    %v621 = vld [vmem:[%s2 + $0x1260] sm:$0xff]
    %v622 = vld [vmem:[%s2 + $0x1268] sm:$0xff]
    %v623 = vld [vmem:[%s2 + $0x1270] sm:$0xff]
    %v624 = vld [vmem:[%s2 + $0x1278] sm:$0xff]
    %v625 = vld [vmem:[%s2 + $0x1280] sm:$0xff]
    %v626 = vld [vmem:[%s2 + $0x1288] sm:$0xff]
    %v627 = vld [vmem:[%s2 + $0x1290] sm:$0xff]
    %v628 = vld [vmem:[%s2 + $0x1298] sm:$0xff]
    %v629 = vld [vmem:[%s2 + $0x12a0] sm:$0xff]
    %v630 = vld [vmem:[%s2 + $0x12a8] sm:$0xff]
    %v631 = vld [vmem:[%s2 + $0x12b0] sm:$0xff]
    %v632 = vld [vmem:[%s2 + $0x12b8] sm:$0xff]
    %v633 = vld [vmem:[%s2 + $0x12c0] sm:$0xff]
    %v634 = vld [vmem:[%s2 + $0x12c8] sm:$0xff]
    %v635 = vld [vmem:[%s2 + $0x12d0] sm:$0xff]
    %v636 = vld [vmem:[%s2 + $0x12d8] sm:$0xff]
    %v637 = vld [vmem:[%s2 + $0x12e0] sm:$0xff]
    %v638 = vld [vmem:[%s2 + $0x12e8] sm:$0xff]
    %v639 = vld [vmem:[%s2 + $0x12f0] sm:$0xff]
    %v640 = vld [vmem:[%s2 + $0x12f8] sm:$0xff]
    %v641 = vld [vmem:[%s2 + $0x1300] sm:$0xff]
    %v642 = vld [vmem:[%s2 + $0x1308] sm:$0xff]
    %v643 = vld [vmem:[%s2 + $0x1310] sm:$0xff]
    %v644 = vld [vmem:[%s2 + $0x1318] sm:$0xff]
    %v645 = vld [vmem:[%s2 + $0x1320] sm:$0xff]
    %v646 = vld [vmem:[%s2 + $0x1328] sm:$0xff]
    %v647 = vld [vmem:[%s2 + $0x1330] sm:$0xff]
    %v648 = vld [vmem:[%s2 + $0x1338] sm:$0xff]
    %v649 = vld [vmem:[%s2 + $0x1340] sm:$0xff]
    %v650 = vld [vmem:[%s2 + $0x1348] sm:$0xff]
    %v651 = vld [vmem:[%s2 + $0x1350] sm:$0xff]
    %v652 = vld [vmem:[%s2 + $0x1358] sm:$0xff]
    %v653 = vld [vmem:[%s2 + $0x1360] sm:$0xff]
    %v654 = vld [vmem:[%s2 + $0x1368] sm:$0xff]
    %v655 = vld [vmem:[%s2 + $0x1370] sm:$0xff]
    %v656 = vld [vmem:[%s2 + $0x1378] sm:$0xff]
    %v657 = vld [vmem:[%s2 + $0x1380] sm:$0xff]
    %v658 = vld [vmem:[%s2 + $0x1388] sm:$0xff]
    %v659 = vld [vmem:[%s2 + $0x1390] sm:$0xff]
    %v660 = vld [vmem:[%s2 + $0x1398] sm:$0xff]
    %v661 = vld [vmem:[%s2 + $0x13a0] sm:$0xff]
    %v662 = vld [vmem:[%s2 + $0x13a8] sm:$0xff]
    %v663 = vld [vmem:[%s2 + $0x13b0] sm:$0xff]
    %v664 = vld [vmem:[%s2 + $0x13b8] sm:$0xff]
    %v665 = vld [vmem:[%s2 + $0x13c0] sm:$0xff]
    %v666 = vld [vmem:[%s2 + $0x13c8] sm:$0xff]
    %v667 = vld [vmem:[%s2 + $0x13d0] sm:$0xff]
    %v668 = vld [vmem:[%s2 + $0x13d8] sm:$0xff]
    %v669 = vld [vmem:[%s2 + $0x13e0] sm:$0xff]
    %v670 = vld [vmem:[%s2 + $0x13e8] sm:$0xff]
    %v671 = vld [vmem:[%s2 + $0x13f0] sm:$0xff]
    %v672 = vld [vmem:[%s2 + $0x13f8] sm:$0xff]
    %v673 = vld [vmem:[%s2 + $0x1400] sm:$0xff]
    %v674 = vld [vmem:[%s2 + $0x1408] sm:$0xff]
    %v675 = vld [vmem:[%s2 + $0x1410] sm:$0xff]
    %v676 = vld [vmem:[%s2 + $0x1418] sm:$0xff]
    %v677 = vld [vmem:[%s2 + $0x1420] sm:$0xff]
    %v678 = vld [vmem:[%s2 + $0x1428] sm:$0xff]
    %v679 = vld [vmem:[%s2 + $0x1430] sm:$0xff]
    %v680 = vld [vmem:[%s2 + $0x1438] sm:$0xff]
    %v681 = vld [vmem:[%s2 + $0x1440] sm:$0xff]
    %v682 = vld [vmem:[%s2 + $0x1448] sm:$0xff]
    %v683 = vld [vmem:[%s2 + $0x1450] sm:$0xff]
    %v684 = vld [vmem:[%s2 + $0x1458] sm:$0xff]
    %v685 = vld [vmem:[%s2 + $0x1460] sm:$0xff]
    %v686 = vld [vmem:[%s2 + $0x1468] sm:$0xff]
    %v687 = vld [vmem:[%s2 + $0x1470] sm:$0xff]
    %v688 = vld [vmem:[%s2 + $0x1478] sm:$0xff]
    %v689 = vld [vmem:[%s2 + $0x1480] sm:$0xff]
    %v690 = vld [vmem:[%s2 + $0x1488] sm:$0xff]
    %v691 = vld [vmem:[%s2 + $0x1490] sm:$0xff]
    %v692 = vld [vmem:[%s2 + $0x1498] sm:$0xff]
    %v693 = vld [vmem:[%s2 + $0x14a0] sm:$0xff]
    %v694 = vld [vmem:[%s2 + $0x14a8] sm:$0xff]
    %v695 = vld [vmem:[%s2 + $0x14b0] sm:$0xff]
    %v696 = vld [vmem:[%s2 + $0x14b8] sm:$0xff]
    %v697 = vld [vmem:[%s2 + $0x14c0] sm:$0xff]
    %v698 = vld [vmem:[%s2 + $0x14c8] sm:$0xff]
    %v699 = vld [vmem:[%s2 + $0x14d0] sm:$0xff]
    %v700 = vld [vmem:[%s2 + $0x14d8] sm:$0xff]
    %v701 = vld [vmem:[%s2 + $0x14e0] sm:$0xff]
    %v702 = vld [vmem:[%s2 + $0x14e8] sm:$0xff]
    %v703 = vld [vmem:[%s2 + $0x14f0] sm:$0xff]
    %v704 = vld [vmem:[%s2 + $0x14f8] sm:$0xff]
    %v705 = vld [vmem:[%s2 + $0x1500] sm:$0xff]
    %v706 = vld [vmem:[%s2 + $0x1508] sm:$0xff]
    %v707 = vld [vmem:[%s2 + $0x1510] sm:$0xff]
    %v708 = vld [vmem:[%s2 + $0x1518] sm:$0xff]
    %v709 = vld [vmem:[%s2 + $0x1520] sm:$0xff]
    %v710 = vld [vmem:[%s2 + $0x1528] sm:$0xff]
    %v711 = vld [vmem:[%s2 + $0x1530] sm:$0xff]
    %v712 = vld [vmem:[%s2 + $0x1538] sm:$0xff]
    %v713 = vld [vmem:[%s2 + $0x1540] sm:$0xff]
    %v714 = vld [vmem:[%s2 + $0x1548] sm:$0xff]
    %v715 = vld [vmem:[%s2 + $0x1550] sm:$0xff]
    %v716 = vld [vmem:[%s2 + $0x1558] sm:$0xff]
    %v717 = vld [vmem:[%s2 + $0x1560] sm:$0xff]
    %v718 = vld [vmem:[%s2 + $0x1568] sm:$0xff]
    %v719 = vld [vmem:[%s2 + $0x1570] sm:$0xff]
    %v720 = vld [vmem:[%s2 + $0x1578] sm:$0xff]
    %v721 = vld [vmem:[%s2 + $0x1580] sm:$0xff]
    %v722 = vld [vmem:[%s2 + $0x1588] sm:$0xff]
    %v723 = vld [vmem:[%s2 + $0x1590] sm:$0xff]
    %v724 = vld [vmem:[%s2 + $0x1598] sm:$0xff]
    %v725 = vld [vmem:[%s2 + $0x15a0] sm:$0xff]
    %v726 = vld [vmem:[%s2 + $0x15a8] sm:$0xff]
    %v727 = vld [vmem:[%s2 + $0x15b0] sm:$0xff]
    %v728 = vld [vmem:[%s2 + $0x15b8] sm:$0xff]
    %v729 = vld [vmem:[%s2 + $0x15c0] sm:$0xff]
    %v730 = vld [vmem:[%s2 + $0x15c8] sm:$0xff]
    %v731 = vld [vmem:[%s2 + $0x15d0] sm:$0xff]
    %v732 = vld [vmem:[%s2 + $0x15d8] sm:$0xff]
    %v733 = vld [vmem:[%s2 + $0x15e0] sm:$0xff]
    %v734 = vld [vmem:[%s2 + $0x15e8] sm:$0xff]
    %v735 = vld [vmem:[%s2 + $0x15f0] sm:$0xff]
    %v736 = vld [vmem:[%s2 + $0x15f8] sm:$0xff]
    %v737 = vld [vmem:[%s2 + $0x1600] sm:$0xff]
    %v738 = vld [vmem:[%s2 + $0x1608] sm:$0xff]
    %v739 = vld [vmem:[%s2 + $0x1610] sm:$0xff]
    %v740 = vld [vmem:[%s2 + $0x1618] sm:$0xff]
    %v741 = vld [vmem:[%s2 + $0x1620] sm:$0xff]
    %v742 = vld [vmem:[%s2 + $0x1628] sm:$0xff]
    %v743 = vld [vmem:[%s2 + $0x1630] sm:$0xff]
    %v744 = vld [vmem:[%s2 + $0x1638] sm:$0xff]
    %v745 = vld [vmem:[%s2 + $0x1640] sm:$0xff]
    %v746 = vld [vmem:[%s2 + $0x1648] sm:$0xff]
    %v747 = vld [vmem:[%s2 + $0x1650] sm:$0xff]
    %v748 = vld [vmem:[%s2 + $0x1658] sm:$0xff]
    %v749 = vld [vmem:[%s2 + $0x1660] sm:$0xff]
    %v750 = vld [vmem:[%s2 + $0x1668] sm:$0xff]
    %v751 = vld [vmem:[%s2 + $0x1670] sm:$0xff]
    %v752 = vld [vmem:[%s2 + $0x1678] sm:$0xff]
    %v753 = vld [vmem:[%s2 + $0x1680] sm:$0xff]
    %v754 = vld [vmem:[%s2 + $0x1688] sm:$0xff]
    %v755 = vld [vmem:[%s2 + $0x1690] sm:$0xff]
    %v756 = vld [vmem:[%s2 + $0x1698] sm:$0xff]
    %v757 = vld [vmem:[%s2 + $0x16a0] sm:$0xff]
    %v758 = vld [vmem:[%s2 + $0x16a8] sm:$0xff]
    %v759 = vld [vmem:[%s2 + $0x16b0] sm:$0xff]
    %v760 = vld [vmem:[%s2 + $0x16b8] sm:$0xff]
    %v761 = vld [vmem:[%s2 + $0x16c0] sm:$0xff]
    %v762 = vld [vmem:[%s2 + $0x16c8] sm:$0xff]
    %v763 = vld [vmem:[%s2 + $0x16d0] sm:$0xff]
    %v764 = vld [vmem:[%s2 + $0x16d8] sm:$0xff]
    %v765 = vld [vmem:[%s2 + $0x16e0] sm:$0xff]
    %v766 = vld [vmem:[%s2 + $0x16e8] sm:$0xff]
    %v767 = vld [vmem:[%s2 + $0x16f0] sm:$0xff]
    %v768 = vld [vmem:[%s2 + $0x16f8] sm:$0xff]
    %v769 = vld [vmem:[%s2 + $0x1700] sm:$0xff]
    %v770 = vld [vmem:[%s2 + $0x1708] sm:$0xff]
    %v771 = vld [vmem:[%s2 + $0x1710] sm:$0xff]
    %v772 = vld [vmem:[%s2 + $0x1718] sm:$0xff]
    %v773 = vld [vmem:[%s2 + $0x1720] sm:$0xff]
    %v774 = vld [vmem:[%s2 + $0x1728] sm:$0xff]
    %v775 = vld [vmem:[%s2 + $0x1730] sm:$0xff]
    %v776 = vld [vmem:[%s2 + $0x1738] sm:$0xff]
    %v777 = vld [vmem:[%s2 + $0x1740] sm:$0xff]
    %v778 = vld [vmem:[%s2 + $0x1748] sm:$0xff]
    %v779 = vld [vmem:[%s2 + $0x1750] sm:$0xff]
    %v780 = vld [vmem:[%s2 + $0x1758] sm:$0xff]
    %v781 = vld [vmem:[%s2 + $0x1760] sm:$0xff]
    %v782 = vld [vmem:[%s2 + $0x1768] sm:$0xff]
    %v783 = vld [vmem:[%s2 + $0x1770] sm:$0xff]
    %v784 = vld [vmem:[%s2 + $0x1778] sm:$0xff]
    %v785 = vld [vmem:[%s2 + $0x1780] sm:$0xff]
    %v786 = vld [vmem:[%s2 + $0x1788] sm:$0xff]
    %v787 = vld [vmem:[%s2 + $0x1790] sm:$0xff]
    %v788 = vld [vmem:[%s2 + $0x1798] sm:$0xff]
    %v789 = vld [vmem:[%s2 + $0x17a0] sm:$0xff]
    %v790 = vld [vmem:[%s2 + $0x17a8] sm:$0xff]
    %v791 = vld [vmem:[%s2 + $0x17b0] sm:$0xff]
    %v792 = vld [vmem:[%s2 + $0x17b8] sm:$0xff]
    %v793 = vld [vmem:[%s2 + $0x17c0] sm:$0xff]
    %v794 = vld [vmem:[%s2 + $0x17c8] sm:$0xff]
    %v795 = vld [vmem:[%s2 + $0x17d0] sm:$0xff]
    %v796 = vld [vmem:[%s2 + $0x17d8] sm:$0xff]
    %v797 = vld [vmem:[%s2 + $0x17e0] sm:$0xff]
    %v798 = vld [vmem:[%s2 + $0x17e8] sm:$0xff]
    %v799 = vld [vmem:[%s2 + $0x17f0] sm:$0xff]
    %v800 = vld [vmem:[%s2 + $0x17f8] sm:$0xff]
    %v801 = vld [vmem:[%s2 + $0x1800] sm:$0xff]
    %v802 = vld [vmem:[%s2 + $0x1808] sm:$0xff]
    %v803 = vld [vmem:[%s2 + $0x1810] sm:$0xff]
    %v804 = vld [vmem:[%s2 + $0x1818] sm:$0xff]
    %v805 = vld [vmem:[%s2 + $0x1820] sm:$0xff]
    %v806 = vld [vmem:[%s2 + $0x1828] sm:$0xff]
    %v807 = vld [vmem:[%s2 + $0x1830] sm:$0xff]
    %v808 = vld [vmem:[%s2 + $0x1838] sm:$0xff]
    %v809 = vld [vmem:[%s2 + $0x1840] sm:$0xff]
    %v810 = vld [vmem:[%s2 + $0x1848] sm:$0xff]
    %v811 = vld [vmem:[%s2 + $0x1850] sm:$0xff]
    %v812 = vld [vmem:[%s2 + $0x1858] sm:$0xff]
    %v813 = vld [vmem:[%s2 + $0x1860] sm:$0xff]
    %v814 = vld [vmem:[%s2 + $0x1868] sm:$0xff]
    %v815 = vld [vmem:[%s2 + $0x1870] sm:$0xff]
    %v816 = vld [vmem:[%s2 + $0x1878] sm:$0xff]
    %v817 = vld [vmem:[%s3] sm:$0x3]
    %v818 = vld [vmem:[%s4] sm:$0xff]
    %v819 = vld [vmem:[%s4 + $0x8] sm:$0xff]
    %v820 = vld [vmem:[%s4 + $0x10] sm:$0xff]
    %v821 = vld [vmem:[%s4 + $0x18] sm:$0xff]
    %v822 = vld [vmem:[%s4 + $0x20] sm:$0xff]
    %v823 = vld [vmem:[%s4 + $0x28] sm:$0xff]
    %v824 = vld [vmem:[%s4 + $0x30] sm:$0xff]
    %v825 = vld [vmem:[%s4 + $0x38] sm:$0xff]
    %v826 = vld [vmem:[%s4 + $0x40] sm:$0xff]
    %v827 = vld [vmem:[%s4 + $0x48] sm:$0xff]
    %v828 = vld [vmem:[%s4 + $0x50] sm:$0xff]
    %v829 = vld [vmem:[%s4 + $0x58] sm:$0xff]
    %v830 = vld [vmem:[%s4 + $0x60] sm:$0xff]
    %v831 = vld [vmem:[%s4 + $0x68] sm:$0xff]
    %v832 = vld [vmem:[%s4 + $0x70] sm:$0xff]
    %v833 = vld [vmem:[%s4 + $0x78] sm:$0xff]
    %v834 = vld [vmem:[%s4 + $0x80] sm:$0xff]
    %v835 = vld [vmem:[%s4 + $0x88] sm:$0xff]
    %v836 = vld [vmem:[%s4 + $0x90] sm:$0xff]
    %v837 = vld [vmem:[%s4 + $0x98] sm:$0xff]
    %v838 = vld [vmem:[%s4 + $0xa0] sm:$0xff]
    %v839 = vld [vmem:[%s4 + $0xa8] sm:$0xff]
    %v840 = vld [vmem:[%s4 + $0xb0] sm:$0xff]
    %v841 = vld [vmem:[%s4 + $0xb8] sm:$0xff]
    %v842 = vld [vmem:[%s4 + $0xc0] sm:$0xff]
    %v843 = vld [vmem:[%s4 + $0xc8] sm:$0xff]
    %v844 = vld [vmem:[%s4 + $0xd0] sm:$0xff]
    %v845 = vld [vmem:[%s4 + $0xd8] sm:$0xff]
    %v846 = vld [vmem:[%s4 + $0xe0] sm:$0xff]
    %v847 = vld [vmem:[%s4 + $0xe8] sm:$0xff]
    %v848 = vld [vmem:[%s4 + $0xf0] sm:$0xff]
    %v849 = vld [vmem:[%s4 + $0xf8] sm:$0xff]
    %v850 = vld [vmem:[%s5] sm:$0x1]
    %v851 = vld [vmem:[%s0] sm:$0xff]
    %v852 = vld [vmem:[%s0 + $0x8] sm:$0xff]
    %v853 = vld [vmem:[%s0 + $0x10] sm:$0xff]
    %v854 = vld [vmem:[%s0 + $0x18] sm:$0xff]
    %v855 = vld [vmem:[%s0 + $0x20] sm:$0xff]
    %v856 = vld [vmem:[%s0 + $0x28] sm:$0xff]
    %v857 = vld [vmem:[%s0 + $0x30] sm:$0x3]
    %v859 = vlaneseq
    %v860 = vshrl.u32 %v859, 7
    %v861 = vsub.s32 0, %v860
    %v862 = vrot.slane %v817, %v861
    %v863 = vlaneseq
    %v864 = vshrl.u32 %v863, 7
    %v865 = vsub.s32 1, %v864
    %v866 = vrot.slane %v817, %v865
    %v876 = vcombine.high %v851, %v851
    %v878 = vunpack.c.l.s4 1983009808
    %v879 = vunpack.c.0.s8 %v878
    %v880 = vlaneseq
    %v881 = vshrl.u32 %v880, 7
    %v882 = vsub.s32 %v879, %v881
    %v883 = vrot.slane %v851, %v882
    %v885 = vunpack.c.l.s4 1983009808
    %v886 = vunpack.c.0.s8 %v885
    %v887 = vlaneseq
    %v888 = vshrl.u32 %v887, 7
    %v889 = vsub.s32 %v886, %v888
    %v890 = vrot.slane %v876, %v889
    %v891 = vcombine.high %v883, %v883
    %v892 = vcombine.high %v890, %v890
    %v893 = vcombine.high %v852, %v852
    %v895 = vunpack.c.l.s4 1983009808
    %v896 = vunpack.c.0.s8 %v895
    %v897 = vlaneseq
    %v898 = vshrl.u32 %v897, 7
    %v899 = vsub.s32 %v896, %v898
    %v900 = vrot.slane %v852, %v899
    %v902 = vunpack.c.l.s4 1983009808
    %v903 = vunpack.c.0.s8 %v902
    %v904 = vlaneseq
    %v905 = vshrl.u32 %v904, 7
    %v906 = vsub.s32 %v903, %v905
    %v907 = vrot.slane %v893, %v906
    %v908 = vcombine.high %v900, %v900
    %v909 = vcombine.high %v907, %v907
    %v910 = vcombine.high %v853, %v853
    %v912 = vunpack.c.l.s4 1983009808
    %v913 = vunpack.c.0.s8 %v912
    %v914 = vlaneseq
    %v915 = vshrl.u32 %v914, 7
    %v916 = vsub.s32 %v913, %v915
    %v917 = vrot.slane %v853, %v916
    %v919 = vunpack.c.l.s4 1983009808
    %v920 = vunpack.c.0.s8 %v919
    %v921 = vlaneseq
    %v922 = vshrl.u32 %v921, 7
    %v923 = vsub.s32 %v920, %v922
    %v924 = vrot.slane %v910, %v923
    %v925 = vcombine.high %v917, %v917
    %v926 = vcombine.high %v924, %v924
    %v927 = vcombine.high %v854, %v854
    %v929 = vunpack.c.l.s4 1983009808
    %v930 = vunpack.c.0.s8 %v929
    %v931 = vlaneseq
    %v932 = vshrl.u32 %v931, 7
    %v933 = vsub.s32 %v930, %v932
    %v934 = vrot.slane %v854, %v933
    %v936 = vunpack.c.l.s4 1983009808
    %v937 = vunpack.c.0.s8 %v936
    %v938 = vlaneseq
    %v939 = vshrl.u32 %v938, 7
    %v940 = vsub.s32 %v937, %v939
    %v941 = vrot.slane %v927, %v940
    %v942 = vcombine.high %v934, %v934
    %v943 = vcombine.high %v941, %v941
    %v944 = vcombine.high %v855, %v855
    %v946 = vunpack.c.l.s4 1983009808
    %v947 = vunpack.c.0.s8 %v946
    %v948 = vlaneseq
    %v949 = vshrl.u32 %v948, 7
    %v950 = vsub.s32 %v947, %v949
    %v951 = vrot.slane %v855, %v950
    %v953 = vunpack.c.l.s4 1983009808
    %v954 = vunpack.c.0.s8 %v953
    %v955 = vlaneseq
    %v956 = vshrl.u32 %v955, 7
    %v957 = vsub.s32 %v954, %v956
    %v958 = vrot.slane %v944, %v957
    %v959 = vcombine.high %v951, %v951
    %v960 = vcombine.high %v958, %v958
    %v961 = vcombine.high %v856, %v856
    %v963 = vunpack.c.l.s4 1983009808
    %v964 = vunpack.c.0.s8 %v963
    %v965 = vlaneseq
    %v966 = vshrl.u32 %v965, 7
    %v967 = vsub.s32 %v964, %v966
    %v968 = vrot.slane %v856, %v967
    %v970 = vunpack.c.l.s4 1983009808
    %v971 = vunpack.c.0.s8 %v970
    %v972 = vlaneseq
    %v973 = vshrl.u32 %v972, 7
    %v974 = vsub.s32 %v971, %v973
    %v975 = vrot.slane %v961, %v974
    %v976 = vcombine.high %v968, %v968
    %v977 = vcombine.high %v975, %v975
    %v979 = vunpack.c.l.s4 1983009808
    %v980 = vunpack.c.0.s8 %v979
    %v981 = vlaneseq
    %v982 = vshrl.u32 %v981, 7
    %v983 = vsub.s32 %v980, %v982
    %v984 = vrot.slane %v857, %v983
    %vm1009 = vcmask 523264
    %v1010 = vsel %vm1009, %v984, 0
    %1012 = vmatprep.subr.mxu0 %v34
    %1013 = vmatpush1.msra.mxu0 %v33
    %1014 = vmatprep.subr.mxu0 %v36
    %1015 = vmatpush1.msra.mxu0 %v35
    %1016 = vmatprep.subr.mxu0 %v38
    %1017 = vmatpush1.msra.mxu0 %v37
    %1018 = vmatprep.subr.mxu0 %v40
    %1019 = vmatpush1.msra.mxu0 %v39
    %1020 = vmatprep.subr.mxu0 %v42
    %1021 = vmatpush1.msra.mxu0 %v41
    %1022 = vmatprep.subr.mxu0 %v44
    %1023 = vmatpush1.msra.mxu0 %v43
    %1024 = vmatprep.subr.mxu0 %v46
    %1025 = vmatpush1.msra.mxu0 %v45
    %1026 = vmatprep.subr.mxu0 %v48
    %1027 = vmatpush1.msra.mxu0 %v47
    %1028 = vmatprep.subr.mxu0 %v50
    %1029 = vmatpush1.msra.mxu0 %v49
    %1030 = vmatprep.subr.mxu0 %v52
    %1031 = vmatpush1.msra.mxu0 %v51
    %1032 = vmatprep.subr.mxu0 %v54
    %1033 = vmatpush1.msra.mxu0 %v53
    %1034 = vmatprep.subr.mxu0 %v56
    %1035 = vmatpush1.msra.mxu0 %v55
    %1036 = vmatprep.subr.mxu0 %v58
    %1037 = vmatpush1.msra.mxu0 %v57
    %1038 = vmatprep.subr.mxu0 %v60
    %1039 = vmatpush1.msra.mxu0 %v59
    %1040 = vmatprep.subr.mxu0 %v62
    %1041 = vmatpush1.msra.mxu0 %v61
    %1042 = vmatprep.subr.mxu0 %v64
    %1043 = vmatpush1.msra.mxu0 %v63
    %1044 = vmatprep.subr.mxu0 %v66
    %1045 = vmatpush1.msra.mxu0 %v65
    %1046 = vmatprep.subr.mxu0 %v68
    %1047 = vmatpush1.msra.mxu0 %v67
    %1048 = vmatprep.subr.mxu0 %v70
    %1049 = vmatpush1.msra.mxu0 %v69
    %1050 = vmatprep.subr.mxu0 %v72
    %1051 = vmatpush1.msra.mxu0 %v71
    %1052 = vmatprep.subr.mxu0 %v74
    %1053 = vmatpush1.msra.mxu0 %v73
    %1054 = vmatprep.subr.mxu0 %v76
    %1055 = vmatpush1.msra.mxu0 %v75
    %1056 = vmatprep.subr.mxu0 %v78
    %1057 = vmatpush1.msra.mxu0 %v77
    %1058 = vmatprep.subr.mxu0 %v80
    %1059 = vmatpush1.msra.mxu0 %v79
    %1060 = vmatprep.subr.mxu0 %v82
    %1061 = vmatpush1.msra.mxu0 %v81
    %1062 = vmatprep.subr.mxu0 %v84
    %1063 = vmatpush1.msra.mxu0 %v83
    %1064 = vmatprep.subr.mxu0 %v86
    %1065 = vmatpush1.msra.mxu0 %v85
    %1066 = vmatprep.subr.mxu0 %v88
    %1067 = vmatpush1.msra.mxu0 %v87
    %1068 = vmatprep.subr.mxu0 %v90
    %1069 = vmatpush1.msra.mxu0 %v89
    %1070 = vmatprep.subr.mxu0 %v92
    %1071 = vmatpush1.msra.mxu0 %v91
    %1072 = vmatprep.subr.mxu0 %v94
    %1073 = vmatpush1.msra.mxu0 %v93
    %1074 = vmatprep.subr.mxu0 %v96
    %1075 = vmatpush1.msra.mxu0 %v95
    %1076 = vmatprep.mubr.f32.mxu0 %v891
    %1077 = vmatmul.mubr.f32.gmra.mrb[0].mxu0 %v883
    %v1078 = vpop.f32.mrb[0].mxu0
    %v1079 = vadd.f32 %v862, %v1078
    %v1080 = vpop.f32.mrb[0].mxu0
    %v1081 = vadd.f32 %v866, %v1080
    %1082 = vdwg.mxu0
    %1083 = vmatprep.subr.mxu0 %v98
    %1084 = vmatpush1.msra.mxu0 %v97
    %1085 = vmatprep.subr.mxu0 %v100
    %1086 = vmatpush1.msra.mxu0 %v99
    %1087 = vmatprep.subr.mxu0 %v102
    %1088 = vmatpush1.msra.mxu0 %v101
    %1089 = vmatprep.subr.mxu0 %v104
    %1090 = vmatpush1.msra.mxu0 %v103
    %1091 = vmatprep.subr.mxu0 %v106
    %1092 = vmatpush1.msra.mxu0 %v105
    %1093 = vmatprep.subr.mxu0 %v108
    %1094 = vmatpush1.msra.mxu0 %v107
    %1095 = vmatprep.subr.mxu0 %v110
    %1096 = vmatpush1.msra.mxu0 %v109
    %1097 = vmatprep.subr.mxu0 %v112
    %1098 = vmatpush1.msra.mxu0 %v111
    %1099 = vmatprep.subr.mxu0 %v114
    %1100 = vmatpush1.msra.mxu0 %v113
    %1101 = vmatprep.subr.mxu0 %v116
    %1102 = vmatpush1.msra.mxu0 %v115
    %1103 = vmatprep.subr.mxu0 %v118
    %1104 = vmatpush1.msra.mxu0 %v117
    %1105 = vmatprep.subr.mxu0 %v120
    %1106 = vmatpush1.msra.mxu0 %v119
    %1107 = vmatprep.subr.mxu0 %v122
    %1108 = vmatpush1.msra.mxu0 %v121
    %1109 = vmatprep.subr.mxu0 %v124
    %1110 = vmatpush1.msra.mxu0 %v123
    %1111 = vmatprep.subr.mxu0 %v126
    %1112 = vmatpush1.msra.mxu0 %v125
    %1113 = vmatprep.subr.mxu0 %v128
    %1114 = vmatpush1.msra.mxu0 %v127
    %1115 = vmatprep.subr.mxu0 %v130
    %1116 = vmatpush1.msra.mxu0 %v129
    %1117 = vmatprep.subr.mxu0 %v132
    %1118 = vmatpush1.msra.mxu0 %v131
    %1119 = vmatprep.subr.mxu0 %v134
    %1120 = vmatpush1.msra.mxu0 %v133
    %1121 = vmatprep.subr.mxu0 %v136
    %1122 = vmatpush1.msra.mxu0 %v135
    %1123 = vmatprep.subr.mxu0 %v138
    %1124 = vmatpush1.msra.mxu0 %v137
    %1125 = vmatprep.subr.mxu0 %v140
    %1126 = vmatpush1.msra.mxu0 %v139
    %1127 = vmatprep.subr.mxu0 %v142
    %1128 = vmatpush1.msra.mxu0 %v141
    %1129 = vmatprep.subr.mxu0 %v144
    %1130 = vmatpush1.msra.mxu0 %v143
    %1131 = vmatprep.subr.mxu0 %v146
    %1132 = vmatpush1.msra.mxu0 %v145
    %1133 = vmatprep.subr.mxu0 %v148
    %1134 = vmatpush1.msra.mxu0 %v147
    %1135 = vmatprep.subr.mxu0 %v150
    %1136 = vmatpush1.msra.mxu0 %v149
    %1137 = vmatprep.subr.mxu0 %v152
    %1138 = vmatpush1.msra.mxu0 %v151
    %1139 = vmatprep.subr.mxu0 %v154
    %1140 = vmatpush1.msra.mxu0 %v153
    %1141 = vmatprep.subr.mxu0 %v156
    %1142 = vmatpush1.msra.mxu0 %v155
    %1143 = vmatprep.subr.mxu0 %v158
    %1144 = vmatpush1.msra.mxu0 %v157
    %1145 = vmatprep.subr.mxu0 %v160
    %1146 = vmatpush1.msra.mxu0 %v159
    %1147 = vmatprep.mubr.f32.mxu0 %v892
    %1148 = vmatmul.mubr.f32.gmra.mrb[0].mxu0 %v890
    %v1149 = vpop.f32.mrb[0].mxu0
    %v1150 = vadd.f32 %v1079, %v1149
    %v1151 = vpop.f32.mrb[0].mxu0
    %v1152 = vadd.f32 %v1081, %v1151
    %1153 = vdwg.mxu0
    %1154 = vmatprep.subr.mxu0 %v162
    %1155 = vmatpush1.msra.mxu0 %v161
    %1156 = vmatprep.subr.mxu0 %v164
    %1157 = vmatpush1.msra.mxu0 %v163
    %1158 = vmatprep.subr.mxu0 %v166
    %1159 = vmatpush1.msra.mxu0 %v165
    %1160 = vmatprep.subr.mxu0 %v168
    %1161 = vmatpush1.msra.mxu0 %v167
    %1162 = vmatprep.subr.mxu0 %v170
    %1163 = vmatpush1.msra.mxu0 %v169
    %1164 = vmatprep.subr.mxu0 %v172
    %1165 = vmatpush1.msra.mxu0 %v171
    %1166 = vmatprep.subr.mxu0 %v174
    %1167 = vmatpush1.msra.mxu0 %v173
    %1168 = vmatprep.subr.mxu0 %v176
    %1169 = vmatpush1.msra.mxu0 %v175
    %1170 = vmatprep.subr.mxu0 %v178
    %1171 = vmatpush1.msra.mxu0 %v177
    %1172 = vmatprep.subr.mxu0 %v180
    %1173 = vmatpush1.msra.mxu0 %v179
    %1174 = vmatprep.subr.mxu0 %v182
    %1175 = vmatpush1.msra.mxu0 %v181
    %1176 = vmatprep.subr.mxu0 %v184
    %1177 = vmatpush1.msra.mxu0 %v183
    %1178 = vmatprep.subr.mxu0 %v186
    %1179 = vmatpush1.msra.mxu0 %v185
    %1180 = vmatprep.subr.mxu0 %v188
    %1181 = vmatpush1.msra.mxu0 %v187
    %1182 = vmatprep.subr.mxu0 %v190
    %1183 = vmatpush1.msra.mxu0 %v189
    %1184 = vmatprep.subr.mxu0 %v192
    %1185 = vmatpush1.msra.mxu0 %v191
    %1186 = vmatprep.subr.mxu0 %v194
    %1187 = vmatpush1.msra.mxu0 %v193
    %1188 = vmatprep.subr.mxu0 %v196
    %1189 = vmatpush1.msra.mxu0 %v195
    %1190 = vmatprep.subr.mxu0 %v198
    %1191 = vmatpush1.msra.mxu0 %v197
    %1192 = vmatprep.subr.mxu0 %v200
    %1193 = vmatpush1.msra.mxu0 %v199
    %1194 = vmatprep.subr.mxu0 %v202
    %1195 = vmatpush1.msra.mxu0 %v201
    %1196 = vmatprep.subr.mxu0 %v204
    %1197 = vmatpush1.msra.mxu0 %v203
    %1198 = vmatprep.subr.mxu0 %v206
    %1199 = vmatpush1.msra.mxu0 %v205
    %1200 = vmatprep.subr.mxu0 %v208
    %1201 = vmatpush1.msra.mxu0 %v207
    %1202 = vmatprep.subr.mxu0 %v210
    %1203 = vmatpush1.msra.mxu0 %v209
    %1204 = vmatprep.subr.mxu0 %v212
    %1205 = vmatpush1.msra.mxu0 %v211
    %1206 = vmatprep.subr.mxu0 %v214
    %1207 = vmatpush1.msra.mxu0 %v213
    %1208 = vmatprep.subr.mxu0 %v216
    %1209 = vmatpush1.msra.mxu0 %v215
    %1210 = vmatprep.subr.mxu0 %v218
    %1211 = vmatpush1.msra.mxu0 %v217
    %1212 = vmatprep.subr.mxu0 %v220
    %1213 = vmatpush1.msra.mxu0 %v219
    %1214 = vmatprep.subr.mxu0 %v222
    %1215 = vmatpush1.msra.mxu0 %v221
    %1216 = vmatprep.subr.mxu0 %v224
    %1217 = vmatpush1.msra.mxu0 %v223
    %1218 = vmatprep.mubr.f32.mxu0 %v908
    %1219 = vmatmul.mubr.f32.gmra.mrb[0].mxu0 %v900
    %v1220 = vpop.f32.mrb[0].mxu0
    %v1221 = vadd.f32 %v1150, %v1220
    %v1222 = vpop.f32.mrb[0].mxu0
    %v1223 = vadd.f32 %v1152, %v1222
    %1224 = vdwg.mxu0
    %1225 = vmatprep.subr.mxu0 %v226
    %1226 = vmatpush1.msra.mxu0 %v225
    %1227 = vmatprep.subr.mxu0 %v228
    %1228 = vmatpush1.msra.mxu0 %v227
    %1229 = vmatprep.subr.mxu0 %v230
    %1230 = vmatpush1.msra.mxu0 %v229
    %1231 = vmatprep.subr.mxu0 %v232
    %1232 = vmatpush1.msra.mxu0 %v231
    %1233 = vmatprep.subr.mxu0 %v234
    %1234 = vmatpush1.msra.mxu0 %v233
    %1235 = vmatprep.subr.mxu0 %v236
    %1236 = vmatpush1.msra.mxu0 %v235
    %1237 = vmatprep.subr.mxu0 %v238
    %1238 = vmatpush1.msra.mxu0 %v237
    %1239 = vmatprep.subr.mxu0 %v240
    %1240 = vmatpush1.msra.mxu0 %v239
    %1241 = vmatprep.subr.mxu0 %v242
    %1242 = vmatpush1.msra.mxu0 %v241
    %1243 = vmatprep.subr.mxu0 %v244
    %1244 = vmatpush1.msra.mxu0 %v243
    %1245 = vmatprep.subr.mxu0 %v246
    %1246 = vmatpush1.msra.mxu0 %v245
    %1247 = vmatprep.subr.mxu0 %v248
    %1248 = vmatpush1.msra.mxu0 %v247
    %1249 = vmatprep.subr.mxu0 %v250
    %1250 = vmatpush1.msra.mxu0 %v249
    %1251 = vmatprep.subr.mxu0 %v252
    %1252 = vmatpush1.msra.mxu0 %v251
    %1253 = vmatprep.subr.mxu0 %v254
    %1254 = vmatpush1.msra.mxu0 %v253
    %1255 = vmatprep.subr.mxu0 %v256
    %1256 = vmatpush1.msra.mxu0 %v255
    %1257 = vmatprep.subr.mxu0 %v258
    %1258 = vmatpush1.msra.mxu0 %v257
    %1259 = vmatprep.subr.mxu0 %v260
    %1260 = vmatpush1.msra.mxu0 %v259
    %1261 = vmatprep.subr.mxu0 %v262
    %1262 = vmatpush1.msra.mxu0 %v261
    %1263 = vmatprep.subr.mxu0 %v264
    %1264 = vmatpush1.msra.mxu0 %v263
    %1265 = vmatprep.subr.mxu0 %v266
    %1266 = vmatpush1.msra.mxu0 %v265
    %1267 = vmatprep.subr.mxu0 %v268
    %1268 = vmatpush1.msra.mxu0 %v267
    %1269 = vmatprep.subr.mxu0 %v270
    %1270 = vmatpush1.msra.mxu0 %v269
    %1271 = vmatprep.subr.mxu0 %v272
    %1272 = vmatpush1.msra.mxu0 %v271
    %1273 = vmatprep.subr.mxu0 %v274
    %1274 = vmatpush1.msra.mxu0 %v273
    %1275 = vmatprep.subr.mxu0 %v276
    %1276 = vmatpush1.msra.mxu0 %v275
    %1277 = vmatprep.subr.mxu0 %v278
    %1278 = vmatpush1.msra.mxu0 %v277
    %1279 = vmatprep.subr.mxu0 %v280
    %1280 = vmatpush1.msra.mxu0 %v279
    %1281 = vmatprep.subr.mxu0 %v282
    %1282 = vmatpush1.msra.mxu0 %v281
    %1283 = vmatprep.subr.mxu0 %v284
    %1284 = vmatpush1.msra.mxu0 %v283
    %1285 = vmatprep.subr.mxu0 %v286
    %1286 = vmatpush1.msra.mxu0 %v285
    %1287 = vmatprep.subr.mxu0 %v288
    %1288 = vmatpush1.msra.mxu0 %v287
    %1289 = vmatprep.mubr.f32.mxu0 %v909
    %1290 = vmatmul.mubr.f32.gmra.mrb[0].mxu0 %v907
    %v1291 = vpop.f32.mrb[0].mxu0
    %v1292 = vadd.f32 %v1221, %v1291
    %v1293 = vpop.f32.mrb[0].mxu0
    %v1294 = vadd.f32 %v1223, %v1293
    %1295 = vdwg.mxu0
    %1296 = vmatprep.subr.mxu0 %v290
    %1297 = vmatpush1.msra.mxu0 %v289
    %1298 = vmatprep.subr.mxu0 %v292
    %1299 = vmatpush1.msra.mxu0 %v291
    %1300 = vmatprep.subr.mxu0 %v294
    %1301 = vmatpush1.msra.mxu0 %v293
    %1302 = vmatprep.subr.mxu0 %v296
    %1303 = vmatpush1.msra.mxu0 %v295
    %1304 = vmatprep.subr.mxu0 %v298
    %1305 = vmatpush1.msra.mxu0 %v297
    %1306 = vmatprep.subr.mxu0 %v300
    %1307 = vmatpush1.msra.mxu0 %v299
    %1308 = vmatprep.subr.mxu0 %v302
    %1309 = vmatpush1.msra.mxu0 %v301
    %1310 = vmatprep.subr.mxu0 %v304
    %1311 = vmatpush1.msra.mxu0 %v303
    %1312 = vmatprep.subr.mxu0 %v306
    %1313 = vmatpush1.msra.mxu0 %v305
    %1314 = vmatprep.subr.mxu0 %v308
    %1315 = vmatpush1.msra.mxu0 %v307
    %1316 = vmatprep.subr.mxu0 %v310
    %1317 = vmatpush1.msra.mxu0 %v309
    %1318 = vmatprep.subr.mxu0 %v312
    %1319 = vmatpush1.msra.mxu0 %v311
    %1320 = vmatprep.subr.mxu0 %v314
    %1321 = vmatpush1.msra.mxu0 %v313
    %1322 = vmatprep.subr.mxu0 %v316
    %1323 = vmatpush1.msra.mxu0 %v315
    %1324 = vmatprep.subr.mxu0 %v318
    %1325 = vmatpush1.msra.mxu0 %v317
    %1326 = vmatprep.subr.mxu0 %v320
    %1327 = vmatpush1.msra.mxu0 %v319
    %1328 = vmatprep.subr.mxu0 %v322
    %1329 = vmatpush1.msra.mxu0 %v321
    %1330 = vmatprep.subr.mxu0 %v324
    %1331 = vmatpush1.msra.mxu0 %v323
    %1332 = vmatprep.subr.mxu0 %v326
    %1333 = vmatpush1.msra.mxu0 %v325
    %1334 = vmatprep.subr.mxu0 %v328
    %1335 = vmatpush1.msra.mxu0 %v327
    %1336 = vmatprep.subr.mxu0 %v330
    %1337 = vmatpush1.msra.mxu0 %v329
    %1338 = vmatprep.subr.mxu0 %v332
    %1339 = vmatpush1.msra.mxu0 %v331
    %1340 = vmatprep.subr.mxu0 %v334
    %1341 = vmatpush1.msra.mxu0 %v333
    %1342 = vmatprep.subr.mxu0 %v336
    %1343 = vmatpush1.msra.mxu0 %v335
    %1344 = vmatprep.subr.mxu0 %v338
    %1345 = vmatpush1.msra.mxu0 %v337
    %1346 = vmatprep.subr.mxu0 %v340
    %1347 = vmatpush1.msra.mxu0 %v339
    %1348 = vmatprep.subr.mxu0 %v342
    %1349 = vmatpush1.msra.mxu0 %v341
    %1350 = vmatprep.subr.mxu0 %v344
    %1351 = vmatpush1.msra.mxu0 %v343
    %1352 = vmatprep.subr.mxu0 %v346
    %1353 = vmatpush1.msra.mxu0 %v345
    %1354 = vmatprep.subr.mxu0 %v348
    %1355 = vmatpush1.msra.mxu0 %v347
    %1356 = vmatprep.subr.mxu0 %v350
    %1357 = vmatpush1.msra.mxu0 %v349
    %1358 = vmatprep.subr.mxu0 %v352
    %1359 = vmatpush1.msra.mxu0 %v351
    %1360 = vmatprep.mubr.f32.mxu0 %v925
    %1361 = vmatmul.mubr.f32.gmra.mrb[0].mxu0 %v917
    %v1362 = vpop.f32.mrb[0].mxu0
    %v1363 = vadd.f32 %v1292, %v1362
    %v1364 = vpop.f32.mrb[0].mxu0
    %v1365 = vadd.f32 %v1294, %v1364
    %1366 = vdwg.mxu0
    %1367 = vmatprep.subr.mxu0 %v354
    %1368 = vmatpush1.msra.mxu0 %v353
    %1369 = vmatprep.subr.mxu0 %v356
    %1370 = vmatpush1.msra.mxu0 %v355
    %1371 = vmatprep.subr.mxu0 %v358
    %1372 = vmatpush1.msra.mxu0 %v357
    %1373 = vmatprep.subr.mxu0 %v360
    %1374 = vmatpush1.msra.mxu0 %v359
    %1375 = vmatprep.subr.mxu0 %v362
    %1376 = vmatpush1.msra.mxu0 %v361
    %1377 = vmatprep.subr.mxu0 %v364
    %1378 = vmatpush1.msra.mxu0 %v363
    %1379 = vmatprep.subr.mxu0 %v366
    %1380 = vmatpush1.msra.mxu0 %v365
    %1381 = vmatprep.subr.mxu0 %v368
    %1382 = vmatpush1.msra.mxu0 %v367
    %1383 = vmatprep.subr.mxu0 %v370
    %1384 = vmatpush1.msra.mxu0 %v369
    %1385 = vmatprep.subr.mxu0 %v372
    %1386 = vmatpush1.msra.mxu0 %v371
    %1387 = vmatprep.subr.mxu0 %v374
    %1388 = vmatpush1.msra.mxu0 %v373
    %1389 = vmatprep.subr.mxu0 %v376
    %1390 = vmatpush1.msra.mxu0 %v375
    %1391 = vmatprep.subr.mxu0 %v378
    %1392 = vmatpush1.msra.mxu0 %v377
    %1393 = vmatprep.subr.mxu0 %v380
    %1394 = vmatpush1.msra.mxu0 %v379
    %1395 = vmatprep.subr.mxu0 %v382
    %1396 = vmatpush1.msra.mxu0 %v381
    %1397 = vmatprep.subr.mxu0 %v384
    %1398 = vmatpush1.msra.mxu0 %v383
    %1399 = vmatprep.subr.mxu0 %v386
    %1400 = vmatpush1.msra.mxu0 %v385
    %1401 = vmatprep.subr.mxu0 %v388
    %1402 = vmatpush1.msra.mxu0 %v387
    %1403 = vmatprep.subr.mxu0 %v390
    %1404 = vmatpush1.msra.mxu0 %v389
    %1405 = vmatprep.subr.mxu0 %v392
    %1406 = vmatpush1.msra.mxu0 %v391
    %1407 = vmatprep.subr.mxu0 %v394
    %1408 = vmatpush1.msra.mxu0 %v393
    %1409 = vmatprep.subr.mxu0 %v396
    %1410 = vmatpush1.msra.mxu0 %v395
    %1411 = vmatprep.subr.mxu0 %v398
    %1412 = vmatpush1.msra.mxu0 %v397
    %1413 = vmatprep.subr.mxu0 %v400
    %1414 = vmatpush1.msra.mxu0 %v399
    %1415 = vmatprep.subr.mxu0 %v402
    %1416 = vmatpush1.msra.mxu0 %v401
    %1417 = vmatprep.subr.mxu0 %v404
    %1418 = vmatpush1.msra.mxu0 %v403
    %1419 = vmatprep.subr.mxu0 %v406
    %1420 = vmatpush1.msra.mxu0 %v405
    %1421 = vmatprep.subr.mxu0 %v408
    %1422 = vmatpush1.msra.mxu0 %v407
    %1423 = vmatprep.subr.mxu0 %v410
    %1424 = vmatpush1.msra.mxu0 %v409
    %1425 = vmatprep.subr.mxu0 %v412
    %1426 = vmatpush1.msra.mxu0 %v411
    %1427 = vmatprep.subr.mxu0 %v414
    %1428 = vmatpush1.msra.mxu0 %v413
    %1429 = vmatprep.subr.mxu0 %v416
    %1430 = vmatpush1.msra.mxu0 %v415
    %1431 = vmatprep.mubr.f32.mxu0 %v926
    %1432 = vmatmul.mubr.f32.gmra.mrb[0].mxu0 %v924
    %v1433 = vpop.f32.mrb[0].mxu0
    %v1434 = vadd.f32 %v1363, %v1433
    %v1435 = vpop.f32.mrb[0].mxu0
    %v1436 = vadd.f32 %v1365, %v1435
    %1437 = vdwg.mxu0
    %1438 = vmatprep.subr.mxu0 %v418
    %1439 = vmatpush1.msra.mxu0 %v417
    %1440 = vmatprep.subr.mxu0 %v420
    %1441 = vmatpush1.msra.mxu0 %v419
    %1442 = vmatprep.subr.mxu0 %v422
    %1443 = vmatpush1.msra.mxu0 %v421
    %1444 = vmatprep.subr.mxu0 %v424
    %1445 = vmatpush1.msra.mxu0 %v423
    %1446 = vmatprep.subr.mxu0 %v426
    %1447 = vmatpush1.msra.mxu0 %v425
    %1448 = vmatprep.subr.mxu0 %v428
    %1449 = vmatpush1.msra.mxu0 %v427
    %1450 = vmatprep.subr.mxu0 %v430
    %1451 = vmatpush1.msra.mxu0 %v429
    %1452 = vmatprep.subr.mxu0 %v432
    %1453 = vmatpush1.msra.mxu0 %v431
    %1454 = vmatprep.subr.mxu0 %v434
    %1455 = vmatpush1.msra.mxu0 %v433
    %1456 = vmatprep.subr.mxu0 %v436
    %1457 = vmatpush1.msra.mxu0 %v435
    %1458 = vmatprep.subr.mxu0 %v438
    %1459 = vmatpush1.msra.mxu0 %v437
    %1460 = vmatprep.subr.mxu0 %v440
    %1461 = vmatpush1.msra.mxu0 %v439
    %1462 = vmatprep.subr.mxu0 %v442
    %1463 = vmatpush1.msra.mxu0 %v441
    %1464 = vmatprep.subr.mxu0 %v444
    %1465 = vmatpush1.msra.mxu0 %v443
    %1466 = vmatprep.subr.mxu0 %v446
    %1467 = vmatpush1.msra.mxu0 %v445
    %1468 = vmatprep.subr.mxu0 %v448
    %1469 = vmatpush1.msra.mxu0 %v447
    %1470 = vmatprep.subr.mxu0 %v450
    %1471 = vmatpush1.msra.mxu0 %v449
    %1472 = vmatprep.subr.mxu0 %v452
    %1473 = vmatpush1.msra.mxu0 %v451
    %1474 = vmatprep.subr.mxu0 %v454
    %1475 = vmatpush1.msra.mxu0 %v453
    %1476 = vmatprep.subr.mxu0 %v456
    %1477 = vmatpush1.msra.mxu0 %v455
    %1478 = vmatprep.subr.mxu0 %v458
    %1479 = vmatpush1.msra.mxu0 %v457
    %1480 = vmatprep.subr.mxu0 %v460
    %1481 = vmatpush1.msra.mxu0 %v459
    %1482 = vmatprep.subr.mxu0 %v462
    %1483 = vmatpush1.msra.mxu0 %v461
    %1484 = vmatprep.subr.mxu0 %v464
    %1485 = vmatpush1.msra.mxu0 %v463
    %1486 = vmatprep.subr.mxu0 %v466
    %1487 = vmatpush1.msra.mxu0 %v465
    %1488 = vmatprep.subr.mxu0 %v468
    %1489 = vmatpush1.msra.mxu0 %v467
    %1490 = vmatprep.subr.mxu0 %v470
    %1491 = vmatpush1.msra.mxu0 %v469
    %1492 = vmatprep.subr.mxu0 %v472
    %1493 = vmatpush1.msra.mxu0 %v471
    %1494 = vmatprep.subr.mxu0 %v474
    %1495 = vmatpush1.msra.mxu0 %v473
    %1496 = vmatprep.subr.mxu0 %v476
    %1497 = vmatpush1.msra.mxu0 %v475
    %1498 = vmatprep.subr.mxu0 %v478
    %1499 = vmatpush1.msra.mxu0 %v477
    %1500 = vmatprep.subr.mxu0 %v480
    %1501 = vmatpush1.msra.mxu0 %v479
    %1502 = vmatprep.mubr.f32.mxu0 %v942
    %1503 = vmatmul.mubr.f32.gmra.mrb[0].mxu0 %v934
    %v1504 = vpop.f32.mrb[0].mxu0
    %v1505 = vadd.f32 %v1434, %v1504
    %v1506 = vpop.f32.mrb[0].mxu0
    %v1507 = vadd.f32 %v1436, %v1506
    %1508 = vdwg.mxu0
    %1509 = vmatprep.subr.mxu0 %v482
    %1510 = vmatpush1.msra.mxu0 %v481
    %1511 = vmatprep.subr.mxu0 %v484
    %1512 = vmatpush1.msra.mxu0 %v483
    %1513 = vmatprep.subr.mxu0 %v486
    %1514 = vmatpush1.msra.mxu0 %v485
    %1515 = vmatprep.subr.mxu0 %v488
    %1516 = vmatpush1.msra.mxu0 %v487
    %1517 = vmatprep.subr.mxu0 %v490
    %1518 = vmatpush1.msra.mxu0 %v489
    %1519 = vmatprep.subr.mxu0 %v492
    %1520 = vmatpush1.msra.mxu0 %v491
    %1521 = vmatprep.subr.mxu0 %v494
    %1522 = vmatpush1.msra.mxu0 %v493
    %1523 = vmatprep.subr.mxu0 %v496
    %1524 = vmatpush1.msra.mxu0 %v495
    %1525 = vmatprep.subr.mxu0 %v498
    %1526 = vmatpush1.msra.mxu0 %v497
    %1527 = vmatprep.subr.mxu0 %v500
    %1528 = vmatpush1.msra.mxu0 %v499
    %1529 = vmatprep.subr.mxu0 %v502
    %1530 = vmatpush1.msra.mxu0 %v501
    %1531 = vmatprep.subr.mxu0 %v504
    %1532 = vmatpush1.msra.mxu0 %v503
    %1533 = vmatprep.subr.mxu0 %v506
    %1534 = vmatpush1.msra.mxu0 %v505
    %1535 = vmatprep.subr.mxu0 %v508
    %1536 = vmatpush1.msra.mxu0 %v507
    %1537 = vmatprep.subr.mxu0 %v510
    %1538 = vmatpush1.msra.mxu0 %v509
    %1539 = vmatprep.subr.mxu0 %v512
    %1540 = vmatpush1.msra.mxu0 %v511
    %1541 = vmatprep.subr.mxu0 %v514
    %1542 = vmatpush1.msra.mxu0 %v513
    %1543 = vmatprep.subr.mxu0 %v516
    %1544 = vmatpush1.msra.mxu0 %v515
    %1545 = vmatprep.subr.mxu0 %v518
    %1546 = vmatpush1.msra.mxu0 %v517
    %1547 = vmatprep.subr.mxu0 %v520
    %1548 = vmatpush1.msra.mxu0 %v519
    %1549 = vmatprep.subr.mxu0 %v522
    %1550 = vmatpush1.msra.mxu0 %v521
    %1551 = vmatprep.subr.mxu0 %v524
    %1552 = vmatpush1.msra.mxu0 %v523
    %1553 = vmatprep.subr.mxu0 %v526
    %1554 = vmatpush1.msra.mxu0 %v525
    %1555 = vmatprep.subr.mxu0 %v528
    %1556 = vmatpush1.msra.mxu0 %v527
    %1557 = vmatprep.subr.mxu0 %v530
    %1558 = vmatpush1.msra.mxu0 %v529
    %1559 = vmatprep.subr.mxu0 %v532
    %1560 = vmatpush1.msra.mxu0 %v531
    %1561 = vmatprep.subr.mxu0 %v534
    %1562 = vmatpush1.msra.mxu0 %v533
    %1563 = vmatprep.subr.mxu0 %v536
    %1564 = vmatpush1.msra.mxu0 %v535
    %1565 = vmatprep.subr.mxu0 %v538
    %1566 = vmatpush1.msra.mxu0 %v537
    %1567 = vmatprep.subr.mxu0 %v540
    %1568 = vmatpush1.msra.mxu0 %v539
    %1569 = vmatprep.subr.mxu0 %v542
    %1570 = vmatpush1.msra.mxu0 %v541
    %1571 = vmatprep.subr.mxu0 %v544
    %1572 = vmatpush1.msra.mxu0 %v543
    %1573 = vmatprep.mubr.f32.mxu0 %v943
    %1574 = vmatmul.mubr.f32.gmra.mrb[0].mxu0 %v941
    %v1575 = vpop.f32.mrb[0].mxu0
    %v1576 = vadd.f32 %v1505, %v1575
    %v1577 = vpop.f32.mrb[0].mxu0
    %v1578 = vadd.f32 %v1507, %v1577
    %1579 = vdwg.mxu0
    %1580 = vmatprep.subr.mxu0 %v546
    %1581 = vmatpush1.msra.mxu0 %v545
    %1582 = vmatprep.subr.mxu0 %v548
    %1583 = vmatpush1.msra.mxu0 %v547
    %1584 = vmatprep.subr.mxu0 %v550
    %1585 = vmatpush1.msra.mxu0 %v549
    %1586 = vmatprep.subr.mxu0 %v552
    %1587 = vmatpush1.msra.mxu0 %v551
    %1588 = vmatprep.subr.mxu0 %v554
    %1589 = vmatpush1.msra.mxu0 %v553
    %1590 = vmatprep.subr.mxu0 %v556
    %1591 = vmatpush1.msra.mxu0 %v555
    %1592 = vmatprep.subr.mxu0 %v558
    %1593 = vmatpush1.msra.mxu0 %v557
    %1594 = vmatprep.subr.mxu0 %v560
    %1595 = vmatpush1.msra.mxu0 %v559
    %1596 = vmatprep.subr.mxu0 %v562
    %1597 = vmatpush1.msra.mxu0 %v561
    %1598 = vmatprep.subr.mxu0 %v564
    %1599 = vmatpush1.msra.mxu0 %v563
    %1600 = vmatprep.subr.mxu0 %v566
    %1601 = vmatpush1.msra.mxu0 %v565
    %1602 = vmatprep.subr.mxu0 %v568
    %1603 = vmatpush1.msra.mxu0 %v567
    %1604 = vmatprep.subr.mxu0 %v570
    %1605 = vmatpush1.msra.mxu0 %v569
    %1606 = vmatprep.subr.mxu0 %v572
    %1607 = vmatpush1.msra.mxu0 %v571
    %1608 = vmatprep.subr.mxu0 %v574
    %1609 = vmatpush1.msra.mxu0 %v573
    %1610 = vmatprep.subr.mxu0 %v576
    %1611 = vmatpush1.msra.mxu0 %v575
    %1612 = vmatprep.subr.mxu0 %v578
    %1613 = vmatpush1.msra.mxu0 %v577
    %1614 = vmatprep.subr.mxu0 %v580
    %1615 = vmatpush1.msra.mxu0 %v579
    %1616 = vmatprep.subr.mxu0 %v582
    %1617 = vmatpush1.msra.mxu0 %v581
    %1618 = vmatprep.subr.mxu0 %v584
    %1619 = vmatpush1.msra.mxu0 %v583
    %1620 = vmatprep.subr.mxu0 %v586
    %1621 = vmatpush1.msra.mxu0 %v585
    %1622 = vmatprep.subr.mxu0 %v588
    %1623 = vmatpush1.msra.mxu0 %v587
    %1624 = vmatprep.subr.mxu0 %v590
    %1625 = vmatpush1.msra.mxu0 %v589
    %1626 = vmatprep.subr.mxu0 %v592
    %1627 = vmatpush1.msra.mxu0 %v591
    %1628 = vmatprep.subr.mxu0 %v594
    %1629 = vmatpush1.msra.mxu0 %v593
    %1630 = vmatprep.subr.mxu0 %v596
    %1631 = vmatpush1.msra.mxu0 %v595
    %1632 = vmatprep.subr.mxu0 %v598
    %1633 = vmatpush1.msra.mxu0 %v597
    %1634 = vmatprep.subr.mxu0 %v600
    %1635 = vmatpush1.msra.mxu0 %v599
    %1636 = vmatprep.subr.mxu0 %v602
    %1637 = vmatpush1.msra.mxu0 %v601
    %1638 = vmatprep.subr.mxu0 %v604
    %1639 = vmatpush1.msra.mxu0 %v603
    %1640 = vmatprep.subr.mxu0 %v606
    %1641 = vmatpush1.msra.mxu0 %v605
    %1642 = vmatprep.subr.mxu0 %v608
    %1643 = vmatpush1.msra.mxu0 %v607
    %1644 = vmatprep.mubr.f32.mxu0 %v959
    %1645 = vmatmul.mubr.f32.gmra.mrb[0].mxu0 %v951
    %v1646 = vpop.f32.mrb[0].mxu0
    %v1647 = vadd.f32 %v1576, %v1646
    %v1648 = vpop.f32.mrb[0].mxu0
    %v1649 = vadd.f32 %v1578, %v1648
    %1650 = vdwg.mxu0
    %1651 = vmatprep.subr.mxu0 %v610
    %1652 = vmatpush1.msra.mxu0 %v609
    %1653 = vmatprep.subr.mxu0 %v612
    %1654 = vmatpush1.msra.mxu0 %v611
    %1655 = vmatprep.subr.mxu0 %v614
    %1656 = vmatpush1.msra.mxu0 %v613
    %1657 = vmatprep.subr.mxu0 %v616
    %1658 = vmatpush1.msra.mxu0 %v615
    %1659 = vmatprep.subr.mxu0 %v618
    %1660 = vmatpush1.msra.mxu0 %v617
    %1661 = vmatprep.subr.mxu0 %v620
    %1662 = vmatpush1.msra.mxu0 %v619
    %1663 = vmatprep.subr.mxu0 %v622
    %1664 = vmatpush1.msra.mxu0 %v621
    %1665 = vmatprep.subr.mxu0 %v624
    %1666 = vmatpush1.msra.mxu0 %v623
    %1667 = vmatprep.subr.mxu0 %v626
    %1668 = vmatpush1.msra.mxu0 %v625
    %1669 = vmatprep.subr.mxu0 %v628
    %1670 = vmatpush1.msra.mxu0 %v627
    %1671 = vmatprep.subr.mxu0 %v630
    %1672 = vmatpush1.msra.mxu0 %v629
    %1673 = vmatprep.subr.mxu0 %v632
    %1674 = vmatpush1.msra.mxu0 %v631
    %1675 = vmatprep.subr.mxu0 %v634
    %1676 = vmatpush1.msra.mxu0 %v633
    %1677 = vmatprep.subr.mxu0 %v636
    %1678 = vmatpush1.msra.mxu0 %v635
    %1679 = vmatprep.subr.mxu0 %v638
    %1680 = vmatpush1.msra.mxu0 %v637
    %1681 = vmatprep.subr.mxu0 %v640
    %1682 = vmatpush1.msra.mxu0 %v639
    %1683 = vmatprep.subr.mxu0 %v642
    %1684 = vmatpush1.msra.mxu0 %v641
    %1685 = vmatprep.subr.mxu0 %v644
    %1686 = vmatpush1.msra.mxu0 %v643
    %1687 = vmatprep.subr.mxu0 %v646
    %1688 = vmatpush1.msra.mxu0 %v645
    %1689 = vmatprep.subr.mxu0 %v648
    %1690 = vmatpush1.msra.mxu0 %v647
    %1691 = vmatprep.subr.mxu0 %v650
    %1692 = vmatpush1.msra.mxu0 %v649
    %1693 = vmatprep.subr.mxu0 %v652
    %1694 = vmatpush1.msra.mxu0 %v651
    %1695 = vmatprep.subr.mxu0 %v654
    %1696 = vmatpush1.msra.mxu0 %v653
    %1697 = vmatprep.subr.mxu0 %v656
    %1698 = vmatpush1.msra.mxu0 %v655
    %1699 = vmatprep.subr.mxu0 %v658
    %1700 = vmatpush1.msra.mxu0 %v657
    %1701 = vmatprep.subr.mxu0 %v660
    %1702 = vmatpush1.msra.mxu0 %v659
    %1703 = vmatprep.subr.mxu0 %v662
    %1704 = vmatpush1.msra.mxu0 %v661
    %1705 = vmatprep.subr.mxu0 %v664
    %1706 = vmatpush1.msra.mxu0 %v663
    %1707 = vmatprep.subr.mxu0 %v666
    %1708 = vmatpush1.msra.mxu0 %v665
    %1709 = vmatprep.subr.mxu0 %v668
    %1710 = vmatpush1.msra.mxu0 %v667
    %1711 = vmatprep.subr.mxu0 %v670
    %1712 = vmatpush1.msra.mxu0 %v669
    %1713 = vmatprep.subr.mxu0 %v672
    %1714 = vmatpush1.msra.mxu0 %v671
    %1715 = vmatprep.mubr.f32.mxu0 %v960
    %1716 = vmatmul.mubr.f32.gmra.mrb[0].mxu0 %v958
    %v1717 = vpop.f32.mrb[0].mxu0
    %v1718 = vadd.f32 %v1647, %v1717
    %v1719 = vpop.f32.mrb[0].mxu0
    %v1720 = vadd.f32 %v1649, %v1719
    %1721 = vdwg.mxu0
    %1722 = vmatprep.subr.mxu0 %v674
    %1723 = vmatpush1.msra.mxu0 %v673
    %1724 = vmatprep.subr.mxu0 %v676
    %1725 = vmatpush1.msra.mxu0 %v675
    %1726 = vmatprep.subr.mxu0 %v678
    %1727 = vmatpush1.msra.mxu0 %v677
    %1728 = vmatprep.subr.mxu0 %v680
    %1729 = vmatpush1.msra.mxu0 %v679
    %1730 = vmatprep.subr.mxu0 %v682
    %1731 = vmatpush1.msra.mxu0 %v681
    %1732 = vmatprep.subr.mxu0 %v684
    %1733 = vmatpush1.msra.mxu0 %v683
    %1734 = vmatprep.subr.mxu0 %v686
    %1735 = vmatpush1.msra.mxu0 %v685
    %1736 = vmatprep.subr.mxu0 %v688
    %1737 = vmatpush1.msra.mxu0 %v687
    %1738 = vmatprep.subr.mxu0 %v690
    %1739 = vmatpush1.msra.mxu0 %v689
    %1740 = vmatprep.subr.mxu0 %v692
    %1741 = vmatpush1.msra.mxu0 %v691
    %1742 = vmatprep.subr.mxu0 %v694
    %1743 = vmatpush1.msra.mxu0 %v693
    %1744 = vmatprep.subr.mxu0 %v696
    %1745 = vmatpush1.msra.mxu0 %v695
    %1746 = vmatprep.subr.mxu0 %v698
    %1747 = vmatpush1.msra.mxu0 %v697
    %1748 = vmatprep.subr.mxu0 %v700
    %1749 = vmatpush1.msra.mxu0 %v699
    %1750 = vmatprep.subr.mxu0 %v702
    %1751 = vmatpush1.msra.mxu0 %v701
    %1752 = vmatprep.subr.mxu0 %v704
    %1753 = vmatpush1.msra.mxu0 %v703
    %1754 = vmatprep.subr.mxu0 %v706
    %1755 = vmatpush1.msra.mxu0 %v705
    %1756 = vmatprep.subr.mxu0 %v708
    %1757 = vmatpush1.msra.mxu0 %v707
    %1758 = vmatprep.subr.mxu0 %v710
    %1759 = vmatpush1.msra.mxu0 %v709
    %1760 = vmatprep.subr.mxu0 %v712
    %1761 = vmatpush1.msra.mxu0 %v711
    %1762 = vmatprep.subr.mxu0 %v714
    %1763 = vmatpush1.msra.mxu0 %v713
    %1764 = vmatprep.subr.mxu0 %v716
    %1765 = vmatpush1.msra.mxu0 %v715
    %1766 = vmatprep.subr.mxu0 %v718
    %1767 = vmatpush1.msra.mxu0 %v717
    %1768 = vmatprep.subr.mxu0 %v720
    %1769 = vmatpush1.msra.mxu0 %v719
    %1770 = vmatprep.subr.mxu0 %v722
    %1771 = vmatpush1.msra.mxu0 %v721
    %1772 = vmatprep.subr.mxu0 %v724
    %1773 = vmatpush1.msra.mxu0 %v723
    %1774 = vmatprep.subr.mxu0 %v726
    %1775 = vmatpush1.msra.mxu0 %v725
    %1776 = vmatprep.subr.mxu0 %v728
    %1777 = vmatpush1.msra.mxu0 %v727
    %1778 = vmatprep.subr.mxu0 %v730
    %1779 = vmatpush1.msra.mxu0 %v729
    %1780 = vmatprep.subr.mxu0 %v732
    %1781 = vmatpush1.msra.mxu0 %v731
    %1782 = vmatprep.subr.mxu0 %v734
    %1783 = vmatpush1.msra.mxu0 %v733
    %1784 = vmatprep.subr.mxu0 %v736
    %1785 = vmatpush1.msra.mxu0 %v735
    %1786 = vmatprep.mubr.f32.mxu0 %v976
    %1787 = vmatmul.mubr.f32.gmra.mrb[0].mxu0 %v968
    %v1788 = vpop.f32.mrb[0].mxu0
    %v1789 = vadd.f32 %v1718, %v1788
    %v1790 = vpop.f32.mrb[0].mxu0
    %v1791 = vadd.f32 %v1720, %v1790
    %1792 = vdwg.mxu0
    %1793 = vmatprep.subr.mxu0 %v738
    %1794 = vmatpush1.msra.mxu0 %v737
    %1795 = vmatprep.subr.mxu0 %v740
    %1796 = vmatpush1.msra.mxu0 %v739
    %1797 = vmatprep.subr.mxu0 %v742
    %1798 = vmatpush1.msra.mxu0 %v741
    %1799 = vmatprep.subr.mxu0 %v744
    %1800 = vmatpush1.msra.mxu0 %v743
    %1801 = vmatprep.subr.mxu0 %v746
    %1802 = vmatpush1.msra.mxu0 %v745
    %1803 = vmatprep.subr.mxu0 %v748
    %1804 = vmatpush1.msra.mxu0 %v747
    %1805 = vmatprep.subr.mxu0 %v750
    %1806 = vmatpush1.msra.mxu0 %v749
    %1807 = vmatprep.subr.mxu0 %v752
    %1808 = vmatpush1.msra.mxu0 %v751
    %1809 = vmatprep.subr.mxu0 %v754
    %1810 = vmatpush1.msra.mxu0 %v753
    %1811 = vmatprep.subr.mxu0 %v756
    %1812 = vmatpush1.msra.mxu0 %v755
    %1813 = vmatprep.subr.mxu0 %v758
    %1814 = vmatpush1.msra.mxu0 %v757
    %1815 = vmatprep.subr.mxu0 %v760
    %1816 = vmatpush1.msra.mxu0 %v759
    %1817 = vmatprep.subr.mxu0 %v762
    %1818 = vmatpush1.msra.mxu0 %v761
    %1819 = vmatprep.subr.mxu0 %v764
    %1820 = vmatpush1.msra.mxu0 %v763
    %1821 = vmatprep.subr.mxu0 %v766
    %1822 = vmatpush1.msra.mxu0 %v765
    %1823 = vmatprep.subr.mxu0 %v768
    %1824 = vmatpush1.msra.mxu0 %v767
    %1825 = vmatprep.subr.mxu0 %v770
    %1826 = vmatpush1.msra.mxu0 %v769
    %1827 = vmatprep.subr.mxu0 %v772
    %1828 = vmatpush1.msra.mxu0 %v771
    %1829 = vmatprep.subr.mxu0 %v774
    %1830 = vmatpush1.msra.mxu0 %v773
    %1831 = vmatprep.subr.mxu0 %v776
    %1832 = vmatpush1.msra.mxu0 %v775
    %1833 = vmatprep.subr.mxu0 %v778
    %1834 = vmatpush1.msra.mxu0 %v777
    %1835 = vmatprep.subr.mxu0 %v780
    %1836 = vmatpush1.msra.mxu0 %v779
    %1837 = vmatprep.subr.mxu0 %v782
    %1838 = vmatpush1.msra.mxu0 %v781
    %1839 = vmatprep.subr.mxu0 %v784
    %1840 = vmatpush1.msra.mxu0 %v783
    %1841 = vmatprep.subr.mxu0 %v786
    %1842 = vmatpush1.msra.mxu0 %v785
    %1843 = vmatprep.subr.mxu0 %v788
    %1844 = vmatpush1.msra.mxu0 %v787
    %1845 = vmatprep.subr.mxu0 %v790
    %1846 = vmatpush1.msra.mxu0 %v789
    %1847 = vmatprep.subr.mxu0 %v792
    %1848 = vmatpush1.msra.mxu0 %v791
    %1849 = vmatprep.subr.mxu0 %v794
    %1850 = vmatpush1.msra.mxu0 %v793
    %1851 = vmatprep.subr.mxu0 %v796
    %1852 = vmatpush1.msra.mxu0 %v795
    %1853 = vmatprep.subr.mxu0 %v798
    %1854 = vmatpush1.msra.mxu0 %v797
    %1855 = vmatprep.subr.mxu0 %v800
    %1856 = vmatpush1.msra.mxu0 %v799
    %1857 = vmatprep.mubr.f32.mxu0 %v977
    %1858 = vmatmul.mubr.f32.gmra.mrb[0].mxu0 %v975
    %v1859 = vpop.f32.mrb[0].mxu0
    %v1860 = vadd.f32 %v1789, %v1859
    %v1861 = vpop.f32.mrb[0].mxu0
    %v1862 = vadd.f32 %v1791, %v1861
    %1863 = vdwg.mxu0
    %1864 = vmatprep.subr.mxu0 %v802
    %1865 = vmatpush1.msra.mxu0 %v801
    %1866 = vmatprep.subr.mxu0 %v804
    %1867 = vmatpush1.msra.mxu0 %v803
    %1868 = vmatprep.subr.mxu0 %v806
    %1869 = vmatpush1.msra.mxu0 %v805
    %1870 = vmatprep.subr.mxu0 %v808
    %1871 = vmatpush1.msra.mxu0 %v807
    %1872 = vmatprep.subr.mxu0 %v810
    %1873 = vmatpush1.msra.mxu0 %v809
    %1874 = vmatprep.subr.mxu0 %v812
    %1875 = vmatpush1.msra.mxu0 %v811
    %1876 = vmatprep.subr.mxu0 %v814
    %1877 = vmatpush1.msra.mxu0 %v813
    %1878 = vmatprep.subr.mxu0 %v816
    %1879 = vmatpush1.msra.mxu0 %v815
    %1880 = vmatprep.subr.mxu0 0.0
    %1881 = vmatpush1.msra.mxu0 0.0
    %1882 = vmatprep.subr.mxu0 0.0
    %1883 = vmatpush1.msra.mxu0 0.0
    %1884 = vmatprep.subr.mxu0 0.0
    %1885 = vmatpush1.msra.mxu0 0.0
    %1886 = vmatprep.subr.mxu0 0.0
    %1887 = vmatpush1.msra.mxu0 0.0
    %1888 = vmatprep.subr.mxu0 0.0
    %1889 = vmatpush1.msra.mxu0 0.0
    %1890 = vmatprep.subr.mxu0 0.0
    %1891 = vmatpush1.msra.mxu0 0.0
    %1892 = vmatprep.subr.mxu0 0.0
    %1893 = vmatpush1.msra.mxu0 0.0
    %1894 = vmatprep.subr.mxu0 0.0
    %1895 = vmatpush1.msra.mxu0 0.0
    %1896 = vmatprep.subr.mxu0 0.0
    %1897 = vmatpush1.msra.mxu0 0.0
    %1898 = vmatprep.subr.mxu0 0.0
    %1899 = vmatpush1.msra.mxu0 0.0
    %1900 = vmatprep.subr.mxu0 0.0
    %1901 = vmatpush1.msra.mxu0 0.0
    %1902 = vmatprep.subr.mxu0 0.0
    %1903 = vmatpush1.msra.mxu0 0.0
    %1904 = vmatprep.subr.mxu0 0.0
    %1905 = vmatpush1.msra.mxu0 0.0
    %1906 = vmatprep.subr.mxu0 0.0
    %1907 = vmatpush1.msra.mxu0 0.0
    %1908 = vmatprep.subr.mxu0 0.0
    %1909 = vmatpush1.msra.mxu0 0.0
    %1910 = vmatprep.subr.mxu0 0.0
    %1911 = vmatpush1.msra.mxu0 0.0
    %1912 = vmatprep.subr.mxu0 0.0
    %1913 = vmatpush1.msra.mxu0 0.0
    %1914 = vmatprep.subr.mxu0 0.0
    %1915 = vmatpush1.msra.mxu0 0.0
    %1916 = vmatprep.subr.mxu0 0.0
    %1917 = vmatpush1.msra.mxu0 0.0
    %1918 = vmatprep.subr.mxu0 0.0
    %1919 = vmatpush1.msra.mxu0 0.0
    %1920 = vmatprep.subr.mxu0 0.0
    %1921 = vmatpush1.msra.mxu0 0.0
    %1922 = vmatprep.subr.mxu0 0.0
    %1923 = vmatpush1.msra.mxu0 0.0
    %1924 = vmatprep.subr.mxu0 0.0
    %1925 = vmatpush1.msra.mxu0 0.0
    %1926 = vmatprep.subr.mxu0 0.0
    %1927 = vmatpush1.msra.mxu0 0.0
    %1928 = vmatprep.mubr.f32.mxu0 0.0
    %1929 = vmatmul.mubr.f32.gmra.mrb[0].mxu0 %v1010
    %v1930 = vpop.f32.mrb[0].mxu0
    %v1931 = vadd.f32 %v1860, %v1930
    %v1932 = vpop.f32.mrb[0].mxu0
    %v1933 = vadd.f32 %v1862, %v1932
    %1934 = vdwg.mxu0
    %v1935 = vmax.f32 %v1931, 0.0
    %v1936 = vmax.f32 %v1933, 0.0
    %v1938 = vlaneseq
    %v1939 = vshrl.u32 %v1938, 7
    %v1940 = vsub.s32 0, %v1939
    %v1941 = vrot.slane %v850, %v1940
    %1943 = vmatprep.subr.mxu0 0.0
    %1944 = vmatpush1.msra.mxu0 %v818
    %1945 = vmatprep.subr.mxu0 0.0
    %1946 = vmatpush1.msra.mxu0 %v819
    %1947 = vmatprep.subr.mxu0 0.0
    %1948 = vmatpush1.msra.mxu0 %v820
    %1949 = vmatprep.subr.mxu0 0.0
    %1950 = vmatpush1.msra.mxu0 %v821
    %1951 = vmatprep.subr.mxu0 0.0
    %1952 = vmatpush1.msra.mxu0 %v822
    %1953 = vmatprep.subr.mxu0 0.0
    %1954 = vmatpush1.msra.mxu0 %v823
    %1955 = vmatprep.subr.mxu0 0.0
    %1956 = vmatpush1.msra.mxu0 %v824
    %1957 = vmatprep.subr.mxu0 0.0
    %1958 = vmatpush1.msra.mxu0 %v825
    %1959 = vmatprep.subr.mxu0 0.0
    %1960 = vmatpush1.msra.mxu0 %v826
    %1961 = vmatprep.subr.mxu0 0.0
    %1962 = vmatpush1.msra.mxu0 %v827
    %1963 = vmatprep.subr.mxu0 0.0
    %1964 = vmatpush1.msra.mxu0 %v828
    %1965 = vmatprep.subr.mxu0 0.0
    %1966 = vmatpush1.msra.mxu0 %v829
    %1967 = vmatprep.subr.mxu0 0.0
    %1968 = vmatpush1.msra.mxu0 %v830
    %1969 = vmatprep.subr.mxu0 0.0
    %1970 = vmatpush1.msra.mxu0 %v831
    %1971 = vmatprep.subr.mxu0 0.0
    %1972 = vmatpush1.msra.mxu0 %v832
    %1973 = vmatprep.subr.mxu0 0.0
    %1974 = vmatpush1.msra.mxu0 %v833
    %1975 = vmatprep.subr.mxu0 0.0
    %1976 = vmatpush1.msra.mxu0 %v834
    %1977 = vmatprep.subr.mxu0 0.0
    %1978 = vmatpush1.msra.mxu0 %v835
    %1979 = vmatprep.subr.mxu0 0.0
    %1980 = vmatpush1.msra.mxu0 %v836
    %1981 = vmatprep.subr.mxu0 0.0
    %1982 = vmatpush1.msra.mxu0 %v837
    %1983 = vmatprep.subr.mxu0 0.0
    %1984 = vmatpush1.msra.mxu0 %v838
    %1985 = vmatprep.subr.mxu0 0.0
    %1986 = vmatpush1.msra.mxu0 %v839
    %1987 = vmatprep.subr.mxu0 0.0
    %1988 = vmatpush1.msra.mxu0 %v840
    %1989 = vmatprep.subr.mxu0 0.0
    %1990 = vmatpush1.msra.mxu0 %v841
    %1991 = vmatprep.subr.mxu0 0.0
    %1992 = vmatpush1.msra.mxu0 %v842
    %1993 = vmatprep.subr.mxu0 0.0
    %1994 = vmatpush1.msra.mxu0 %v843
    %1995 = vmatprep.subr.mxu0 0.0
    %1996 = vmatpush1.msra.mxu0 %v844
    %1997 = vmatprep.subr.mxu0 0.0
    %1998 = vmatpush1.msra.mxu0 %v845
    %1999 = vmatprep.subr.mxu0 0.0
    %2000 = vmatpush1.msra.mxu0 %v846
    %2001 = vmatprep.subr.mxu0 0.0
    %2002 = vmatpush1.msra.mxu0 %v847
    %2003 = vmatprep.subr.mxu0 0.0
    %2004 = vmatpush1.msra.mxu0 %v848
    %2005 = vmatprep.subr.mxu0 0.0
    %2006 = vmatpush1.msra.mxu0 %v849
    %2007 = vmatprep.mubr.f32.mxu0 %v1936
    %2008 = vmatmul.mubr.f32.gmra.mrb[0].mxu0 %v1935
    %v2009 = vpop.f32.mrb[0].mxu0
    %v2010 = vadd.f32 %v1941, %v2009
    %v2011 = vpop.f32.mrb[0].mxu0
    %2012 = vdwg.mxu0
    %v2013 = vmul.f32 %v2010, 0.5
    %v2014 = vmul.f32 %v2010, 0.044715
    %v2015 = vmul.f32 %v2014, %v2010
    %v2016 = vmul.f32 %v2015, %v2010
    %v2017 = vadd.f32 %v2010, %v2016
    %v2018 = vmul.f32 %v2017, 0.7978846
    %v2019 = vtanh.pop %v2018
    %v2020 = vadd.f32 %v2019, 1.0
    %v2021 = vmul.f32 %v2013, %v2020
    %v2022 = vld [vmem:[%s1] sm:$0xff]
    %v2023 = vld [vmem:[%s1 + $0x8] sm:$0xff]
    %v2024 = vld [vmem:[%s1 + $0x10] sm:$0xff]
    %v2025 = vld [vmem:[%s1 + $0x18] sm:$0xff]
    %v2026 = vld [vmem:[%s1 + $0x20] sm:$0xff]
    %v2027 = vld [vmem:[%s1 + $0x28] sm:$0xff]
    %v2028 = vld [vmem:[%s1 + $0x30] sm:$0x3]
    %v2036 = vcombine.high %v2022, %v2022
    %v2038 = vunpack.c.l.s4 1983009808
    %v2039 = vunpack.c.0.s8 %v2038
    %v2040 = vlaneseq
    %v2041 = vshrl.u32 %v2040, 7
    %v2042 = vsub.s32 %v2039, %v2041
    %v2043 = vrot.slane %v2022, %v2042
    %v2045 = vunpack.c.l.s4 1983009808
    %v2046 = vunpack.c.0.s8 %v2045
    %v2047 = vlaneseq
    %v2048 = vshrl.u32 %v2047, 7
    %v2049 = vsub.s32 %v2046, %v2048
    %v2050 = vrot.slane %v2036, %v2049
    %v2051 = vcombine.high %v2043, %v2043
    %v2052 = vcombine.high %v2050, %v2050
    %v2053 = vcombine.high %v2023, %v2023
    %v2055 = vunpack.c.l.s4 1983009808
    %v2056 = vunpack.c.0.s8 %v2055
    %v2057 = vlaneseq
    %v2058 = vshrl.u32 %v2057, 7
    %v2059 = vsub.s32 %v2056, %v2058
    %v2060 = vrot.slane %v2023, %v2059
    %v2062 = vunpack.c.l.s4 1983009808
    %v2063 = vunpack.c.0.s8 %v2062
    %v2064 = vlaneseq
    %v2065 = vshrl.u32 %v2064, 7
    %v2066 = vsub.s32 %v2063, %v2065
    %v2067 = vrot.slane %v2053, %v2066
    %v2068 = vcombine.high %v2060, %v2060
    %v2069 = vcombine.high %v2067, %v2067
    %v2070 = vcombine.high %v2024, %v2024
    %v2072 = vunpack.c.l.s4 1983009808
    %v2073 = vunpack.c.0.s8 %v2072
    %v2074 = vlaneseq
    %v2075 = vshrl.u32 %v2074, 7
    %v2076 = vsub.s32 %v2073, %v2075
    %v2077 = vrot.slane %v2024, %v2076
    %v2079 = vunpack.c.l.s4 1983009808
    %v2080 = vunpack.c.0.s8 %v2079
    %v2081 = vlaneseq
    %v2082 = vshrl.u32 %v2081, 7
    %v2083 = vsub.s32 %v2080, %v2082
    %v2084 = vrot.slane %v2070, %v2083
    %v2085 = vcombine.high %v2077, %v2077
    %v2086 = vcombine.high %v2084, %v2084
    %v2087 = vcombine.high %v2025, %v2025
    %v2089 = vunpack.c.l.s4 1983009808
    %v2090 = vunpack.c.0.s8 %v2089
    %v2091 = vlaneseq
    %v2092 = vshrl.u32 %v2091, 7
    %v2093 = vsub.s32 %v2090, %v2092
    %v2094 = vrot.slane %v2025, %v2093
    %v2096 = vunpack.c.l.s4 1983009808
    %v2097 = vunpack.c.0.s8 %v2096
    %v2098 = vlaneseq
    %v2099 = vshrl.u32 %v2098, 7
    %v2100 = vsub.s32 %v2097, %v2099
    %v2101 = vrot.slane %v2087, %v2100
    %v2102 = vcombine.high %v2094, %v2094
    %v2103 = vcombine.high %v2101, %v2101
    %v2104 = vcombine.high %v2026, %v2026
    %v2106 = vunpack.c.l.s4 1983009808
    %v2107 = vunpack.c.0.s8 %v2106
    %v2108 = vlaneseq
    %v2109 = vshrl.u32 %v2108, 7
    %v2110 = vsub.s32 %v2107, %v2109
    %v2111 = vrot.slane %v2026, %v2110
    %v2113 = vunpack.c.l.s4 1983009808
    %v2114 = vunpack.c.0.s8 %v2113
    %v2115 = vlaneseq
    %v2116 = vshrl.u32 %v2115, 7
    %v2117 = vsub.s32 %v2114, %v2116
    %v2118 = vrot.slane %v2104, %v2117
    %v2119 = vcombine.high %v2111, %v2111
    %v2120 = vcombine.high %v2118, %v2118
    %v2121 = vcombine.high %v2027, %v2027
    %v2123 = vunpack.c.l.s4 1983009808
    %v2124 = vunpack.c.0.s8 %v2123
    %v2125 = vlaneseq
    %v2126 = vshrl.u32 %v2125, 7
    %v2127 = vsub.s32 %v2124, %v2126
    %v2128 = vrot.slane %v2027, %v2127
    %v2130 = vunpack.c.l.s4 1983009808
    %v2131 = vunpack.c.0.s8 %v2130
    %v2132 = vlaneseq
    %v2133 = vshrl.u32 %v2132, 7
    %v2134 = vsub.s32 %v2131, %v2133
    %v2135 = vrot.slane %v2121, %v2134
    %v2136 = vcombine.high %v2128, %v2128
    %v2137 = vcombine.high %v2135, %v2135
    %v2139 = vunpack.c.l.s4 1983009808
    %v2140 = vunpack.c.0.s8 %v2139
    %v2141 = vlaneseq
    %v2142 = vshrl.u32 %v2141, 7
    %v2143 = vsub.s32 %v2140, %v2142
    %v2144 = vrot.slane %v2028, %v2143
    %v2169 = vsel %vm1009, %v2144, 0
    %2171 = vmatprep.subr.mxu0 %v34
    %2172 = vmatpush1.msra.mxu0 %v33
    %2173 = vmatprep.subr.mxu0 %v36
    %2174 = vmatpush1.msra.mxu0 %v35
    %2175 = vmatprep.subr.mxu0 %v38
    %2176 = vmatpush1.msra.mxu0 %v37
    %2177 = vmatprep.subr.mxu0 %v40
    %2178 = vmatpush1.msra.mxu0 %v39
    %2179 = vmatprep.subr.mxu0 %v42
    %2180 = vmatpush1.msra.mxu0 %v41
    %2181 = vmatprep.subr.mxu0 %v44
    %2182 = vmatpush1.msra.mxu0 %v43
    %2183 = vmatprep.subr.mxu0 %v46
    %2184 = vmatpush1.msra.mxu0 %v45
    %2185 = vmatprep.subr.mxu0 %v48
    %2186 = vmatpush1.msra.mxu0 %v47
    %2187 = vmatprep.subr.mxu0 %v50
    %2188 = vmatpush1.msra.mxu0 %v49
    %2189 = vmatprep.subr.mxu0 %v52
    %2190 = vmatpush1.msra.mxu0 %v51
    %2191 = vmatprep.subr.mxu0 %v54
    %2192 = vmatpush1.msra.mxu0 %v53
    %2193 = vmatprep.subr.mxu0 %v56
    %2194 = vmatpush1.msra.mxu0 %v55
    %2195 = vmatprep.subr.mxu0 %v58
    %2196 = vmatpush1.msra.mxu0 %v57
    %2197 = vmatprep.subr.mxu0 %v60
    %2198 = vmatpush1.msra.mxu0 %v59
    %2199 = vmatprep.subr.mxu0 %v62
    %2200 = vmatpush1.msra.mxu0 %v61
    %2201 = vmatprep.subr.mxu0 %v64
    %2202 = vmatpush1.msra.mxu0 %v63
    %2203 = vmatprep.subr.mxu0 %v66
    %2204 = vmatpush1.msra.mxu0 %v65
    %2205 = vmatprep.subr.mxu0 %v68
    %2206 = vmatpush1.msra.mxu0 %v67
    %2207 = vmatprep.subr.mxu0 %v70
    %2208 = vmatpush1.msra.mxu0 %v69
    %2209 = vmatprep.subr.mxu0 %v72
    %2210 = vmatpush1.msra.mxu0 %v71
    %2211 = vmatprep.subr.mxu0 %v74
    %2212 = vmatpush1.msra.mxu0 %v73
    %2213 = vmatprep.subr.mxu0 %v76
    %2214 = vmatpush1.msra.mxu0 %v75
    %2215 = vmatprep.subr.mxu0 %v78
    %2216 = vmatpush1.msra.mxu0 %v77
    %2217 = vmatprep.subr.mxu0 %v80
    %2218 = vmatpush1.msra.mxu0 %v79
    %2219 = vmatprep.subr.mxu0 %v82
    %2220 = vmatpush1.msra.mxu0 %v81
    %2221 = vmatprep.subr.mxu0 %v84
    %2222 = vmatpush1.msra.mxu0 %v83
    %2223 = vmatprep.subr.mxu0 %v86
    %2224 = vmatpush1.msra.mxu0 %v85
    %2225 = vmatprep.subr.mxu0 %v88
    %2226 = vmatpush1.msra.mxu0 %v87
    %2227 = vmatprep.subr.mxu0 %v90
    %2228 = vmatpush1.msra.mxu0 %v89
    %2229 = vmatprep.subr.mxu0 %v92
    %2230 = vmatpush1.msra.mxu0 %v91
    %2231 = vmatprep.subr.mxu0 %v94
    %2232 = vmatpush1.msra.mxu0 %v93
    %2233 = vmatprep.subr.mxu0 %v96
    %2234 = vmatpush1.msra.mxu0 %v95
    %2235 = vmatprep.mubr.f32.mxu0 %v2051
    %2236 = vmatmul.mubr.f32.gmra.mrb[0].mxu0 %v2043
    %v2237 = vpop.f32.mrb[0].mxu0
    %v2238 = vadd.f32 %v862, %v2237
    %v2239 = vpop.f32.mrb[0].mxu0
    %v2240 = vadd.f32 %v866, %v2239
    %2241 = vdwg.mxu0
    %2242 = vmatprep.subr.mxu0 %v98
    %2243 = vmatpush1.msra.mxu0 %v97
    %2244 = vmatprep.subr.mxu0 %v100
    %2245 = vmatpush1.msra.mxu0 %v99
    %2246 = vmatprep.subr.mxu0 %v102
    %2247 = vmatpush1.msra.mxu0 %v101
    %2248 = vmatprep.subr.mxu0 %v104
    %2249 = vmatpush1.msra.mxu0 %v103
    %2250 = vmatprep.subr.mxu0 %v106
    %2251 = vmatpush1.msra.mxu0 %v105
    %2252 = vmatprep.subr.mxu0 %v108
    %2253 = vmatpush1.msra.mxu0 %v107
    %2254 = vmatprep.subr.mxu0 %v110
    %2255 = vmatpush1.msra.mxu0 %v109
    %2256 = vmatprep.subr.mxu0 %v112
    %2257 = vmatpush1.msra.mxu0 %v111
    %2258 = vmatprep.subr.mxu0 %v114
    %2259 = vmatpush1.msra.mxu0 %v113
    %2260 = vmatprep.subr.mxu0 %v116
    %2261 = vmatpush1.msra.mxu0 %v115
    %2262 = vmatprep.subr.mxu0 %v118
    %2263 = vmatpush1.msra.mxu0 %v117
    %2264 = vmatprep.subr.mxu0 %v120
    %2265 = vmatpush1.msra.mxu0 %v119
    %2266 = vmatprep.subr.mxu0 %v122
    %2267 = vmatpush1.msra.mxu0 %v121
    %2268 = vmatprep.subr.mxu0 %v124
    %2269 = vmatpush1.msra.mxu0 %v123
    %2270 = vmatprep.subr.mxu0 %v126
    %2271 = vmatpush1.msra.mxu0 %v125
    %2272 = vmatprep.subr.mxu0 %v128
    %2273 = vmatpush1.msra.mxu0 %v127
    %2274 = vmatprep.subr.mxu0 %v130
    %2275 = vmatpush1.msra.mxu0 %v129
    %2276 = vmatprep.subr.mxu0 %v132
    %2277 = vmatpush1.msra.mxu0 %v131
    %2278 = vmatprep.subr.mxu0 %v134
    %2279 = vmatpush1.msra.mxu0 %v133
    %2280 = vmatprep.subr.mxu0 %v136
    %2281 = vmatpush1.msra.mxu0 %v135
    %2282 = vmatprep.subr.mxu0 %v138
    %2283 = vmatpush1.msra.mxu0 %v137
    %2284 = vmatprep.subr.mxu0 %v140
    %2285 = vmatpush1.msra.mxu0 %v139
    %2286 = vmatprep.subr.mxu0 %v142
    %2287 = vmatpush1.msra.mxu0 %v141
    %2288 = vmatprep.subr.mxu0 %v144
    %2289 = vmatpush1.msra.mxu0 %v143
    %2290 = vmatprep.subr.mxu0 %v146
    %2291 = vmatpush1.msra.mxu0 %v145
    %2292 = vmatprep.subr.mxu0 %v148
    %2293 = vmatpush1.msra.mxu0 %v147
    %2294 = vmatprep.subr.mxu0 %v150
    %2295 = vmatpush1.msra.mxu0 %v149
    %2296 = vmatprep.subr.mxu0 %v152
    %2297 = vmatpush1.msra.mxu0 %v151
    %2298 = vmatprep.subr.mxu0 %v154
    %2299 = vmatpush1.msra.mxu0 %v153
    %2300 = vmatprep.subr.mxu0 %v156
    %2301 = vmatpush1.msra.mxu0 %v155
    %2302 = vmatprep.subr.mxu0 %v158
    %2303 = vmatpush1.msra.mxu0 %v157
    %2304 = vmatprep.subr.mxu0 %v160
    %2305 = vmatpush1.msra.mxu0 %v159
    %2306 = vmatprep.mubr.f32.mxu0 %v2052
    %2307 = vmatmul.mubr.f32.gmra.mrb[0].mxu0 %v2050
    %v2308 = vpop.f32.mrb[0].mxu0
    %v2309 = vadd.f32 %v2238, %v2308
    %v2310 = vpop.f32.mrb[0].mxu0
    %v2311 = vadd.f32 %v2240, %v2310
    %2312 = vdwg.mxu0
    %2313 = vmatprep.subr.mxu0 %v162
    %2314 = vmatpush1.msra.mxu0 %v161
    %2315 = vmatprep.subr.mxu0 %v164
    %2316 = vmatpush1.msra.mxu0 %v163
    %2317 = vmatprep.subr.mxu0 %v166
    %2318 = vmatpush1.msra.mxu0 %v165
    %2319 = vmatprep.subr.mxu0 %v168
    %2320 = vmatpush1.msra.mxu0 %v167
    %2321 = vmatprep.subr.mxu0 %v170
    %2322 = vmatpush1.msra.mxu0 %v169
    %2323 = vmatprep.subr.mxu0 %v172
    %2324 = vmatpush1.msra.mxu0 %v171
    %2325 = vmatprep.subr.mxu0 %v174
    %2326 = vmatpush1.msra.mxu0 %v173
    %2327 = vmatprep.subr.mxu0 %v176
    %2328 = vmatpush1.msra.mxu0 %v175
    %2329 = vmatprep.subr.mxu0 %v178
    %2330 = vmatpush1.msra.mxu0 %v177
    %2331 = vmatprep.subr.mxu0 %v180
    %2332 = vmatpush1.msra.mxu0 %v179
    %2333 = vmatprep.subr.mxu0 %v182
    %2334 = vmatpush1.msra.mxu0 %v181
    %2335 = vmatprep.subr.mxu0 %v184
    %2336 = vmatpush1.msra.mxu0 %v183
    %2337 = vmatprep.subr.mxu0 %v186
    %2338 = vmatpush1.msra.mxu0 %v185
    %2339 = vmatprep.subr.mxu0 %v188
    %2340 = vmatpush1.msra.mxu0 %v187
    %2341 = vmatprep.subr.mxu0 %v190
    %2342 = vmatpush1.msra.mxu0 %v189
    %2343 = vmatprep.subr.mxu0 %v192
    %2344 = vmatpush1.msra.mxu0 %v191
    %2345 = vmatprep.subr.mxu0 %v194
    %2346 = vmatpush1.msra.mxu0 %v193
    %2347 = vmatprep.subr.mxu0 %v196
    %2348 = vmatpush1.msra.mxu0 %v195
    %2349 = vmatprep.subr.mxu0 %v198
    %2350 = vmatpush1.msra.mxu0 %v197
    %2351 = vmatprep.subr.mxu0 %v200
    %2352 = vmatpush1.msra.mxu0 %v199
    %2353 = vmatprep.subr.mxu0 %v202
    %2354 = vmatpush1.msra.mxu0 %v201
    %2355 = vmatprep.subr.mxu0 %v204
    %2356 = vmatpush1.msra.mxu0 %v203
    %2357 = vmatprep.subr.mxu0 %v206
    %2358 = vmatpush1.msra.mxu0 %v205
    %2359 = vmatprep.subr.mxu0 %v208
    %2360 = vmatpush1.msra.mxu0 %v207
    %2361 = vmatprep.subr.mxu0 %v210
    %2362 = vmatpush1.msra.mxu0 %v209
    %2363 = vmatprep.subr.mxu0 %v212
    %2364 = vmatpush1.msra.mxu0 %v211
    %2365 = vmatprep.subr.mxu0 %v214
    %2366 = vmatpush1.msra.mxu0 %v213
    %2367 = vmatprep.subr.mxu0 %v216
    %2368 = vmatpush1.msra.mxu0 %v215
    %2369 = vmatprep.subr.mxu0 %v218
    %2370 = vmatpush1.msra.mxu0 %v217
    %2371 = vmatprep.subr.mxu0 %v220
    %2372 = vmatpush1.msra.mxu0 %v219
    %2373 = vmatprep.subr.mxu0 %v222
    %2374 = vmatpush1.msra.mxu0 %v221
    %2375 = vmatprep.subr.mxu0 %v224
    %2376 = vmatpush1.msra.mxu0 %v223
    %2377 = vmatprep.mubr.f32.mxu0 %v2068
    %2378 = vmatmul.mubr.f32.gmra.mrb[0].mxu0 %v2060
    %v2379 = vpop.f32.mrb[0].mxu0
    %v2380 = vadd.f32 %v2309, %v2379
    %v2381 = vpop.f32.mrb[0].mxu0
    %v2382 = vadd.f32 %v2311, %v2381
    %2383 = vdwg.mxu0
    %2384 = vmatprep.subr.mxu0 %v226
    %2385 = vmatpush1.msra.mxu0 %v225
    %2386 = vmatprep.subr.mxu0 %v228
    %2387 = vmatpush1.msra.mxu0 %v227
    %2388 = vmatprep.subr.mxu0 %v230
    %2389 = vmatpush1.msra.mxu0 %v229
    %2390 = vmatprep.subr.mxu0 %v232
    %2391 = vmatpush1.msra.mxu0 %v231
    %2392 = vmatprep.subr.mxu0 %v234
    %2393 = vmatpush1.msra.mxu0 %v233
    %2394 = vmatprep.subr.mxu0 %v236
    %2395 = vmatpush1.msra.mxu0 %v235
    %2396 = vmatprep.subr.mxu0 %v238
    %2397 = vmatpush1.msra.mxu0 %v237
    %2398 = vmatprep.subr.mxu0 %v240
    %2399 = vmatpush1.msra.mxu0 %v239
    %2400 = vmatprep.subr.mxu0 %v242
    %2401 = vmatpush1.msra.mxu0 %v241
    %2402 = vmatprep.subr.mxu0 %v244
    %2403 = vmatpush1.msra.mxu0 %v243
    %2404 = vmatprep.subr.mxu0 %v246
    %2405 = vmatpush1.msra.mxu0 %v245
    %2406 = vmatprep.subr.mxu0 %v248
    %2407 = vmatpush1.msra.mxu0 %v247
    %2408 = vmatprep.subr.mxu0 %v250
    %2409 = vmatpush1.msra.mxu0 %v249
    %2410 = vmatprep.subr.mxu0 %v252
    %2411 = vmatpush1.msra.mxu0 %v251
    %2412 = vmatprep.subr.mxu0 %v254
    %2413 = vmatpush1.msra.mxu0 %v253
    %2414 = vmatprep.subr.mxu0 %v256
    %2415 = vmatpush1.msra.mxu0 %v255
    %2416 = vmatprep.subr.mxu0 %v258
    %2417 = vmatpush1.msra.mxu0 %v257
    %2418 = vmatprep.subr.mxu0 %v260
    %2419 = vmatpush1.msra.mxu0 %v259
    %2420 = vmatprep.subr.mxu0 %v262
    %2421 = vmatpush1.msra.mxu0 %v261
    %2422 = vmatprep.subr.mxu0 %v264
    %2423 = vmatpush1.msra.mxu0 %v263
    %2424 = vmatprep.subr.mxu0 %v266
    %2425 = vmatpush1.msra.mxu0 %v265
    %2426 = vmatprep.subr.mxu0 %v268
    %2427 = vmatpush1.msra.mxu0 %v267
    %2428 = vmatprep.subr.mxu0 %v270
    %2429 = vmatpush1.msra.mxu0 %v269
    %2430 = vmatprep.subr.mxu0 %v272
    %2431 = vmatpush1.msra.mxu0 %v271
    %2432 = vmatprep.subr.mxu0 %v274
    %2433 = vmatpush1.msra.mxu0 %v273
    %2434 = vmatprep.subr.mxu0 %v276
    %2435 = vmatpush1.msra.mxu0 %v275
    %2436 = vmatprep.subr.mxu0 %v278
    %2437 = vmatpush1.msra.mxu0 %v277
    %2438 = vmatprep.subr.mxu0 %v280
    %2439 = vmatpush1.msra.mxu0 %v279
    %2440 = vmatprep.subr.mxu0 %v282
    %2441 = vmatpush1.msra.mxu0 %v281
    %2442 = vmatprep.subr.mxu0 %v284
    %2443 = vmatpush1.msra.mxu0 %v283
    %2444 = vmatprep.subr.mxu0 %v286
    %2445 = vmatpush1.msra.mxu0 %v285
    %2446 = vmatprep.subr.mxu0 %v288
    %2447 = vmatpush1.msra.mxu0 %v287
    %2448 = vmatprep.mubr.f32.mxu0 %v2069
    %2449 = vmatmul.mubr.f32.gmra.mrb[0].mxu0 %v2067
    %v2450 = vpop.f32.mrb[0].mxu0
    %v2451 = vadd.f32 %v2380, %v2450
    %v2452 = vpop.f32.mrb[0].mxu0
    %v2453 = vadd.f32 %v2382, %v2452
    %2454 = vdwg.mxu0
    %2455 = vmatprep.subr.mxu0 %v290
    %2456 = vmatpush1.msra.mxu0 %v289
    %2457 = vmatprep.subr.mxu0 %v292
    %2458 = vmatpush1.msra.mxu0 %v291
    %2459 = vmatprep.subr.mxu0 %v294
    %2460 = vmatpush1.msra.mxu0 %v293
    %2461 = vmatprep.subr.mxu0 %v296
    %2462 = vmatpush1.msra.mxu0 %v295
    %2463 = vmatprep.subr.mxu0 %v298
    %2464 = vmatpush1.msra.mxu0 %v297
    %2465 = vmatprep.subr.mxu0 %v300
    %2466 = vmatpush1.msra.mxu0 %v299
    %2467 = vmatprep.subr.mxu0 %v302
    %2468 = vmatpush1.msra.mxu0 %v301
    %2469 = vmatprep.subr.mxu0 %v304
    %2470 = vmatpush1.msra.mxu0 %v303
    %2471 = vmatprep.subr.mxu0 %v306
    %2472 = vmatpush1.msra.mxu0 %v305
    %2473 = vmatprep.subr.mxu0 %v308
    %2474 = vmatpush1.msra.mxu0 %v307
    %2475 = vmatprep.subr.mxu0 %v310
    %2476 = vmatpush1.msra.mxu0 %v309
    %2477 = vmatprep.subr.mxu0 %v312
    %2478 = vmatpush1.msra.mxu0 %v311
    %2479 = vmatprep.subr.mxu0 %v314
    %2480 = vmatpush1.msra.mxu0 %v313
    %2481 = vmatprep.subr.mxu0 %v316
    %2482 = vmatpush1.msra.mxu0 %v315
    %2483 = vmatprep.subr.mxu0 %v318
    %2484 = vmatpush1.msra.mxu0 %v317
    %2485 = vmatprep.subr.mxu0 %v320
    %2486 = vmatpush1.msra.mxu0 %v319
    %2487 = vmatprep.subr.mxu0 %v322
    %2488 = vmatpush1.msra.mxu0 %v321
    %2489 = vmatprep.subr.mxu0 %v324
    %2490 = vmatpush1.msra.mxu0 %v323
    %2491 = vmatprep.subr.mxu0 %v326
    %2492 = vmatpush1.msra.mxu0 %v325
    %2493 = vmatprep.subr.mxu0 %v328
    %2494 = vmatpush1.msra.mxu0 %v327
    %2495 = vmatprep.subr.mxu0 %v330
    %2496 = vmatpush1.msra.mxu0 %v329
    %2497 = vmatprep.subr.mxu0 %v332
    %2498 = vmatpush1.msra.mxu0 %v331
    %2499 = vmatprep.subr.mxu0 %v334
    %2500 = vmatpush1.msra.mxu0 %v333
    %2501 = vmatprep.subr.mxu0 %v336
    %2502 = vmatpush1.msra.mxu0 %v335
    %2503 = vmatprep.subr.mxu0 %v338
    %2504 = vmatpush1.msra.mxu0 %v337
    %2505 = vmatprep.subr.mxu0 %v340
    %2506 = vmatpush1.msra.mxu0 %v339
    %2507 = vmatprep.subr.mxu0 %v342
    %2508 = vmatpush1.msra.mxu0 %v341
    %2509 = vmatprep.subr.mxu0 %v344
    %2510 = vmatpush1.msra.mxu0 %v343
    %2511 = vmatprep.subr.mxu0 %v346
    %2512 = vmatpush1.msra.mxu0 %v345
    %2513 = vmatprep.subr.mxu0 %v348
    %2514 = vmatpush1.msra.mxu0 %v347
    %2515 = vmatprep.subr.mxu0 %v350
    %2516 = vmatpush1.msra.mxu0 %v349
    %2517 = vmatprep.subr.mxu0 %v352
    %2518 = vmatpush1.msra.mxu0 %v351
    %2519 = vmatprep.mubr.f32.mxu0 %v2085
    %2520 = vmatmul.mubr.f32.gmra.mrb[0].mxu0 %v2077
    %v2521 = vpop.f32.mrb[0].mxu0
    %v2522 = vadd.f32 %v2451, %v2521
    %v2523 = vpop.f32.mrb[0].mxu0
    %v2524 = vadd.f32 %v2453, %v2523
    %2525 = vdwg.mxu0
    %2526 = vmatprep.subr.mxu0 %v354
    %2527 = vmatpush1.msra.mxu0 %v353
    %2528 = vmatprep.subr.mxu0 %v356
    %2529 = vmatpush1.msra.mxu0 %v355
    %2530 = vmatprep.subr.mxu0 %v358
    %2531 = vmatpush1.msra.mxu0 %v357
    %2532 = vmatprep.subr.mxu0 %v360
    %2533 = vmatpush1.msra.mxu0 %v359
    %2534 = vmatprep.subr.mxu0 %v362
    %2535 = vmatpush1.msra.mxu0 %v361
    %2536 = vmatprep.subr.mxu0 %v364
    %2537 = vmatpush1.msra.mxu0 %v363
    %2538 = vmatprep.subr.mxu0 %v366
    %2539 = vmatpush1.msra.mxu0 %v365
    %2540 = vmatprep.subr.mxu0 %v368
    %2541 = vmatpush1.msra.mxu0 %v367
    %2542 = vmatprep.subr.mxu0 %v370
    %2543 = vmatpush1.msra.mxu0 %v369
    %2544 = vmatprep.subr.mxu0 %v372
    %2545 = vmatpush1.msra.mxu0 %v371
    %2546 = vmatprep.subr.mxu0 %v374
    %2547 = vmatpush1.msra.mxu0 %v373
    %2548 = vmatprep.subr.mxu0 %v376
    %2549 = vmatpush1.msra.mxu0 %v375
    %2550 = vmatprep.subr.mxu0 %v378
    %2551 = vmatpush1.msra.mxu0 %v377
    %2552 = vmatprep.subr.mxu0 %v380
    %2553 = vmatpush1.msra.mxu0 %v379
    %2554 = vmatprep.subr.mxu0 %v382
    %2555 = vmatpush1.msra.mxu0 %v381
    %2556 = vmatprep.subr.mxu0 %v384
    %2557 = vmatpush1.msra.mxu0 %v383
    %2558 = vmatprep.subr.mxu0 %v386
    %2559 = vmatpush1.msra.mxu0 %v385
    %2560 = vmatprep.subr.mxu0 %v388
    %2561 = vmatpush1.msra.mxu0 %v387
    %2562 = vmatprep.subr.mxu0 %v390
    %2563 = vmatpush1.msra.mxu0 %v389
    %2564 = vmatprep.subr.mxu0 %v392
    %2565 = vmatpush1.msra.mxu0 %v391
    %2566 = vmatprep.subr.mxu0 %v394
    %2567 = vmatpush1.msra.mxu0 %v393
    %2568 = vmatprep.subr.mxu0 %v396
    %2569 = vmatpush1.msra.mxu0 %v395
    %2570 = vmatprep.subr.mxu0 %v398
    %2571 = vmatpush1.msra.mxu0 %v397
    %2572 = vmatprep.subr.mxu0 %v400
    %2573 = vmatpush1.msra.mxu0 %v399
    %2574 = vmatprep.subr.mxu0 %v402
    %2575 = vmatpush1.msra.mxu0 %v401
    %2576 = vmatprep.subr.mxu0 %v404
    %2577 = vmatpush1.msra.mxu0 %v403
    %2578 = vmatprep.subr.mxu0 %v406
    %2579 = vmatpush1.msra.mxu0 %v405
    %2580 = vmatprep.subr.mxu0 %v408
    %2581 = vmatpush1.msra.mxu0 %v407
    %2582 = vmatprep.subr.mxu0 %v410
    %2583 = vmatpush1.msra.mxu0 %v409
    %2584 = vmatprep.subr.mxu0 %v412
    %2585 = vmatpush1.msra.mxu0 %v411
    %2586 = vmatprep.subr.mxu0 %v414
    %2587 = vmatpush1.msra.mxu0 %v413
    %2588 = vmatprep.subr.mxu0 %v416
    %2589 = vmatpush1.msra.mxu0 %v415
    %2590 = vmatprep.mubr.f32.mxu0 %v2086
    %2591 = vmatmul.mubr.f32.gmra.mrb[0].mxu0 %v2084
    %v2592 = vpop.f32.mrb[0].mxu0
    %v2593 = vadd.f32 %v2522, %v2592
    %v2594 = vpop.f32.mrb[0].mxu0
    %v2595 = vadd.f32 %v2524, %v2594
    %2596 = vdwg.mxu0
    %2597 = vmatprep.subr.mxu0 %v418
    %2598 = vmatpush1.msra.mxu0 %v417
    %2599 = vmatprep.subr.mxu0 %v420
    %2600 = vmatpush1.msra.mxu0 %v419
    %2601 = vmatprep.subr.mxu0 %v422
    %2602 = vmatpush1.msra.mxu0 %v421
    %2603 = vmatprep.subr.mxu0 %v424
    %2604 = vmatpush1.msra.mxu0 %v423
    %2605 = vmatprep.subr.mxu0 %v426
    %2606 = vmatpush1.msra.mxu0 %v425
    %2607 = vmatprep.subr.mxu0 %v428
    %2608 = vmatpush1.msra.mxu0 %v427
    %2609 = vmatprep.subr.mxu0 %v430
    %2610 = vmatpush1.msra.mxu0 %v429
    %2611 = vmatprep.subr.mxu0 %v432
    %2612 = vmatpush1.msra.mxu0 %v431
    %2613 = vmatprep.subr.mxu0 %v434
    %2614 = vmatpush1.msra.mxu0 %v433
    %2615 = vmatprep.subr.mxu0 %v436
    %2616 = vmatpush1.msra.mxu0 %v435
    %2617 = vmatprep.subr.mxu0 %v438
    %2618 = vmatpush1.msra.mxu0 %v437
    %2619 = vmatprep.subr.mxu0 %v440
    %2620 = vmatpush1.msra.mxu0 %v439
    %2621 = vmatprep.subr.mxu0 %v442
    %2622 = vmatpush1.msra.mxu0 %v441
    %2623 = vmatprep.subr.mxu0 %v444
    %2624 = vmatpush1.msra.mxu0 %v443
    %2625 = vmatprep.subr.mxu0 %v446
    %2626 = vmatpush1.msra.mxu0 %v445
    %2627 = vmatprep.subr.mxu0 %v448
    %2628 = vmatpush1.msra.mxu0 %v447
    %2629 = vmatprep.subr.mxu0 %v450
    %2630 = vmatpush1.msra.mxu0 %v449
    %2631 = vmatprep.subr.mxu0 %v452
    %2632 = vmatpush1.msra.mxu0 %v451
    %2633 = vmatprep.subr.mxu0 %v454
    %2634 = vmatpush1.msra.mxu0 %v453
    %2635 = vmatprep.subr.mxu0 %v456
    %2636 = vmatpush1.msra.mxu0 %v455
    %2637 = vmatprep.subr.mxu0 %v458
    %2638 = vmatpush1.msra.mxu0 %v457
    %2639 = vmatprep.subr.mxu0 %v460
    %2640 = vmatpush1.msra.mxu0 %v459
    %2641 = vmatprep.subr.mxu0 %v462
    %2642 = vmatpush1.msra.mxu0 %v461
    %2643 = vmatprep.subr.mxu0 %v464
    %2644 = vmatpush1.msra.mxu0 %v463
    %2645 = vmatprep.subr.mxu0 %v466
    %2646 = vmatpush1.msra.mxu0 %v465
    %2647 = vmatprep.subr.mxu0 %v468
    %2648 = vmatpush1.msra.mxu0 %v467
    %2649 = vmatprep.subr.mxu0 %v470
    %2650 = vmatpush1.msra.mxu0 %v469
    %2651 = vmatprep.subr.mxu0 %v472
    %2652 = vmatpush1.msra.mxu0 %v471
    %2653 = vmatprep.subr.mxu0 %v474
    %2654 = vmatpush1.msra.mxu0 %v473
    %2655 = vmatprep.subr.mxu0 %v476
    %2656 = vmatpush1.msra.mxu0 %v475
    %2657 = vmatprep.subr.mxu0 %v478
    %2658 = vmatpush1.msra.mxu0 %v477
    %2659 = vmatprep.subr.mxu0 %v480
    %2660 = vmatpush1.msra.mxu0 %v479
    %2661 = vmatprep.mubr.f32.mxu0 %v2102
    %2662 = vmatmul.mubr.f32.gmra.mrb[0].mxu0 %v2094
    %v2663 = vpop.f32.mrb[0].mxu0
    %v2664 = vadd.f32 %v2593, %v2663
    %v2665 = vpop.f32.mrb[0].mxu0
    %v2666 = vadd.f32 %v2595, %v2665
    %2667 = vdwg.mxu0
    %2668 = vmatprep.subr.mxu0 %v482
    %2669 = vmatpush1.msra.mxu0 %v481
    %2670 = vmatprep.subr.mxu0 %v484
    %2671 = vmatpush1.msra.mxu0 %v483
    %2672 = vmatprep.subr.mxu0 %v486
    %2673 = vmatpush1.msra.mxu0 %v485
    %2674 = vmatprep.subr.mxu0 %v488
    %2675 = vmatpush1.msra.mxu0 %v487
    %2676 = vmatprep.subr.mxu0 %v490
    %2677 = vmatpush1.msra.mxu0 %v489
    %2678 = vmatprep.subr.mxu0 %v492
    %2679 = vmatpush1.msra.mxu0 %v491
    %2680 = vmatprep.subr.mxu0 %v494
    %2681 = vmatpush1.msra.mxu0 %v493
    %2682 = vmatprep.subr.mxu0 %v496
    %2683 = vmatpush1.msra.mxu0 %v495
    %2684 = vmatprep.subr.mxu0 %v498
    %2685 = vmatpush1.msra.mxu0 %v497
    %2686 = vmatprep.subr.mxu0 %v500
    %2687 = vmatpush1.msra.mxu0 %v499
    %2688 = vmatprep.subr.mxu0 %v502
    %2689 = vmatpush1.msra.mxu0 %v501
    %2690 = vmatprep.subr.mxu0 %v504
    %2691 = vmatpush1.msra.mxu0 %v503
    %2692 = vmatprep.subr.mxu0 %v506
    %2693 = vmatpush1.msra.mxu0 %v505
    %2694 = vmatprep.subr.mxu0 %v508
    %2695 = vmatpush1.msra.mxu0 %v507
    %2696 = vmatprep.subr.mxu0 %v510
    %2697 = vmatpush1.msra.mxu0 %v509
    %2698 = vmatprep.subr.mxu0 %v512
    %2699 = vmatpush1.msra.mxu0 %v511
    %2700 = vmatprep.subr.mxu0 %v514
    %2701 = vmatpush1.msra.mxu0 %v513
    %2702 = vmatprep.subr.mxu0 %v516
    %2703 = vmatpush1.msra.mxu0 %v515
    %2704 = vmatprep.subr.mxu0 %v518
    %2705 = vmatpush1.msra.mxu0 %v517
    %2706 = vmatprep.subr.mxu0 %v520
    %2707 = vmatpush1.msra.mxu0 %v519
    %2708 = vmatprep.subr.mxu0 %v522
    %2709 = vmatpush1.msra.mxu0 %v521
    %2710 = vmatprep.subr.mxu0 %v524
    %2711 = vmatpush1.msra.mxu0 %v523
    %2712 = vmatprep.subr.mxu0 %v526
    %2713 = vmatpush1.msra.mxu0 %v525
    %2714 = vmatprep.subr.mxu0 %v528
    %2715 = vmatpush1.msra.mxu0 %v527
    %2716 = vmatprep.subr.mxu0 %v530
    %2717 = vmatpush1.msra.mxu0 %v529
    %2718 = vmatprep.subr.mxu0 %v532
    %2719 = vmatpush1.msra.mxu0 %v531
    %2720 = vmatprep.subr.mxu0 %v534
    %2721 = vmatpush1.msra.mxu0 %v533
    %2722 = vmatprep.subr.mxu0 %v536
    %2723 = vmatpush1.msra.mxu0 %v535
    %2724 = vmatprep.subr.mxu0 %v538
    %2725 = vmatpush1.msra.mxu0 %v537
    %2726 = vmatprep.subr.mxu0 %v540
    %2727 = vmatpush1.msra.mxu0 %v539
    %2728 = vmatprep.subr.mxu0 %v542
    %2729 = vmatpush1.msra.mxu0 %v541
    %2730 = vmatprep.subr.mxu0 %v544
    %2731 = vmatpush1.msra.mxu0 %v543
    %2732 = vmatprep.mubr.f32.mxu0 %v2103
    %2733 = vmatmul.mubr.f32.gmra.mrb[0].mxu0 %v2101
    %v2734 = vpop.f32.mrb[0].mxu0
    %v2735 = vadd.f32 %v2664, %v2734
    %v2736 = vpop.f32.mrb[0].mxu0
    %v2737 = vadd.f32 %v2666, %v2736
    %2738 = vdwg.mxu0
    %2739 = vmatprep.subr.mxu0 %v546
    %2740 = vmatpush1.msra.mxu0 %v545
    %2741 = vmatprep.subr.mxu0 %v548
    %2742 = vmatpush1.msra.mxu0 %v547
    %2743 = vmatprep.subr.mxu0 %v550
    %2744 = vmatpush1.msra.mxu0 %v549
    %2745 = vmatprep.subr.mxu0 %v552
    %2746 = vmatpush1.msra.mxu0 %v551
    %2747 = vmatprep.subr.mxu0 %v554
    %2748 = vmatpush1.msra.mxu0 %v553
    %2749 = vmatprep.subr.mxu0 %v556
    %2750 = vmatpush1.msra.mxu0 %v555
    %2751 = vmatprep.subr.mxu0 %v558
    %2752 = vmatpush1.msra.mxu0 %v557
    %2753 = vmatprep.subr.mxu0 %v560
    %2754 = vmatpush1.msra.mxu0 %v559
    %2755 = vmatprep.subr.mxu0 %v562
    %2756 = vmatpush1.msra.mxu0 %v561
    %2757 = vmatprep.subr.mxu0 %v564
    %2758 = vmatpush1.msra.mxu0 %v563
    %2759 = vmatprep.subr.mxu0 %v566
    %2760 = vmatpush1.msra.mxu0 %v565
    %2761 = vmatprep.subr.mxu0 %v568
    %2762 = vmatpush1.msra.mxu0 %v567
    %2763 = vmatprep.subr.mxu0 %v570
    %2764 = vmatpush1.msra.mxu0 %v569
    %2765 = vmatprep.subr.mxu0 %v572
    %2766 = vmatpush1.msra.mxu0 %v571
    %2767 = vmatprep.subr.mxu0 %v574
    %2768 = vmatpush1.msra.mxu0 %v573
    %2769 = vmatprep.subr.mxu0 %v576
    %2770 = vmatpush1.msra.mxu0 %v575
    %2771 = vmatprep.subr.mxu0 %v578
    %2772 = vmatpush1.msra.mxu0 %v577
    %2773 = vmatprep.subr.mxu0 %v580
    %2774 = vmatpush1.msra.mxu0 %v579
    %2775 = vmatprep.subr.mxu0 %v582
    %2776 = vmatpush1.msra.mxu0 %v581
    %2777 = vmatprep.subr.mxu0 %v584
    %2778 = vmatpush1.msra.mxu0 %v583
    %2779 = vmatprep.subr.mxu0 %v586
    %2780 = vmatpush1.msra.mxu0 %v585
    %2781 = vmatprep.subr.mxu0 %v588
    %2782 = vmatpush1.msra.mxu0 %v587
    %2783 = vmatprep.subr.mxu0 %v590
    %2784 = vmatpush1.msra.mxu0 %v589
    %2785 = vmatprep.subr.mxu0 %v592
    %2786 = vmatpush1.msra.mxu0 %v591
    %2787 = vmatprep.subr.mxu0 %v594
    %2788 = vmatpush1.msra.mxu0 %v593
    %2789 = vmatprep.subr.mxu0 %v596
    %2790 = vmatpush1.msra.mxu0 %v595
    %2791 = vmatprep.subr.mxu0 %v598
    %2792 = vmatpush1.msra.mxu0 %v597
    %2793 = vmatprep.subr.mxu0 %v600
    %2794 = vmatpush1.msra.mxu0 %v599
    %2795 = vmatprep.subr.mxu0 %v602
    %2796 = vmatpush1.msra.mxu0 %v601
    %2797 = vmatprep.subr.mxu0 %v604
    %2798 = vmatpush1.msra.mxu0 %v603
    %2799 = vmatprep.subr.mxu0 %v606
    %2800 = vmatpush1.msra.mxu0 %v605
    %2801 = vmatprep.subr.mxu0 %v608
    %2802 = vmatpush1.msra.mxu0 %v607
    %2803 = vmatprep.mubr.f32.mxu0 %v2119
    %2804 = vmatmul.mubr.f32.gmra.mrb[0].mxu0 %v2111
    %v2805 = vpop.f32.mrb[0].mxu0
    %v2806 = vadd.f32 %v2735, %v2805
    %v2807 = vpop.f32.mrb[0].mxu0
    %v2808 = vadd.f32 %v2737, %v2807
    %2809 = vdwg.mxu0
    %2810 = vmatprep.subr.mxu0 %v610
    %2811 = vmatpush1.msra.mxu0 %v609
    %2812 = vmatprep.subr.mxu0 %v612
    %2813 = vmatpush1.msra.mxu0 %v611
    %2814 = vmatprep.subr.mxu0 %v614
    %2815 = vmatpush1.msra.mxu0 %v613
    %2816 = vmatprep.subr.mxu0 %v616
    %2817 = vmatpush1.msra.mxu0 %v615
    %2818 = vmatprep.subr.mxu0 %v618
    %2819 = vmatpush1.msra.mxu0 %v617
    %2820 = vmatprep.subr.mxu0 %v620
    %2821 = vmatpush1.msra.mxu0 %v619
    %2822 = vmatprep.subr.mxu0 %v622
    %2823 = vmatpush1.msra.mxu0 %v621
    %2824 = vmatprep.subr.mxu0 %v624
    %2825 = vmatpush1.msra.mxu0 %v623
    %2826 = vmatprep.subr.mxu0 %v626
    %2827 = vmatpush1.msra.mxu0 %v625
    %2828 = vmatprep.subr.mxu0 %v628
    %2829 = vmatpush1.msra.mxu0 %v627
    %2830 = vmatprep.subr.mxu0 %v630
    %2831 = vmatpush1.msra.mxu0 %v629
    %2832 = vmatprep.subr.mxu0 %v632
    %2833 = vmatpush1.msra.mxu0 %v631
    %2834 = vmatprep.subr.mxu0 %v634
    %2835 = vmatpush1.msra.mxu0 %v633
    %2836 = vmatprep.subr.mxu0 %v636
    %2837 = vmatpush1.msra.mxu0 %v635
    %2838 = vmatprep.subr.mxu0 %v638
    %2839 = vmatpush1.msra.mxu0 %v637
    %2840 = vmatprep.subr.mxu0 %v640
    %2841 = vmatpush1.msra.mxu0 %v639
    %2842 = vmatprep.subr.mxu0 %v642
    %2843 = vmatpush1.msra.mxu0 %v641
    %2844 = vmatprep.subr.mxu0 %v644
    %2845 = vmatpush1.msra.mxu0 %v643
    %2846 = vmatprep.subr.mxu0 %v646
    %2847 = vmatpush1.msra.mxu0 %v645
    %2848 = vmatprep.subr.mxu0 %v648
    %2849 = vmatpush1.msra.mxu0 %v647
    %2850 = vmatprep.subr.mxu0 %v650
    %2851 = vmatpush1.msra.mxu0 %v649
    %2852 = vmatprep.subr.mxu0 %v652
    %2853 = vmatpush1.msra.mxu0 %v651
    %2854 = vmatprep.subr.mxu0 %v654
    %2855 = vmatpush1.msra.mxu0 %v653
    %2856 = vmatprep.subr.mxu0 %v656
    %2857 = vmatpush1.msra.mxu0 %v655
    %2858 = vmatprep.subr.mxu0 %v658
    %2859 = vmatpush1.msra.mxu0 %v657
    %2860 = vmatprep.subr.mxu0 %v660
    %2861 = vmatpush1.msra.mxu0 %v659
    %2862 = vmatprep.subr.mxu0 %v662
    %2863 = vmatpush1.msra.mxu0 %v661
    %2864 = vmatprep.subr.mxu0 %v664
    %2865 = vmatpush1.msra.mxu0 %v663
    %2866 = vmatprep.subr.mxu0 %v666
    %2867 = vmatpush1.msra.mxu0 %v665
    %2868 = vmatprep.subr.mxu0 %v668
    %2869 = vmatpush1.msra.mxu0 %v667
    %2870 = vmatprep.subr.mxu0 %v670
    %2871 = vmatpush1.msra.mxu0 %v669
    %2872 = vmatprep.subr.mxu0 %v672
    %2873 = vmatpush1.msra.mxu0 %v671
    %2874 = vmatprep.mubr.f32.mxu0 %v2120
    %2875 = vmatmul.mubr.f32.gmra.mrb[0].mxu0 %v2118
    %v2876 = vpop.f32.mrb[0].mxu0
    %v2877 = vadd.f32 %v2806, %v2876
    %v2878 = vpop.f32.mrb[0].mxu0
    %v2879 = vadd.f32 %v2808, %v2878
    %2880 = vdwg.mxu0
    %2881 = vmatprep.subr.mxu0 %v674
    %2882 = vmatpush1.msra.mxu0 %v673
    %2883 = vmatprep.subr.mxu0 %v676
    %2884 = vmatpush1.msra.mxu0 %v675
    %2885 = vmatprep.subr.mxu0 %v678
    %2886 = vmatpush1.msra.mxu0 %v677
    %2887 = vmatprep.subr.mxu0 %v680
    %2888 = vmatpush1.msra.mxu0 %v679
    %2889 = vmatprep.subr.mxu0 %v682
    %2890 = vmatpush1.msra.mxu0 %v681
    %2891 = vmatprep.subr.mxu0 %v684
    %2892 = vmatpush1.msra.mxu0 %v683
    %2893 = vmatprep.subr.mxu0 %v686
    %2894 = vmatpush1.msra.mxu0 %v685
    %2895 = vmatprep.subr.mxu0 %v688
    %2896 = vmatpush1.msra.mxu0 %v687
    %2897 = vmatprep.subr.mxu0 %v690
    %2898 = vmatpush1.msra.mxu0 %v689
    %2899 = vmatprep.subr.mxu0 %v692
    %2900 = vmatpush1.msra.mxu0 %v691
    %2901 = vmatprep.subr.mxu0 %v694
    %2902 = vmatpush1.msra.mxu0 %v693
    %2903 = vmatprep.subr.mxu0 %v696
    %2904 = vmatpush1.msra.mxu0 %v695
    %2905 = vmatprep.subr.mxu0 %v698
    %2906 = vmatpush1.msra.mxu0 %v697
    %2907 = vmatprep.subr.mxu0 %v700
    %2908 = vmatpush1.msra.mxu0 %v699
    %2909 = vmatprep.subr.mxu0 %v702
    %2910 = vmatpush1.msra.mxu0 %v701
    %2911 = vmatprep.subr.mxu0 %v704
    %2912 = vmatpush1.msra.mxu0 %v703
    %2913 = vmatprep.subr.mxu0 %v706
    %2914 = vmatpush1.msra.mxu0 %v705
    %2915 = vmatprep.subr.mxu0 %v708
    %2916 = vmatpush1.msra.mxu0 %v707
    %2917 = vmatprep.subr.mxu0 %v710
    %2918 = vmatpush1.msra.mxu0 %v709
    %2919 = vmatprep.subr.mxu0 %v712
    %2920 = vmatpush1.msra.mxu0 %v711
    %2921 = vmatprep.subr.mxu0 %v714
    %2922 = vmatpush1.msra.mxu0 %v713
    %2923 = vmatprep.subr.mxu0 %v716
    %2924 = vmatpush1.msra.mxu0 %v715
    %2925 = vmatprep.subr.mxu0 %v718
    %2926 = vmatpush1.msra.mxu0 %v717
    %2927 = vmatprep.subr.mxu0 %v720
    %2928 = vmatpush1.msra.mxu0 %v719
    %2929 = vmatprep.subr.mxu0 %v722
    %2930 = vmatpush1.msra.mxu0 %v721
    %2931 = vmatprep.subr.mxu0 %v724
    %2932 = vmatpush1.msra.mxu0 %v723
    %2933 = vmatprep.subr.mxu0 %v726
    %2934 = vmatpush1.msra.mxu0 %v725
    %2935 = vmatprep.subr.mxu0 %v728
    %2936 = vmatpush1.msra.mxu0 %v727
    %2937 = vmatprep.subr.mxu0 %v730
    %2938 = vmatpush1.msra.mxu0 %v729
    %2939 = vmatprep.subr.mxu0 %v732
    %2940 = vmatpush1.msra.mxu0 %v731
    %2941 = vmatprep.subr.mxu0 %v734
    %2942 = vmatpush1.msra.mxu0 %v733
    %2943 = vmatprep.subr.mxu0 %v736
    %2944 = vmatpush1.msra.mxu0 %v735
    %2945 = vmatprep.mubr.f32.mxu0 %v2136
    %2946 = vmatmul.mubr.f32.gmra.mrb[0].mxu0 %v2128
    %v2947 = vpop.f32.mrb[0].mxu0
    %v2948 = vadd.f32 %v2877, %v2947
    %v2949 = vpop.f32.mrb[0].mxu0
    %v2950 = vadd.f32 %v2879, %v2949
    %2951 = vdwg.mxu0
    %2952 = vmatprep.subr.mxu0 %v738
    %2953 = vmatpush1.msra.mxu0 %v737
    %2954 = vmatprep.subr.mxu0 %v740
    %2955 = vmatpush1.msra.mxu0 %v739
    %2956 = vmatprep.subr.mxu0 %v742
    %2957 = vmatpush1.msra.mxu0 %v741
    %2958 = vmatprep.subr.mxu0 %v744
    %2959 = vmatpush1.msra.mxu0 %v743
    %2960 = vmatprep.subr.mxu0 %v746
    %2961 = vmatpush1.msra.mxu0 %v745
    %2962 = vmatprep.subr.mxu0 %v748
    %2963 = vmatpush1.msra.mxu0 %v747
    %2964 = vmatprep.subr.mxu0 %v750
    %2965 = vmatpush1.msra.mxu0 %v749
    %2966 = vmatprep.subr.mxu0 %v752
    %2967 = vmatpush1.msra.mxu0 %v751
    %2968 = vmatprep.subr.mxu0 %v754
    %2969 = vmatpush1.msra.mxu0 %v753
    %2970 = vmatprep.subr.mxu0 %v756
    %2971 = vmatpush1.msra.mxu0 %v755
    %2972 = vmatprep.subr.mxu0 %v758
    %2973 = vmatpush1.msra.mxu0 %v757
    %2974 = vmatprep.subr.mxu0 %v760
    %2975 = vmatpush1.msra.mxu0 %v759
    %2976 = vmatprep.subr.mxu0 %v762
    %2977 = vmatpush1.msra.mxu0 %v761
    %2978 = vmatprep.subr.mxu0 %v764
    %2979 = vmatpush1.msra.mxu0 %v763
    %2980 = vmatprep.subr.mxu0 %v766
    %2981 = vmatpush1.msra.mxu0 %v765
    %2982 = vmatprep.subr.mxu0 %v768
    %2983 = vmatpush1.msra.mxu0 %v767
    %2984 = vmatprep.subr.mxu0 %v770
    %2985 = vmatpush1.msra.mxu0 %v769
    %2986 = vmatprep.subr.mxu0 %v772
    %2987 = vmatpush1.msra.mxu0 %v771
    %2988 = vmatprep.subr.mxu0 %v774
    %2989 = vmatpush1.msra.mxu0 %v773
    %2990 = vmatprep.subr.mxu0 %v776
    %2991 = vmatpush1.msra.mxu0 %v775
    %2992 = vmatprep.subr.mxu0 %v778
    %2993 = vmatpush1.msra.mxu0 %v777
    %2994 = vmatprep.subr.mxu0 %v780
    %2995 = vmatpush1.msra.mxu0 %v779
    %2996 = vmatprep.subr.mxu0 %v782
    %2997 = vmatpush1.msra.mxu0 %v781
    %2998 = vmatprep.subr.mxu0 %v784
    %2999 = vmatpush1.msra.mxu0 %v783
    %3000 = vmatprep.subr.mxu0 %v786
    %3001 = vmatpush1.msra.mxu0 %v785
    %3002 = vmatprep.subr.mxu0 %v788
    %3003 = vmatpush1.msra.mxu0 %v787
    %3004 = vmatprep.subr.mxu0 %v790
    %3005 = vmatpush1.msra.mxu0 %v789
    %3006 = vmatprep.subr.mxu0 %v792
    %3007 = vmatpush1.msra.mxu0 %v791
    %3008 = vmatprep.subr.mxu0 %v794
    %3009 = vmatpush1.msra.mxu0 %v793
    %3010 = vmatprep.subr.mxu0 %v796
    %3011 = vmatpush1.msra.mxu0 %v795
    %3012 = vmatprep.subr.mxu0 %v798
    %3013 = vmatpush1.msra.mxu0 %v797
    %3014 = vmatprep.subr.mxu0 %v800
    %3015 = vmatpush1.msra.mxu0 %v799
    %3016 = vmatprep.mubr.f32.mxu0 %v2137
    %3017 = vmatmul.mubr.f32.gmra.mrb[0].mxu0 %v2135
    %v3018 = vpop.f32.mrb[0].mxu0
    %v3019 = vadd.f32 %v2948, %v3018
    %v3020 = vpop.f32.mrb[0].mxu0
    %v3021 = vadd.f32 %v2950, %v3020
    %3022 = vdwg.mxu0
    %3023 = vmatprep.subr.mxu0 %v802
    %3024 = vmatpush1.msra.mxu0 %v801
    %3025 = vmatprep.subr.mxu0 %v804
    %3026 = vmatpush1.msra.mxu0 %v803
    %3027 = vmatprep.subr.mxu0 %v806
    %3028 = vmatpush1.msra.mxu0 %v805
    %3029 = vmatprep.subr.mxu0 %v808
    %3030 = vmatpush1.msra.mxu0 %v807
    %3031 = vmatprep.subr.mxu0 %v810
    %3032 = vmatpush1.msra.mxu0 %v809
    %3033 = vmatprep.subr.mxu0 %v812
    %3034 = vmatpush1.msra.mxu0 %v811
    %3035 = vmatprep.subr.mxu0 %v814
    %3036 = vmatpush1.msra.mxu0 %v813
    %3037 = vmatprep.subr.mxu0 %v816
    %3038 = vmatpush1.msra.mxu0 %v815
    %3039 = vmatprep.subr.mxu0 0.0
    %3040 = vmatpush1.msra.mxu0 0.0
    %3041 = vmatprep.subr.mxu0 0.0
    %3042 = vmatpush1.msra.mxu0 0.0
    %3043 = vmatprep.subr.mxu0 0.0
    %3044 = vmatpush1.msra.mxu0 0.0
    %3045 = vmatprep.subr.mxu0 0.0
    %3046 = vmatpush1.msra.mxu0 0.0
    %3047 = vmatprep.subr.mxu0 0.0
    %3048 = vmatpush1.msra.mxu0 0.0
    %3049 = vmatprep.subr.mxu0 0.0
    %3050 = vmatpush1.msra.mxu0 0.0
    %3051 = vmatprep.subr.mxu0 0.0
    %3052 = vmatpush1.msra.mxu0 0.0
    %3053 = vmatprep.subr.mxu0 0.0
    %3054 = vmatpush1.msra.mxu0 0.0
    %3055 = vmatprep.subr.mxu0 0.0
    %3056 = vmatpush1.msra.mxu0 0.0
    %3057 = vmatprep.subr.mxu0 0.0
    %3058 = vmatpush1.msra.mxu0 0.0
    %3059 = vmatprep.subr.mxu0 0.0
    %3060 = vmatpush1.msra.mxu0 0.0
    %3061 = vmatprep.subr.mxu0 0.0
    %3062 = vmatpush1.msra.mxu0 0.0
    %3063 = vmatprep.subr.mxu0 0.0
    %3064 = vmatpush1.msra.mxu0 0.0
    %3065 = vmatprep.subr.mxu0 0.0
    %3066 = vmatpush1.msra.mxu0 0.0
    %3067 = vmatprep.subr.mxu0 0.0
    %3068 = vmatpush1.msra.mxu0 0.0
    %3069 = vmatprep.subr.mxu0 0.0
    %3070 = vmatpush1.msra.mxu0 0.0
    %3071 = vmatprep.subr.mxu0 0.0
    %3072 = vmatpush1.msra.mxu0 0.0
    %3073 = vmatprep.subr.mxu0 0.0
    %3074 = vmatpush1.msra.mxu0 0.0
    %3075 = vmatprep.subr.mxu0 0.0
    %3076 = vmatpush1.msra.mxu0 0.0
    %3077 = vmatprep.subr.mxu0 0.0
    %3078 = vmatpush1.msra.mxu0 0.0
    %3079 = vmatprep.subr.mxu0 0.0
    %3080 = vmatpush1.msra.mxu0 0.0
    %3081 = vmatprep.subr.mxu0 0.0
    %3082 = vmatpush1.msra.mxu0 0.0
    %3083 = vmatprep.subr.mxu0 0.0
    %3084 = vmatpush1.msra.mxu0 0.0
    %3085 = vmatprep.subr.mxu0 0.0
    %3086 = vmatpush1.msra.mxu0 0.0
    %3087 = vmatprep.mubr.f32.mxu0 0.0
    %3088 = vmatmul.mubr.f32.gmra.mrb[0].mxu0 %v2169
    %v3089 = vpop.f32.mrb[0].mxu0
    %v3090 = vadd.f32 %v3019, %v3089
    %v3091 = vpop.f32.mrb[0].mxu0
    %v3092 = vadd.f32 %v3021, %v3091
    %3093 = vdwg.mxu0
    %v3094 = vmax.f32 %v3090, 0.0
    %v3095 = vmax.f32 %v3092, 0.0
    %3096 = vmatprep.subr.mxu0 0.0
    %3097 = vmatpush1.msra.mxu0 %v818
    %3098 = vmatprep.subr.mxu0 0.0
    %3099 = vmatpush1.msra.mxu0 %v819
    %3100 = vmatprep.subr.mxu0 0.0
    %3101 = vmatpush1.msra.mxu0 %v820
    %3102 = vmatprep.subr.mxu0 0.0
    %3103 = vmatpush1.msra.mxu0 %v821
    %3104 = vmatprep.subr.mxu0 0.0
    %3105 = vmatpush1.msra.mxu0 %v822
    %3106 = vmatprep.subr.mxu0 0.0
    %3107 = vmatpush1.msra.mxu0 %v823
    %3108 = vmatprep.subr.mxu0 0.0
    %3109 = vmatpush1.msra.mxu0 %v824
    %3110 = vmatprep.subr.mxu0 0.0
    %3111 = vmatpush1.msra.mxu0 %v825
    %3112 = vmatprep.subr.mxu0 0.0
    %3113 = vmatpush1.msra.mxu0 %v826
    %3114 = vmatprep.subr.mxu0 0.0
    %3115 = vmatpush1.msra.mxu0 %v827
    %3116 = vmatprep.subr.mxu0 0.0
    %3117 = vmatpush1.msra.mxu0 %v828
    %3118 = vmatprep.subr.mxu0 0.0
    %3119 = vmatpush1.msra.mxu0 %v829
    %3120 = vmatprep.subr.mxu0 0.0
    %3121 = vmatpush1.msra.mxu0 %v830
    %3122 = vmatprep.subr.mxu0 0.0
    %3123 = vmatpush1.msra.mxu0 %v831
    %3124 = vmatprep.subr.mxu0 0.0
    %3125 = vmatpush1.msra.mxu0 %v832
    %3126 = vmatprep.subr.mxu0 0.0
    %3127 = vmatpush1.msra.mxu0 %v833
    %3128 = vmatprep.subr.mxu0 0.0
    %3129 = vmatpush1.msra.mxu0 %v834
    %3130 = vmatprep.subr.mxu0 0.0
    %3131 = vmatpush1.msra.mxu0 %v835
    %3132 = vmatprep.subr.mxu0 0.0
    %3133 = vmatpush1.msra.mxu0 %v836
    %3134 = vmatprep.subr.mxu0 0.0
    %3135 = vmatpush1.msra.mxu0 %v837
    %3136 = vmatprep.subr.mxu0 0.0
    %3137 = vmatpush1.msra.mxu0 %v838
    %3138 = vmatprep.subr.mxu0 0.0
    %3139 = vmatpush1.msra.mxu0 %v839
    %3140 = vmatprep.subr.mxu0 0.0
    %3141 = vmatpush1.msra.mxu0 %v840
    %3142 = vmatprep.subr.mxu0 0.0
    %3143 = vmatpush1.msra.mxu0 %v841
    %3144 = vmatprep.subr.mxu0 0.0
    %3145 = vmatpush1.msra.mxu0 %v842
    %3146 = vmatprep.subr.mxu0 0.0
    %3147 = vmatpush1.msra.mxu0 %v843
    %3148 = vmatprep.subr.mxu0 0.0
    %3149 = vmatpush1.msra.mxu0 %v844
    %3150 = vmatprep.subr.mxu0 0.0
    %3151 = vmatpush1.msra.mxu0 %v845
    %3152 = vmatprep.subr.mxu0 0.0
    %3153 = vmatpush1.msra.mxu0 %v846
    %3154 = vmatprep.subr.mxu0 0.0
    %3155 = vmatpush1.msra.mxu0 %v847
    %3156 = vmatprep.subr.mxu0 0.0
    %3157 = vmatpush1.msra.mxu0 %v848
    %3158 = vmatprep.subr.mxu0 0.0
    %3159 = vmatpush1.msra.mxu0 %v849
    %3160 = vmatprep.mubr.f32.mxu0 %v3095
    %3161 = vmatmul.mubr.f32.gmra.mrb[0].mxu0 %v3094
    %v3162 = vpop.f32.mrb[0].mxu0
    %v3163 = vadd.f32 %v1941, %v3162
    %v3164 = vpop.f32.mrb[0].mxu0
    %3165 = vdwg.mxu0
    %v3166 = vmul.f32 %v3163, 0.5
    %v3167 = vmul.f32 %v3163, 0.044715
    %v3168 = vmul.f32 %v3167, %v3163
    %v3169 = vmul.f32 %v3168, %v3163
    %v3170 = vadd.f32 %v3163, %v3169
    %v3171 = vmul.f32 %v3170, 0.7978846
    %v3172 = vtanh.pop %v3171
    %v3173 = vadd.f32 %v3172, 1.0
    %v3174 = vmul.f32 %v3166, %v3173
    %v3175 = vld [vmem:[%s6] sm:$0xff]
    %v3176 = vld [vmem:[%s6 + $0x8] sm:$0x3]
    %v3177 = vld [vmem:[%s7] sm:$0xff]
    %v3178 = vld [vmem:[%s7 + $0x8] sm:$0x3]
    %vm3179 = vcmask 80896
    %v3181 = vsel %vm3179, %v3174, 0
    %vm3183 = vcmask 1041408
    %v3185 = vsel %vm3183, %v3178, 0
    %3187 = vmatprep.subr.mxu0 0.0
    %3188 = vmatpush1.msra.mxu0 %v3177
    %3189 = vmatprep.subr.mxu0 0.0
    %3190 = vmatpush1.msra.mxu0 %v3185
    %3191 = vmatprep.subr.mxu0 0.0
    %3192 = vmatpush1.msra.mxu0 0.0
    %3193 = vmatprep.subr.mxu0 0.0
    %3194 = vmatpush1.msra.mxu0 0.0
    %3195 = vmatprep.subr.mxu0 0.0
    %3196 = vmatpush1.msra.mxu0 0.0
    %3197 = vmatprep.subr.mxu0 0.0
    %3198 = vmatpush1.msra.mxu0 0.0
    %3199 = vmatprep.subr.mxu0 0.0
    %3200 = vmatpush1.msra.mxu0 0.0
    %3201 = vmatprep.subr.mxu0 0.0
    %3202 = vmatpush1.msra.mxu0 0.0
    %3203 = vmatprep.subr.mxu0 0.0
    %3204 = vmatpush1.msra.mxu0 0.0
    %3205 = vmatprep.subr.mxu0 0.0
    %3206 = vmatpush1.msra.mxu0 0.0
    %3207 = vmatprep.subr.mxu0 0.0
    %3208 = vmatpush1.msra.mxu0 0.0
    %3209 = vmatprep.subr.mxu0 0.0
    %3210 = vmatpush1.msra.mxu0 0.0
    %3211 = vmatprep.subr.mxu0 0.0
    %3212 = vmatpush1.msra.mxu0 0.0
    %3213 = vmatprep.subr.mxu0 0.0
    %3214 = vmatpush1.msra.mxu0 0.0
    %3215 = vmatprep.subr.mxu0 0.0
    %3216 = vmatpush1.msra.mxu0 0.0
    %3217 = vmatprep.subr.mxu0 0.0
    %3218 = vmatpush1.msra.mxu0 0.0
    %3219 = vmatprep.subr.mxu0 0.0
    %3220 = vmatpush1.msra.mxu0 0.0
    %3221 = vmatprep.subr.mxu0 0.0
    %3222 = vmatpush1.msra.mxu0 0.0
    %3223 = vmatprep.subr.mxu0 0.0
    %3224 = vmatpush1.msra.mxu0 0.0
    %3225 = vmatprep.subr.mxu0 0.0
    %3226 = vmatpush1.msra.mxu0 0.0
    %3227 = vmatprep.subr.mxu0 0.0
    %3228 = vmatpush1.msra.mxu0 0.0
    %3229 = vmatprep.subr.mxu0 0.0
    %3230 = vmatpush1.msra.mxu0 0.0
    %3231 = vmatprep.subr.mxu0 0.0
    %3232 = vmatpush1.msra.mxu0 0.0
    %3233 = vmatprep.subr.mxu0 0.0
    %3234 = vmatpush1.msra.mxu0 0.0
    %3235 = vmatprep.subr.mxu0 0.0
    %3236 = vmatpush1.msra.mxu0 0.0
    %3237 = vmatprep.subr.mxu0 0.0
    %3238 = vmatpush1.msra.mxu0 0.0
    %3239 = vmatprep.subr.mxu0 0.0
    %3240 = vmatpush1.msra.mxu0 0.0
    %3241 = vmatprep.subr.mxu0 0.0
    %3242 = vmatpush1.msra.mxu0 0.0
    %3243 = vmatprep.subr.mxu0 0.0
    %3244 = vmatpush1.msra.mxu0 0.0
    %3245 = vmatprep.subr.mxu0 0.0
    %3246 = vmatpush1.msra.mxu0 0.0
    %3247 = vmatprep.subr.mxu0 0.0
    %3248 = vmatpush1.msra.mxu0 0.0
    %3249 = vmatprep.subr.mxu0 0.0
    %3250 = vmatpush1.msra.mxu0 0.0
    %3251 = vmatprep.mubr.f32.mxu0 0.0
    %3252 = vmatmul.mubr.f32.gmra.mrb[0].mxu0 %v3181
    %v3253 = vpop.f32.mrb[0].mxu0
    %v3254 = vadd.f32 0.0, %v3253
    %v3255 = vpop.f32.mrb[0].mxu0
    %3256 = vdwg.mxu0
    %v3258 = vsel %vm3179, %v2021, 0
    %v3261 = vsel %vm3183, %v3176, 0
    %3263 = vmatprep.subr.mxu0 0.0
    %3264 = vmatpush1.msra.mxu0 %v3175
    %3265 = vmatprep.subr.mxu0 0.0
    %3266 = vmatpush1.msra.mxu0 %v3261
    %3267 = vmatprep.subr.mxu0 0.0
    %3268 = vmatpush1.msra.mxu0 0.0
    %3269 = vmatprep.subr.mxu0 0.0
    %3270 = vmatpush1.msra.mxu0 0.0
    %3271 = vmatprep.subr.mxu0 0.0
    %3272 = vmatpush1.msra.mxu0 0.0
    %3273 = vmatprep.subr.mxu0 0.0
    %3274 = vmatpush1.msra.mxu0 0.0
    %3275 = vmatprep.subr.mxu0 0.0
    %3276 = vmatpush1.msra.mxu0 0.0
    %3277 = vmatprep.subr.mxu0 0.0
    %3278 = vmatpush1.msra.mxu0 0.0
    %3279 = vmatprep.subr.mxu0 0.0
    %3280 = vmatpush1.msra.mxu0 0.0
    %3281 = vmatprep.subr.mxu0 0.0
    %3282 = vmatpush1.msra.mxu0 0.0
    %3283 = vmatprep.subr.mxu0 0.0
    %3284 = vmatpush1.msra.mxu0 0.0
    %3285 = vmatprep.subr.mxu0 0.0
    %3286 = vmatpush1.msra.mxu0 0.0
    %3287 = vmatprep.subr.mxu0 0.0
    %3288 = vmatpush1.msra.mxu0 0.0
    %3289 = vmatprep.subr.mxu0 0.0
    %3290 = vmatpush1.msra.mxu0 0.0
    %3291 = vmatprep.subr.mxu0 0.0
    %3292 = vmatpush1.msra.mxu0 0.0
    %3293 = vmatprep.subr.mxu0 0.0
    %3294 = vmatpush1.msra.mxu0 0.0
    %3295 = vmatprep.subr.mxu0 0.0
    %3296 = vmatpush1.msra.mxu0 0.0
    %3297 = vmatprep.subr.mxu0 0.0
    %3298 = vmatpush1.msra.mxu0 0.0
    %3299 = vmatprep.subr.mxu0 0.0
    %3300 = vmatpush1.msra.mxu0 0.0
    %3301 = vmatprep.subr.mxu0 0.0
    %3302 = vmatpush1.msra.mxu0 0.0
    %3303 = vmatprep.subr.mxu0 0.0
    %3304 = vmatpush1.msra.mxu0 0.0
    %3305 = vmatprep.subr.mxu0 0.0
    %3306 = vmatpush1.msra.mxu0 0.0
    %3307 = vmatprep.subr.mxu0 0.0
    %3308 = vmatpush1.msra.mxu0 0.0
    %3309 = vmatprep.subr.mxu0 0.0
    %3310 = vmatpush1.msra.mxu0 0.0
    %3311 = vmatprep.subr.mxu0 0.0
    %3312 = vmatpush1.msra.mxu0 0.0
    %3313 = vmatprep.subr.mxu0 0.0
    %3314 = vmatpush1.msra.mxu0 0.0
    %3315 = vmatprep.subr.mxu0 0.0
    %3316 = vmatpush1.msra.mxu0 0.0
    %3317 = vmatprep.subr.mxu0 0.0
    %3318 = vmatpush1.msra.mxu0 0.0
    %3319 = vmatprep.subr.mxu0 0.0
    %3320 = vmatpush1.msra.mxu0 0.0
    %3321 = vmatprep.subr.mxu0 0.0
    %3322 = vmatpush1.msra.mxu0 0.0
    %3323 = vmatprep.subr.mxu0 0.0
    %3324 = vmatpush1.msra.mxu0 0.0
    %3325 = vmatprep.subr.mxu0 0.0
    %3326 = vmatpush1.msra.mxu0 0.0
    %3327 = vmatprep.mubr.f32.mxu0 0.0
    %3328 = vmatmul.mubr.f32.gmra.mrb[0].mxu0 %v3258
    %v3329 = vpop.f32.mrb[0].mxu0
    %v3330 = vadd.f32 %v3254, %v3329
    %v3331 = vpop.f32.mrb[0].mxu0
    %3332 = vdwg.mxu0
    %v3333 = vld [vmem:[%s8] sm:$0x1]
    %v3335 = vlaneseq
    %v3336 = vshrl.u32 %v3335, 7
    %v3337 = vsub.s32 0, %v3336
    %v3338 = vrot.slane %v3333, %v3337
    %v3340 = vadd.f32 %v3330, %v3338
    %vm3341 = vcmask 148480
    %3342 = vst.msk [vmem:[#allocation2] sm:$0x3] %vm3341, %v3340
    // Predicated region
    $region38: #{digit_adder_forward.5} parent=1 // pred_check
      _
    $region39: #{digit_adder_forward.5} parent=1 // pred_check_branch
      %3344 = sbr.rel (0) target = $region41
    $region40: #{digit_adder_forward.5} parent=1 // pred_region
      %s3346 = ssub.s32 32, 32
      %3347 = vsyncadd [#allocation3], %s3346
      %s3349 = sshll.u32 [#allocation2], 4
      %s3350 = int_to_ptr.vmem [resolvable:$true] %s3349
      %3352 = dma.vmem_to_hbm [thread:$0]  %s3350, 32, %s9, [#allocation3]
    $region41: #{digit_adder_forward.5} parent=1 // pred_fallthru
      _
    // Predicated region
    $region42: #{digit_adder_forward.5} parent=1 // pred_check
      _
    $region43: #{digit_adder_forward.5} parent=1 // pred_check_branch
      %3354 = sbr.rel (0) target = $region45
    $region44: #{digit_adder_forward.5} parent=1 // pred_region
      %3355 = dma.done [#allocation3], 32
    $region45: #{digit_adder_forward.5} parent=1 // pred_fallthru
      _
    %3356 = vsyncpa [#allocation3], 1

</llo_original>
